<compile_context>
chip_gen: v6e
topology: v6e:2x2x1
jax: 0.10.0
libtpu: 0.0.40
codegen_flags: <defaults>
</compile_context>

<pallas_src>
import functools

import jax
import jax.numpy as jnp
from jax.experimental import pallas as pl
from jax.experimental.pallas import tpu as pltpu


def _round_up(x, m):
    return (x + m - 1) // m * m


# ----------------------------------------------------------------------------
# Batched GEMM Pallas kernel with fused pre-activation / bias / tanh epilogue.
#   A:(G,M,K) bf16   W:(G,K,N) bf16   bias:(G,1,N) f32  ->  out:(G,M,N) f32
# ----------------------------------------------------------------------------
def _gemm_kernel(a_ref, b_ref, bias_ref, o_ref, acc_ref, *, pre_act, post_act):
    k = pl.program_id(3)

    @pl.when(k == 0)
    def _():
        acc_ref[...] = jnp.zeros_like(acc_ref)

    a = a_ref[0, :, :]                               # (tm, tk) bf16
    if pre_act == "relu":
        a = jnp.maximum(a, 0)
    elif pre_act == "leaky_relu":
        a = jnp.where(a >= 0, a, a * 0.2)

    acc_ref[...] += jnp.dot(a, b_ref[0, :, :],
                            preferred_element_type=jnp.float32)

    @pl.when(k == pl.num_programs(3) - 1)
    def _():
        r = acc_ref[...] + bias_ref[0, :, :]         # (tm,tn)+(1,tn) f32
        if post_act == "tanh":
            r = jnp.tanh(r)
        o_ref[0, :, :] = r.astype(o_ref.dtype)


def _choose_tm(M):
    """Large M tiles (per-step overhead), but >=2 M-blocks so both v7x TCs work."""
    Mr = _round_up(M, 16)
    if Mr >= 2048:
        return 512
    if Mr >= 64:
        return min(512, _round_up((Mr + 1) // 2, 16))
    return Mr


def prep_gemm_params(w2, b):
    """Hoisted (init-time) weight/bias prep: reshape done by caller, here we
    pick K/N tiles, zero-pad to tile multiples and cast the weight to bf16."""
    G, K, N = w2.shape
    tk = min(512, _round_up(K, 128))
    tn = min(512, _round_up(N, 128))      # N axis collapses to 1 block for N<=512
    Kp, Np = _round_up(K, tk), _round_up(N, tn)
    wp = jnp.pad(w2, ((0, 0), (0, Kp - K), (0, Np - N))).astype(jnp.bfloat16)
    bp = jnp.tile(jnp.pad(b.astype(jnp.float32), (0, Np - N))[None, None, :],
                  (G, 1, 1))                                   # (G,1,Np) f32
    return {"wp": wp, "bp": bp, "K": K, "N": N, "tk": tk, "tn": tn}


def pallas_gemm(a, p, *, pre_act="none", post_act="none"):
    """out = post_act(pre_act(a) @ W + bias); a:(G,M,Kp) bf16, K pre-padded."""
    G, M, Ka = a.shape
    Kp, Np = p["wp"].shape[1], p["wp"].shape[2]
    assert Ka == Kp, "patches must be built K-padded to match the prepped weight"
    N, tk, tn = p["N"], p["tk"], p["tn"]
    tm = _choose_tm(M)
    Mp = _round_up(M, tm)
    if Mp != M:
        a = jnp.pad(a, ((0, 0), (0, Mp - M), (0, 0)))

    kernel = functools.partial(_gemm_kernel, pre_act=pre_act, post_act=post_act)
    out = pl.pallas_call(
        kernel,
        out_shape=jax.ShapeDtypeStruct((G, Mp, Np), jnp.float32),
        grid_spec=pltpu.PrefetchScalarGridSpec(
            num_scalar_prefetch=0,
            grid=(G, Mp // tm, Np // tn, Kp // tk),
            in_specs=[
                pl.BlockSpec((1, tm, tk), lambda g, i, j, k: (g, i, k)),
                pl.BlockSpec((1, tk, tn), lambda g, i, j, k: (g, k, j)),
                pl.BlockSpec((1, 1, tn), lambda g, i, j, k: (g, 0, j)),
            ],
            out_specs=pl.BlockSpec((1, tm, tn), lambda g, i, j, k: (g, i, j)),
            scratch_shapes=[pltpu.VMEM((tm, tn), jnp.float32)],
        ),
        compiler_params=pltpu.CompilerParams(
            dimension_semantics=("parallel", "parallel", "parallel", "arbitrary"),
            # Explicit budget (safe on v7x's 64 MiB physical VMEM); our largest
            # double-buffered tile set is well under 8 MiB.
            vmem_limit_bytes=32 * 1024 * 1024,
        ),
    )(a, p["wp"], p["bp"])
    if Mp != M or Np != N:
        out = out[:, :M, :N]
    return out


# ----------------------------------------------------------------------------
# Convolutions lowered onto the batched Pallas GEMM (NHWC).
# ----------------------------------------------------------------------------
def conv2d(x, p, *, stride, pad, pre_act="none", post_act="none"):
    """Standard conv; patches built in bf16, K-padding folded into the concat."""
    B, H, W, Cin = x.shape
    k, Cout = p["k"], p["N"]
    K, Kp = p["K"], p["wp"].shape[1]
    assert K == k * k * Cin
    Ho = (H + 2 * pad - k) // stride + 1
    Wo = (W + 2 * pad - k) // stride + 1
    xb = x.astype(jnp.bfloat16)
    if pad:
        xb = jnp.pad(xb, ((0, 0), (pad, pad), (pad, pad), (0, 0)))
    cols = []
    for kh in range(k):
        for kw in range(k):
            cols.append(xb[:, kh: kh + stride * (Ho - 1) + 1: stride,
                              kw: kw + stride * (Wo - 1) + 1: stride, :])
    if Kp > K:
        cols.append(jnp.zeros((B, Ho, Wo, Kp - K), jnp.bfloat16))
    a = jnp.concatenate(cols, axis=-1).reshape(1, B * Ho * Wo, Kp)
    out = pallas_gemm(a, p, pre_act=pre_act, post_act=post_act)
    return out.reshape(B, Ho, Wo, Cout)


def conv_transpose2d(x, p, *, pre_act="none", post_act="none"):
    """ConvTranspose2d(k=4, s=2, p=1) via sub-pixel decomposition:
    4 phase-specific effective-2x2 convs over the non-dilated input, run as one
    batched (G=4) Pallas GEMM, then interleaved into the 2x-upsampled output."""
    B, H, W, Cin = x.shape
    Cout = p["N"]
    K, Kp = p["K"], p["wp"].shape[1]
    assert K == 4 * Cin
    xb = jnp.pad(x.astype(jnp.bfloat16), ((0, 0), (1, 1), (1, 1), (0, 0)))
    phases = []
    for py in range(2):
        for px in range(2):
            taps = [xb[:, py + dr: py + dr + H, px + dc: px + dc + W, :]
                    for dr in range(2) for dc in range(2)]
            if Kp > K:
                taps.append(jnp.zeros((B, H, W, Kp - K), jnp.bfloat16))
            phases.append(jnp.concatenate(taps, axis=-1).reshape(B * H * W, Kp))
    a = jnp.stack(phases, axis=0)                               # (4, B*H*W, Kp)
    out = pallas_gemm(a, p, pre_act=pre_act, post_act=post_act)  # (4, M, Cout)
    # out[py*2+px, b*H*W + r*W + c] -> y[b, 2r+py, 2c+px]
    out = out.reshape(2, 2, B, H, W, Cout)
    out = jnp.transpose(out, (2, 3, 0, 4, 1, 5)).reshape(B, 2 * H, 2 * W, Cout)
    return out


def batchnorm(x, p, eps=1e-5):
    """Train-mode BatchNorm2d (batch statistics), NHWC."""
    mean = jnp.mean(x, axis=(0, 1, 2), keepdims=True)
    var = jnp.mean((x - mean) ** 2, axis=(0, 1, 2), keepdims=True)
    return (x - mean) / jnp.sqrt(var + eps) * p["gamma"] + p["beta"]


# ----------------------------------------------------------------------------
# Parameter init (deterministic, synthetic) — GEMM-ready (pre-padded / bf16).
# ----------------------------------------------------------------------------
def init_conv(key, k, cin, cout, use_bias):
    kw_, kb_ = jax.random.split(key)
    w = jax.random.normal(kw_, (k, k, cin, cout), jnp.float32) * 0.05
    if use_bias:
        b = jax.random.normal(kb_, (cout,), jnp.float32) * 0.05
    else:
        b = jnp.zeros((cout,), jnp.float32)
    p = prep_gemm_params(w.reshape(1, k * k * cin, cout), b)
    p["k"] = k
    return p


def init_deconv(key, cin, cout, use_bias):
    """ConvTranspose2d(4,2,1) weights, stored in equivalent-conv layout
    (4,4,Cin,Cout), then split into the 4 sub-pixel phase GEMM weights."""
    kw_, kb_ = jax.random.split(key)
    w = jax.random.normal(kw_, (4, 4, cin, cout), jnp.float32) * 0.05
    if use_bias:
        b = jax.random.normal(kb_, (cout,), jnp.float32) * 0.05
    else:
        b = jnp.zeros((cout,), jnp.float32)
    phase_w = []
    for py in range(2):
        for px in range(2):
            taps = [w[2 * dr + py, 2 * dc + px] for dr in range(2) for dc in range(2)]
            phase_w.append(jnp.concatenate(taps, axis=0))       # (4*Cin, Cout)
    w2 = jnp.stack(phase_w, axis=0)                             # (4, 4*Cin, Cout)
    return prep_gemm_params(w2, b)


def init_bn(c):
    return {"gamma": jnp.ones((c,), jnp.float32), "beta": jnp.zeros((c,), jnp.float32)}


def build_unet_block(key, outer_nc, inner_nc, input_nc=None, submodule=None,
                     outermost=False, innermost=False):
    use_bias = False  # norm_layer is BatchNorm2d
    if input_nc is None:
        input_nc = outer_nc
    k0, k1 = jax.random.split(key)
    p = {"outermost": outermost, "innermost": innermost, "submodule": submodule}
    p["downconv"] = init_conv(k0, 4, input_nc, inner_nc, use_bias)
    if outermost:
        p["upconv"] = init_deconv(k1, inner_nc * 2, outer_nc, True)  # bias=True
    elif innermost:
        p["upconv"] = init_deconv(k1, inner_nc, outer_nc, use_bias)
        p["upnorm"] = init_bn(outer_nc)
    else:
        p["downnorm"] = init_bn(inner_nc)
        p["upconv"] = init_deconv(k1, inner_nc * 2, outer_nc, use_bias)
        p["upnorm"] = init_bn(outer_nc)
    return p


def build_unet(key, input_nc, output_nc, num_downs, ngf):
    keys = jax.random.split(key, num_downs + 1)
    blk = build_unet_block(keys[0], ngf * 8, ngf * 8, innermost=True)
    ki = 1
    for _ in range(num_downs - 5):
        blk = build_unet_block(keys[ki], ngf * 8, ngf * 8, submodule=blk)
        ki += 1
    blk = build_unet_block(keys[ki], ngf * 4, ngf * 8, submodule=blk); ki += 1
    blk = build_unet_block(keys[ki], ngf * 2, ngf * 4, submodule=blk); ki += 1
    blk = build_unet_block(keys[ki], ngf, ngf * 2, submodule=blk); ki += 1
    blk = build_unet_block(keys[ki], output_nc, ngf, input_nc=input_nc,
                           submodule=blk, outermost=True)
    return blk


def build_seg_net(key, input_nc, num_classes=2, hidden=16):
    k0, k1 = jax.random.split(key)
    return {
        "conv1": init_conv(k0, 3, input_nc, hidden, True),
        "conv2": init_conv(k1, 3, hidden, num_classes, True),
    }


def init_mgan(key, input_nc, output_nc, num_down, ngf):
    k_seg, k_unet = jax.random.split(key)
    return {
        "seg": build_seg_net(k_seg, input_nc),
        "unet": build_unet(k_unet, input_nc + 1, output_nc, num_down, ngf),
    }


# ----------------------------------------------------------------------------
# Forward passes.
# ----------------------------------------------------------------------------
def unet_block_forward(p, x):
    if p["outermost"]:
        h = conv2d(x, p["downconv"], stride=2, pad=1, pre_act="none")
        h = unet_block_forward(p["submodule"], h)
        return conv_transpose2d(h, p["upconv"], pre_act="relu", post_act="tanh")
    elif p["innermost"]:
        h = conv2d(x, p["downconv"], stride=2, pad=1, pre_act="leaky_relu")
        h = conv_transpose2d(h, p["upconv"], pre_act="relu")
        h = batchnorm(h, p["upnorm"])
        return jnp.concatenate([x, h], axis=-1)
    else:
        h = conv2d(x, p["downconv"], stride=2, pad=1, pre_act="leaky_relu")
        h = batchnorm(h, p["downnorm"])
        h = unet_block_forward(p["submodule"], h)
        h = conv_transpose2d(h, p["upconv"], pre_act="relu")
        h = batchnorm(h, p["upnorm"])
        return jnp.concatenate([x, h], axis=-1)


def seg_net_forward(p, x):
    h = conv2d(x, p["conv1"], stride=1, pad=1, pre_act="none")
    return conv2d(h, p["conv2"], stride=1, pad=1, pre_act="relu")


def mgan_forward(params, x_nchw):
    """x_nchw: (B, C, H, W) float32 -> (fake_SS, dmask, fake_SI), all NCHW."""
    x = jnp.transpose(x_nchw, (0, 2, 3, 1)).astype(jnp.float32)  # NHWC

    fake_ss = seg_net_forward(params["seg"], x)                  # (B,H,W,2)

    # 2-class argmax -> (idx/(C-1)-0.5)*2 == where(c1 > c0, +1, -1).
    # Strict '>' keeps the first max index on ties, matching torch .max(2)[1].
    dmask = jnp.where(fake_ss[..., 1:2] > fake_ss[..., 0:1], 1.0, -1.0)

    fake_si = unet_block_forward(params["unet"],
                                 jnp.concatenate([x, dmask], axis=-1))

    to_nchw = lambda t: jnp.transpose(t, (0, 3, 1, 2))
    return to_nchw(fake_ss), to_nchw(dmask), to_nchw(fake_si)


# ----------------------------------------------------------------------------
if __name__ == "__main__":
    key = jax.random.PRNGKey(0)
    B, IN_NC, OUT_NC = 2, 3, 3
    H = W = 32
    NGF, NUM_DOWN = 8, 5   # small, consistent UNet config (32 -> 1 bottleneck)

    k_params, k_x = jax.random.split(key)
    params = init_mgan(k_params, IN_NC, OUT_NC, NUM_DOWN, NGF)
    x = jax.random.normal(k_x, (B, IN_NC, H, W), jnp.float32)

    forward = jax.jit(functools.partial(mgan_forward, params))
    fake_SS, dmask, fake_SI = forward(x)
    jax.block_until_ready((fake_SS, dmask, fake_SI))

    assert fake_SS.shape == (B, 2, H, W)
    assert dmask.shape == (B, 1, H, W)
    assert fake_SI.shape == (B, OUT_NC, H, W)
    assert bool(jnp.all(jnp.abs(jnp.abs(dmask) - 1.0) < 1e-6))
    assert bool(jnp.all(jnp.abs(fake_SI) <= 1.0))
    assert bool(jnp.all(jnp.isfinite(fake_SS)))

    print("KERNEL_OK")
</pallas_src>

<mosaic_0001>
module attributes {stable_mosaic.version = 11 : i64} {
  func.func @_gemm_kernel(%arg0: i32, %arg1: i32, %arg2: i32, %arg3: i32, %arg4: memref<1x512x128xbf16, #tpu.memory_space<vmem>>, %arg5: memref<1x128x128xbf16, #tpu.memory_space<vmem>>, %arg6: memref<1x1x128xf32, #tpu.memory_space<vmem>>, %arg7: memref<1x512x128xf32, #tpu.memory_space<vmem>>, %arg8: memref<512x128xf32, #tpu.memory_space<vmem>>) attributes {dimension_semantics = [#tpu.dimension_semantics<parallel>, #tpu.dimension_semantics<parallel>, #tpu.dimension_semantics<parallel>, #tpu.dimension_semantics<arbitrary>], iteration_bounds = array<i64: 1, 4, 1, 1>, scalar_prefetch = 0 : i64, scratch_operands = 1 : i64, tpu.core_type = #tpu.core_type<tc>, window_params = [{transform_indices = @transform_0, window_bounds = array<i64: 1, 512, 128>}, {transform_indices = @transform_1, window_bounds = array<i64: 1, 128, 128>}, {transform_indices = @transform_2, window_bounds = array<i64: 1, 1, 128>}, {transform_indices = @transform_3, window_bounds = array<i64: 1, 512, 128>}]} {
    %c0_i32 = arith.constant 0 : i32
    %0 = arith.cmpi eq, %arg3, %c0_i32 : i32
    %1 = arith.extui %0 : i1 to i32
    %c0_i32_0 = arith.constant 0 : i32
    %2 = arith.cmpi ne, %1, %c0_i32_0 : i32
    scf.if %2 {
      %cst_12 = arith.constant 0.000000e+00 : f32
      %14 = vector.broadcast %cst_12 : f32 to vector<512x128xf32>
      %c0_13 = arith.constant 0 : index
      %c0_14 = arith.constant 0 : index
      %15 = vector.load %arg8[%c0_13, %c0_14] : memref<512x128xf32, #tpu.memory_space<vmem>>, vector<512x128xf32>
      tpu.vector_store %arg8[%c0_13, %c0_14], %14 {strides = array<i32>} : memref<512x128xf32, #tpu.memory_space<vmem>>, vector<512x128xf32>,
    } else {
    }
    %c0 = arith.constant 0 : index
    %c0_1 = arith.constant 0 : index
    %c0_2 = arith.constant 0 : index
    %3 = vector.load %arg4[%c0, %c0_1, %c0_2] : memref<1x512x128xbf16, #tpu.memory_space<vmem>>, vector<1x512x128xbf16>
    %4 = vector.shape_cast %3 : vector<1x512x128xbf16> to vector<512x128xbf16>
    %c0_3 = arith.constant 0 : index
    %c0_4 = arith.constant 0 : index
    %5 = vector.load %arg8[%c0_3, %c0_4] : memref<512x128xf32, #tpu.memory_space<vmem>>, vector<512x128xf32>
    %c0_5 = arith.constant 0 : index
    %c0_6 = arith.constant 0 : index
    %c0_7 = arith.constant 0 : index
    %6 = vector.load %arg5[%c0_5, %c0_6, %c0_7] : memref<1x128x128xbf16, #tpu.memory_space<vmem>>, vector<1x128x128xbf16>
    %7 = vector.shape_cast %6 : vector<1x128x128xbf16> to vector<128x128xbf16>
    %cst = arith.constant dense<0.000000e+00> : vector<512x128xf32>
    %8 = tpu.matmul %4, %7, %cst {dimension_numbers = #tpu.dot_dimension_numbers<[1], [0], [0], [1], [0, 0, 1, 1], [], []>} : vector<512x128xbf16>, vector<128x128xbf16>, vector<512x128xf32> -> vector<512x128xf32>
    %9 = arith.addf %5, %8 : vector<512x128xf32>
    %c0_8 = arith.constant 0 : index
    %c0_9 = arith.constant 0 : index
    %10 = vector.load %arg8[%c0_8, %c0_9] : memref<512x128xf32, #tpu.memory_space<vmem>>, vector<512x128xf32>
    tpu.vector_store %arg8[%c0_8, %c0_9], %9 {strides = array<i32>} : memref<512x128xf32, #tpu.memory_space<vmem>>, vector<512x128xf32>,
    %c0_i32_10 = arith.constant 0 : i32
    %11 = arith.cmpi eq, %arg3, %c0_i32_10 : i32
    %12 = arith.extui %11 : i1 to i32
    %c0_i32_11 = arith.constant 0 : i32
    %13 = arith.cmpi ne, %12, %c0_i32_11 : i32
    scf.if %13 {
      %c0_12 = arith.constant 0 : index
      %c0_13 = arith.constant 0 : index
      %14 = vector.load %arg8[%c0_12, %c0_13] : memref<512x128xf32, #tpu.memory_space<vmem>>, vector<512x128xf32>
      %c0_14 = arith.constant 0 : index
      %c0_15 = arith.constant 0 : index
      %c0_16 = arith.constant 0 : index
      %15 = vector.load %arg6[%c0_14, %c0_15, %c0_16] : memref<1x1x128xf32, #tpu.memory_space<vmem>>, vector<1x1x128xf32>
      %16 = vector.shape_cast %15 : vector<1x1x128xf32> to vector<1x128xf32>
      %17 = vector.broadcast %16 : vector<1x128xf32> to vector<512x128xf32>
      %18 = arith.addf %14, %17 : vector<512x128xf32>
      %c0_17 = arith.constant 0 : index
      %c0_18 = arith.constant 0 : index
      %c0_19 = arith.constant 0 : index
      %19 = vector.load %arg7[%c0_17, %c0_18, %c0_19] : memref<1x512x128xf32, #tpu.memory_space<vmem>>, vector<1x512x128xf32>
      %20 = vector.shape_cast %19 : vector<1x512x128xf32> to vector<512x128xf32>
      %21 = vector.shape_cast %18 : vector<512x128xf32> to vector<1x512x128xf32>
      tpu.vector_store %arg7[%c0_17, %c0_18, %c0_19], %21 {strides = array<i32>} : memref<1x512x128xf32, #tpu.memory_space<vmem>>, vector<1x512x128xf32>,
    } else {
    }
    return
  }
  func.func @transform_0(%arg0: i32, %arg1: i32, %arg2: i32, %arg3: i32) -> (i32, i32, i32) {
    %c0_i32 = arith.constant 0 : i32
    return %arg0, %arg1, %arg3 : i32, i32, i32
  }
  func.func @transform_1(%arg0: i32, %arg1: i32, %arg2: i32, %arg3: i32) -> (i32, i32, i32) {
    %c0_i32 = arith.constant 0 : i32
    return %arg0, %arg3, %arg2 : i32, i32, i32
  }
  func.func @transform_2(%arg0: i32, %arg1: i32, %arg2: i32, %arg3: i32) -> (i32, i32, i32) {
    %c0_i32 = arith.constant 0 : i32
    %c0_i32_0 = arith.constant 0 : i32
    return %arg0, %c0_i32, %arg2 : i32, i32, i32
  }
  func.func @transform_3(%arg0: i32, %arg1: i32, %arg2: i32, %arg3: i32) -> (i32, i32, i32) {
    %c0_i32 = arith.constant 0 : i32
    return %arg0, %arg1, %arg2 : i32, i32, i32
  }
}

module attributes {stable_mosaic.version = 11 : i64} {
  func.func @_gemm_kernel(%arg0: i32, %arg1: i32, %arg2: i32, %arg3: i32, %arg4: memref<1x512x256xbf16, #tpu.memory_space<vmem>>, %arg5: memref<1x256x128xbf16, #tpu.memory_space<vmem>>, %arg6: memref<1x1x128xf32, #tpu.memory_space<vmem>>, %arg7: memref<1x512x128xf32, #tpu.memory_space<vmem>>, %arg8: memref<512x128xf32, #tpu.memory_space<vmem>>) attributes {dimension_semantics = [#tpu.dimension_semantics<parallel>, #tpu.dimension_semantics<parallel>, #tpu.dimension_semantics<parallel>, #tpu.dimension_semantics<arbitrary>], iteration_bounds = array<i64: 1, 4, 1, 1>, scalar_prefetch = 0 : i64, scratch_operands = 1 : i64, tpu.core_type = #tpu.core_type<tc>, window_params = [{transform_indices = @transform_0, window_bounds = array<i64: 1, 512, 256>}, {transform_indices = @transform_1, window_bounds = array<i64: 1, 256, 128>}, {transform_indices = @transform_2, window_bounds = array<i64: 1, 1, 128>}, {transform_indices = @transform_3, window_bounds = array<i64: 1, 512, 128>}]} {
    %c0_i32 = arith.constant 0 : i32
    %0 = arith.cmpi eq, %arg3, %c0_i32 : i32
    %1 = arith.extui %0 : i1 to i32
    %c0_i32_0 = arith.constant 0 : i32
    %2 = arith.cmpi ne, %1, %c0_i32_0 : i32
    scf.if %2 {
      %cst_13 = arith.constant 0.000000e+00 : f32
      %16 = vector.broadcast %cst_13 : f32 to vector<512x128xf32>
      %c0_14 = arith.constant 0 : index
      %c0_15 = arith.constant 0 : index
      %17 = vector.load %arg8[%c0_14, %c0_15] : memref<512x128xf32, #tpu.memory_space<vmem>>, vector<512x128xf32>
      tpu.vector_store %arg8[%c0_14, %c0_15], %16 {strides = array<i32>} : memref<512x128xf32, #tpu.memory_space<vmem>>, vector<512x128xf32>,
    } else {
    }
    %c0 = arith.constant 0 : index
    %c0_1 = arith.constant 0 : index
    %c0_2 = arith.constant 0 : index
    %3 = vector.load %arg4[%c0, %c0_1, %c0_2] : memref<1x512x256xbf16, #tpu.memory_space<vmem>>, vector<1x512x256xbf16>
    %4 = vector.shape_cast %3 : vector<1x512x256xbf16> to vector<512x256xbf16>
    %cst = arith.constant 0.000000e+00 : bf16
    %5 = vector.broadcast %cst : bf16 to vector<512x256xbf16>
    %6 = arith.maximumf %4, %5 : vector<512x256xbf16>
    %c0_3 = arith.constant 0 : index
    %c0_4 = arith.constant 0 : index
    %7 = vector.load %arg8[%c0_3, %c0_4] : memref<512x128xf32, #tpu.memory_space<vmem>>, vector<512x128xf32>
    %c0_5 = arith.constant 0 : index
    %c0_6 = arith.constant 0 : index
    %c0_7 = arith.constant 0 : index
    %8 = vector.load %arg5[%c0_5, %c0_6, %c0_7] : memref<1x256x128xbf16, #tpu.memory_space<vmem>>, vector<1x256x128xbf16>
    %9 = vector.shape_cast %8 : vector<1x256x128xbf16> to vector<256x128xbf16>
    %cst_8 = arith.constant dense<0.000000e+00> : vector<512x128xf32>
    %10 = tpu.matmul %6, %9, %cst_8 {dimension_numbers = #tpu.dot_dimension_numbers<[1], [0], [0], [1], [0, 0, 1, 1], [], []>} : vector<512x256xbf16>, vector<256x128xbf16>, vector<512x128xf32> -> vector<512x128xf32>
    %11 = arith.addf %7, %10 : vector<512x128xf32>
    %c0_9 = arith.constant 0 : index
    %c0_10 = arith.constant 0 : index
    %12 = vector.load %arg8[%c0_9, %c0_10] : memref<512x128xf32, #tpu.memory_space<vmem>>, vector<512x128xf32>
    tpu.vector_store %arg8[%c0_9, %c0_10], %11 {strides = array<i32>} : memref<512x128xf32, #tpu.memory_space<vmem>>, vector<512x128xf32>,
    %c0_i32_11 = arith.constant 0 : i32
    %13 = arith.cmpi eq, %arg3, %c0_i32_11 : i32
    %14 = arith.extui %13 : i1 to i32
    %c0_i32_12 = arith.constant 0 : i32
    %15 = arith.cmpi ne, %14, %c0_i32_12 : i32
    scf.if %15 {
      %c0_13 = arith.constant 0 : index
      %c0_14 = arith.constant 0 : index
      %16 = vector.load %arg8[%c0_13, %c0_14] : memref<512x128xf32, #tpu.memory_space<vmem>>, vector<512x128xf32>
      %c0_15 = arith.constant 0 : index
      %c0_16 = arith.constant 0 : index
      %c0_17 = arith.constant 0 : index
      %17 = vector.load %arg6[%c0_15, %c0_16, %c0_17] : memref<1x1x128xf32, #tpu.memory_space<vmem>>, vector<1x1x128xf32>
      %18 = vector.shape_cast %17 : vector<1x1x128xf32> to vector<1x128xf32>
      %19 = vector.broadcast %18 : vector<1x128xf32> to vector<512x128xf32>
      %20 = arith.addf %16, %19 : vector<512x128xf32>
      %c0_18 = arith.constant 0 : index
      %c0_19 = arith.constant 0 : index
      %c0_20 = arith.constant 0 : index
      %21 = vector.load %arg7[%c0_18, %c0_19, %c0_20] : memref<1x512x128xf32, #tpu.memory_space<vmem>>, vector<1x512x128xf32>
      %22 = vector.shape_cast %21 : vector<1x512x128xf32> to vector<512x128xf32>
      %23 = vector.shape_cast %20 : vector<512x128xf32> to vector<1x512x128xf32>
      tpu.vector_store %arg7[%c0_18, %c0_19, %c0_20], %23 {strides = array<i32>} : memref<1x512x128xf32, #tpu.memory_space<vmem>>, vector<1x512x128xf32>,
    } else {
    }
    return
  }
  func.func @transform_0(%arg0: i32, %arg1: i32, %arg2: i32, %arg3: i32) -> (i32, i32, i32) {
    %c0_i32 = arith.constant 0 : i32
    return %arg0, %arg1, %arg3 : i32, i32, i32
  }
  func.func @transform_1(%arg0: i32, %arg1: i32, %arg2: i32, %arg3: i32) -> (i32, i32, i32) {
    %c0_i32 = arith.constant 0 : i32
    return %arg0, %arg3, %arg2 : i32, i32, i32
  }
  func.func @transform_2(%arg0: i32, %arg1: i32, %arg2: i32, %arg3: i32) -> (i32, i32, i32) {
    %c0_i32 = arith.constant 0 : i32
    %c0_i32_0 = arith.constant 0 : i32
    return %arg0, %c0_i32, %arg2 : i32, i32, i32
  }
  func.func @transform_3(%arg0: i32, %arg1: i32, %arg2: i32, %arg3: i32) -> (i32, i32, i32) {
    %c0_i32 = arith.constant 0 : i32
    return %arg0, %arg1, %arg2 : i32, i32, i32
  }
}

module attributes {stable_mosaic.version = 11 : i64} {
  func.func @_gemm_kernel(%arg0: i32, %arg1: i32, %arg2: i32, %arg3: i32, %arg4: memref<1x256x128xbf16, #tpu.memory_space<vmem>>, %arg5: memref<1x128x128xbf16, #tpu.memory_space<vmem>>, %arg6: memref<1x1x128xf32, #tpu.memory_space<vmem>>, %arg7: memref<1x256x128xf32, #tpu.memory_space<vmem>>, %arg8: memref<256x128xf32, #tpu.memory_space<vmem>>) attributes {dimension_semantics = [#tpu.dimension_semantics<parallel>, #tpu.dimension_semantics<parallel>, #tpu.dimension_semantics<parallel>, #tpu.dimension_semantics<arbitrary>], iteration_bounds = array<i64: 1, 2, 1, 1>, scalar_prefetch = 0 : i64, scratch_operands = 1 : i64, tpu.core_type = #tpu.core_type<tc>, window_params = [{transform_indices = @transform_0, window_bounds = array<i64: 1, 256, 128>}, {transform_indices = @transform_1, window_bounds = array<i64: 1, 128, 128>}, {transform_indices = @transform_2, window_bounds = array<i64: 1, 1, 128>}, {transform_indices = @transform_3, window_bounds = array<i64: 1, 256, 128>}]} {
    %c0_i32 = arith.constant 0 : i32
    %0 = arith.cmpi eq, %arg3, %c0_i32 : i32
    %1 = arith.extui %0 : i1 to i32
    %c0_i32_0 = arith.constant 0 : i32
    %2 = arith.cmpi ne, %1, %c0_i32_0 : i32
    scf.if %2 {
      %cst_12 = arith.constant 0.000000e+00 : f32
      %14 = vector.broadcast %cst_12 : f32 to vector<256x128xf32>
      %c0_13 = arith.constant 0 : index
      %c0_14 = arith.constant 0 : index
      %15 = vector.load %arg8[%c0_13, %c0_14] : memref<256x128xf32, #tpu.memory_space<vmem>>, vector<256x128xf32>
      tpu.vector_store %arg8[%c0_13, %c0_14], %14 {strides = array<i32>} : memref<256x128xf32, #tpu.memory_space<vmem>>, vector<256x128xf32>,
    } else {
    }
    %c0 = arith.constant 0 : index
    %c0_1 = arith.constant 0 : index
    %c0_2 = arith.constant 0 : index
    %3 = vector.load %arg4[%c0, %c0_1, %c0_2] : memref<1x256x128xbf16, #tpu.memory_space<vmem>>, vector<1x256x128xbf16>
    %4 = vector.shape_cast %3 : vector<1x256x128xbf16> to vector<256x128xbf16>
    %c0_3 = arith.constant 0 : index
    %c0_4 = arith.constant 0 : index
    %5 = vector.load %arg8[%c0_3, %c0_4] : memref<256x128xf32, #tpu.memory_space<vmem>>, vector<256x128xf32>
    %c0_5 = arith.constant 0 : index
    %c0_6 = arith.constant 0 : index
    %c0_7 = arith.constant 0 : index
    %6 = vector.load %arg5[%c0_5, %c0_6, %c0_7] : memref<1x128x128xbf16, #tpu.memory_space<vmem>>, vector<1x128x128xbf16>
    %7 = vector.shape_cast %6 : vector<1x128x128xbf16> to vector<128x128xbf16>
    %cst = arith.constant dense<0.000000e+00> : vector<256x128xf32>
    %8 = tpu.matmul %4, %7, %cst {dimension_numbers = #tpu.dot_dimension_numbers<[1], [0], [0], [1], [0, 0, 1, 1], [], []>} : vector<256x128xbf16>, vector<128x128xbf16>, vector<256x128xf32> -> vector<256x128xf32>
    %9 = arith.addf %5, %8 : vector<256x128xf32>
    %c0_8 = arith.constant 0 : index
    %c0_9 = arith.constant 0 : index
    %10 = vector.load %arg8[%c0_8, %c0_9] : memref<256x128xf32, #tpu.memory_space<vmem>>, vector<256x128xf32>
    tpu.vector_store %arg8[%c0_8, %c0_9], %9 {strides = array<i32>} : memref<256x128xf32, #tpu.memory_space<vmem>>, vector<256x128xf32>,
    %c0_i32_10 = arith.constant 0 : i32
    %11 = arith.cmpi eq, %arg3, %c0_i32_10 : i32
    %12 = arith.extui %11 : i1 to i32
    %c0_i32_11 = arith.constant 0 : i32
    %13 = arith.cmpi ne, %12, %c0_i32_11 : i32
    scf.if %13 {
      %c0_12 = arith.constant 0 : index
      %c0_13 = arith.constant 0 : index
      %14 = vector.load %arg8[%c0_12, %c0_13] : memref<256x128xf32, #tpu.memory_space<vmem>>, vector<256x128xf32>
      %c0_14 = arith.constant 0 : index
      %c0_15 = arith.constant 0 : index
      %c0_16 = arith.constant 0 : index
      %15 = vector.load %arg6[%c0_14, %c0_15, %c0_16] : memref<1x1x128xf32, #tpu.memory_space<vmem>>, vector<1x1x128xf32>
      %16 = vector.shape_cast %15 : vector<1x1x128xf32> to vector<1x128xf32>
      %17 = vector.broadcast %16 : vector<1x128xf32> to vector<256x128xf32>
      %18 = arith.addf %14, %17 : vector<256x128xf32>
      %c0_17 = arith.constant 0 : index
      %c0_18 = arith.constant 0 : index
      %c0_19 = arith.constant 0 : index
      %19 = vector.load %arg7[%c0_17, %c0_18, %c0_19] : memref<1x256x128xf32, #tpu.memory_space<vmem>>, vector<1x256x128xf32>
      %20 = vector.shape_cast %19 : vector<1x256x128xf32> to vector<256x128xf32>
      %21 = vector.shape_cast %18 : vector<256x128xf32> to vector<1x256x128xf32>
      tpu.vector_store %arg7[%c0_17, %c0_18, %c0_19], %21 {strides = array<i32>} : memref<1x256x128xf32, #tpu.memory_space<vmem>>, vector<1x256x128xf32>,
    } else {
    }
    return
  }
  func.func @transform_0(%arg0: i32, %arg1: i32, %arg2: i32, %arg3: i32) -> (i32, i32, i32) {
    %c0_i32 = arith.constant 0 : i32
    return %arg0, %arg1, %arg3 : i32, i32, i32
  }
  func.func @transform_1(%arg0: i32, %arg1: i32, %arg2: i32, %arg3: i32) -> (i32, i32, i32) {
    %c0_i32 = arith.constant 0 : i32
    return %arg0, %arg3, %arg2 : i32, i32, i32
  }
  func.func @transform_2(%arg0: i32, %arg1: i32, %arg2: i32, %arg3: i32) -> (i32, i32, i32) {
    %c0_i32 = arith.constant 0 : i32
    %c0_i32_0 = arith.constant 0 : i32
    return %arg0, %c0_i32, %arg2 : i32, i32, i32
  }
  func.func @transform_3(%arg0: i32, %arg1: i32, %arg2: i32, %arg3: i32) -> (i32, i32, i32) {
    %c0_i32 = arith.constant 0 : i32
    return %arg0, %arg1, %arg2 : i32, i32, i32
  }
}

module attributes {stable_mosaic.version = 11 : i64} {
  func.func @_gemm_kernel(%arg0: i32, %arg1: i32, %arg2: i32, %arg3: i32, %arg4: memref<1x64x128xbf16, #tpu.memory_space<vmem>>, %arg5: memref<1x128x128xbf16, #tpu.memory_space<vmem>>, %arg6: memref<1x1x128xf32, #tpu.memory_space<vmem>>, %arg7: memref<1x64x128xf32, #tpu.memory_space<vmem>>, %arg8: memref<64x128xf32, #tpu.memory_space<vmem>>) attributes {dimension_semantics = [#tpu.dimension_semantics<parallel>, #tpu.dimension_semantics<parallel>, #tpu.dimension_semantics<parallel>, #tpu.dimension_semantics<arbitrary>], iteration_bounds = array<i64: 1, 2, 1, 1>, scalar_prefetch = 0 : i64, scratch_operands = 1 : i64, tpu.core_type = #tpu.core_type<tc>, window_params = [{transform_indices = @transform_0, window_bounds = array<i64: 1, 64, 128>}, {transform_indices = @transform_1, window_bounds = array<i64: 1, 128, 128>}, {transform_indices = @transform_2, window_bounds = array<i64: 1, 1, 128>}, {transform_indices = @transform_3, window_bounds = array<i64: 1, 64, 128>}]} {
    %c0_i32 = arith.constant 0 : i32
    %0 = arith.cmpi eq, %arg3, %c0_i32 : i32
    %1 = arith.extui %0 : i1 to i32
    %c0_i32_0 = arith.constant 0 : i32
    %2 = arith.cmpi ne, %1, %c0_i32_0 : i32
    scf.if %2 {
      %cst_14 = arith.constant 0.000000e+00 : f32
      %19 = vector.broadcast %cst_14 : f32 to vector<64x128xf32>
      %c0_15 = arith.constant 0 : index
      %c0_16 = arith.constant 0 : index
      %20 = vector.load %arg8[%c0_15, %c0_16] : memref<64x128xf32, #tpu.memory_space<vmem>>, vector<64x128xf32>
      tpu.vector_store %arg8[%c0_15, %c0_16], %19 {strides = array<i32>} : memref<64x128xf32, #tpu.memory_space<vmem>>, vector<64x128xf32>,
    } else {
    }
    %c0 = arith.constant 0 : index
    %c0_1 = arith.constant 0 : index
    %c0_2 = arith.constant 0 : index
    %3 = vector.load %arg4[%c0, %c0_1, %c0_2] : memref<1x64x128xbf16, #tpu.memory_space<vmem>>, vector<1x64x128xbf16>
    %4 = vector.shape_cast %3 : vector<1x64x128xbf16> to vector<64x128xbf16>
    %cst = arith.constant 0.000000e+00 : bf16
    %5 = vector.broadcast %cst : bf16 to vector<64x128xbf16>
    %6 = arith.cmpf oge, %4, %5 : vector<64x128xbf16>
    %cst_3 = arith.constant 2.001950e-01 : bf16
    %7 = vector.broadcast %cst_3 : bf16 to vector<64x128xbf16>
    %8 = arith.mulf %4, %7 : vector<64x128xbf16>
    %9 = arith.select %6, %4, %8 : vector<64x128xi1>, vector<64x128xbf16>
    %c0_4 = arith.constant 0 : index
    %c0_5 = arith.constant 0 : index
    %10 = vector.load %arg8[%c0_4, %c0_5] : memref<64x128xf32, #tpu.memory_space<vmem>>, vector<64x128xf32>
    %c0_6 = arith.constant 0 : index
    %c0_7 = arith.constant 0 : index
    %c0_8 = arith.constant 0 : index
    %11 = vector.load %arg5[%c0_6, %c0_7, %c0_8] : memref<1x128x128xbf16, #tpu.memory_space<vmem>>, vector<1x128x128xbf16>
    %12 = vector.shape_cast %11 : vector<1x128x128xbf16> to vector<128x128xbf16>
    %cst_9 = arith.constant dense<0.000000e+00> : vector<64x128xf32>
    %13 = tpu.matmul %9, %12, %cst_9 {dimension_numbers = #tpu.dot_dimension_numbers<[1], [0], [0], [1], [0, 0, 1, 1], [], []>} : vector<64x128xbf16>, vector<128x128xbf16>, vector<64x128xf32> -> vector<64x128xf32>
    %14 = arith.addf %10, %13 : vector<64x128xf32>
    %c0_10 = arith.constant 0 : index
    %c0_11 = arith.constant 0 : index
    %15 = vector.load %arg8[%c0_10, %c0_11] : memref<64x128xf32, #tpu.memory_space<vmem>>, vector<64x128xf32>
    tpu.vector_store %arg8[%c0_10, %c0_11], %14 {strides = array<i32>} : memref<64x128xf32, #tpu.memory_space<vmem>>, vector<64x128xf32>,
    %c0_i32_12 = arith.constant 0 : i32
    %16 = arith.cmpi eq, %arg3, %c0_i32_12 : i32
    %17 = arith.extui %16 : i1 to i32
    %c0_i32_13 = arith.constant 0 : i32
    %18 = arith.cmpi ne, %17, %c0_i32_13 : i32
    scf.if %18 {
      %c0_14 = arith.constant 0 : index
      %c0_15 = arith.constant 0 : index
      %19 = vector.load %arg8[%c0_14, %c0_15] : memref<64x128xf32, #tpu.memory_space<vmem>>, vector<64x128xf32>
      %c0_16 = arith.constant 0 : index
      %c0_17 = arith.constant 0 : index
      %c0_18 = arith.constant 0 : index
      %20 = vector.load %arg6[%c0_16, %c0_17, %c0_18] : memref<1x1x128xf32, #tpu.memory_space<vmem>>, vector<1x1x128xf32>
      %21 = vector.shape_cast %20 : vector<1x1x128xf32> to vector<1x128xf32>
      %22 = vector.broadcast %21 : vector<1x128xf32> to vector<64x128xf32>
      %23 = arith.addf %19, %22 : vector<64x128xf32>
      %c0_19 = arith.constant 0 : index
      %c0_20 = arith.constant 0 : index
      %c0_21 = arith.constant 0 : index
      %24 = vector.load %arg7[%c0_19, %c0_20, %c0_21] : memref<1x64x128xf32, #tpu.memory_space<vmem>>, vector<1x64x128xf32>
      %25 = vector.shape_cast %24 : vector<1x64x128xf32> to vector<64x128xf32>
      %26 = vector.shape_cast %23 : vector<64x128xf32> to vector<1x64x128xf32>
      tpu.vector_store %arg7[%c0_19, %c0_20, %c0_21], %26 {strides = array<i32>} : memref<1x64x128xf32, #tpu.memory_space<vmem>>, vector<1x64x128xf32>,
    } else {
    }
    return
  }
  func.func @transform_0(%arg0: i32, %arg1: i32, %arg2: i32, %arg3: i32) -> (i32, i32, i32) {
    %c0_i32 = arith.constant 0 : i32
    return %arg0, %arg1, %arg3 : i32, i32, i32
  }
  func.func @transform_1(%arg0: i32, %arg1: i32, %arg2: i32, %arg3: i32) -> (i32, i32, i32) {
    %c0_i32 = arith.constant 0 : i32
    return %arg0, %arg3, %arg2 : i32, i32, i32
  }
  func.func @transform_2(%arg0: i32, %arg1: i32, %arg2: i32, %arg3: i32) -> (i32, i32, i32) {
    %c0_i32 = arith.constant 0 : i32
    %c0_i32_0 = arith.constant 0 : i32
    return %arg0, %c0_i32, %arg2 : i32, i32, i32
  }
  func.func @transform_3(%arg0: i32, %arg1: i32, %arg2: i32, %arg3: i32) -> (i32, i32, i32) {
    %c0_i32 = arith.constant 0 : i32
    return %arg0, %arg1, %arg2 : i32, i32, i32
  }
}

module attributes {stable_mosaic.version = 11 : i64} {
  func.func @_gemm_kernel(%arg0: i32, %arg1: i32, %arg2: i32, %arg3: i32, %arg4: memref<1x32x256xbf16, #tpu.memory_space<vmem>>, %arg5: memref<1x256x128xbf16, #tpu.memory_space<vmem>>, %arg6: memref<1x1x128xf32, #tpu.memory_space<vmem>>, %arg7: memref<1x32x128xf32, #tpu.memory_space<vmem>>, %arg8: memref<32x128xf32, #tpu.memory_space<vmem>>) attributes {dimension_semantics = [#tpu.dimension_semantics<parallel>, #tpu.dimension_semantics<parallel>, #tpu.dimension_semantics<parallel>, #tpu.dimension_semantics<arbitrary>], iteration_bounds = array<i64: 1, 1, 1, 1>, scalar_prefetch = 0 : i64, scratch_operands = 1 : i64, tpu.core_type = #tpu.core_type<tc>, window_params = [{transform_indices = @transform_0, window_bounds = array<i64: 1, 32, 256>}, {transform_indices = @transform_1, window_bounds = array<i64: 1, 256, 128>}, {transform_indices = @transform_2, window_bounds = array<i64: 1, 1, 128>}, {transform_indices = @transform_3, window_bounds = array<i64: 1, 32, 128>}]} {
    %c0_i32 = arith.constant 0 : i32
    %0 = arith.cmpi eq, %arg3, %c0_i32 : i32
    %1 = arith.extui %0 : i1 to i32
    %c0_i32_0 = arith.constant 0 : i32
    %2 = arith.cmpi ne, %1, %c0_i32_0 : i32
    scf.if %2 {
      %cst_14 = arith.constant 0.000000e+00 : f32
      %19 = vector.broadcast %cst_14 : f32 to vector<32x128xf32>
      %c0_15 = arith.constant 0 : index
      %c0_16 = arith.constant 0 : index
      %20 = vector.load %arg8[%c0_15, %c0_16] : memref<32x128xf32, #tpu.memory_space<vmem>>, vector<32x128xf32>
      tpu.vector_store %arg8[%c0_15, %c0_16], %19 {strides = array<i32>} : memref<32x128xf32, #tpu.memory_space<vmem>>, vector<32x128xf32>,
    } else {
    }
    %c0 = arith.constant 0 : index
    %c0_1 = arith.constant 0 : index
    %c0_2 = arith.constant 0 : index
    %3 = vector.load %arg4[%c0, %c0_1, %c0_2] : memref<1x32x256xbf16, #tpu.memory_space<vmem>>, vector<1x32x256xbf16>
    %4 = vector.shape_cast %3 : vector<1x32x256xbf16> to vector<32x256xbf16>
    %cst = arith.constant 0.000000e+00 : bf16
    %5 = vector.broadcast %cst : bf16 to vector<32x256xbf16>
    %6 = arith.cmpf oge, %4, %5 : vector<32x256xbf16>
    %cst_3 = arith.constant 2.001950e-01 : bf16
    %7 = vector.broadcast %cst_3 : bf16 to vector<32x256xbf16>
    %8 = arith.mulf %4, %7 : vector<32x256xbf16>
    %9 = arith.select %6, %4, %8 : vector<32x256xi1>, vector<32x256xbf16>
    %c0_4 = arith.constant 0 : index
    %c0_5 = arith.constant 0 : index
    %10 = vector.load %arg8[%c0_4, %c0_5] : memref<32x128xf32, #tpu.memory_space<vmem>>, vector<32x128xf32>
    %c0_6 = arith.constant 0 : index
    %c0_7 = arith.constant 0 : index
    %c0_8 = arith.constant 0 : index
    %11 = vector.load %arg5[%c0_6, %c0_7, %c0_8] : memref<1x256x128xbf16, #tpu.memory_space<vmem>>, vector<1x256x128xbf16>
    %12 = vector.shape_cast %11 : vector<1x256x128xbf16> to vector<256x128xbf16>
    %cst_9 = arith.constant dense<0.000000e+00> : vector<32x128xf32>
    %13 = tpu.matmul %9, %12, %cst_9 {dimension_numbers = #tpu.dot_dimension_numbers<[1], [0], [0], [1], [0, 0, 1, 1], [], []>} : vector<32x256xbf16>, vector<256x128xbf16>, vector<32x128xf32> -> vector<32x128xf32>
    %14 = arith.addf %10, %13 : vector<32x128xf32>
    %c0_10 = arith.constant 0 : index
    %c0_11 = arith.constant 0 : index
    %15 = vector.load %arg8[%c0_10, %c0_11] : memref<32x128xf32, #tpu.memory_space<vmem>>, vector<32x128xf32>
    tpu.vector_store %arg8[%c0_10, %c0_11], %14 {strides = array<i32>} : memref<32x128xf32, #tpu.memory_space<vmem>>, vector<32x128xf32>,
    %c0_i32_12 = arith.constant 0 : i32
    %16 = arith.cmpi eq, %arg3, %c0_i32_12 : i32
    %17 = arith.extui %16 : i1 to i32
    %c0_i32_13 = arith.constant 0 : i32
    %18 = arith.cmpi ne, %17, %c0_i32_13 : i32
    scf.if %18 {
      %c0_14 = arith.constant 0 : index
      %c0_15 = arith.constant 0 : index
      %19 = vector.load %arg8[%c0_14, %c0_15] : memref<32x128xf32, #tpu.memory_space<vmem>>, vector<32x128xf32>
      %c0_16 = arith.constant 0 : index
      %c0_17 = arith.constant 0 : index
      %c0_18 = arith.constant 0 : index
      %20 = vector.load %arg6[%c0_16, %c0_17, %c0_18] : memref<1x1x128xf32, #tpu.memory_space<vmem>>, vector<1x1x128xf32>
      %21 = vector.shape_cast %20 : vector<1x1x128xf32> to vector<1x128xf32>
      %22 = vector.broadcast %21 : vector<1x128xf32> to vector<32x128xf32>
      %23 = arith.addf %19, %22 : vector<32x128xf32>
      %c0_19 = arith.constant 0 : index
      %c0_20 = arith.constant 0 : index
      %c0_21 = arith.constant 0 : index
      %24 = vector.load %arg7[%c0_19, %c0_20, %c0_21] : memref<1x32x128xf32, #tpu.memory_space<vmem>>, vector<1x32x128xf32>
      %25 = vector.shape_cast %24 : vector<1x32x128xf32> to vector<32x128xf32>
      %26 = vector.shape_cast %23 : vector<32x128xf32> to vector<1x32x128xf32>
      tpu.vector_store %arg7[%c0_19, %c0_20, %c0_21], %26 {strides = array<i32>} : memref<1x32x128xf32, #tpu.memory_space<vmem>>, vector<1x32x128xf32>,
    } else {
    }
    return
  }
  func.func @transform_0(%arg0: i32, %arg1: i32, %arg2: i32, %arg3: i32) -> (i32, i32, i32) {
    %c0_i32 = arith.constant 0 : i32
    return %arg0, %arg1, %arg3 : i32, i32, i32
  }
  func.func @transform_1(%arg0: i32, %arg1: i32, %arg2: i32, %arg3: i32) -> (i32, i32, i32) {
    %c0_i32 = arith.constant 0 : i32
    return %arg0, %arg3, %arg2 : i32, i32, i32
  }
  func.func @transform_2(%arg0: i32, %arg1: i32, %arg2: i32, %arg3: i32) -> (i32, i32, i32) {
    %c0_i32 = arith.constant 0 : i32
    %c0_i32_0 = arith.constant 0 : i32
    return %arg0, %c0_i32, %arg2 : i32, i32, i32
  }
  func.func @transform_3(%arg0: i32, %arg1: i32, %arg2: i32, %arg3: i32) -> (i32, i32, i32) {
    %c0_i32 = arith.constant 0 : i32
    return %arg0, %arg1, %arg2 : i32, i32, i32
  }
}

module attributes {stable_mosaic.version = 11 : i64} {
  func.func @_gemm_kernel(%arg0: i32, %arg1: i32, %arg2: i32, %arg3: i32, %arg4: memref<1x16x512xbf16, #tpu.memory_space<vmem>>, %arg5: memref<1x512x128xbf16, #tpu.memory_space<vmem>>, %arg6: memref<1x1x128xf32, #tpu.memory_space<vmem>>, %arg7: memref<1x16x128xf32, #tpu.memory_space<vmem>>, %arg8: memref<16x128xf32, #tpu.memory_space<vmem>>) attributes {dimension_semantics = [#tpu.dimension_semantics<parallel>, #tpu.dimension_semantics<parallel>, #tpu.dimension_semantics<parallel>, #tpu.dimension_semantics<arbitrary>], iteration_bounds = array<i64: 1, 1, 1, 1>, scalar_prefetch = 0 : i64, scratch_operands = 1 : i64, tpu.core_type = #tpu.core_type<tc>, window_params = [{transform_indices = @transform_0, window_bounds = array<i64: 1, 16, 512>}, {transform_indices = @transform_1, window_bounds = array<i64: 1, 512, 128>}, {transform_indices = @transform_2, window_bounds = array<i64: 1, 1, 128>}, {transform_indices = @transform_3, window_bounds = array<i64: 1, 16, 128>}]} {
    %c0_i32 = arith.constant 0 : i32
    %0 = arith.cmpi eq, %arg3, %c0_i32 : i32
    %1 = arith.extui %0 : i1 to i32
    %c0_i32_0 = arith.constant 0 : i32
    %2 = arith.cmpi ne, %1, %c0_i32_0 : i32
    scf.if %2 {
      %cst_14 = arith.constant 0.000000e+00 : f32
      %19 = vector.broadcast %cst_14 : f32 to vector<16x128xf32>
      %c0_15 = arith.constant 0 : index
      %c0_16 = arith.constant 0 : index
      %20 = vector.load %arg8[%c0_15, %c0_16] : memref<16x128xf32, #tpu.memory_space<vmem>>, vector<16x128xf32>
      tpu.vector_store %arg8[%c0_15, %c0_16], %19 {strides = array<i32>} : memref<16x128xf32, #tpu.memory_space<vmem>>, vector<16x128xf32>,
    } else {
    }
    %c0 = arith.constant 0 : index
    %c0_1 = arith.constant 0 : index
    %c0_2 = arith.constant 0 : index
    %3 = vector.load %arg4[%c0, %c0_1, %c0_2] : memref<1x16x512xbf16, #tpu.memory_space<vmem>>, vector<1x16x512xbf16>
    %4 = vector.shape_cast %3 : vector<1x16x512xbf16> to vector<16x512xbf16>
    %cst = arith.constant 0.000000e+00 : bf16
    %5 = vector.broadcast %cst : bf16 to vector<16x512xbf16>
    %6 = arith.cmpf oge, %4, %5 : vector<16x512xbf16>
    %cst_3 = arith.constant 2.001950e-01 : bf16
    %7 = vector.broadcast %cst_3 : bf16 to vector<16x512xbf16>
    %8 = arith.mulf %4, %7 : vector<16x512xbf16>
    %9 = arith.select %6, %4, %8 : vector<16x512xi1>, vector<16x512xbf16>
    %c0_4 = arith.constant 0 : index
    %c0_5 = arith.constant 0 : index
    %10 = vector.load %arg8[%c0_4, %c0_5] : memref<16x128xf32, #tpu.memory_space<vmem>>, vector<16x128xf32>
    %c0_6 = arith.constant 0 : index
    %c0_7 = arith.constant 0 : index
    %c0_8 = arith.constant 0 : index
    %11 = vector.load %arg5[%c0_6, %c0_7, %c0_8] : memref<1x512x128xbf16, #tpu.memory_space<vmem>>, vector<1x512x128xbf16>
    %12 = vector.shape_cast %11 : vector<1x512x128xbf16> to vector<512x128xbf16>
    %cst_9 = arith.constant dense<0.000000e+00> : vector<16x128xf32>
    %13 = tpu.matmul %9, %12, %cst_9 {dimension_numbers = #tpu.dot_dimension_numbers<[1], [0], [0], [1], [0, 0, 1, 1], [], []>} : vector<16x512xbf16>, vector<512x128xbf16>, vector<16x128xf32> -> vector<16x128xf32>
    %14 = arith.addf %10, %13 : vector<16x128xf32>
    %c0_10 = arith.constant 0 : index
    %c0_11 = arith.constant 0 : index
    %15 = vector.load %arg8[%c0_10, %c0_11] : memref<16x128xf32, #tpu.memory_space<vmem>>, vector<16x128xf32>
    tpu.vector_store %arg8[%c0_10, %c0_11], %14 {strides = array<i32>} : memref<16x128xf32, #tpu.memory_space<vmem>>, vector<16x128xf32>,
    %c0_i32_12 = arith.constant 0 : i32
    %16 = arith.cmpi eq, %arg3, %c0_i32_12 : i32
    %17 = arith.extui %16 : i1 to i32
    %c0_i32_13 = arith.constant 0 : i32
    %18 = arith.cmpi ne, %17, %c0_i32_13 : i32
    scf.if %18 {
      %c0_14 = arith.constant 0 : index
      %c0_15 = arith.constant 0 : index
      %19 = vector.load %arg8[%c0_14, %c0_15] : memref<16x128xf32, #tpu.memory_space<vmem>>, vector<16x128xf32>
      %c0_16 = arith.constant 0 : index
      %c0_17 = arith.constant 0 : index
      %c0_18 = arith.constant 0 : index
      %20 = vector.load %arg6[%c0_16, %c0_17, %c0_18] : memref<1x1x128xf32, #tpu.memory_space<vmem>>, vector<1x1x128xf32>
      %21 = vector.shape_cast %20 : vector<1x1x128xf32> to vector<1x128xf32>
      %22 = vector.broadcast %21 : vector<1x128xf32> to vector<16x128xf32>
      %23 = arith.addf %19, %22 : vector<16x128xf32>
      %c0_19 = arith.constant 0 : index
      %c0_20 = arith.constant 0 : index
      %c0_21 = arith.constant 0 : index
      %24 = vector.load %arg7[%c0_19, %c0_20, %c0_21] : memref<1x16x128xf32, #tpu.memory_space<vmem>>, vector<1x16x128xf32>
      %25 = vector.shape_cast %24 : vector<1x16x128xf32> to vector<16x128xf32>
      %26 = vector.shape_cast %23 : vector<16x128xf32> to vector<1x16x128xf32>
      tpu.vector_store %arg7[%c0_19, %c0_20, %c0_21], %26 {strides = array<i32>} : memref<1x16x128xf32, #tpu.memory_space<vmem>>, vector<1x16x128xf32>,
    } else {
    }
    return
  }
  func.func @transform_0(%arg0: i32, %arg1: i32, %arg2: i32, %arg3: i32) -> (i32, i32, i32) {
    %c0_i32 = arith.constant 0 : i32
    return %arg0, %arg1, %arg3 : i32, i32, i32
  }
  func.func @transform_1(%arg0: i32, %arg1: i32, %arg2: i32, %arg3: i32) -> (i32, i32, i32) {
    %c0_i32 = arith.constant 0 : i32
    return %arg0, %arg3, %arg2 : i32, i32, i32
  }
  func.func @transform_2(%arg0: i32, %arg1: i32, %arg2: i32, %arg3: i32) -> (i32, i32, i32) {
    %c0_i32 = arith.constant 0 : i32
    %c0_i32_0 = arith.constant 0 : i32
    return %arg0, %c0_i32, %arg2 : i32, i32, i32
  }
  func.func @transform_3(%arg0: i32, %arg1: i32, %arg2: i32, %arg3: i32) -> (i32, i32, i32) {
    %c0_i32 = arith.constant 0 : i32
    return %arg0, %arg1, %arg2 : i32, i32, i32
  }
}

module attributes {stable_mosaic.version = 11 : i64} {
  func.func @_gemm_kernel(%arg0: i32, %arg1: i32, %arg2: i32, %arg3: i32, %arg4: memref<1x16x512xbf16, #tpu.memory_space<vmem>>, %arg5: memref<1x512x128xbf16, #tpu.memory_space<vmem>>, %arg6: memref<1x1x128xf32, #tpu.memory_space<vmem>>, %arg7: memref<1x16x128xf32, #tpu.memory_space<vmem>>, %arg8: memref<16x128xf32, #tpu.memory_space<vmem>>) attributes {dimension_semantics = [#tpu.dimension_semantics<parallel>, #tpu.dimension_semantics<parallel>, #tpu.dimension_semantics<parallel>, #tpu.dimension_semantics<arbitrary>], iteration_bounds = array<i64: 1, 1, 1, 2>, scalar_prefetch = 0 : i64, scratch_operands = 1 : i64, tpu.core_type = #tpu.core_type<tc>, window_params = [{transform_indices = @transform_0, window_bounds = array<i64: 1, 16, 512>}, {transform_indices = @transform_1, window_bounds = array<i64: 1, 512, 128>}, {transform_indices = @transform_2, window_bounds = array<i64: 1, 1, 128>}, {transform_indices = @transform_3, window_bounds = array<i64: 1, 16, 128>}]} {
    %c0_i32 = arith.constant 0 : i32
    %0 = arith.cmpi eq, %arg3, %c0_i32 : i32
    %1 = arith.extui %0 : i1 to i32
    %c0_i32_0 = arith.constant 0 : i32
    %2 = arith.cmpi ne, %1, %c0_i32_0 : i32
    scf.if %2 {
      %cst_13 = arith.constant 0.000000e+00 : f32
      %19 = vector.broadcast %cst_13 : f32 to vector<16x128xf32>
      %c0_14 = arith.constant 0 : index
      %c0_15 = arith.constant 0 : index
      %20 = vector.load %arg8[%c0_14, %c0_15] : memref<16x128xf32, #tpu.memory_space<vmem>>, vector<16x128xf32>
      tpu.vector_store %arg8[%c0_14, %c0_15], %19 {strides = array<i32>} : memref<16x128xf32, #tpu.memory_space<vmem>>, vector<16x128xf32>,
    } else {
    }
    %c0 = arith.constant 0 : index
    %c0_1 = arith.constant 0 : index
    %c0_2 = arith.constant 0 : index
    %3 = vector.load %arg4[%c0, %c0_1, %c0_2] : memref<1x16x512xbf16, #tpu.memory_space<vmem>>, vector<1x16x512xbf16>
    %4 = vector.shape_cast %3 : vector<1x16x512xbf16> to vector<16x512xbf16>
    %cst = arith.constant 0.000000e+00 : bf16
    %5 = vector.broadcast %cst : bf16 to vector<16x512xbf16>
    %6 = arith.cmpf oge, %4, %5 : vector<16x512xbf16>
    %cst_3 = arith.constant 2.001950e-01 : bf16
    %7 = vector.broadcast %cst_3 : bf16 to vector<16x512xbf16>
    %8 = arith.mulf %4, %7 : vector<16x512xbf16>
    %9 = arith.select %6, %4, %8 : vector<16x512xi1>, vector<16x512xbf16>
    %c0_4 = arith.constant 0 : index
    %c0_5 = arith.constant 0 : index
    %10 = vector.load %arg8[%c0_4, %c0_5] : memref<16x128xf32, #tpu.memory_space<vmem>>, vector<16x128xf32>
    %c0_6 = arith.constant 0 : index
    %c0_7 = arith.constant 0 : index
    %c0_8 = arith.constant 0 : index
    %11 = vector.load %arg5[%c0_6, %c0_7, %c0_8] : memref<1x512x128xbf16, #tpu.memory_space<vmem>>, vector<1x512x128xbf16>
    %12 = vector.shape_cast %11 : vector<1x512x128xbf16> to vector<512x128xbf16>
    %cst_9 = arith.constant dense<0.000000e+00> : vector<16x128xf32>
    %13 = tpu.matmul %9, %12, %cst_9 {dimension_numbers = #tpu.dot_dimension_numbers<[1], [0], [0], [1], [0, 0, 1, 1], [], []>} : vector<16x512xbf16>, vector<512x128xbf16>, vector<16x128xf32> -> vector<16x128xf32>
    %14 = arith.addf %10, %13 : vector<16x128xf32>
    %c0_10 = arith.constant 0 : index
    %c0_11 = arith.constant 0 : index
    %15 = vector.load %arg8[%c0_10, %c0_11] : memref<16x128xf32, #tpu.memory_space<vmem>>, vector<16x128xf32>
    tpu.vector_store %arg8[%c0_10, %c0_11], %14 {strides = array<i32>} : memref<16x128xf32, #tpu.memory_space<vmem>>, vector<16x128xf32>,
    %c1_i32 = arith.constant 1 : i32
    %16 = arith.cmpi eq, %arg3, %c1_i32 : i32
    %17 = arith.extui %16 : i1 to i32
    %c0_i32_12 = arith.constant 0 : i32
    %18 = arith.cmpi ne, %17, %c0_i32_12 : i32
    scf.if %18 {
      %c0_13 = arith.constant 0 : index
      %c0_14 = arith.constant 0 : index
      %19 = vector.load %arg8[%c0_13, %c0_14] : memref<16x128xf32, #tpu.memory_space<vmem>>, vector<16x128xf32>
      %c0_15 = arith.constant 0 : index
      %c0_16 = arith.constant 0 : index
      %c0_17 = arith.constant 0 : index
      %20 = vector.load %arg6[%c0_15, %c0_16, %c0_17] : memref<1x1x128xf32, #tpu.memory_space<vmem>>, vector<1x1x128xf32>
      %21 = vector.shape_cast %20 : vector<1x1x128xf32> to vector<1x128xf32>
      %22 = vector.broadcast %21 : vector<1x128xf32> to vector<16x128xf32>
      %23 = arith.addf %19, %22 : vector<16x128xf32>
      %c0_18 = arith.constant 0 : index
      %c0_19 = arith.constant 0 : index
      %c0_20 = arith.constant 0 : index
      %24 = vector.load %arg7[%c0_18, %c0_19, %c0_20] : memref<1x16x128xf32, #tpu.memory_space<vmem>>, vector<1x16x128xf32>
      %25 = vector.shape_cast %24 : vector<1x16x128xf32> to vector<16x128xf32>
      %26 = vector.shape_cast %23 : vector<16x128xf32> to vector<1x16x128xf32>
      tpu.vector_store %arg7[%c0_18, %c0_19, %c0_20], %26 {strides = array<i32>} : memref<1x16x128xf32, #tpu.memory_space<vmem>>, vector<1x16x128xf32>,
    } else {
    }
    return
  }
  func.func @transform_0(%arg0: i32, %arg1: i32, %arg2: i32, %arg3: i32) -> (i32, i32, i32) {
    %c0_i32 = arith.constant 0 : i32
    return %arg0, %arg1, %arg3 : i32, i32, i32
  }
  func.func @transform_1(%arg0: i32, %arg1: i32, %arg2: i32, %arg3: i32) -> (i32, i32, i32) {
    %c0_i32 = arith.constant 0 : i32
    return %arg0, %arg3, %arg2 : i32, i32, i32
  }
  func.func @transform_2(%arg0: i32, %arg1: i32, %arg2: i32, %arg3: i32) -> (i32, i32, i32) {
    %c0_i32 = arith.constant 0 : i32
    %c0_i32_0 = arith.constant 0 : i32
    return %arg0, %c0_i32, %arg2 : i32, i32, i32
  }
  func.func @transform_3(%arg0: i32, %arg1: i32, %arg2: i32, %arg3: i32) -> (i32, i32, i32) {
    %c0_i32 = arith.constant 0 : i32
    return %arg0, %arg1, %arg2 : i32, i32, i32
  }
}

module attributes {stable_mosaic.version = 11 : i64} {
  func.func @_gemm_kernel(%arg0: i32, %arg1: i32, %arg2: i32, %arg3: i32, %arg4: memref<1x16x256xbf16, #tpu.memory_space<vmem>>, %arg5: memref<1x256x128xbf16, #tpu.memory_space<vmem>>, %arg6: memref<1x1x128xf32, #tpu.memory_space<vmem>>, %arg7: memref<1x16x128xf32, #tpu.memory_space<vmem>>, %arg8: memref<16x128xf32, #tpu.memory_space<vmem>>) attributes {dimension_semantics = [#tpu.dimension_semantics<parallel>, #tpu.dimension_semantics<parallel>, #tpu.dimension_semantics<parallel>, #tpu.dimension_semantics<arbitrary>], iteration_bounds = array<i64: 4, 1, 1, 1>, scalar_prefetch = 0 : i64, scratch_operands = 1 : i64, tpu.core_type = #tpu.core_type<tc>, window_params = [{transform_indices = @transform_0, window_bounds = array<i64: 1, 16, 256>}, {transform_indices = @transform_1, window_bounds = array<i64: 1, 256, 128>}, {transform_indices = @transform_2, window_bounds = array<i64: 1, 1, 128>}, {transform_indices = @transform_3, window_bounds = array<i64: 1, 16, 128>}]} {
    %c0_i32 = arith.constant 0 : i32
    %0 = arith.cmpi eq, %arg3, %c0_i32 : i32
    %1 = arith.extui %0 : i1 to i32
    %c0_i32_0 = arith.constant 0 : i32
    %2 = arith.cmpi ne, %1, %c0_i32_0 : i32
    scf.if %2 {
      %cst_13 = arith.constant 0.000000e+00 : f32
      %16 = vector.broadcast %cst_13 : f32 to vector<16x128xf32>
      %c0_14 = arith.constant 0 : index
      %c0_15 = arith.constant 0 : index
      %17 = vector.load %arg8[%c0_14, %c0_15] : memref<16x128xf32, #tpu.memory_space<vmem>>, vector<16x128xf32>
      tpu.vector_store %arg8[%c0_14, %c0_15], %16 {strides = array<i32>} : memref<16x128xf32, #tpu.memory_space<vmem>>, vector<16x128xf32>,
    } else {
    }
    %c0 = arith.constant 0 : index
    %c0_1 = arith.constant 0 : index
    %c0_2 = arith.constant 0 : index
    %3 = vector.load %arg4[%c0, %c0_1, %c0_2] : memref<1x16x256xbf16, #tpu.memory_space<vmem>>, vector<1x16x256xbf16>
    %4 = vector.shape_cast %3 : vector<1x16x256xbf16> to vector<16x256xbf16>
    %cst = arith.constant 0.000000e+00 : bf16
    %5 = vector.broadcast %cst : bf16 to vector<16x256xbf16>
    %6 = arith.maximumf %4, %5 : vector<16x256xbf16>
    %c0_3 = arith.constant 0 : index
    %c0_4 = arith.constant 0 : index
    %7 = vector.load %arg8[%c0_3, %c0_4] : memref<16x128xf32, #tpu.memory_space<vmem>>, vector<16x128xf32>
    %c0_5 = arith.constant 0 : index
    %c0_6 = arith.constant 0 : index
    %c0_7 = arith.constant 0 : index
    %8 = vector.load %arg5[%c0_5, %c0_6, %c0_7] : memref<1x256x128xbf16, #tpu.memory_space<vmem>>, vector<1x256x128xbf16>
    %9 = vector.shape_cast %8 : vector<1x256x128xbf16> to vector<256x128xbf16>
    %cst_8 = arith.constant dense<0.000000e+00> : vector<16x128xf32>
    %10 = tpu.matmul %6, %9, %cst_8 {dimension_numbers = #tpu.dot_dimension_numbers<[1], [0], [0], [1], [0, 0, 1, 1], [], []>} : vector<16x256xbf16>, vector<256x128xbf16>, vector<16x128xf32> -> vector<16x128xf32>
    %11 = arith.addf %7, %10 : vector<16x128xf32>
    %c0_9 = arith.constant 0 : index
    %c0_10 = arith.constant 0 : index
    %12 = vector.load %arg8[%c0_9, %c0_10] : memref<16x128xf32, #tpu.memory_space<vmem>>, vector<16x128xf32>
    tpu.vector_store %arg8[%c0_9, %c0_10], %11 {strides = array<i32>} : memref<16x128xf32, #tpu.memory_space<vmem>>, vector<16x128xf32>,
    %c0_i32_11 = arith.constant 0 : i32
    %13 = arith.cmpi eq, %arg3, %c0_i32_11 : i32
    %14 = arith.extui %13 : i1 to i32
    %c0_i32_12 = arith.constant 0 : i32
    %15 = arith.cmpi ne, %14, %c0_i32_12 : i32
    scf.if %15 {
      %c0_13 = arith.constant 0 : index
      %c0_14 = arith.constant 0 : index
      %16 = vector.load %arg8[%c0_13, %c0_14] : memref<16x128xf32, #tpu.memory_space<vmem>>, vector<16x128xf32>
      %c0_15 = arith.constant 0 : index
      %c0_16 = arith.constant 0 : index
      %c0_17 = arith.constant 0 : index
      %17 = vector.load %arg6[%c0_15, %c0_16, %c0_17] : memref<1x1x128xf32, #tpu.memory_space<vmem>>, vector<1x1x128xf32>
      %18 = vector.shape_cast %17 : vector<1x1x128xf32> to vector<1x128xf32>
      %19 = vector.broadcast %18 : vector<1x128xf32> to vector<16x128xf32>
      %20 = arith.addf %16, %19 : vector<16x128xf32>
      %c0_18 = arith.constant 0 : index
      %c0_19 = arith.constant 0 : index
      %c0_20 = arith.constant 0 : index
      %21 = vector.load %arg7[%c0_18, %c0_19, %c0_20] : memref<1x16x128xf32, #tpu.memory_space<vmem>>, vector<1x16x128xf32>
      %22 = vector.shape_cast %21 : vector<1x16x128xf32> to vector<16x128xf32>
      %23 = vector.shape_cast %20 : vector<16x128xf32> to vector<1x16x128xf32>
      tpu.vector_store %arg7[%c0_18, %c0_19, %c0_20], %23 {strides = array<i32>} : memref<1x16x128xf32, #tpu.memory_space<vmem>>, vector<1x16x128xf32>,
    } else {
    }
    return
  }
  func.func @transform_0(%arg0: i32, %arg1: i32, %arg2: i32, %arg3: i32) -> (i32, i32, i32) {
    %c0_i32 = arith.constant 0 : i32
    return %arg0, %arg1, %arg3 : i32, i32, i32
  }
  func.func @transform_1(%arg0: i32, %arg1: i32, %arg2: i32, %arg3: i32) -> (i32, i32, i32) {
    %c0_i32 = arith.constant 0 : i32
    return %arg0, %arg3, %arg2 : i32, i32, i32
  }
  func.func @transform_2(%arg0: i32, %arg1: i32, %arg2: i32, %arg3: i32) -> (i32, i32, i32) {
    %c0_i32 = arith.constant 0 : i32
    %c0_i32_0 = arith.constant 0 : i32
    return %arg0, %c0_i32, %arg2 : i32, i32, i32
  }
  func.func @transform_3(%arg0: i32, %arg1: i32, %arg2: i32, %arg3: i32) -> (i32, i32, i32) {
    %c0_i32 = arith.constant 0 : i32
    return %arg0, %arg1, %arg2 : i32, i32, i32
  }
}

module attributes {stable_mosaic.version = 11 : i64} {
  func.func @_gemm_kernel(%arg0: i32, %arg1: i32, %arg2: i32, %arg3: i32, %arg4: memref<1x16x512xbf16, #tpu.memory_space<vmem>>, %arg5: memref<1x512x128xbf16, #tpu.memory_space<vmem>>, %arg6: memref<1x1x128xf32, #tpu.memory_space<vmem>>, %arg7: memref<1x16x128xf32, #tpu.memory_space<vmem>>, %arg8: memref<16x128xf32, #tpu.memory_space<vmem>>) attributes {dimension_semantics = [#tpu.dimension_semantics<parallel>, #tpu.dimension_semantics<parallel>, #tpu.dimension_semantics<parallel>, #tpu.dimension_semantics<arbitrary>], iteration_bounds = array<i64: 4, 1, 1, 1>, scalar_prefetch = 0 : i64, scratch_operands = 1 : i64, tpu.core_type = #tpu.core_type<tc>, window_params = [{transform_indices = @transform_0, window_bounds = array<i64: 1, 16, 512>}, {transform_indices = @transform_1, window_bounds = array<i64: 1, 512, 128>}, {transform_indices = @transform_2, window_bounds = array<i64: 1, 1, 128>}, {transform_indices = @transform_3, window_bounds = array<i64: 1, 16, 128>}]} {
    %c0_i32 = arith.constant 0 : i32
    %0 = arith.cmpi eq, %arg3, %c0_i32 : i32
    %1 = arith.extui %0 : i1 to i32
    %c0_i32_0 = arith.constant 0 : i32
    %2 = arith.cmpi ne, %1, %c0_i32_0 : i32
    scf.if %2 {
      %cst_13 = arith.constant 0.000000e+00 : f32
      %16 = vector.broadcast %cst_13 : f32 to vector<16x128xf32>
      %c0_14 = arith.constant 0 : index
      %c0_15 = arith.constant 0 : index
      %17 = vector.load %arg8[%c0_14, %c0_15] : memref<16x128xf32, #tpu.memory_space<vmem>>, vector<16x128xf32>
      tpu.vector_store %arg8[%c0_14, %c0_15], %16 {strides = array<i32>} : memref<16x128xf32, #tpu.memory_space<vmem>>, vector<16x128xf32>,
    } else {
    }
    %c0 = arith.constant 0 : index
    %c0_1 = arith.constant 0 : index
    %c0_2 = arith.constant 0 : index
    %3 = vector.load %arg4[%c0, %c0_1, %c0_2] : memref<1x16x512xbf16, #tpu.memory_space<vmem>>, vector<1x16x512xbf16>
    %4 = vector.shape_cast %3 : vector<1x16x512xbf16> to vector<16x512xbf16>
    %cst = arith.constant 0.000000e+00 : bf16
    %5 = vector.broadcast %cst : bf16 to vector<16x512xbf16>
    %6 = arith.maximumf %4, %5 : vector<16x512xbf16>
    %c0_3 = arith.constant 0 : index
    %c0_4 = arith.constant 0 : index
    %7 = vector.load %arg8[%c0_3, %c0_4] : memref<16x128xf32, #tpu.memory_space<vmem>>, vector<16x128xf32>
    %c0_5 = arith.constant 0 : index
    %c0_6 = arith.constant 0 : index
    %c0_7 = arith.constant 0 : index
    %8 = vector.load %arg5[%c0_5, %c0_6, %c0_7] : memref<1x512x128xbf16, #tpu.memory_space<vmem>>, vector<1x512x128xbf16>
    %9 = vector.shape_cast %8 : vector<1x512x128xbf16> to vector<512x128xbf16>
    %cst_8 = arith.constant dense<0.000000e+00> : vector<16x128xf32>
    %10 = tpu.matmul %6, %9, %cst_8 {dimension_numbers = #tpu.dot_dimension_numbers<[1], [0], [0], [1], [0, 0, 1, 1], [], []>} : vector<16x512xbf16>, vector<512x128xbf16>, vector<16x128xf32> -> vector<16x128xf32>
    %11 = arith.addf %7, %10 : vector<16x128xf32>
    %c0_9 = arith.constant 0 : index
    %c0_10 = arith.constant 0 : index
    %12 = vector.load %arg8[%c0_9, %c0_10] : memref<16x128xf32, #tpu.memory_space<vmem>>, vector<16x128xf32>
    tpu.vector_store %arg8[%c0_9, %c0_10], %11 {strides = array<i32>} : memref<16x128xf32, #tpu.memory_space<vmem>>, vector<16x128xf32>,
    %c0_i32_11 = arith.constant 0 : i32
    %13 = arith.cmpi eq, %arg3, %c0_i32_11 : i32
    %14 = arith.extui %13 : i1 to i32
    %c0_i32_12 = arith.constant 0 : i32
    %15 = arith.cmpi ne, %14, %c0_i32_12 : i32
    scf.if %15 {
      %c0_13 = arith.constant 0 : index
      %c0_14 = arith.constant 0 : index
      %16 = vector.load %arg8[%c0_13, %c0_14] : memref<16x128xf32, #tpu.memory_space<vmem>>, vector<16x128xf32>
      %c0_15 = arith.constant 0 : index
      %c0_16 = arith.constant 0 : index
      %c0_17 = arith.constant 0 : index
      %17 = vector.load %arg6[%c0_15, %c0_16, %c0_17] : memref<1x1x128xf32, #tpu.memory_space<vmem>>, vector<1x1x128xf32>
      %18 = vector.shape_cast %17 : vector<1x1x128xf32> to vector<1x128xf32>
      %19 = vector.broadcast %18 : vector<1x128xf32> to vector<16x128xf32>
      %20 = arith.addf %16, %19 : vector<16x128xf32>
      %c0_18 = arith.constant 0 : index
      %c0_19 = arith.constant 0 : index
      %c0_20 = arith.constant 0 : index
      %21 = vector.load %arg7[%c0_18, %c0_19, %c0_20] : memref<1x16x128xf32, #tpu.memory_space<vmem>>, vector<1x16x128xf32>
      %22 = vector.shape_cast %21 : vector<1x16x128xf32> to vector<16x128xf32>
      %23 = vector.shape_cast %20 : vector<16x128xf32> to vector<1x16x128xf32>
      tpu.vector_store %arg7[%c0_18, %c0_19, %c0_20], %23 {strides = array<i32>} : memref<1x16x128xf32, #tpu.memory_space<vmem>>, vector<1x16x128xf32>,
    } else {
    }
    return
  }
  func.func @transform_0(%arg0: i32, %arg1: i32, %arg2: i32, %arg3: i32) -> (i32, i32, i32) {
    %c0_i32 = arith.constant 0 : i32
    return %arg0, %arg1, %arg3 : i32, i32, i32
  }
  func.func @transform_1(%arg0: i32, %arg1: i32, %arg2: i32, %arg3: i32) -> (i32, i32, i32) {
    %c0_i32 = arith.constant 0 : i32
    return %arg0, %arg3, %arg2 : i32, i32, i32
  }
  func.func @transform_2(%arg0: i32, %arg1: i32, %arg2: i32, %arg3: i32) -> (i32, i32, i32) {
    %c0_i32 = arith.constant 0 : i32
    %c0_i32_0 = arith.constant 0 : i32
    return %arg0, %c0_i32, %arg2 : i32, i32, i32
  }
  func.func @transform_3(%arg0: i32, %arg1: i32, %arg2: i32, %arg3: i32) -> (i32, i32, i32) {
    %c0_i32 = arith.constant 0 : i32
    return %arg0, %arg1, %arg2 : i32, i32, i32
  }
}

module attributes {stable_mosaic.version = 11 : i64} {
  func.func @_gemm_kernel(%arg0: i32, %arg1: i32, %arg2: i32, %arg3: i32, %arg4: memref<1x32x256xbf16, #tpu.memory_space<vmem>>, %arg5: memref<1x256x128xbf16, #tpu.memory_space<vmem>>, %arg6: memref<1x1x128xf32, #tpu.memory_space<vmem>>, %arg7: memref<1x32x128xf32, #tpu.memory_space<vmem>>, %arg8: memref<32x128xf32, #tpu.memory_space<vmem>>) attributes {dimension_semantics = [#tpu.dimension_semantics<parallel>, #tpu.dimension_semantics<parallel>, #tpu.dimension_semantics<parallel>, #tpu.dimension_semantics<arbitrary>], iteration_bounds = array<i64: 4, 1, 1, 1>, scalar_prefetch = 0 : i64, scratch_operands = 1 : i64, tpu.core_type = #tpu.core_type<tc>, window_params = [{transform_indices = @transform_0, window_bounds = array<i64: 1, 32, 256>}, {transform_indices = @transform_1, window_bounds = array<i64: 1, 256, 128>}, {transform_indices = @transform_2, window_bounds = array<i64: 1, 1, 128>}, {transform_indices = @transform_3, window_bounds = array<i64: 1, 32, 128>}]} {
    %c0_i32 = arith.constant 0 : i32
    %0 = arith.cmpi eq, %arg3, %c0_i32 : i32
    %1 = arith.extui %0 : i1 to i32
    %c0_i32_0 = arith.constant 0 : i32
    %2 = arith.cmpi ne, %1, %c0_i32_0 : i32
    scf.if %2 {
      %cst_13 = arith.constant 0.000000e+00 : f32
      %16 = vector.broadcast %cst_13 : f32 to vector<32x128xf32>
      %c0_14 = arith.constant 0 : index
      %c0_15 = arith.constant 0 : index
      %17 = vector.load %arg8[%c0_14, %c0_15] : memref<32x128xf32, #tpu.memory_space<vmem>>, vector<32x128xf32>
      tpu.vector_store %arg8[%c0_14, %c0_15], %16 {strides = array<i32>} : memref<32x128xf32, #tpu.memory_space<vmem>>, vector<32x128xf32>,
    } else {
    }
    %c0 = arith.constant 0 : index
    %c0_1 = arith.constant 0 : index
    %c0_2 = arith.constant 0 : index
    %3 = vector.load %arg4[%c0, %c0_1, %c0_2] : memref<1x32x256xbf16, #tpu.memory_space<vmem>>, vector<1x32x256xbf16>
    %4 = vector.shape_cast %3 : vector<1x32x256xbf16> to vector<32x256xbf16>
    %cst = arith.constant 0.000000e+00 : bf16
    %5 = vector.broadcast %cst : bf16 to vector<32x256xbf16>
    %6 = arith.maximumf %4, %5 : vector<32x256xbf16>
    %c0_3 = arith.constant 0 : index
    %c0_4 = arith.constant 0 : index
    %7 = vector.load %arg8[%c0_3, %c0_4] : memref<32x128xf32, #tpu.memory_space<vmem>>, vector<32x128xf32>
    %c0_5 = arith.constant 0 : index
    %c0_6 = arith.constant 0 : index
    %c0_7 = arith.constant 0 : index
    %8 = vector.load %arg5[%c0_5, %c0_6, %c0_7] : memref<1x256x128xbf16, #tpu.memory_space<vmem>>, vector<1x256x128xbf16>
    %9 = vector.shape_cast %8 : vector<1x256x128xbf16> to vector<256x128xbf16>
    %cst_8 = arith.constant dense<0.000000e+00> : vector<32x128xf32>
    %10 = tpu.matmul %6, %9, %cst_8 {dimension_numbers = #tpu.dot_dimension_numbers<[1], [0], [0], [1], [0, 0, 1, 1], [], []>} : vector<32x256xbf16>, vector<256x128xbf16>, vector<32x128xf32> -> vector<32x128xf32>
    %11 = arith.addf %7, %10 : vector<32x128xf32>
    %c0_9 = arith.constant 0 : index
    %c0_10 = arith.constant 0 : index
    %12 = vector.load %arg8[%c0_9, %c0_10] : memref<32x128xf32, #tpu.memory_space<vmem>>, vector<32x128xf32>
    tpu.vector_store %arg8[%c0_9, %c0_10], %11 {strides = array<i32>} : memref<32x128xf32, #tpu.memory_space<vmem>>, vector<32x128xf32>,
    %c0_i32_11 = arith.constant 0 : i32
    %13 = arith.cmpi eq, %arg3, %c0_i32_11 : i32
    %14 = arith.extui %13 : i1 to i32
    %c0_i32_12 = arith.constant 0 : i32
    %15 = arith.cmpi ne, %14, %c0_i32_12 : i32
    scf.if %15 {
      %c0_13 = arith.constant 0 : index
      %c0_14 = arith.constant 0 : index
      %16 = vector.load %arg8[%c0_13, %c0_14] : memref<32x128xf32, #tpu.memory_space<vmem>>, vector<32x128xf32>
      %c0_15 = arith.constant 0 : index
      %c0_16 = arith.constant 0 : index
      %c0_17 = arith.constant 0 : index
      %17 = vector.load %arg6[%c0_15, %c0_16, %c0_17] : memref<1x1x128xf32, #tpu.memory_space<vmem>>, vector<1x1x128xf32>
      %18 = vector.shape_cast %17 : vector<1x1x128xf32> to vector<1x128xf32>
      %19 = vector.broadcast %18 : vector<1x128xf32> to vector<32x128xf32>
      %20 = arith.addf %16, %19 : vector<32x128xf32>
      %c0_18 = arith.constant 0 : index
      %c0_19 = arith.constant 0 : index
      %c0_20 = arith.constant 0 : index
      %21 = vector.load %arg7[%c0_18, %c0_19, %c0_20] : memref<1x32x128xf32, #tpu.memory_space<vmem>>, vector<1x32x128xf32>
      %22 = vector.shape_cast %21 : vector<1x32x128xf32> to vector<32x128xf32>
      %23 = vector.shape_cast %20 : vector<32x128xf32> to vector<1x32x128xf32>
      tpu.vector_store %arg7[%c0_18, %c0_19, %c0_20], %23 {strides = array<i32>} : memref<1x32x128xf32, #tpu.memory_space<vmem>>, vector<1x32x128xf32>,
    } else {
    }
    return
  }
  func.func @transform_0(%arg0: i32, %arg1: i32, %arg2: i32, %arg3: i32) -> (i32, i32, i32) {
    %c0_i32 = arith.constant 0 : i32
    return %arg0, %arg1, %arg3 : i32, i32, i32
  }
  func.func @transform_1(%arg0: i32, %arg1: i32, %arg2: i32, %arg3: i32) -> (i32, i32, i32) {
    %c0_i32 = arith.constant 0 : i32
    return %arg0, %arg3, %arg2 : i32, i32, i32
  }
  func.func @transform_2(%arg0: i32, %arg1: i32, %arg2: i32, %arg3: i32) -> (i32, i32, i32) {
    %c0_i32 = arith.constant 0 : i32
    %c0_i32_0 = arith.constant 0 : i32
    return %arg0, %c0_i32, %arg2 : i32, i32, i32
  }
  func.func @transform_3(%arg0: i32, %arg1: i32, %arg2: i32, %arg3: i32) -> (i32, i32, i32) {
    %c0_i32 = arith.constant 0 : i32
    return %arg0, %arg1, %arg2 : i32, i32, i32
  }
}

module attributes {stable_mosaic.version = 11 : i64} {
  func.func @_gemm_kernel(%arg0: i32, %arg1: i32, %arg2: i32, %arg3: i32, %arg4: memref<1x64x128xbf16, #tpu.memory_space<vmem>>, %arg5: memref<1x128x128xbf16, #tpu.memory_space<vmem>>, %arg6: memref<1x1x128xf32, #tpu.memory_space<vmem>>, %arg7: memref<1x64x128xf32, #tpu.memory_space<vmem>>, %arg8: memref<64x128xf32, #tpu.memory_space<vmem>>) attributes {dimension_semantics = [#tpu.dimension_semantics<parallel>, #tpu.dimension_semantics<parallel>, #tpu.dimension_semantics<parallel>, #tpu.dimension_semantics<arbitrary>], iteration_bounds = array<i64: 4, 2, 1, 1>, scalar_prefetch = 0 : i64, scratch_operands = 1 : i64, tpu.core_type = #tpu.core_type<tc>, window_params = [{transform_indices = @transform_0, window_bounds = array<i64: 1, 64, 128>}, {transform_indices = @transform_1, window_bounds = array<i64: 1, 128, 128>}, {transform_indices = @transform_2, window_bounds = array<i64: 1, 1, 128>}, {transform_indices = @transform_3, window_bounds = array<i64: 1, 64, 128>}]} {
    %c0_i32 = arith.constant 0 : i32
    %0 = arith.cmpi eq, %arg3, %c0_i32 : i32
    %1 = arith.extui %0 : i1 to i32
    %c0_i32_0 = arith.constant 0 : i32
    %2 = arith.cmpi ne, %1, %c0_i32_0 : i32
    scf.if %2 {
      %cst_13 = arith.constant 0.000000e+00 : f32
      %16 = vector.broadcast %cst_13 : f32 to vector<64x128xf32>
      %c0_14 = arith.constant 0 : index
      %c0_15 = arith.constant 0 : index
      %17 = vector.load %arg8[%c0_14, %c0_15] : memref<64x128xf32, #tpu.memory_space<vmem>>, vector<64x128xf32>
      tpu.vector_store %arg8[%c0_14, %c0_15], %16 {strides = array<i32>} : memref<64x128xf32, #tpu.memory_space<vmem>>, vector<64x128xf32>,
    } else {
    }
    %c0 = arith.constant 0 : index
    %c0_1 = arith.constant 0 : index
    %c0_2 = arith.constant 0 : index
    %3 = vector.load %arg4[%c0, %c0_1, %c0_2] : memref<1x64x128xbf16, #tpu.memory_space<vmem>>, vector<1x64x128xbf16>
    %4 = vector.shape_cast %3 : vector<1x64x128xbf16> to vector<64x128xbf16>
    %cst = arith.constant 0.000000e+00 : bf16
    %5 = vector.broadcast %cst : bf16 to vector<64x128xbf16>
    %6 = arith.maximumf %4, %5 : vector<64x128xbf16>
    %c0_3 = arith.constant 0 : index
    %c0_4 = arith.constant 0 : index
    %7 = vector.load %arg8[%c0_3, %c0_4] : memref<64x128xf32, #tpu.memory_space<vmem>>, vector<64x128xf32>
    %c0_5 = arith.constant 0 : index
    %c0_6 = arith.constant 0 : index
    %c0_7 = arith.constant 0 : index
    %8 = vector.load %arg5[%c0_5, %c0_6, %c0_7] : memref<1x128x128xbf16, #tpu.memory_space<vmem>>, vector<1x128x128xbf16>
    %9 = vector.shape_cast %8 : vector<1x128x128xbf16> to vector<128x128xbf16>
    %cst_8 = arith.constant dense<0.000000e+00> : vector<64x128xf32>
    %10 = tpu.matmul %6, %9, %cst_8 {dimension_numbers = #tpu.dot_dimension_numbers<[1], [0], [0], [1], [0, 0, 1, 1], [], []>} : vector<64x128xbf16>, vector<128x128xbf16>, vector<64x128xf32> -> vector<64x128xf32>
    %11 = arith.addf %7, %10 : vector<64x128xf32>
    %c0_9 = arith.constant 0 : index
    %c0_10 = arith.constant 0 : index
    %12 = vector.load %arg8[%c0_9, %c0_10] : memref<64x128xf32, #tpu.memory_space<vmem>>, vector<64x128xf32>
    tpu.vector_store %arg8[%c0_9, %c0_10], %11 {strides = array<i32>} : memref<64x128xf32, #tpu.memory_space<vmem>>, vector<64x128xf32>,
    %c0_i32_11 = arith.constant 0 : i32
    %13 = arith.cmpi eq, %arg3, %c0_i32_11 : i32
    %14 = arith.extui %13 : i1 to i32
    %c0_i32_12 = arith.constant 0 : i32
    %15 = arith.cmpi ne, %14, %c0_i32_12 : i32
    scf.if %15 {
      %c0_13 = arith.constant 0 : index
      %c0_14 = arith.constant 0 : index
      %16 = vector.load %arg8[%c0_13, %c0_14] : memref<64x128xf32, #tpu.memory_space<vmem>>, vector<64x128xf32>
      %c0_15 = arith.constant 0 : index
      %c0_16 = arith.constant 0 : index
      %c0_17 = arith.constant 0 : index
      %17 = vector.load %arg6[%c0_15, %c0_16, %c0_17] : memref<1x1x128xf32, #tpu.memory_space<vmem>>, vector<1x1x128xf32>
      %18 = vector.shape_cast %17 : vector<1x1x128xf32> to vector<1x128xf32>
      %19 = vector.broadcast %18 : vector<1x128xf32> to vector<64x128xf32>
      %20 = arith.addf %16, %19 : vector<64x128xf32>
      %c0_18 = arith.constant 0 : index
      %c0_19 = arith.constant 0 : index
      %c0_20 = arith.constant 0 : index
      %21 = vector.load %arg7[%c0_18, %c0_19, %c0_20] : memref<1x64x128xf32, #tpu.memory_space<vmem>>, vector<1x64x128xf32>
      %22 = vector.shape_cast %21 : vector<1x64x128xf32> to vector<64x128xf32>
      %23 = vector.shape_cast %20 : vector<64x128xf32> to vector<1x64x128xf32>
      tpu.vector_store %arg7[%c0_18, %c0_19, %c0_20], %23 {strides = array<i32>} : memref<1x64x128xf32, #tpu.memory_space<vmem>>, vector<1x64x128xf32>,
    } else {
    }
    return
  }
  func.func @transform_0(%arg0: i32, %arg1: i32, %arg2: i32, %arg3: i32) -> (i32, i32, i32) {
    %c0_i32 = arith.constant 0 : i32
    return %arg0, %arg1, %arg3 : i32, i32, i32
  }
  func.func @transform_1(%arg0: i32, %arg1: i32, %arg2: i32, %arg3: i32) -> (i32, i32, i32) {
    %c0_i32 = arith.constant 0 : i32
    return %arg0, %arg3, %arg2 : i32, i32, i32
  }
  func.func @transform_2(%arg0: i32, %arg1: i32, %arg2: i32, %arg3: i32) -> (i32, i32, i32) {
    %c0_i32 = arith.constant 0 : i32
    %c0_i32_0 = arith.constant 0 : i32
    return %arg0, %c0_i32, %arg2 : i32, i32, i32
  }
  func.func @transform_3(%arg0: i32, %arg1: i32, %arg2: i32, %arg3: i32) -> (i32, i32, i32) {
    %c0_i32 = arith.constant 0 : i32
    return %arg0, %arg1, %arg2 : i32, i32, i32
  }
}

module attributes {stable_mosaic.version = 11 : i64} {
  func.func @_gemm_kernel(%arg0: i32, %arg1: i32, %arg2: i32, %arg3: i32, %arg4: memref<1x256x128xbf16, #tpu.memory_space<vmem>>, %arg5: memref<1x128x128xbf16, #tpu.memory_space<vmem>>, %arg6: memref<1x1x128xf32, #tpu.memory_space<vmem>>, %arg7: memref<1x256x128xf32, #tpu.memory_space<vmem>>, %arg8: memref<256x128xf32, #tpu.memory_space<vmem>>) attributes {dimension_semantics = [#tpu.dimension_semantics<parallel>, #tpu.dimension_semantics<parallel>, #tpu.dimension_semantics<parallel>, #tpu.dimension_semantics<arbitrary>], iteration_bounds = array<i64: 4, 2, 1, 1>, scalar_prefetch = 0 : i64, scratch_operands = 1 : i64, tpu.core_type = #tpu.core_type<tc>, window_params = [{transform_indices = @transform_0, window_bounds = array<i64: 1, 256, 128>}, {transform_indices = @transform_1, window_bounds = array<i64: 1, 128, 128>}, {transform_indices = @transform_2, window_bounds = array<i64: 1, 1, 128>}, {transform_indices = @transform_3, window_bounds = array<i64: 1, 256, 128>}]} {
    %c0_i32 = arith.constant 0 : i32
    %0 = arith.cmpi eq, %arg3, %c0_i32 : i32
    %1 = arith.extui %0 : i1 to i32
    %c0_i32_0 = arith.constant 0 : i32
    %2 = arith.cmpi ne, %1, %c0_i32_0 : i32
    scf.if %2 {
      %cst_13 = arith.constant 0.000000e+00 : f32
      %16 = vector.broadcast %cst_13 : f32 to vector<256x128xf32>
      %c0_14 = arith.constant 0 : index
      %c0_15 = arith.constant 0 : index
      %17 = vector.load %arg8[%c0_14, %c0_15] : memref<256x128xf32, #tpu.memory_space<vmem>>, vector<256x128xf32>
      tpu.vector_store %arg8[%c0_14, %c0_15], %16 {strides = array<i32>} : memref<256x128xf32, #tpu.memory_space<vmem>>, vector<256x128xf32>,
    } else {
    }
    %c0 = arith.constant 0 : index
    %c0_1 = arith.constant 0 : index
    %c0_2 = arith.constant 0 : index
    %3 = vector.load %arg4[%c0, %c0_1, %c0_2] : memref<1x256x128xbf16, #tpu.memory_space<vmem>>, vector<1x256x128xbf16>
    %4 = vector.shape_cast %3 : vector<1x256x128xbf16> to vector<256x128xbf16>
    %cst = arith.constant 0.000000e+00 : bf16
    %5 = vector.broadcast %cst : bf16 to vector<256x128xbf16>
    %6 = arith.maximumf %4, %5 : vector<256x128xbf16>
    %c0_3 = arith.constant 0 : index
    %c0_4 = arith.constant 0 : index
    %7 = vector.load %arg8[%c0_3, %c0_4] : memref<256x128xf32, #tpu.memory_space<vmem>>, vector<256x128xf32>
    %c0_5 = arith.constant 0 : index
    %c0_6 = arith.constant 0 : index
    %c0_7 = arith.constant 0 : index
    %8 = vector.load %arg5[%c0_5, %c0_6, %c0_7] : memref<1x128x128xbf16, #tpu.memory_space<vmem>>, vector<1x128x128xbf16>
    %9 = vector.shape_cast %8 : vector<1x128x128xbf16> to vector<128x128xbf16>
    %cst_8 = arith.constant dense<0.000000e+00> : vector<256x128xf32>
    %10 = tpu.matmul %6, %9, %cst_8 {dimension_numbers = #tpu.dot_dimension_numbers<[1], [0], [0], [1], [0, 0, 1, 1], [], []>} : vector<256x128xbf16>, vector<128x128xbf16>, vector<256x128xf32> -> vector<256x128xf32>
    %11 = arith.addf %7, %10 : vector<256x128xf32>
    %c0_9 = arith.constant 0 : index
    %c0_10 = arith.constant 0 : index
    %12 = vector.load %arg8[%c0_9, %c0_10] : memref<256x128xf32, #tpu.memory_space<vmem>>, vector<256x128xf32>
    tpu.vector_store %arg8[%c0_9, %c0_10], %11 {strides = array<i32>} : memref<256x128xf32, #tpu.memory_space<vmem>>, vector<256x128xf32>,
    %c0_i32_11 = arith.constant 0 : i32
    %13 = arith.cmpi eq, %arg3, %c0_i32_11 : i32
    %14 = arith.extui %13 : i1 to i32
    %c0_i32_12 = arith.constant 0 : i32
    %15 = arith.cmpi ne, %14, %c0_i32_12 : i32
    scf.if %15 {
      %c0_13 = arith.constant 0 : index
      %c0_14 = arith.constant 0 : index
      %16 = vector.load %arg8[%c0_13, %c0_14] : memref<256x128xf32, #tpu.memory_space<vmem>>, vector<256x128xf32>
      %c0_15 = arith.constant 0 : index
      %c0_16 = arith.constant 0 : index
      %c0_17 = arith.constant 0 : index
      %17 = vector.load %arg6[%c0_15, %c0_16, %c0_17] : memref<1x1x128xf32, #tpu.memory_space<vmem>>, vector<1x1x128xf32>
      %18 = vector.shape_cast %17 : vector<1x1x128xf32> to vector<1x128xf32>
      %19 = vector.broadcast %18 : vector<1x128xf32> to vector<256x128xf32>
      %20 = arith.addf %16, %19 : vector<256x128xf32>
      %21 = math.tanh %20 : vector<256x128xf32>
      %c0_18 = arith.constant 0 : index
      %c0_19 = arith.constant 0 : index
      %c0_20 = arith.constant 0 : index
      %22 = vector.load %arg7[%c0_18, %c0_19, %c0_20] : memref<1x256x128xf32, #tpu.memory_space<vmem>>, vector<1x256x128xf32>
      %23 = vector.shape_cast %22 : vector<1x256x128xf32> to vector<256x128xf32>
      %24 = vector.shape_cast %21 : vector<256x128xf32> to vector<1x256x128xf32>
      tpu.vector_store %arg7[%c0_18, %c0_19, %c0_20], %24 {strides = array<i32>} : memref<1x256x128xf32, #tpu.memory_space<vmem>>, vector<1x256x128xf32>,
    } else {
    }
    return
  }
  func.func @transform_0(%arg0: i32, %arg1: i32, %arg2: i32, %arg3: i32) -> (i32, i32, i32) {
    %c0_i32 = arith.constant 0 : i32
    return %arg0, %arg1, %arg3 : i32, i32, i32
  }
  func.func @transform_1(%arg0: i32, %arg1: i32, %arg2: i32, %arg3: i32) -> (i32, i32, i32) {
    %c0_i32 = arith.constant 0 : i32
    return %arg0, %arg3, %arg2 : i32, i32, i32
  }
  func.func @transform_2(%arg0: i32, %arg1: i32, %arg2: i32, %arg3: i32) -> (i32, i32, i32) {
    %c0_i32 = arith.constant 0 : i32
    %c0_i32_0 = arith.constant 0 : i32
    return %arg0, %c0_i32, %arg2 : i32, i32, i32
  }
  func.func @transform_3(%arg0: i32, %arg1: i32, %arg2: i32, %arg3: i32) -> (i32, i32, i32) {
    %c0_i32 = arith.constant 0 : i32
    return %arg0, %arg1, %arg2 : i32, i32, i32
  }
}

</mosaic_0001>

<llo_original>
// kernel: mgan_forward.12
$region0: #{mgan_forward.12}
  #allocation0 [shape = 'u32[]', space=smem, size = 0x4, offset = 0x4, fixed_abs, tag = 'smem constant byte address 0x4 - core index']
  #allocation1 [shape = 'u32[144,128]{1,0:T(1,128)}', space=vmem, size = 0x12000, scoped, tag = 'internal scratch']
  #allocation2 [shape = 'f32[512,128]{1,0:T(8,128)}', space=vmem, size = 0x40000, scoped, tag = 'scratch operand']
  %s0 = inlined_call_operand.vmem [shape: bf16[1,2048,128], index: 0, kind: input, shape index: {}]
  %s1 = inlined_call_operand.vmem [shape: bf16[1,128,128], index: 1, kind: input, shape index: {}]
  %s2 = inlined_call_operand.vmem [shape: f32[1,1,128], index: 2, kind: input, shape index: {}]
  %s3 = inlined_call_operand.vmem [shape: f32[1,2048,128], index: 3, kind: output, shape index: {}]
  %s4 = sld [smem:[#allocation0]]
  $region53: #{mgan_forward.12} parent=0
    _
  %s6 = ssub.s32 1, %s4
  %s7 = scalar_select 0, %s6, %s4
  loop: start=0, step=1, limit=6
  $region2: #{mgan_forward.12} parent=0 // loop_pre_header
    _
  $region3: #{mgan_forward.12} parent=0 // loop_header
    %s9 = sphi 0, %s13
    %p10 = scmp.ge.s32.totalorder %s9, 6
    %s16 = sphi 0, %s42
    %s17 = sphi 0, %s38
    %s18 = sphi 0, %s34
    %s19 = sphi 0, %s30
    %s20 = sphi 0, %s16
    %s21 = sphi 0, %s17
    %s22 = sphi 0, %s18
    %s23 = sphi 0, %s19
    %s24 = sphi 0, %s20
    %s25 = sphi 0, %s21
    %s26 = sphi 0, %s22
    %s27 = sphi 0, %s23
    %s49 = sphi 0, %s51
    %s52 = sphi 0, %s49
    %s53 = sphi 0, %s52
    %s69 = sphi 0, %s53
    %s79 = sphi 0, %s81
    %s82 = sphi 0, %s79
    %s83 = sphi 0, %s82
    %s99 = sphi 0, %s83
    %s107 = sphi 0, %s109
    %s110 = sphi 0, %s107
    %s111 = sphi 0, %s110
    %s127 = sphi 0, %s111
    %s137 = sphi 0, %s139
    %s140 = sphi 0, %s137
    %s141 = sphi 0, %s140
    %s157 = sphi 0, %s141
  $region4: #{mgan_forward.12} parent=0 // loop_header_branch
    %12 = sbr.rel (%p10) target = $region8
  $region5: #{mgan_forward.12} parent=0 // loop_body
    %s14 = ssub.s32 %s9, 1
    %s15 = ssub.s32 %s9, 2
    %s28 = sadd.s32 1, %s19
    %p29 = scmp.ge.s32.totalorder %s28, 1
    %s30 = scalar_select %p29, 0, %s28
    %s31 = sadd.s32 1, %s18
    %s32 = scalar_select %p29, %s31, %s18
    %p33 = scmp.ge.s32.totalorder %s32, 1
    %s34 = scalar_select %p33, 0, %s32
    %s35 = sadd.s32 1, %s17
    %s36 = scalar_select %p33, %s35, %s17
    %p37 = scmp.ge.s32.totalorder %s36, 4
    %s38 = scalar_select %p37, 0, %s36
    %s39 = sadd.s32 1, %s16
    %s40 = scalar_select %p37, %s39, %s16
    %p41 = scmp.ge.s32.totalorder %s40, 1
    %s42 = scalar_select %p41, 0, %s40
    %s43 = ssub.s32 %s16, %s42
    %s44 = ssub.s32 %s17, %s38
    %s45 = sor.u32 %s43, %s44
    %s46 = ssub.s32 %s19, %s30
    %s47 = sor.u32 %s45, %s46
    %p48 = scmp.eq.s32.totalorder %s47, 0
    %s50 = sadd.s32 %s49, 1
    %s51 = scalar_select %p48, %s49, %s50
    %p54 = pneg %p48
    %p55 = scmp.eq.s32.totalorder %s9, 3
    %p56 = por %p54, %p55
    %p57 = scmp.ne.s32.totalorder %s49, %s52
    %p58 = scmp.eq.s32.totalorder %s9, 0
    %p59 = por %p57, %p58
    %p60 = scmp.ne.s32.totalorder %s49, %s52
    %p61 = scmp.eq.s32.totalorder %s14, 3
    %p62 = por %p60, %p61
    %p63 = scmp.ne.s32.totalorder %s52, %s53
    %p64 = scmp.eq.s32.totalorder %s14, 0
    %p65 = por %p63, %p64
    %p66 = scmp.ne.s32.totalorder %s52, %s53
    %p67 = scmp.eq.s32.totalorder %s15, 3
    %p68 = por %p66, %p67
    %p70 = scmp.ne.s32.totalorder %s53, %s69
    %p71 = scmp.eq.s32.totalorder %s15, 0
    %p72 = por %p70, %p71
    %s73 = ssub.s32 %s16, %s42
    %s74 = ssub.s32 %s19, %s30
    %s75 = sor.u32 %s73, %s74
    %s76 = ssub.s32 %s18, %s34
    %s77 = sor.u32 %s75, %s76
    %p78 = scmp.eq.s32.totalorder %s77, 0
    %s80 = sadd.s32 %s79, 1
    %s81 = scalar_select %p78, %s79, %s80
    %p84 = pneg %p78
    %p85 = scmp.eq.s32.totalorder %s9, 3
    %p86 = por %p84, %p85
    %p87 = scmp.ne.s32.totalorder %s79, %s82
    %p88 = scmp.eq.s32.totalorder %s9, 0
    %p89 = por %p87, %p88
    %p90 = scmp.ne.s32.totalorder %s79, %s82
    %p91 = scmp.eq.s32.totalorder %s14, 3
    %p92 = por %p90, %p91
    %p93 = scmp.ne.s32.totalorder %s82, %s83
    %p94 = scmp.eq.s32.totalorder %s14, 0
    %p95 = por %p93, %p94
    %p96 = scmp.ne.s32.totalorder %s82, %s83
    %p97 = scmp.eq.s32.totalorder %s15, 3
    %p98 = por %p96, %p97
    %p100 = scmp.ne.s32.totalorder %s83, %s99
    %p101 = scmp.eq.s32.totalorder %s15, 0
    %p102 = por %p100, %p101
    %s103 = ssub.s32 %s16, %s42
    %s104 = ssub.s32 %s18, %s34
    %s105 = sor.u32 %s103, %s104
    %p106 = scmp.eq.s32.totalorder %s105, 0
    %s108 = sadd.s32 %s107, 1
    %s109 = scalar_select %p106, %s107, %s108
    %p112 = pneg %p106
    %p113 = scmp.eq.s32.totalorder %s9, 3
    %p114 = por %p112, %p113
    %p115 = scmp.ne.s32.totalorder %s107, %s110
    %p116 = scmp.eq.s32.totalorder %s9, 0
    %p117 = por %p115, %p116
    %p118 = scmp.ne.s32.totalorder %s107, %s110
    %p119 = scmp.eq.s32.totalorder %s14, 3
    %p120 = por %p118, %p119
    %p121 = scmp.ne.s32.totalorder %s110, %s111
    %p122 = scmp.eq.s32.totalorder %s14, 0
    %p123 = por %p121, %p122
    %p124 = scmp.ne.s32.totalorder %s110, %s111
    %p125 = scmp.eq.s32.totalorder %s15, 3
    %p126 = por %p124, %p125
    %p128 = scmp.ne.s32.totalorder %s111, %s127
    %p129 = scmp.eq.s32.totalorder %s15, 0
    %p130 = por %p128, %p129
    %s131 = ssub.s32 %s16, %s42
    %s132 = ssub.s32 %s17, %s38
    %s133 = sor.u32 %s131, %s132
    %s134 = ssub.s32 %s18, %s34
    %s135 = sor.u32 %s133, %s134
    %p136 = scmp.eq.s32.totalorder %s135, 0
    %s138 = sadd.s32 %s137, 1
    %s139 = scalar_select %p136, %s137, %s138
    %p142 = pneg %p136
    %p143 = scmp.eq.s32.totalorder %s9, 3
    %p144 = por %p142, %p143
    %p145 = scmp.ne.s32.totalorder %s137, %s140
    %p146 = scmp.eq.s32.totalorder %s9, 0
    %p147 = por %p145, %p146
    %p148 = scmp.ne.s32.totalorder %s137, %s140
    %p149 = scmp.eq.s32.totalorder %s14, 3
    %p150 = por %p148, %p149
    %p151 = scmp.ne.s32.totalorder %s140, %s141
    %p152 = scmp.eq.s32.totalorder %s14, 0
    %p153 = por %p151, %p152
    %p154 = scmp.ne.s32.totalorder %s140, %s141
    %p155 = scmp.eq.s32.totalorder %s15, 3
    %p156 = por %p154, %p155
    %p158 = scmp.ne.s32.totalorder %s141, %s157
    %p159 = scmp.eq.s32.totalorder %s15, 0
    %p160 = por %p158, %p159
    %p161 = scmp.le.s32.totalorder 1, %s9
    %p162 = scmp.lt.s32.totalorder %s9, 5
    %p163 = pnand %p161, %p162
    %p164 = pneg %p163
    // Predicated region
    $region9: #{mgan_forward.12} parent=5 // pred_check
      _
    $region10: #{mgan_forward.12} parent=5 // pred_check_branch
      %166 = sbr.rel (%p163) target = $region12
    $region11: #{mgan_forward.12} parent=5 // pred_region
      %s167 = ssub.s32 %s9, 1
      // Predicated region
      $region13: #{mgan_forward.12} parent=11 // pred_check
        %p168 = pneg %p95
      $region14: #{mgan_forward.12} parent=11 // pred_check_branch
        %170 = sbr.rel (%p168) target = $region16
      $region15: #{mgan_forward.12} parent=11 // pred_region
        %s171 = smul.u32 16, %s23
        %p172 = scmp.lt.s32.totalorder %s20, 0
        %s173 = scalar_select %p172, %s20, 0
        %p174 = scmp.lt.s32.totalorder %s171, 15
        %s175 = scalar_select %p174, %s171, 15
        %p176 = scmp.lt.s32.totalorder %s22, 0
        %s177 = scalar_select %p176, %s22, 0
        %s178 = sadd.s32 %s177, %s175
        %s179 = smul.addr %s173, 16
        %s180 = sadd.s32 %s178, %s179
        %s181 = smul.addr %s180, 4
        %s182 = scalar_lea.vmem %s1, %s181
        %s183 = smul.u32 16, %s23
      $region16: #{mgan_forward.12} parent=11 // pred_fallthru
        _
      // Predicated region
      $region17: #{mgan_forward.12} parent=11 // pred_check
        %p184 = pneg %p123
      $region18: #{mgan_forward.12} parent=11 // pred_check_branch
        %186 = sbr.rel (%p184) target = $region20
      $region19: #{mgan_forward.12} parent=11 // pred_region
        %p187 = scmp.lt.s32.totalorder %s20, 0
        %s188 = scalar_select %p187, %s20, 0
        %p189 = scmp.lt.s32.totalorder %s22, 0
        %s190 = scalar_select %p189, %s22, 0
        %s191 = sadd.s32 %s190, %s188
        %s192 = scalar_lea.vmem %s2, %s191
      $region20: #{mgan_forward.12} parent=11 // pred_fallthru
        _
    $region12: #{mgan_forward.12} parent=5 // pred_fallthru
      _
    %p193 = scmp.lt.s32.totalorder %s9, 4
    // Predicated region
    $region21: #{mgan_forward.12} parent=5 // pred_check
      %p194 = pneg %p193
    $region22: #{mgan_forward.12} parent=5 // pred_check_branch
      %196 = sbr.rel (%p194) target = $region24
    $region23: #{mgan_forward.12} parent=5 // pred_region
      // Predicated region
      $region25: #{mgan_forward.12} parent=23 // pred_check
        %p197 = pneg %p59
      $region26: #{mgan_forward.12} parent=23 // pred_check_branch
        %199 = sbr.rel (%p197) target = $region28
      $region27: #{mgan_forward.12} parent=23 // pred_region
        %s200 = smul.u32 64, %s17
        %p201 = scmp.lt.s32.totalorder %s16, 0
        %s202 = scalar_select %p201, %s16, 0
        %p203 = scmp.lt.s32.totalorder %s200, 255
        %s204 = scalar_select %p203, %s200, 255
        %p205 = scmp.lt.s32.totalorder %s19, 0
        %s206 = scalar_select %p205, %s19, 0
        %s207 = sadd.s32 %s206, %s204
        %s208 = smul.addr %s202, 256
        %s209 = sadd.s32 %s207, %s208
        %s210 = smul.addr %s209, 4
        %s211 = scalar_lea.vmem %s0, %s210
        %s212 = smul.u32 64, %s17
      $region28: #{mgan_forward.12} parent=23 // pred_fallthru
        _
    $region24: #{mgan_forward.12} parent=5 // pred_fallthru
      _
    %p213 = scmp.le.s32.totalorder 1, %s9
    %p214 = scmp.lt.s32.totalorder %s9, 5
    %p215 = pnand %p213, %p214
    %p216 = pneg %p215
    // Predicated region
    $region29: #{mgan_forward.12} parent=5 // pred_check
      _
    $region30: #{mgan_forward.12} parent=5 // pred_check_branch
      %218 = sbr.rel (%p215) target = $region32
    $region31: #{mgan_forward.12} parent=5 // pred_region
      %s219 = ssub.s32 %s9, 1
      %s220 = smul.u32 64, %s21
      %p221 = scmp.lt.s32.totalorder %s20, 0
      %s222 = scalar_select %p221, %s20, 0
      %p223 = scmp.lt.s32.totalorder %s220, 255
      %s224 = scalar_select %p223, %s220, 255
      %p225 = scmp.lt.s32.totalorder %s23, 0
      %s226 = scalar_select %p225, %s23, 0
      %s227 = sadd.s32 %s226, %s224
      %s228 = smul.addr %s222, 256
      %s229 = sadd.s32 %s227, %s228
      %s230 = smul.addr %s229, 4
      %s231 = scalar_lea.vmem %s0, %s230
      %p232 = pneg %p65
      %p233 = pneg %p62
      %s234 = smul.u32 16, %s23
      %p235 = scmp.lt.s32.totalorder %s20, 0
      %s236 = scalar_select %p235, %s20, 0
      %p237 = scmp.lt.s32.totalorder %s234, 15
      %s238 = scalar_select %p237, %s234, 15
      %p239 = scmp.lt.s32.totalorder %s22, 0
      %s240 = scalar_select %p239, %s22, 0
      %s241 = sadd.s32 %s240, %s238
      %s242 = smul.addr %s236, 16
      %s243 = sadd.s32 %s241, %s242
      %s244 = smul.addr %s243, 4
      %s245 = scalar_lea.vmem %s1, %s244
      %p246 = pneg %p95
      %p247 = pneg %p92
      %p248 = scmp.lt.s32.totalorder %s20, 0
      %s249 = scalar_select %p248, %s20, 0
      %p250 = scmp.lt.s32.totalorder %s22, 0
      %s251 = scalar_select %p250, %s22, 0
      %s252 = sadd.s32 %s251, %s249
      %s253 = scalar_lea.vmem %s2, %s252
      %p254 = pneg %p123
      %p255 = pneg %p120
      %p256 = pneg %p153
      %p257 = pneg %p150
      %s258 = smul.u32 64, %s21
      %p259 = scmp.lt.s32.totalorder %s20, 0
      %s260 = scalar_select %p259, %s20, 0
      %p261 = scmp.lt.s32.totalorder %s258, 255
      %s262 = scalar_select %p261, %s258, 255
      %p263 = scmp.lt.s32.totalorder %s22, 0
      %s264 = scalar_select %p263, %s22, 0
      %s265 = sadd.s32 %s264, %s262
      %s266 = smul.addr %s260, 256
      %s267 = sadd.s32 %s265, %s266
      %s268 = smul.addr %s267, 8
      %s269 = scalar_lea.vmem %s3, %s268
      %s270 = smul.u32 64, %s21
      %p271 = scmp.lt.s32.totalorder %s20, 0
      %s272 = scalar_select %p271, %s20, 0
      %p273 = scmp.lt.s32.totalorder %s270, 255
      %s274 = scalar_select %p273, %s270, 255
      %p275 = scmp.lt.s32.totalorder %s23, 0
      %s276 = scalar_select %p275, %s23, 0
      %s277 = sadd.s32 %s276, %s274
      %s278 = smul.addr %s272, 256
      %s279 = sadd.s32 %s277, %s278
      %s280 = smul.addr %s279, 4
      %s281 = scalar_lea.vmem %s0, %s280
      %s282 = smul.u32 64, %s21
      %s283 = smul.u32 16, %s23
      %p284 = scmp.lt.s32.totalorder %s20, 0
      %s285 = scalar_select %p284, %s20, 0
      %p286 = scmp.lt.s32.totalorder %s283, 15
      %s287 = scalar_select %p286, %s283, 15
      %p288 = scmp.lt.s32.totalorder %s22, 0
      %s289 = scalar_select %p288, %s22, 0
      %s290 = sadd.s32 %s289, %s287
      %s291 = smul.addr %s285, 16
      %s292 = sadd.s32 %s290, %s291
      %s293 = smul.addr %s292, 4
      %s294 = scalar_lea.vmem %s1, %s293
      %s295 = smul.u32 16, %s23
      %p296 = scmp.lt.s32.totalorder %s20, 0
      %s297 = scalar_select %p296, %s20, 0
      %p298 = scmp.lt.s32.totalorder %s22, 0
      %s299 = scalar_select %p298, %s22, 0
      %s300 = sadd.s32 %s299, %s297
      %s301 = scalar_lea.vmem %s2, %s300
      %s302 = smul.u32 64, %s21
      %p303 = scmp.lt.s32.totalorder %s20, 0
      %s304 = scalar_select %p303, %s20, 0
      %p305 = scmp.lt.s32.totalorder %s302, 255
      %s306 = scalar_select %p305, %s302, 255
      %p307 = scmp.lt.s32.totalorder %s22, 0
      %s308 = scalar_select %p307, %s22, 0
      %s309 = sadd.s32 %s308, %s306
      %s310 = smul.addr %s304, 256
      %s311 = sadd.s32 %s309, %s310
      %s312 = smul.addr %s311, 8
      %s313 = scalar_lea.vmem %s3, %s312
      %s314 = smul.u32 64, %s21
      %p316 = scmp.eq.s32.totalorder %s23, 0
      // Predicated region
      $region33: #{mgan_forward.12} parent=31 // pred_check
        %p317 = pneg %p316
      $region34: #{mgan_forward.12} parent=31 // pred_check_branch
        %319 = sbr.rel (%p317) target = $region36
      $region35: #{mgan_forward.12} parent=31 // pred_region
        %320 = vst [vmem:[#allocation2] sm:$0xff] 0.0
        %321 = vst [vmem:[#allocation2 + $0x8] sm:$0xff] 0.0
        %322 = vst [vmem:[#allocation2 + $0x10] sm:$0xff] 0.0
        %323 = vst [vmem:[#allocation2 + $0x18] sm:$0xff] 0.0
        %324 = vst [vmem:[#allocation2 + $0x20] sm:$0xff] 0.0
        %325 = vst [vmem:[#allocation2 + $0x28] sm:$0xff] 0.0
        %326 = vst [vmem:[#allocation2 + $0x30] sm:$0xff] 0.0
        %327 = vst [vmem:[#allocation2 + $0x38] sm:$0xff] 0.0
        %328 = vst [vmem:[#allocation2 + $0x40] sm:$0xff] 0.0
        %329 = vst [vmem:[#allocation2 + $0x48] sm:$0xff] 0.0
        %330 = vst [vmem:[#allocation2 + $0x50] sm:$0xff] 0.0
        %331 = vst [vmem:[#allocation2 + $0x58] sm:$0xff] 0.0
        %332 = vst [vmem:[#allocation2 + $0x60] sm:$0xff] 0.0
        %333 = vst [vmem:[#allocation2 + $0x68] sm:$0xff] 0.0
        %334 = vst [vmem:[#allocation2 + $0x70] sm:$0xff] 0.0
        %335 = vst [vmem:[#allocation2 + $0x78] sm:$0xff] 0.0
        %336 = vst [vmem:[#allocation2 + $0x80] sm:$0xff] 0.0
        %337 = vst [vmem:[#allocation2 + $0x88] sm:$0xff] 0.0
        %338 = vst [vmem:[#allocation2 + $0x90] sm:$0xff] 0.0
        %339 = vst [vmem:[#allocation2 + $0x98] sm:$0xff] 0.0
        %340 = vst [vmem:[#allocation2 + $0xa0] sm:$0xff] 0.0
        %341 = vst [vmem:[#allocation2 + $0xa8] sm:$0xff] 0.0
        %342 = vst [vmem:[#allocation2 + $0xb0] sm:$0xff] 0.0
        %343 = vst [vmem:[#allocation2 + $0xb8] sm:$0xff] 0.0
        %344 = vst [vmem:[#allocation2 + $0xc0] sm:$0xff] 0.0
        %345 = vst [vmem:[#allocation2 + $0xc8] sm:$0xff] 0.0
        %346 = vst [vmem:[#allocation2 + $0xd0] sm:$0xff] 0.0
        %347 = vst [vmem:[#allocation2 + $0xd8] sm:$0xff] 0.0
        %348 = vst [vmem:[#allocation2 + $0xe0] sm:$0xff] 0.0
        %349 = vst [vmem:[#allocation2 + $0xe8] sm:$0xff] 0.0
        %350 = vst [vmem:[#allocation2 + $0xf0] sm:$0xff] 0.0
        %351 = vst [vmem:[#allocation2 + $0xf8] sm:$0xff] 0.0
        %352 = vst [vmem:[#allocation2 + $0x100] sm:$0xff] 0.0
        %353 = vst [vmem:[#allocation2 + $0x108] sm:$0xff] 0.0
        %354 = vst [vmem:[#allocation2 + $0x110] sm:$0xff] 0.0
        %355 = vst [vmem:[#allocation2 + $0x118] sm:$0xff] 0.0
        %356 = vst [vmem:[#allocation2 + $0x120] sm:$0xff] 0.0
        %357 = vst [vmem:[#allocation2 + $0x128] sm:$0xff] 0.0
        %358 = vst [vmem:[#allocation2 + $0x130] sm:$0xff] 0.0
        %359 = vst [vmem:[#allocation2 + $0x138] sm:$0xff] 0.0
        %360 = vst [vmem:[#allocation2 + $0x140] sm:$0xff] 0.0
        %361 = vst [vmem:[#allocation2 + $0x148] sm:$0xff] 0.0
        %362 = vst [vmem:[#allocation2 + $0x150] sm:$0xff] 0.0
        %363 = vst [vmem:[#allocation2 + $0x158] sm:$0xff] 0.0
        %364 = vst [vmem:[#allocation2 + $0x160] sm:$0xff] 0.0
        %365 = vst [vmem:[#allocation2 + $0x168] sm:$0xff] 0.0
        %366 = vst [vmem:[#allocation2 + $0x170] sm:$0xff] 0.0
        %367 = vst [vmem:[#allocation2 + $0x178] sm:$0xff] 0.0
        %368 = vst [vmem:[#allocation2 + $0x180] sm:$0xff] 0.0
        %369 = vst [vmem:[#allocation2 + $0x188] sm:$0xff] 0.0
        %370 = vst [vmem:[#allocation2 + $0x190] sm:$0xff] 0.0
        %371 = vst [vmem:[#allocation2 + $0x198] sm:$0xff] 0.0
        %372 = vst [vmem:[#allocation2 + $0x1a0] sm:$0xff] 0.0
        %373 = vst [vmem:[#allocation2 + $0x1a8] sm:$0xff] 0.0
        %374 = vst [vmem:[#allocation2 + $0x1b0] sm:$0xff] 0.0
        %375 = vst [vmem:[#allocation2 + $0x1b8] sm:$0xff] 0.0
        %376 = vst [vmem:[#allocation2 + $0x1c0] sm:$0xff] 0.0
        %377 = vst [vmem:[#allocation2 + $0x1c8] sm:$0xff] 0.0
        %378 = vst [vmem:[#allocation2 + $0x1d0] sm:$0xff] 0.0
        %379 = vst [vmem:[#allocation2 + $0x1d8] sm:$0xff] 0.0
        %380 = vst [vmem:[#allocation2 + $0x1e0] sm:$0xff] 0.0
        %381 = vst [vmem:[#allocation2 + $0x1e8] sm:$0xff] 0.0
        %382 = vst [vmem:[#allocation2 + $0x1f0] sm:$0xff] 0.0
        %383 = vst [vmem:[#allocation2 + $0x1f8] sm:$0xff] 0.0
      $region36: #{mgan_forward.12} parent=31 // pred_fallthru
        _
      %v384 = vld [vmem:[%s281] sm:$0xf]
      %v385 = vld [vmem:[%s281 + $0x4] sm:$0xf]
      %v386 = vld [vmem:[%s281 + $0x8] sm:$0xf]
      %v387 = vld [vmem:[%s281 + $0xc] sm:$0xf]
      %v388 = vld [vmem:[%s281 + $0x10] sm:$0xf]
      %v389 = vld [vmem:[%s281 + $0x14] sm:$0xf]
      %v390 = vld [vmem:[%s281 + $0x18] sm:$0xf]
      %v391 = vld [vmem:[%s281 + $0x1c] sm:$0xf]
      %v392 = vld [vmem:[%s281 + $0x20] sm:$0xf]
      %v393 = vld [vmem:[%s281 + $0x24] sm:$0xf]
      %v394 = vld [vmem:[%s281 + $0x28] sm:$0xf]
      %v395 = vld [vmem:[%s281 + $0x2c] sm:$0xf]
      %v396 = vld [vmem:[%s281 + $0x30] sm:$0xf]
      %v397 = vld [vmem:[%s281 + $0x34] sm:$0xf]
      %v398 = vld [vmem:[%s281 + $0x38] sm:$0xf]
      %v399 = vld [vmem:[%s281 + $0x3c] sm:$0xf]
      %v400 = vld [vmem:[%s281 + $0x40] sm:$0xf]
      %v401 = vld [vmem:[%s281 + $0x44] sm:$0xf]
      %v402 = vld [vmem:[%s281 + $0x48] sm:$0xf]
      %v403 = vld [vmem:[%s281 + $0x4c] sm:$0xf]
      %v404 = vld [vmem:[%s281 + $0x50] sm:$0xf]
      %v405 = vld [vmem:[%s281 + $0x54] sm:$0xf]
      %v406 = vld [vmem:[%s281 + $0x58] sm:$0xf]
      %v407 = vld [vmem:[%s281 + $0x5c] sm:$0xf]
      %v408 = vld [vmem:[%s281 + $0x60] sm:$0xf]
      %v409 = vld [vmem:[%s281 + $0x64] sm:$0xf]
      %v410 = vld [vmem:[%s281 + $0x68] sm:$0xf]
      %v411 = vld [vmem:[%s281 + $0x6c] sm:$0xf]
      %v412 = vld [vmem:[%s281 + $0x70] sm:$0xf]
      %v413 = vld [vmem:[%s281 + $0x74] sm:$0xf]
      %v414 = vld [vmem:[%s281 + $0x78] sm:$0xf]
      %v415 = vld [vmem:[%s281 + $0x7c] sm:$0xf]
      %v416 = vld [vmem:[%s281 + $0x80] sm:$0xf]
      %v417 = vld [vmem:[%s281 + $0x84] sm:$0xf]
      %v418 = vld [vmem:[%s281 + $0x88] sm:$0xf]
      %v419 = vld [vmem:[%s281 + $0x8c] sm:$0xf]
      %v420 = vld [vmem:[%s281 + $0x90] sm:$0xf]
      %v421 = vld [vmem:[%s281 + $0x94] sm:$0xf]
      %v422 = vld [vmem:[%s281 + $0x98] sm:$0xf]
      %v423 = vld [vmem:[%s281 + $0x9c] sm:$0xf]
      %v424 = vld [vmem:[%s281 + $0xa0] sm:$0xf]
      %v425 = vld [vmem:[%s281 + $0xa4] sm:$0xf]
      %v426 = vld [vmem:[%s281 + $0xa8] sm:$0xf]
      %v427 = vld [vmem:[%s281 + $0xac] sm:$0xf]
      %v428 = vld [vmem:[%s281 + $0xb0] sm:$0xf]
      %v429 = vld [vmem:[%s281 + $0xb4] sm:$0xf]
      %v430 = vld [vmem:[%s281 + $0xb8] sm:$0xf]
      %v431 = vld [vmem:[%s281 + $0xbc] sm:$0xf]
      %v432 = vld [vmem:[%s281 + $0xc0] sm:$0xf]
      %v433 = vld [vmem:[%s281 + $0xc4] sm:$0xf]
      %v434 = vld [vmem:[%s281 + $0xc8] sm:$0xf]
      %v435 = vld [vmem:[%s281 + $0xcc] sm:$0xf]
      %v436 = vld [vmem:[%s281 + $0xd0] sm:$0xf]
      %v437 = vld [vmem:[%s281 + $0xd4] sm:$0xf]
      %v438 = vld [vmem:[%s281 + $0xd8] sm:$0xf]
      %v439 = vld [vmem:[%s281 + $0xdc] sm:$0xf]
      %v440 = vld [vmem:[%s281 + $0xe0] sm:$0xf]
      %v441 = vld [vmem:[%s281 + $0xe4] sm:$0xf]
      %v442 = vld [vmem:[%s281 + $0xe8] sm:$0xf]
      %v443 = vld [vmem:[%s281 + $0xec] sm:$0xf]
      %v444 = vld [vmem:[%s281 + $0xf0] sm:$0xf]
      %v445 = vld [vmem:[%s281 + $0xf4] sm:$0xf]
      %v446 = vld [vmem:[%s281 + $0xf8] sm:$0xf]
      %v447 = vld [vmem:[%s281 + $0xfc] sm:$0xf]
      %v448 = vld [vmem:[#allocation2] sm:$0xff]
      %v449 = vld [vmem:[#allocation2 + $0x8] sm:$0xff]
      %v450 = vld [vmem:[#allocation2 + $0x10] sm:$0xff]
      %v451 = vld [vmem:[#allocation2 + $0x18] sm:$0xff]
      %v452 = vld [vmem:[#allocation2 + $0x20] sm:$0xff]
      %v453 = vld [vmem:[#allocation2 + $0x28] sm:$0xff]
      %v454 = vld [vmem:[#allocation2 + $0x30] sm:$0xff]
      %v455 = vld [vmem:[#allocation2 + $0x38] sm:$0xff]
      %v456 = vld [vmem:[#allocation2 + $0x40] sm:$0xff]
      %v457 = vld [vmem:[#allocation2 + $0x48] sm:$0xff]
      %v458 = vld [vmem:[#allocation2 + $0x50] sm:$0xff]
      %v459 = vld [vmem:[#allocation2 + $0x58] sm:$0xff]
      %v460 = vld [vmem:[#allocation2 + $0x60] sm:$0xff]
      %v461 = vld [vmem:[#allocation2 + $0x68] sm:$0xff]
      %v462 = vld [vmem:[#allocation2 + $0x70] sm:$0xff]
      %v463 = vld [vmem:[#allocation2 + $0x78] sm:$0xff]
      %v464 = vld [vmem:[#allocation2 + $0x80] sm:$0xff]
      %v465 = vld [vmem:[#allocation2 + $0x88] sm:$0xff]
      %v466 = vld [vmem:[#allocation2 + $0x90] sm:$0xff]
      %v467 = vld [vmem:[#allocation2 + $0x98] sm:$0xff]
      %v468 = vld [vmem:[#allocation2 + $0xa0] sm:$0xff]
      %v469 = vld [vmem:[#allocation2 + $0xa8] sm:$0xff]
      %v470 = vld [vmem:[#allocation2 + $0xb0] sm:$0xff]
      %v471 = vld [vmem:[#allocation2 + $0xb8] sm:$0xff]
      %v472 = vld [vmem:[#allocation2 + $0xc0] sm:$0xff]
      %v473 = vld [vmem:[#allocation2 + $0xc8] sm:$0xff]
      %v474 = vld [vmem:[#allocation2 + $0xd0] sm:$0xff]
      %v475 = vld [vmem:[#allocation2 + $0xd8] sm:$0xff]
      %v476 = vld [vmem:[#allocation2 + $0xe0] sm:$0xff]
      %v477 = vld [vmem:[#allocation2 + $0xe8] sm:$0xff]
      %v478 = vld [vmem:[#allocation2 + $0xf0] sm:$0xff]
      %v479 = vld [vmem:[#allocation2 + $0xf8] sm:$0xff]
      %v480 = vld [vmem:[#allocation2 + $0x100] sm:$0xff]
      %v481 = vld [vmem:[#allocation2 + $0x108] sm:$0xff]
      %v482 = vld [vmem:[#allocation2 + $0x110] sm:$0xff]
      %v483 = vld [vmem:[#allocation2 + $0x118] sm:$0xff]
      %v484 = vld [vmem:[#allocation2 + $0x120] sm:$0xff]
      %v485 = vld [vmem:[#allocation2 + $0x128] sm:$0xff]
      %v486 = vld [vmem:[#allocation2 + $0x130] sm:$0xff]
      %v487 = vld [vmem:[#allocation2 + $0x138] sm:$0xff]
      %v488 = vld [vmem:[#allocation2 + $0x140] sm:$0xff]
      %v489 = vld [vmem:[#allocation2 + $0x148] sm:$0xff]
      %v490 = vld [vmem:[#allocation2 + $0x150] sm:$0xff]
      %v491 = vld [vmem:[#allocation2 + $0x158] sm:$0xff]
      %v492 = vld [vmem:[#allocation2 + $0x160] sm:$0xff]
      %v493 = vld [vmem:[#allocation2 + $0x168] sm:$0xff]
      %v494 = vld [vmem:[#allocation2 + $0x170] sm:$0xff]
      %v495 = vld [vmem:[#allocation2 + $0x178] sm:$0xff]
      %v496 = vld [vmem:[#allocation2 + $0x180] sm:$0xff]
      %v497 = vld [vmem:[#allocation2 + $0x188] sm:$0xff]
      %v498 = vld [vmem:[#allocation2 + $0x190] sm:$0xff]
      %v499 = vld [vmem:[#allocation2 + $0x198] sm:$0xff]
      %v500 = vld [vmem:[#allocation2 + $0x1a0] sm:$0xff]
      %v501 = vld [vmem:[#allocation2 + $0x1a8] sm:$0xff]
      %v502 = vld [vmem:[#allocation2 + $0x1b0] sm:$0xff]
      %v503 = vld [vmem:[#allocation2 + $0x1b8] sm:$0xff]
      %v504 = vld [vmem:[#allocation2 + $0x1c0] sm:$0xff]
      %v505 = vld [vmem:[#allocation2 + $0x1c8] sm:$0xff]
      %v506 = vld [vmem:[#allocation2 + $0x1d0] sm:$0xff]
      %v507 = vld [vmem:[#allocation2 + $0x1d8] sm:$0xff]
      %v508 = vld [vmem:[#allocation2 + $0x1e0] sm:$0xff]
      %v509 = vld [vmem:[#allocation2 + $0x1e8] sm:$0xff]
      %v510 = vld [vmem:[#allocation2 + $0x1f0] sm:$0xff]
      %v511 = vld [vmem:[#allocation2 + $0x1f8] sm:$0xff]
      %v512 = vld [vmem:[%s294] sm:$0xf]
      %v513 = vld [vmem:[%s294 + $0x4] sm:$0xf]
      %v514 = vld [vmem:[%s294 + $0x8] sm:$0xf]
      %v515 = vld [vmem:[%s294 + $0xc] sm:$0xf]
      %v516 = vld [vmem:[%s294 + $0x10] sm:$0xf]
      %v517 = vld [vmem:[%s294 + $0x14] sm:$0xf]
      %v518 = vld [vmem:[%s294 + $0x18] sm:$0xf]
      %v519 = vld [vmem:[%s294 + $0x1c] sm:$0xf]
      %v520 = vld [vmem:[%s294 + $0x20] sm:$0xf]
      %v521 = vld [vmem:[%s294 + $0x24] sm:$0xf]
      %v522 = vld [vmem:[%s294 + $0x28] sm:$0xf]
      %v523 = vld [vmem:[%s294 + $0x2c] sm:$0xf]
      %v524 = vld [vmem:[%s294 + $0x30] sm:$0xf]
      %v525 = vld [vmem:[%s294 + $0x34] sm:$0xf]
      %v526 = vld [vmem:[%s294 + $0x38] sm:$0xf]
      %v527 = vld [vmem:[%s294 + $0x3c] sm:$0xf]
      %v592 = vunpack.c.l.b16 %v384
      %v593 = vunpack.c.l.b16 %v385
      %v594 = vunpack.c.l.b16 %v386
      %v595 = vunpack.c.l.b16 %v387
      %v596 = vunpack.c.l.b16 %v388
      %v597 = vunpack.c.l.b16 %v389
      %v598 = vunpack.c.l.b16 %v390
      %v599 = vunpack.c.l.b16 %v391
      %v600 = vunpack.c.l.b16 %v392
      %v601 = vunpack.c.l.b16 %v393
      %v602 = vunpack.c.l.b16 %v394
      %v603 = vunpack.c.l.b16 %v395
      %v604 = vunpack.c.l.b16 %v396
      %v605 = vunpack.c.l.b16 %v397
      %v606 = vunpack.c.l.b16 %v398
      %v607 = vunpack.c.l.b16 %v399
      %v608 = vunpack.c.l.b16 %v400
      %v609 = vunpack.c.l.b16 %v401
      %v610 = vunpack.c.l.b16 %v402
      %v611 = vunpack.c.l.b16 %v403
      %v612 = vunpack.c.l.b16 %v404
      %v613 = vunpack.c.l.b16 %v405
      %v614 = vunpack.c.l.b16 %v406
      %v615 = vunpack.c.l.b16 %v407
      %v616 = vunpack.c.l.b16 %v408
      %v617 = vunpack.c.l.b16 %v409
      %v618 = vunpack.c.l.b16 %v410
      %v619 = vunpack.c.l.b16 %v411
      %v620 = vunpack.c.l.b16 %v412
      %v621 = vunpack.c.l.b16 %v413
      %v622 = vunpack.c.l.b16 %v414
      %v623 = vunpack.c.l.b16 %v415
      %v624 = vunpack.c.l.b16 %v416
      %v625 = vunpack.c.l.b16 %v417
      %v626 = vunpack.c.l.b16 %v418
      %v627 = vunpack.c.l.b16 %v419
      %v628 = vunpack.c.l.b16 %v420
      %v629 = vunpack.c.l.b16 %v421
      %v630 = vunpack.c.l.b16 %v422
      %v631 = vunpack.c.l.b16 %v423
      %v632 = vunpack.c.l.b16 %v424
      %v633 = vunpack.c.l.b16 %v425
      %v634 = vunpack.c.l.b16 %v426
      %v635 = vunpack.c.l.b16 %v427
      %v636 = vunpack.c.l.b16 %v428
      %v637 = vunpack.c.l.b16 %v429
      %v638 = vunpack.c.l.b16 %v430
      %v639 = vunpack.c.l.b16 %v431
      %v640 = vunpack.c.l.b16 %v432
      %v641 = vunpack.c.l.b16 %v433
      %v642 = vunpack.c.l.b16 %v434
      %v643 = vunpack.c.l.b16 %v435
      %v644 = vunpack.c.l.b16 %v436
      %v645 = vunpack.c.l.b16 %v437
      %v646 = vunpack.c.l.b16 %v438
      %v647 = vunpack.c.l.b16 %v439
      %v648 = vunpack.c.l.b16 %v440
      %v649 = vunpack.c.l.b16 %v441
      %v650 = vunpack.c.l.b16 %v442
      %v651 = vunpack.c.l.b16 %v443
      %v652 = vunpack.c.l.b16 %v444
      %v653 = vunpack.c.l.b16 %v445
      %v654 = vunpack.c.l.b16 %v446
      %v655 = vunpack.c.l.b16 %v447
      %v656 = vpack.c.b16 %v593, %v592
      %v657 = vpack.c.b16 %v595, %v594
      %v658 = vpack.c.b16 %v597, %v596
      %v659 = vpack.c.b16 %v599, %v598
      %v660 = vpack.c.b16 %v601, %v600
      %v661 = vpack.c.b16 %v603, %v602
      %v662 = vpack.c.b16 %v605, %v604
      %v663 = vpack.c.b16 %v607, %v606
      %v664 = vpack.c.b16 %v609, %v608
      %v665 = vpack.c.b16 %v611, %v610
      %v666 = vpack.c.b16 %v613, %v612
      %v667 = vpack.c.b16 %v615, %v614
      %v668 = vpack.c.b16 %v617, %v616
      %v669 = vpack.c.b16 %v619, %v618
      %v670 = vpack.c.b16 %v621, %v620
      %v671 = vpack.c.b16 %v623, %v622
      %v672 = vpack.c.b16 %v625, %v624
      %v673 = vpack.c.b16 %v627, %v626
      %v674 = vpack.c.b16 %v629, %v628
      %v675 = vpack.c.b16 %v631, %v630
      %v676 = vpack.c.b16 %v633, %v632
      %v677 = vpack.c.b16 %v635, %v634
      %v678 = vpack.c.b16 %v637, %v636
      %v679 = vpack.c.b16 %v639, %v638
      %v680 = vpack.c.b16 %v641, %v640
      %v681 = vpack.c.b16 %v643, %v642
      %v682 = vpack.c.b16 %v645, %v644
      %v683 = vpack.c.b16 %v647, %v646
      %v684 = vpack.c.b16 %v649, %v648
      %v685 = vpack.c.b16 %v651, %v650
      %v686 = vpack.c.b16 %v653, %v652
      %v687 = vpack.c.b16 %v655, %v654
      %v736 = vunpack.c.l.b16 %v512
      %v737 = vunpack.c.l.b16 %v513
      %v738 = vunpack.c.l.b16 %v514
      %v739 = vunpack.c.l.b16 %v515
      %v740 = vunpack.c.l.b16 %v516
      %v741 = vunpack.c.l.b16 %v517
      %v742 = vunpack.c.l.b16 %v518
      %v743 = vunpack.c.l.b16 %v519
      %v744 = vunpack.c.l.b16 %v520
      %v745 = vunpack.c.l.b16 %v521
      %v746 = vunpack.c.l.b16 %v522
      %v747 = vunpack.c.l.b16 %v523
      %v748 = vunpack.c.l.b16 %v524
      %v749 = vunpack.c.l.b16 %v525
      %v750 = vunpack.c.l.b16 %v526
      %v751 = vunpack.c.l.b16 %v527
      %v752 = vpack.c.b16 %v737, %v736
      %v753 = vpack.c.b16 %v739, %v738
      %v754 = vpack.c.b16 %v741, %v740
      %v755 = vpack.c.b16 %v743, %v742
      %v756 = vpack.c.b16 %v745, %v744
      %v757 = vpack.c.b16 %v747, %v746
      %v758 = vpack.c.b16 %v749, %v748
      %v759 = vpack.c.b16 %v751, %v750
      %768 = vmatprep.subr.bf16.mxu0 0
      %769 = vmatpush1.bf16.msra.mxu0 %v759
      %770 = vmatprep.subr.bf16.mxu0 0
      %771 = vmatpush1.bf16.msra.mxu0 %v758
      %772 = vmatprep.subr.bf16.mxu0 0
      %773 = vmatpush1.bf16.msra.mxu0 %v757
      %774 = vmatprep.subr.bf16.mxu0 0
      %775 = vmatpush1.bf16.msra.mxu0 %v756
      %776 = vmatprep.subr.bf16.mxu0 0
      %777 = vmatpush1.bf16.msra.mxu0 %v755
      %778 = vmatprep.subr.bf16.mxu0 0
      %779 = vmatpush1.bf16.msra.mxu0 %v754
      %780 = vmatprep.subr.bf16.mxu0 0
      %781 = vmatpush1.bf16.msra.mxu0 %v753
      %782 = vmatprep.subr.bf16.mxu0 0
      %783 = vmatpush1.bf16.msra.mxu0 %v752
      %784 = vmatprep.subr.bf16.mxu0 0
      %785 = vmatpush2.bf16.msra.mxu0 0
      %786 = vmatprep.subr.bf16.mxu0 0
      %787 = vmatpush2.bf16.msra.mxu0 0
      %788 = vmatprep.subr.bf16.mxu0 0
      %789 = vmatpush2.bf16.msra.mxu0 0
      %790 = vmatprep.subr.bf16.mxu0 0
      %791 = vmatpush2.bf16.msra.mxu0 0
      %792 = vmatprep.subr.bf16.mxu0 0
      %793 = vmatpush2.bf16.msra.mxu0 0
      %794 = vmatprep.subr.bf16.mxu0 0
      %795 = vmatpush2.bf16.msra.mxu0 0
      %796 = vmatprep.subr.bf16.mxu0 0
      %797 = vmatpush2.bf16.msra.mxu0 0
      %798 = vmatprep.subr.bf16.mxu0 0
      %799 = vmatpush2.bf16.msra.mxu0 0
      %800 = vmatprep.mubr.bf16.mxu0 0
      %801 = vmatmul.mubr.bf16.gmra.mxu0 %v656
      %v802 = vpop.f32.mrf.mxu0
      %v803 = vadd.f32 0.0, %v802
      %v804 = vpop.f32.mrf.mxu0
      %v805 = vpop.f32.mrf.mxu0
      %v806 = vadd.f32 0.0, %v805
      %v807 = vpop.f32.mrf.mxu0
      %808 = vmatprep.mubr.bf16.mxu0 0
      %809 = vmatmul.mubr.bf16.gmra.mxu0 %v657
      %v810 = vpop.f32.mrf.mxu0
      %v811 = vadd.f32 0.0, %v810
      %v812 = vpop.f32.mrf.mxu0
      %v813 = vpop.f32.mrf.mxu0
      %v814 = vadd.f32 0.0, %v813
      %v815 = vpop.f32.mrf.mxu0
      %816 = vmatprep.mubr.bf16.mxu0 0
      %817 = vmatmul.mubr.bf16.gmra.mxu0 %v658
      %v818 = vpop.f32.mrf.mxu0
      %v819 = vadd.f32 0.0, %v818
      %v820 = vpop.f32.mrf.mxu0
      %v821 = vpop.f32.mrf.mxu0
      %v822 = vadd.f32 0.0, %v821
      %v823 = vpop.f32.mrf.mxu0
      %824 = vmatprep.mubr.bf16.mxu0 0
      %825 = vmatmul.mubr.bf16.gmra.mxu0 %v659
      %v826 = vpop.f32.mrf.mxu0
      %v827 = vadd.f32 0.0, %v826
      %v828 = vpop.f32.mrf.mxu0
      %v829 = vpop.f32.mrf.mxu0
      %v830 = vadd.f32 0.0, %v829
      %v831 = vpop.f32.mrf.mxu0
      %832 = vmatprep.mubr.bf16.mxu0 0
      %833 = vmatmul.mubr.bf16.gmra.mxu0 %v660
      %v834 = vpop.f32.mrf.mxu0
      %v835 = vadd.f32 0.0, %v834
      %v836 = vpop.f32.mrf.mxu0
      %v837 = vpop.f32.mrf.mxu0
      %v838 = vadd.f32 0.0, %v837
      %v839 = vpop.f32.mrf.mxu0
      %840 = vmatprep.mubr.bf16.mxu0 0
      %841 = vmatmul.mubr.bf16.gmra.mxu0 %v661
      %v842 = vpop.f32.mrf.mxu0
      %v843 = vadd.f32 0.0, %v842
      %v844 = vpop.f32.mrf.mxu0
      %v845 = vpop.f32.mrf.mxu0
      %v846 = vadd.f32 0.0, %v845
      %v847 = vpop.f32.mrf.mxu0
      %848 = vmatprep.mubr.bf16.mxu0 0
      %849 = vmatmul.mubr.bf16.gmra.mxu0 %v662
      %v850 = vpop.f32.mrf.mxu0
      %v851 = vadd.f32 0.0, %v850
      %v852 = vpop.f32.mrf.mxu0
      %v853 = vpop.f32.mrf.mxu0
      %v854 = vadd.f32 0.0, %v853
      %v855 = vpop.f32.mrf.mxu0
      %856 = vmatprep.mubr.bf16.mxu0 0
      %857 = vmatmul.mubr.bf16.gmra.mxu0 %v663
      %v858 = vpop.f32.mrf.mxu0
      %v859 = vadd.f32 0.0, %v858
      %v860 = vpop.f32.mrf.mxu0
      %v861 = vpop.f32.mrf.mxu0
      %v862 = vadd.f32 0.0, %v861
      %v863 = vpop.f32.mrf.mxu0
      %864 = vmatprep.mubr.bf16.mxu0 0
      %865 = vmatmul.mubr.bf16.gmra.mxu0 %v664
      %v866 = vpop.f32.mrf.mxu0
      %v867 = vadd.f32 0.0, %v866
      %v868 = vpop.f32.mrf.mxu0
      %v869 = vpop.f32.mrf.mxu0
      %v870 = vadd.f32 0.0, %v869
      %v871 = vpop.f32.mrf.mxu0
      %872 = vmatprep.mubr.bf16.mxu0 0
      %873 = vmatmul.mubr.bf16.gmra.mxu0 %v665
      %v874 = vpop.f32.mrf.mxu0
      %v875 = vadd.f32 0.0, %v874
      %v876 = vpop.f32.mrf.mxu0
      %v877 = vpop.f32.mrf.mxu0
      %v878 = vadd.f32 0.0, %v877
      %v879 = vpop.f32.mrf.mxu0
      %880 = vmatprep.mubr.bf16.mxu0 0
      %881 = vmatmul.mubr.bf16.gmra.mxu0 %v666
      %v882 = vpop.f32.mrf.mxu0
      %v883 = vadd.f32 0.0, %v882
      %v884 = vpop.f32.mrf.mxu0
      %v885 = vpop.f32.mrf.mxu0
      %v886 = vadd.f32 0.0, %v885
      %v887 = vpop.f32.mrf.mxu0
      %888 = vmatprep.mubr.bf16.mxu0 0
      %889 = vmatmul.mubr.bf16.gmra.mxu0 %v667
      %v890 = vpop.f32.mrf.mxu0
      %v891 = vadd.f32 0.0, %v890
      %v892 = vpop.f32.mrf.mxu0
      %v893 = vpop.f32.mrf.mxu0
      %v894 = vadd.f32 0.0, %v893
      %v895 = vpop.f32.mrf.mxu0
      %896 = vmatprep.mubr.bf16.mxu0 0
      %897 = vmatmul.mubr.bf16.gmra.mxu0 %v668
      %v898 = vpop.f32.mrf.mxu0
      %v899 = vadd.f32 0.0, %v898
      %v900 = vpop.f32.mrf.mxu0
      %v901 = vpop.f32.mrf.mxu0
      %v902 = vadd.f32 0.0, %v901
      %v903 = vpop.f32.mrf.mxu0
      %904 = vmatprep.mubr.bf16.mxu0 0
      %905 = vmatmul.mubr.bf16.gmra.mxu0 %v669
      %v906 = vpop.f32.mrf.mxu0
      %v907 = vadd.f32 0.0, %v906
      %v908 = vpop.f32.mrf.mxu0
      %v909 = vpop.f32.mrf.mxu0
      %v910 = vadd.f32 0.0, %v909
      %v911 = vpop.f32.mrf.mxu0
      %912 = vmatprep.mubr.bf16.mxu0 0
      %913 = vmatmul.mubr.bf16.gmra.mxu0 %v670
      %v914 = vpop.f32.mrf.mxu0
      %v915 = vadd.f32 0.0, %v914
      %v916 = vpop.f32.mrf.mxu0
      %v917 = vpop.f32.mrf.mxu0
      %v918 = vadd.f32 0.0, %v917
      %v919 = vpop.f32.mrf.mxu0
      %920 = vmatprep.mubr.bf16.mxu0 0
      %921 = vmatmul.mubr.bf16.gmra.mxu0 %v671
      %v922 = vpop.f32.mrf.mxu0
      %v923 = vadd.f32 0.0, %v922
      %v924 = vpop.f32.mrf.mxu0
      %v925 = vpop.f32.mrf.mxu0
      %v926 = vadd.f32 0.0, %v925
      %v927 = vpop.f32.mrf.mxu0
      %928 = vmatprep.mubr.bf16.mxu0 0
      %929 = vmatmul.mubr.bf16.gmra.mxu0 %v672
      %v930 = vpop.f32.mrf.mxu0
      %v931 = vadd.f32 0.0, %v930
      %v932 = vpop.f32.mrf.mxu0
      %v933 = vpop.f32.mrf.mxu0
      %v934 = vadd.f32 0.0, %v933
      %v935 = vpop.f32.mrf.mxu0
      %936 = vmatprep.mubr.bf16.mxu0 0
      %937 = vmatmul.mubr.bf16.gmra.mxu0 %v673
      %v938 = vpop.f32.mrf.mxu0
      %v939 = vadd.f32 0.0, %v938
      %v940 = vpop.f32.mrf.mxu0
      %v941 = vpop.f32.mrf.mxu0
      %v942 = vadd.f32 0.0, %v941
      %v943 = vpop.f32.mrf.mxu0
      %944 = vmatprep.mubr.bf16.mxu0 0
      %945 = vmatmul.mubr.bf16.gmra.mxu0 %v674
      %v946 = vpop.f32.mrf.mxu0
      %v947 = vadd.f32 0.0, %v946
      %v948 = vpop.f32.mrf.mxu0
      %v949 = vpop.f32.mrf.mxu0
      %v950 = vadd.f32 0.0, %v949
      %v951 = vpop.f32.mrf.mxu0
      %952 = vmatprep.mubr.bf16.mxu0 0
      %953 = vmatmul.mubr.bf16.gmra.mxu0 %v675
      %v954 = vpop.f32.mrf.mxu0
      %v955 = vadd.f32 0.0, %v954
      %v956 = vpop.f32.mrf.mxu0
      %v957 = vpop.f32.mrf.mxu0
      %v958 = vadd.f32 0.0, %v957
      %v959 = vpop.f32.mrf.mxu0
      %960 = vmatprep.mubr.bf16.mxu0 0
      %961 = vmatmul.mubr.bf16.gmra.mxu0 %v676
      %v962 = vpop.f32.mrf.mxu0
      %v963 = vadd.f32 0.0, %v962
      %v964 = vpop.f32.mrf.mxu0
      %v965 = vpop.f32.mrf.mxu0
      %v966 = vadd.f32 0.0, %v965
      %v967 = vpop.f32.mrf.mxu0
      %968 = vmatprep.mubr.bf16.mxu0 0
      %969 = vmatmul.mubr.bf16.gmra.mxu0 %v677
      %v970 = vpop.f32.mrf.mxu0
      %v971 = vadd.f32 0.0, %v970
      %v972 = vpop.f32.mrf.mxu0
      %v973 = vpop.f32.mrf.mxu0
      %v974 = vadd.f32 0.0, %v973
      %v975 = vpop.f32.mrf.mxu0
      %976 = vmatprep.mubr.bf16.mxu0 0
      %977 = vmatmul.mubr.bf16.gmra.mxu0 %v678
      %v978 = vpop.f32.mrf.mxu0
      %v979 = vadd.f32 0.0, %v978
      %v980 = vpop.f32.mrf.mxu0
      %v981 = vpop.f32.mrf.mxu0
      %v982 = vadd.f32 0.0, %v981
      %v983 = vpop.f32.mrf.mxu0
      %984 = vmatprep.mubr.bf16.mxu0 0
      %985 = vmatmul.mubr.bf16.gmra.mxu0 %v679
      %v986 = vpop.f32.mrf.mxu0
      %v987 = vadd.f32 0.0, %v986
      %v988 = vpop.f32.mrf.mxu0
      %v989 = vpop.f32.mrf.mxu0
      %v990 = vadd.f32 0.0, %v989
      %v991 = vpop.f32.mrf.mxu0
      %992 = vmatprep.mubr.bf16.mxu0 0
      %993 = vmatmul.mubr.bf16.gmra.mxu0 %v680
      %v994 = vpop.f32.mrf.mxu0
      %v995 = vadd.f32 0.0, %v994
      %v996 = vpop.f32.mrf.mxu0
      %v997 = vpop.f32.mrf.mxu0
      %v998 = vadd.f32 0.0, %v997
      %v999 = vpop.f32.mrf.mxu0
      %1000 = vmatprep.mubr.bf16.mxu0 0
      %1001 = vmatmul.mubr.bf16.gmra.mxu0 %v681
      %v1002 = vpop.f32.mrf.mxu0
      %v1003 = vadd.f32 0.0, %v1002
      %v1004 = vpop.f32.mrf.mxu0
      %v1005 = vpop.f32.mrf.mxu0
      %v1006 = vadd.f32 0.0, %v1005
      %v1007 = vpop.f32.mrf.mxu0
      %1008 = vmatprep.mubr.bf16.mxu0 0
      %1009 = vmatmul.mubr.bf16.gmra.mxu0 %v682
      %v1010 = vpop.f32.mrf.mxu0
      %v1011 = vadd.f32 0.0, %v1010
      %v1012 = vpop.f32.mrf.mxu0
      %v1013 = vpop.f32.mrf.mxu0
      %v1014 = vadd.f32 0.0, %v1013
      %v1015 = vpop.f32.mrf.mxu0
      %1016 = vmatprep.mubr.bf16.mxu0 0
      %1017 = vmatmul.mubr.bf16.gmra.mxu0 %v683
      %v1018 = vpop.f32.mrf.mxu0
      %v1019 = vadd.f32 0.0, %v1018
      %v1020 = vpop.f32.mrf.mxu0
      %v1021 = vpop.f32.mrf.mxu0
      %v1022 = vadd.f32 0.0, %v1021
      %v1023 = vpop.f32.mrf.mxu0
      %1024 = vmatprep.mubr.bf16.mxu0 0
      %1025 = vmatmul.mubr.bf16.gmra.mxu0 %v684
      %v1026 = vpop.f32.mrf.mxu0
      %v1027 = vadd.f32 0.0, %v1026
      %v1028 = vpop.f32.mrf.mxu0
      %v1029 = vpop.f32.mrf.mxu0
      %v1030 = vadd.f32 0.0, %v1029
      %v1031 = vpop.f32.mrf.mxu0
      %1032 = vmatprep.mubr.bf16.mxu0 0
      %1033 = vmatmul.mubr.bf16.gmra.mxu0 %v685
      %v1034 = vpop.f32.mrf.mxu0
      %v1035 = vadd.f32 0.0, %v1034
      %v1036 = vpop.f32.mrf.mxu0
      %v1037 = vpop.f32.mrf.mxu0
      %v1038 = vadd.f32 0.0, %v1037
      %v1039 = vpop.f32.mrf.mxu0
      %1040 = vmatprep.mubr.bf16.mxu0 0
      %1041 = vmatmul.mubr.bf16.gmra.mxu0 %v686
      %v1042 = vpop.f32.mrf.mxu0
      %v1043 = vadd.f32 0.0, %v1042
      %v1044 = vpop.f32.mrf.mxu0
      %v1045 = vpop.f32.mrf.mxu0
      %v1046 = vadd.f32 0.0, %v1045
      %v1047 = vpop.f32.mrf.mxu0
      %1048 = vmatprep.mubr.bf16.mxu0 0
      %1049 = vmatmul.mubr.bf16.gmra.mxu0 %v687
      %v1050 = vpop.f32.mrf.mxu0
      %v1051 = vadd.f32 0.0, %v1050
      %v1052 = vpop.f32.mrf.mxu0
      %v1053 = vpop.f32.mrf.mxu0
      %v1054 = vadd.f32 0.0, %v1053
      %v1055 = vpop.f32.mrf.mxu0
      %1056 = vdwg.mxu0
      %v1057 = vadd.f32 %v448, %v803
      %v1058 = vadd.f32 %v449, %v806
      %v1059 = vadd.f32 %v450, %v811
      %v1060 = vadd.f32 %v451, %v814
      %v1061 = vadd.f32 %v452, %v819
      %v1062 = vadd.f32 %v453, %v822
      %v1063 = vadd.f32 %v454, %v827
      %v1064 = vadd.f32 %v455, %v830
      %v1065 = vadd.f32 %v456, %v835
      %v1066 = vadd.f32 %v457, %v838
      %v1067 = vadd.f32 %v458, %v843
      %v1068 = vadd.f32 %v459, %v846
      %v1069 = vadd.f32 %v460, %v851
      %v1070 = vadd.f32 %v461, %v854
      %v1071 = vadd.f32 %v462, %v859
      %v1072 = vadd.f32 %v463, %v862
      %v1073 = vadd.f32 %v464, %v867
      %v1074 = vadd.f32 %v465, %v870
      %v1075 = vadd.f32 %v466, %v875
      %v1076 = vadd.f32 %v467, %v878
      %v1077 = vadd.f32 %v468, %v883
      %v1078 = vadd.f32 %v469, %v886
      %v1079 = vadd.f32 %v470, %v891
      %v1080 = vadd.f32 %v471, %v894
      %v1081 = vadd.f32 %v472, %v899
      %v1082 = vadd.f32 %v473, %v902
      %v1083 = vadd.f32 %v474, %v907
      %v1084 = vadd.f32 %v475, %v910
      %v1085 = vadd.f32 %v476, %v915
      %v1086 = vadd.f32 %v477, %v918
      %v1087 = vadd.f32 %v478, %v923
      %v1088 = vadd.f32 %v479, %v926
      %v1089 = vadd.f32 %v480, %v931
      %v1090 = vadd.f32 %v481, %v934
      %v1091 = vadd.f32 %v482, %v939
      %v1092 = vadd.f32 %v483, %v942
      %v1093 = vadd.f32 %v484, %v947
      %v1094 = vadd.f32 %v485, %v950
      %v1095 = vadd.f32 %v486, %v955
      %v1096 = vadd.f32 %v487, %v958
      %v1097 = vadd.f32 %v488, %v963
      %v1098 = vadd.f32 %v489, %v966
      %v1099 = vadd.f32 %v490, %v971
      %v1100 = vadd.f32 %v491, %v974
      %v1101 = vadd.f32 %v492, %v979
      %v1102 = vadd.f32 %v493, %v982
      %v1103 = vadd.f32 %v494, %v987
      %v1104 = vadd.f32 %v495, %v990
      %v1105 = vadd.f32 %v496, %v995
      %v1106 = vadd.f32 %v497, %v998
      %v1107 = vadd.f32 %v498, %v1003
      %v1108 = vadd.f32 %v499, %v1006
      %v1109 = vadd.f32 %v500, %v1011
      %v1110 = vadd.f32 %v501, %v1014
      %v1111 = vadd.f32 %v502, %v1019
      %v1112 = vadd.f32 %v503, %v1022
      %v1113 = vadd.f32 %v504, %v1027
      %v1114 = vadd.f32 %v505, %v1030
      %v1115 = vadd.f32 %v506, %v1035
      %v1116 = vadd.f32 %v507, %v1038
      %v1117 = vadd.f32 %v508, %v1043
      %v1118 = vadd.f32 %v509, %v1046
      %v1119 = vadd.f32 %v510, %v1051
      %v1120 = vadd.f32 %v511, %v1054
      %1121 = vst [vmem:[#allocation2] sm:$0xff] %v1057
      %1122 = vst [vmem:[#allocation2 + $0x8] sm:$0xff] %v1058
      %1123 = vst [vmem:[#allocation2 + $0x10] sm:$0xff] %v1059
      %1124 = vst [vmem:[#allocation2 + $0x18] sm:$0xff] %v1060
      %1125 = vst [vmem:[#allocation2 + $0x20] sm:$0xff] %v1061
      %1126 = vst [vmem:[#allocation2 + $0x28] sm:$0xff] %v1062
      %1127 = vst [vmem:[#allocation2 + $0x30] sm:$0xff] %v1063
      %1128 = vst [vmem:[#allocation2 + $0x38] sm:$0xff] %v1064
      %1129 = vst [vmem:[#allocation2 + $0x40] sm:$0xff] %v1065
      %1130 = vst [vmem:[#allocation2 + $0x48] sm:$0xff] %v1066
      %1131 = vst [vmem:[#allocation2 + $0x50] sm:$0xff] %v1067
      %1132 = vst [vmem:[#allocation2 + $0x58] sm:$0xff] %v1068
      %1133 = vst [vmem:[#allocation2 + $0x60] sm:$0xff] %v1069
      %1134 = vst [vmem:[#allocation2 + $0x68] sm:$0xff] %v1070
      %1135 = vst [vmem:[#allocation2 + $0x70] sm:$0xff] %v1071
      %1136 = vst [vmem:[#allocation2 + $0x78] sm:$0xff] %v1072
      %1137 = vst [vmem:[#allocation2 + $0x80] sm:$0xff] %v1073
      %1138 = vst [vmem:[#allocation2 + $0x88] sm:$0xff] %v1074
      %1139 = vst [vmem:[#allocation2 + $0x90] sm:$0xff] %v1075
      %1140 = vst [vmem:[#allocation2 + $0x98] sm:$0xff] %v1076
      %1141 = vst [vmem:[#allocation2 + $0xa0] sm:$0xff] %v1077
      %1142 = vst [vmem:[#allocation2 + $0xa8] sm:$0xff] %v1078
      %1143 = vst [vmem:[#allocation2 + $0xb0] sm:$0xff] %v1079
      %1144 = vst [vmem:[#allocation2 + $0xb8] sm:$0xff] %v1080
      %1145 = vst [vmem:[#allocation2 + $0xc0] sm:$0xff] %v1081
      %1146 = vst [vmem:[#allocation2 + $0xc8] sm:$0xff] %v1082
      %1147 = vst [vmem:[#allocation2 + $0xd0] sm:$0xff] %v1083
      %1148 = vst [vmem:[#allocation2 + $0xd8] sm:$0xff] %v1084
      %1149 = vst [vmem:[#allocation2 + $0xe0] sm:$0xff] %v1085
      %1150 = vst [vmem:[#allocation2 + $0xe8] sm:$0xff] %v1086
      %1151 = vst [vmem:[#allocation2 + $0xf0] sm:$0xff] %v1087
      %1152 = vst [vmem:[#allocation2 + $0xf8] sm:$0xff] %v1088
      %1153 = vst [vmem:[#allocation2 + $0x100] sm:$0xff] %v1089
      %1154 = vst [vmem:[#allocation2 + $0x108] sm:$0xff] %v1090
      %1155 = vst [vmem:[#allocation2 + $0x110] sm:$0xff] %v1091
      %1156 = vst [vmem:[#allocation2 + $0x118] sm:$0xff] %v1092
      %1157 = vst [vmem:[#allocation2 + $0x120] sm:$0xff] %v1093
      %1158 = vst [vmem:[#allocation2 + $0x128] sm:$0xff] %v1094
      %1159 = vst [vmem:[#allocation2 + $0x130] sm:$0xff] %v1095
      %1160 = vst [vmem:[#allocation2 + $0x138] sm:$0xff] %v1096
      %1161 = vst [vmem:[#allocation2 + $0x140] sm:$0xff] %v1097
      %1162 = vst [vmem:[#allocation2 + $0x148] sm:$0xff] %v1098
      %1163 = vst [vmem:[#allocation2 + $0x150] sm:$0xff] %v1099
      %1164 = vst [vmem:[#allocation2 + $0x158] sm:$0xff] %v1100
      %1165 = vst [vmem:[#allocation2 + $0x160] sm:$0xff] %v1101
      %1166 = vst [vmem:[#allocation2 + $0x168] sm:$0xff] %v1102
      %1167 = vst [vmem:[#allocation2 + $0x170] sm:$0xff] %v1103
      %1168 = vst [vmem:[#allocation2 + $0x178] sm:$0xff] %v1104
      %1169 = vst [vmem:[#allocation2 + $0x180] sm:$0xff] %v1105
      %1170 = vst [vmem:[#allocation2 + $0x188] sm:$0xff] %v1106
      %1171 = vst [vmem:[#allocation2 + $0x190] sm:$0xff] %v1107
      %1172 = vst [vmem:[#allocation2 + $0x198] sm:$0xff] %v1108
      %1173 = vst [vmem:[#allocation2 + $0x1a0] sm:$0xff] %v1109
      %1174 = vst [vmem:[#allocation2 + $0x1a8] sm:$0xff] %v1110
      %1175 = vst [vmem:[#allocation2 + $0x1b0] sm:$0xff] %v1111
      %1176 = vst [vmem:[#allocation2 + $0x1b8] sm:$0xff] %v1112
      %1177 = vst [vmem:[#allocation2 + $0x1c0] sm:$0xff] %v1113
      %1178 = vst [vmem:[#allocation2 + $0x1c8] sm:$0xff] %v1114
      %1179 = vst [vmem:[#allocation2 + $0x1d0] sm:$0xff] %v1115
      %1180 = vst [vmem:[#allocation2 + $0x1d8] sm:$0xff] %v1116
      %1181 = vst [vmem:[#allocation2 + $0x1e0] sm:$0xff] %v1117
      %1182 = vst [vmem:[#allocation2 + $0x1e8] sm:$0xff] %v1118
      %1183 = vst [vmem:[#allocation2 + $0x1f0] sm:$0xff] %v1119
      %1184 = vst [vmem:[#allocation2 + $0x1f8] sm:$0xff] %v1120
      // Predicated region
      $region37: #{mgan_forward.12} parent=31 // pred_check
        %p1185 = pneg %p316
      $region38: #{mgan_forward.12} parent=31 // pred_check_branch
        %1187 = sbr.rel (%p1185) target = $region40
      $region39: #{mgan_forward.12} parent=31 // pred_region
        %v1188 = vld [vmem:[#allocation2] sm:$0xff]
        %v1189 = vld [vmem:[#allocation2 + $0x8] sm:$0xff]
        %v1190 = vld [vmem:[#allocation2 + $0x10] sm:$0xff]
        %v1191 = vld [vmem:[#allocation2 + $0x18] sm:$0xff]
        %v1192 = vld [vmem:[#allocation2 + $0x20] sm:$0xff]
        %v1193 = vld [vmem:[#allocation2 + $0x28] sm:$0xff]
        %v1194 = vld [vmem:[#allocation2 + $0x30] sm:$0xff]
        %v1195 = vld [vmem:[#allocation2 + $0x38] sm:$0xff]
        %v1196 = vld [vmem:[#allocation2 + $0x40] sm:$0xff]
        %v1197 = vld [vmem:[#allocation2 + $0x48] sm:$0xff]
        %v1198 = vld [vmem:[#allocation2 + $0x50] sm:$0xff]
        %v1199 = vld [vmem:[#allocation2 + $0x58] sm:$0xff]
        %v1200 = vld [vmem:[#allocation2 + $0x60] sm:$0xff]
        %v1201 = vld [vmem:[#allocation2 + $0x68] sm:$0xff]
        %v1202 = vld [vmem:[#allocation2 + $0x70] sm:$0xff]
        %v1203 = vld [vmem:[#allocation2 + $0x78] sm:$0xff]
        %v1204 = vld [vmem:[#allocation2 + $0x80] sm:$0xff]
        %v1205 = vld [vmem:[#allocation2 + $0x88] sm:$0xff]
        %v1206 = vld [vmem:[#allocation2 + $0x90] sm:$0xff]
        %v1207 = vld [vmem:[#allocation2 + $0x98] sm:$0xff]
        %v1208 = vld [vmem:[#allocation2 + $0xa0] sm:$0xff]
        %v1209 = vld [vmem:[#allocation2 + $0xa8] sm:$0xff]
        %v1210 = vld [vmem:[#allocation2 + $0xb0] sm:$0xff]
        %v1211 = vld [vmem:[#allocation2 + $0xb8] sm:$0xff]
        %v1212 = vld [vmem:[#allocation2 + $0xc0] sm:$0xff]
        %v1213 = vld [vmem:[#allocation2 + $0xc8] sm:$0xff]
        %v1214 = vld [vmem:[#allocation2 + $0xd0] sm:$0xff]
        %v1215 = vld [vmem:[#allocation2 + $0xd8] sm:$0xff]
        %v1216 = vld [vmem:[#allocation2 + $0xe0] sm:$0xff]
        %v1217 = vld [vmem:[#allocation2 + $0xe8] sm:$0xff]
        %v1218 = vld [vmem:[#allocation2 + $0xf0] sm:$0xff]
        %v1219 = vld [vmem:[#allocation2 + $0xf8] sm:$0xff]
        %v1220 = vld [vmem:[#allocation2 + $0x100] sm:$0xff]
        %v1221 = vld [vmem:[#allocation2 + $0x108] sm:$0xff]
        %v1222 = vld [vmem:[#allocation2 + $0x110] sm:$0xff]
        %v1223 = vld [vmem:[#allocation2 + $0x118] sm:$0xff]
        %v1224 = vld [vmem:[#allocation2 + $0x120] sm:$0xff]
        %v1225 = vld [vmem:[#allocation2 + $0x128] sm:$0xff]
        %v1226 = vld [vmem:[#allocation2 + $0x130] sm:$0xff]
        %v1227 = vld [vmem:[#allocation2 + $0x138] sm:$0xff]
        %v1228 = vld [vmem:[#allocation2 + $0x140] sm:$0xff]
        %v1229 = vld [vmem:[#allocation2 + $0x148] sm:$0xff]
        %v1230 = vld [vmem:[#allocation2 + $0x150] sm:$0xff]
        %v1231 = vld [vmem:[#allocation2 + $0x158] sm:$0xff]
        %v1232 = vld [vmem:[#allocation2 + $0x160] sm:$0xff]
        %v1233 = vld [vmem:[#allocation2 + $0x168] sm:$0xff]
        %v1234 = vld [vmem:[#allocation2 + $0x170] sm:$0xff]
        %v1235 = vld [vmem:[#allocation2 + $0x178] sm:$0xff]
        %v1236 = vld [vmem:[#allocation2 + $0x180] sm:$0xff]
        %v1237 = vld [vmem:[#allocation2 + $0x188] sm:$0xff]
        %v1238 = vld [vmem:[#allocation2 + $0x190] sm:$0xff]
        %v1239 = vld [vmem:[#allocation2 + $0x198] sm:$0xff]
        %v1240 = vld [vmem:[#allocation2 + $0x1a0] sm:$0xff]
        %v1241 = vld [vmem:[#allocation2 + $0x1a8] sm:$0xff]
        %v1242 = vld [vmem:[#allocation2 + $0x1b0] sm:$0xff]
        %v1243 = vld [vmem:[#allocation2 + $0x1b8] sm:$0xff]
        %v1244 = vld [vmem:[#allocation2 + $0x1c0] sm:$0xff]
        %v1245 = vld [vmem:[#allocation2 + $0x1c8] sm:$0xff]
        %v1246 = vld [vmem:[#allocation2 + $0x1d0] sm:$0xff]
        %v1247 = vld [vmem:[#allocation2 + $0x1d8] sm:$0xff]
        %v1248 = vld [vmem:[#allocation2 + $0x1e0] sm:$0xff]
        %v1249 = vld [vmem:[#allocation2 + $0x1e8] sm:$0xff]
        %v1250 = vld [vmem:[#allocation2 + $0x1f0] sm:$0xff]
        %v1251 = vld [vmem:[#allocation2 + $0x1f8] sm:$0xff]
        %v1252 = vld [vmem:[%s301] sm:$0x1]
        %v1254 = vlaneseq
        %v1255 = vshrl.u32 %v1254, 7
        %v1256 = vsub.s32 0, %v1255
        %v1257 = vrot.slane %v1252, %v1256
        %v1259 = vadd.f32 %v1188, %v1257
        %v1260 = vadd.f32 %v1189, %v1257
        %v1261 = vadd.f32 %v1190, %v1257
        %v1262 = vadd.f32 %v1191, %v1257
        %v1263 = vadd.f32 %v1192, %v1257
        %v1264 = vadd.f32 %v1193, %v1257
        %v1265 = vadd.f32 %v1194, %v1257
        %v1266 = vadd.f32 %v1195, %v1257
        %v1267 = vadd.f32 %v1196, %v1257
        %v1268 = vadd.f32 %v1197, %v1257
        %v1269 = vadd.f32 %v1198, %v1257
        %v1270 = vadd.f32 %v1199, %v1257
        %v1271 = vadd.f32 %v1200, %v1257
        %v1272 = vadd.f32 %v1201, %v1257
        %v1273 = vadd.f32 %v1202, %v1257
        %v1274 = vadd.f32 %v1203, %v1257
        %v1275 = vadd.f32 %v1204, %v1257
        %v1276 = vadd.f32 %v1205, %v1257
        %v1277 = vadd.f32 %v1206, %v1257
        %v1278 = vadd.f32 %v1207, %v1257
        %v1279 = vadd.f32 %v1208, %v1257
        %v1280 = vadd.f32 %v1209, %v1257
        %v1281 = vadd.f32 %v1210, %v1257
        %v1282 = vadd.f32 %v1211, %v1257
        %v1283 = vadd.f32 %v1212, %v1257
        %v1284 = vadd.f32 %v1213, %v1257
        %v1285 = vadd.f32 %v1214, %v1257
        %v1286 = vadd.f32 %v1215, %v1257
        %v1287 = vadd.f32 %v1216, %v1257
        %v1288 = vadd.f32 %v1217, %v1257
        %v1289 = vadd.f32 %v1218, %v1257
        %v1290 = vadd.f32 %v1219, %v1257
        %v1291 = vadd.f32 %v1220, %v1257
        %v1292 = vadd.f32 %v1221, %v1257
        %v1293 = vadd.f32 %v1222, %v1257
        %v1294 = vadd.f32 %v1223, %v1257
        %v1295 = vadd.f32 %v1224, %v1257
        %v1296 = vadd.f32 %v1225, %v1257
        %v1297 = vadd.f32 %v1226, %v1257
        %v1298 = vadd.f32 %v1227, %v1257
        %v1299 = vadd.f32 %v1228, %v1257
        %v1300 = vadd.f32 %v1229, %v1257
        %v1301 = vadd.f32 %v1230, %v1257
        %v1302 = vadd.f32 %v1231, %v1257
        %v1303 = vadd.f32 %v1232, %v1257
        %v1304 = vadd.f32 %v1233, %v1257
        %v1305 = vadd.f32 %v1234, %v1257
        %v1306 = vadd.f32 %v1235, %v1257
        %v1307 = vadd.f32 %v1236, %v1257
        %v1308 = vadd.f32 %v1237, %v1257
        %v1309 = vadd.f32 %v1238, %v1257
        %v1310 = vadd.f32 %v1239, %v1257
        %v1311 = vadd.f32 %v1240, %v1257
        %v1312 = vadd.f32 %v1241, %v1257
        %v1313 = vadd.f32 %v1242, %v1257
        %v1314 = vadd.f32 %v1243, %v1257
        %v1315 = vadd.f32 %v1244, %v1257
        %v1316 = vadd.f32 %v1245, %v1257
        %v1317 = vadd.f32 %v1246, %v1257
        %v1318 = vadd.f32 %v1247, %v1257
        %v1319 = vadd.f32 %v1248, %v1257
        %v1320 = vadd.f32 %v1249, %v1257
        %v1321 = vadd.f32 %v1250, %v1257
        %v1322 = vadd.f32 %v1251, %v1257
        %1323 = vst [vmem:[%s313] sm:$0xff] %v1259
        %1324 = vst [vmem:[%s313 + $0x8] sm:$0xff] %v1260
        %1325 = vst [vmem:[%s313 + $0x10] sm:$0xff] %v1261
        %1326 = vst [vmem:[%s313 + $0x18] sm:$0xff] %v1262
        %1327 = vst [vmem:[%s313 + $0x20] sm:$0xff] %v1263
        %1328 = vst [vmem:[%s313 + $0x28] sm:$0xff] %v1264
        %1329 = vst [vmem:[%s313 + $0x30] sm:$0xff] %v1265
        %1330 = vst [vmem:[%s313 + $0x38] sm:$0xff] %v1266
        %1331 = vst [vmem:[%s313 + $0x40] sm:$0xff] %v1267
        %1332 = vst [vmem:[%s313 + $0x48] sm:$0xff] %v1268
        %1333 = vst [vmem:[%s313 + $0x50] sm:$0xff] %v1269
        %1334 = vst [vmem:[%s313 + $0x58] sm:$0xff] %v1270
        %1335 = vst [vmem:[%s313 + $0x60] sm:$0xff] %v1271
        %1336 = vst [vmem:[%s313 + $0x68] sm:$0xff] %v1272
        %1337 = vst [vmem:[%s313 + $0x70] sm:$0xff] %v1273
        %1338 = vst [vmem:[%s313 + $0x78] sm:$0xff] %v1274
        %1339 = vst [vmem:[%s313 + $0x80] sm:$0xff] %v1275
        %1340 = vst [vmem:[%s313 + $0x88] sm:$0xff] %v1276
        %1341 = vst [vmem:[%s313 + $0x90] sm:$0xff] %v1277
        %1342 = vst [vmem:[%s313 + $0x98] sm:$0xff] %v1278
        %1343 = vst [vmem:[%s313 + $0xa0] sm:$0xff] %v1279
        %1344 = vst [vmem:[%s313 + $0xa8] sm:$0xff] %v1280
        %1345 = vst [vmem:[%s313 + $0xb0] sm:$0xff] %v1281
        %1346 = vst [vmem:[%s313 + $0xb8] sm:$0xff] %v1282
        %1347 = vst [vmem:[%s313 + $0xc0] sm:$0xff] %v1283
        %1348 = vst [vmem:[%s313 + $0xc8] sm:$0xff] %v1284
        %1349 = vst [vmem:[%s313 + $0xd0] sm:$0xff] %v1285
        %1350 = vst [vmem:[%s313 + $0xd8] sm:$0xff] %v1286
        %1351 = vst [vmem:[%s313 + $0xe0] sm:$0xff] %v1287
        %1352 = vst [vmem:[%s313 + $0xe8] sm:$0xff] %v1288
        %1353 = vst [vmem:[%s313 + $0xf0] sm:$0xff] %v1289
        %1354 = vst [vmem:[%s313 + $0xf8] sm:$0xff] %v1290
        %1355 = vst [vmem:[%s313 + $0x100] sm:$0xff] %v1291
        %1356 = vst [vmem:[%s313 + $0x108] sm:$0xff] %v1292
        %1357 = vst [vmem:[%s313 + $0x110] sm:$0xff] %v1293
        %1358 = vst [vmem:[%s313 + $0x118] sm:$0xff] %v1294
        %1359 = vst [vmem:[%s313 + $0x120] sm:$0xff] %v1295
        %1360 = vst [vmem:[%s313 + $0x128] sm:$0xff] %v1296
        %1361 = vst [vmem:[%s313 + $0x130] sm:$0xff] %v1297
        %1362 = vst [vmem:[%s313 + $0x138] sm:$0xff] %v1298
        %1363 = vst [vmem:[%s313 + $0x140] sm:$0xff] %v1299
        %1364 = vst [vmem:[%s313 + $0x148] sm:$0xff] %v1300
        %1365 = vst [vmem:[%s313 + $0x150] sm:$0xff] %v1301
        %1366 = vst [vmem:[%s313 + $0x158] sm:$0xff] %v1302
        %1367 = vst [vmem:[%s313 + $0x160] sm:$0xff] %v1303
        %1368 = vst [vmem:[%s313 + $0x168] sm:$0xff] %v1304
        %1369 = vst [vmem:[%s313 + $0x170] sm:$0xff] %v1305
        %1370 = vst [vmem:[%s313 + $0x178] sm:$0xff] %v1306
        %1371 = vst [vmem:[%s313 + $0x180] sm:$0xff] %v1307
        %1372 = vst [vmem:[%s313 + $0x188] sm:$0xff] %v1308
        %1373 = vst [vmem:[%s313 + $0x190] sm:$0xff] %v1309
        %1374 = vst [vmem:[%s313 + $0x198] sm:$0xff] %v1310
        %1375 = vst [vmem:[%s313 + $0x1a0] sm:$0xff] %v1311
        %1376 = vst [vmem:[%s313 + $0x1a8] sm:$0xff] %v1312
        %1377 = vst [vmem:[%s313 + $0x1b0] sm:$0xff] %v1313
        %1378 = vst [vmem:[%s313 + $0x1b8] sm:$0xff] %v1314
        %1379 = vst [vmem:[%s313 + $0x1c0] sm:$0xff] %v1315
        %1380 = vst [vmem:[%s313 + $0x1c8] sm:$0xff] %v1316
        %1381 = vst [vmem:[%s313 + $0x1d0] sm:$0xff] %v1317
        %1382 = vst [vmem:[%s313 + $0x1d8] sm:$0xff] %v1318
        %1383 = vst [vmem:[%s313 + $0x1e0] sm:$0xff] %v1319
        %1384 = vst [vmem:[%s313 + $0x1e8] sm:$0xff] %v1320
        %1385 = vst [vmem:[%s313 + $0x1f0] sm:$0xff] %v1321
        %1386 = vst [vmem:[%s313 + $0x1f8] sm:$0xff] %v1322
      $region40: #{mgan_forward.12} parent=31 // pred_fallthru
        _
      %s1387 = smul.u32 64, %s21
      %p1388 = scmp.lt.s32.totalorder %s20, 0
      %s1389 = scalar_select %p1388, %s20, 0
      %p1390 = scmp.lt.s32.totalorder %s1387, 255
      %s1391 = scalar_select %p1390, %s1387, 255
      %p1392 = scmp.lt.s32.totalorder %s22, 0
      %s1393 = scalar_select %p1392, %s22, 0
      %s1394 = sadd.s32 %s1393, %s1391
      %s1395 = smul.addr %s1389, 256
      %s1396 = sadd.s32 %s1394, %s1395
      %s1397 = smul.addr %s1396, 8
      %s1398 = scalar_lea.vmem %s3, %s1397
      // Predicated region
      $region41: #{mgan_forward.12} parent=31 // pred_check
        %p1399 = pneg %p150
      $region42: #{mgan_forward.12} parent=31 // pred_check_branch
        %1401 = sbr.rel (%p1399) target = $region44
      $region43: #{mgan_forward.12} parent=31 // pred_region
        %s1402 = smul.u32 64, %s21
      $region44: #{mgan_forward.12} parent=31 // pred_fallthru
        _
    $region32: #{mgan_forward.12} parent=5 // pred_fallthru
      _
    %p1403 = scmp.le.s32.totalorder 2, %s9
    // Predicated region
    $region45: #{mgan_forward.12} parent=5 // pred_check
      %p1404 = pneg %p1403
    $region46: #{mgan_forward.12} parent=5 // pred_check_branch
      %1406 = sbr.rel (%p1404) target = $region48
    $region47: #{mgan_forward.12} parent=5 // pred_region
      %s1407 = ssub.s32 %s9, 2
      // Predicated region
      $region49: #{mgan_forward.12} parent=47 // pred_check
        %p1408 = pneg %p156
      $region50: #{mgan_forward.12} parent=47 // pred_check_branch
        %1410 = sbr.rel (%p1408) target = $region52
      $region51: #{mgan_forward.12} parent=47 // pred_region
        %s1411 = smul.u32 64, %s25
        %p1412 = scmp.lt.s32.totalorder %s24, 0
        %s1413 = scalar_select %p1412, %s24, 0
        %p1414 = scmp.lt.s32.totalorder %s1411, 255
        %s1415 = scalar_select %p1414, %s1411, 255
        %p1416 = scmp.lt.s32.totalorder %s26, 0
        %s1417 = scalar_select %p1416, %s26, 0
        %s1418 = sadd.s32 %s1417, %s1415
        %s1419 = smul.addr %s1413, 256
        %s1420 = sadd.s32 %s1418, %s1419
        %s1421 = smul.addr %s1420, 8
        %s1422 = scalar_lea.vmem %s3, %s1421
      $region52: #{mgan_forward.12} parent=47 // pred_fallthru
        _
    $region48: #{mgan_forward.12} parent=5 // pred_fallthru
      _
  $region6: #{mgan_forward.12} parent=0 // loop_footer
    %s13 = sadd.s32 1, %s9
  $region7: #{mgan_forward.12} parent=0 // loop_footer_branch
    %8 = sbr.rel target = $region3
  $region8: #{mgan_forward.12} parent=0 // loop_exit
    _

// kernel: mgan_forward.13
$region0: #{mgan_forward.13}
  #allocation0 [shape = 'u32[]', space=smem, size = 0x4, offset = 0x4, fixed_abs, tag = 'smem constant byte address 0x4 - core index']
  #allocation1 [shape = 'u32[144,128]{1,0:T(1,128)}', space=vmem, size = 0x12000, scoped, tag = 'internal scratch']
  #allocation2 [shape = 'f32[512,128]{1,0:T(8,128)}', space=vmem, size = 0x40000, scoped, tag = 'scratch operand']
  %s0 = inlined_call_operand.vmem [shape: bf16[1,2048,256], index: 0, kind: input, shape index: {}]
  %s1 = inlined_call_operand.vmem [shape: bf16[1,256,128], index: 1, kind: input, shape index: {}]
  %s2 = inlined_call_operand.vmem [shape: f32[1,1,128], index: 2, kind: input, shape index: {}]
  %s3 = inlined_call_operand.vmem [shape: f32[1,2048,128], index: 3, kind: output, shape index: {}]
  %s4 = sld [smem:[#allocation0]]
  $region53: #{mgan_forward.13} parent=0
    _
  %s6 = ssub.s32 1, %s4
  %s7 = scalar_select 0, %s6, %s4
  loop: start=0, step=1, limit=6
  $region2: #{mgan_forward.13} parent=0 // loop_pre_header
    _
  $region3: #{mgan_forward.13} parent=0 // loop_header
    %s9 = sphi 0, %s13
    %p10 = scmp.ge.s32.totalorder %s9, 6
    %s16 = sphi 0, %s42
    %s17 = sphi 0, %s38
    %s18 = sphi 0, %s34
    %s19 = sphi 0, %s30
    %s20 = sphi 0, %s16
    %s21 = sphi 0, %s17
    %s22 = sphi 0, %s18
    %s23 = sphi 0, %s19
    %s24 = sphi 0, %s20
    %s25 = sphi 0, %s21
    %s26 = sphi 0, %s22
    %s27 = sphi 0, %s23
    %s49 = sphi 0, %s51
    %s52 = sphi 0, %s49
    %s53 = sphi 0, %s52
    %s69 = sphi 0, %s53
    %s79 = sphi 0, %s81
    %s82 = sphi 0, %s79
    %s83 = sphi 0, %s82
    %s99 = sphi 0, %s83
    %s107 = sphi 0, %s109
    %s110 = sphi 0, %s107
    %s111 = sphi 0, %s110
    %s127 = sphi 0, %s111
    %s137 = sphi 0, %s139
    %s140 = sphi 0, %s137
    %s141 = sphi 0, %s140
    %s157 = sphi 0, %s141
  $region4: #{mgan_forward.13} parent=0 // loop_header_branch
    %12 = sbr.rel (%p10) target = $region8
  $region5: #{mgan_forward.13} parent=0 // loop_body
    %s14 = ssub.s32 %s9, 1
    %s15 = ssub.s32 %s9, 2
    %s28 = sadd.s32 1, %s19
    %p29 = scmp.ge.s32.totalorder %s28, 1
    %s30 = scalar_select %p29, 0, %s28
    %s31 = sadd.s32 1, %s18
    %s32 = scalar_select %p29, %s31, %s18
    %p33 = scmp.ge.s32.totalorder %s32, 1
    %s34 = scalar_select %p33, 0, %s32
    %s35 = sadd.s32 1, %s17
    %s36 = scalar_select %p33, %s35, %s17
    %p37 = scmp.ge.s32.totalorder %s36, 4
    %s38 = scalar_select %p37, 0, %s36
    %s39 = sadd.s32 1, %s16
    %s40 = scalar_select %p37, %s39, %s16
    %p41 = scmp.ge.s32.totalorder %s40, 1
    %s42 = scalar_select %p41, 0, %s40
    %s43 = ssub.s32 %s16, %s42
    %s44 = ssub.s32 %s17, %s38
    %s45 = sor.u32 %s43, %s44
    %s46 = ssub.s32 %s19, %s30
    %s47 = sor.u32 %s45, %s46
    %p48 = scmp.eq.s32.totalorder %s47, 0
    %s50 = sadd.s32 %s49, 1
    %s51 = scalar_select %p48, %s49, %s50
    %p54 = pneg %p48
    %p55 = scmp.eq.s32.totalorder %s9, 3
    %p56 = por %p54, %p55
    %p57 = scmp.ne.s32.totalorder %s49, %s52
    %p58 = scmp.eq.s32.totalorder %s9, 0
    %p59 = por %p57, %p58
    %p60 = scmp.ne.s32.totalorder %s49, %s52
    %p61 = scmp.eq.s32.totalorder %s14, 3
    %p62 = por %p60, %p61
    %p63 = scmp.ne.s32.totalorder %s52, %s53
    %p64 = scmp.eq.s32.totalorder %s14, 0
    %p65 = por %p63, %p64
    %p66 = scmp.ne.s32.totalorder %s52, %s53
    %p67 = scmp.eq.s32.totalorder %s15, 3
    %p68 = por %p66, %p67
    %p70 = scmp.ne.s32.totalorder %s53, %s69
    %p71 = scmp.eq.s32.totalorder %s15, 0
    %p72 = por %p70, %p71
    %s73 = ssub.s32 %s16, %s42
    %s74 = ssub.s32 %s19, %s30
    %s75 = sor.u32 %s73, %s74
    %s76 = ssub.s32 %s18, %s34
    %s77 = sor.u32 %s75, %s76
    %p78 = scmp.eq.s32.totalorder %s77, 0
    %s80 = sadd.s32 %s79, 1
    %s81 = scalar_select %p78, %s79, %s80
    %p84 = pneg %p78
    %p85 = scmp.eq.s32.totalorder %s9, 3
    %p86 = por %p84, %p85
    %p87 = scmp.ne.s32.totalorder %s79, %s82
    %p88 = scmp.eq.s32.totalorder %s9, 0
    %p89 = por %p87, %p88
    %p90 = scmp.ne.s32.totalorder %s79, %s82
    %p91 = scmp.eq.s32.totalorder %s14, 3
    %p92 = por %p90, %p91
    %p93 = scmp.ne.s32.totalorder %s82, %s83
    %p94 = scmp.eq.s32.totalorder %s14, 0
    %p95 = por %p93, %p94
    %p96 = scmp.ne.s32.totalorder %s82, %s83
    %p97 = scmp.eq.s32.totalorder %s15, 3
    %p98 = por %p96, %p97
    %p100 = scmp.ne.s32.totalorder %s83, %s99
    %p101 = scmp.eq.s32.totalorder %s15, 0
    %p102 = por %p100, %p101
    %s103 = ssub.s32 %s16, %s42
    %s104 = ssub.s32 %s18, %s34
    %s105 = sor.u32 %s103, %s104
    %p106 = scmp.eq.s32.totalorder %s105, 0
    %s108 = sadd.s32 %s107, 1
    %s109 = scalar_select %p106, %s107, %s108
    %p112 = pneg %p106
    %p113 = scmp.eq.s32.totalorder %s9, 3
    %p114 = por %p112, %p113
    %p115 = scmp.ne.s32.totalorder %s107, %s110
    %p116 = scmp.eq.s32.totalorder %s9, 0
    %p117 = por %p115, %p116
    %p118 = scmp.ne.s32.totalorder %s107, %s110
    %p119 = scmp.eq.s32.totalorder %s14, 3
    %p120 = por %p118, %p119
    %p121 = scmp.ne.s32.totalorder %s110, %s111
    %p122 = scmp.eq.s32.totalorder %s14, 0
    %p123 = por %p121, %p122
    %p124 = scmp.ne.s32.totalorder %s110, %s111
    %p125 = scmp.eq.s32.totalorder %s15, 3
    %p126 = por %p124, %p125
    %p128 = scmp.ne.s32.totalorder %s111, %s127
    %p129 = scmp.eq.s32.totalorder %s15, 0
    %p130 = por %p128, %p129
    %s131 = ssub.s32 %s16, %s42
    %s132 = ssub.s32 %s17, %s38
    %s133 = sor.u32 %s131, %s132
    %s134 = ssub.s32 %s18, %s34
    %s135 = sor.u32 %s133, %s134
    %p136 = scmp.eq.s32.totalorder %s135, 0
    %s138 = sadd.s32 %s137, 1
    %s139 = scalar_select %p136, %s137, %s138
    %p142 = pneg %p136
    %p143 = scmp.eq.s32.totalorder %s9, 3
    %p144 = por %p142, %p143
    %p145 = scmp.ne.s32.totalorder %s137, %s140
    %p146 = scmp.eq.s32.totalorder %s9, 0
    %p147 = por %p145, %p146
    %p148 = scmp.ne.s32.totalorder %s137, %s140
    %p149 = scmp.eq.s32.totalorder %s14, 3
    %p150 = por %p148, %p149
    %p151 = scmp.ne.s32.totalorder %s140, %s141
    %p152 = scmp.eq.s32.totalorder %s14, 0
    %p153 = por %p151, %p152
    %p154 = scmp.ne.s32.totalorder %s140, %s141
    %p155 = scmp.eq.s32.totalorder %s15, 3
    %p156 = por %p154, %p155
    %p158 = scmp.ne.s32.totalorder %s141, %s157
    %p159 = scmp.eq.s32.totalorder %s15, 0
    %p160 = por %p158, %p159
    %p161 = scmp.le.s32.totalorder 1, %s9
    %p162 = scmp.lt.s32.totalorder %s9, 5
    %p163 = pnand %p161, %p162
    %p164 = pneg %p163
    // Predicated region
    $region9: #{mgan_forward.13} parent=5 // pred_check
      _
    $region10: #{mgan_forward.13} parent=5 // pred_check_branch
      %166 = sbr.rel (%p163) target = $region12
    $region11: #{mgan_forward.13} parent=5 // pred_region
      %s167 = ssub.s32 %s9, 1
      // Predicated region
      $region13: #{mgan_forward.13} parent=11 // pred_check
        %p168 = pneg %p95
      $region14: #{mgan_forward.13} parent=11 // pred_check_branch
        %170 = sbr.rel (%p168) target = $region16
      $region15: #{mgan_forward.13} parent=11 // pred_region
        %s171 = smul.u32 32, %s23
        %p172 = scmp.lt.s32.totalorder %s20, 0
        %s173 = scalar_select %p172, %s20, 0
        %p174 = scmp.lt.s32.totalorder %s171, 31
        %s175 = scalar_select %p174, %s171, 31
        %p176 = scmp.lt.s32.totalorder %s22, 0
        %s177 = scalar_select %p176, %s22, 0
        %s178 = sadd.s32 %s177, %s175
        %s179 = smul.addr %s173, 32
        %s180 = sadd.s32 %s178, %s179
        %s181 = smul.addr %s180, 4
        %s182 = scalar_lea.vmem %s1, %s181
        %s183 = smul.u32 32, %s23
      $region16: #{mgan_forward.13} parent=11 // pred_fallthru
        _
      // Predicated region
      $region17: #{mgan_forward.13} parent=11 // pred_check
        %p184 = pneg %p123
      $region18: #{mgan_forward.13} parent=11 // pred_check_branch
        %186 = sbr.rel (%p184) target = $region20
      $region19: #{mgan_forward.13} parent=11 // pred_region
        %p187 = scmp.lt.s32.totalorder %s20, 0
        %s188 = scalar_select %p187, %s20, 0
        %p189 = scmp.lt.s32.totalorder %s22, 0
        %s190 = scalar_select %p189, %s22, 0
        %s191 = sadd.s32 %s190, %s188
        %s192 = scalar_lea.vmem %s2, %s191
      $region20: #{mgan_forward.13} parent=11 // pred_fallthru
        _
    $region12: #{mgan_forward.13} parent=5 // pred_fallthru
      _
    %p193 = scmp.lt.s32.totalorder %s9, 4
    // Predicated region
    $region21: #{mgan_forward.13} parent=5 // pred_check
      %p194 = pneg %p193
    $region22: #{mgan_forward.13} parent=5 // pred_check_branch
      %196 = sbr.rel (%p194) target = $region24
    $region23: #{mgan_forward.13} parent=5 // pred_region
      // Predicated region
      $region25: #{mgan_forward.13} parent=23 // pred_check
        %p197 = pneg %p59
      $region26: #{mgan_forward.13} parent=23 // pred_check_branch
        %199 = sbr.rel (%p197) target = $region28
      $region27: #{mgan_forward.13} parent=23 // pred_region
        %s200 = smul.u32 64, %s17
        %s201 = smul.u32 2, %s19
        %p202 = scmp.lt.s32.totalorder %s16, 0
        %s203 = scalar_select %p202, %s16, 0
        %p204 = scmp.lt.s32.totalorder %s200, 255
        %s205 = scalar_select %p204, %s200, 255
        %p206 = scmp.lt.s32.totalorder %s201, 1
        %s207 = scalar_select %p206, %s201, 1
        %s208 = smul.addr %s205, 2
        %s209 = sadd.s32 %s207, %s208
        %s210 = smul.addr %s203, 512
        %s211 = sadd.s32 %s209, %s210
        %s212 = smul.addr %s211, 4
        %s213 = scalar_lea.vmem %s0, %s212
        %s214 = smul.u32 64, %s17
        %s215 = smul.u32 2, %s19
      $region28: #{mgan_forward.13} parent=23 // pred_fallthru
        _
    $region24: #{mgan_forward.13} parent=5 // pred_fallthru
      _
    %p216 = scmp.le.s32.totalorder 1, %s9
    %p217 = scmp.lt.s32.totalorder %s9, 5
    %p218 = pnand %p216, %p217
    %p219 = pneg %p218
    // Predicated region
    $region29: #{mgan_forward.13} parent=5 // pred_check
      _
    $region30: #{mgan_forward.13} parent=5 // pred_check_branch
      %221 = sbr.rel (%p218) target = $region32
    $region31: #{mgan_forward.13} parent=5 // pred_region
      %s222 = ssub.s32 %s9, 1
      %s223 = smul.u32 64, %s21
      %s224 = smul.u32 2, %s23
      %p225 = scmp.lt.s32.totalorder %s20, 0
      %s226 = scalar_select %p225, %s20, 0
      %p227 = scmp.lt.s32.totalorder %s223, 255
      %s228 = scalar_select %p227, %s223, 255
      %p229 = scmp.lt.s32.totalorder %s224, 1
      %s230 = scalar_select %p229, %s224, 1
      %s231 = smul.addr %s228, 2
      %s232 = sadd.s32 %s230, %s231
      %s233 = smul.addr %s226, 512
      %s234 = sadd.s32 %s232, %s233
      %s235 = smul.addr %s234, 4
      %s236 = scalar_lea.vmem %s0, %s235
      %p237 = pneg %p65
      %p238 = pneg %p62
      %s239 = smul.u32 32, %s23
      %p240 = scmp.lt.s32.totalorder %s20, 0
      %s241 = scalar_select %p240, %s20, 0
      %p242 = scmp.lt.s32.totalorder %s239, 31
      %s243 = scalar_select %p242, %s239, 31
      %p244 = scmp.lt.s32.totalorder %s22, 0
      %s245 = scalar_select %p244, %s22, 0
      %s246 = sadd.s32 %s245, %s243
      %s247 = smul.addr %s241, 32
      %s248 = sadd.s32 %s246, %s247
      %s249 = smul.addr %s248, 4
      %s250 = scalar_lea.vmem %s1, %s249
      %p251 = pneg %p95
      %p252 = pneg %p92
      %p253 = scmp.lt.s32.totalorder %s20, 0
      %s254 = scalar_select %p253, %s20, 0
      %p255 = scmp.lt.s32.totalorder %s22, 0
      %s256 = scalar_select %p255, %s22, 0
      %s257 = sadd.s32 %s256, %s254
      %s258 = scalar_lea.vmem %s2, %s257
      %p259 = pneg %p123
      %p260 = pneg %p120
      %p261 = pneg %p153
      %p262 = pneg %p150
      %s263 = smul.u32 64, %s21
      %p264 = scmp.lt.s32.totalorder %s20, 0
      %s265 = scalar_select %p264, %s20, 0
      %p266 = scmp.lt.s32.totalorder %s263, 255
      %s267 = scalar_select %p266, %s263, 255
      %p268 = scmp.lt.s32.totalorder %s22, 0
      %s269 = scalar_select %p268, %s22, 0
      %s270 = sadd.s32 %s269, %s267
      %s271 = smul.addr %s265, 256
      %s272 = sadd.s32 %s270, %s271
      %s273 = smul.addr %s272, 8
      %s274 = scalar_lea.vmem %s3, %s273
      %s275 = smul.u32 64, %s21
      %s276 = smul.u32 2, %s23
      %p277 = scmp.lt.s32.totalorder %s20, 0
      %s278 = scalar_select %p277, %s20, 0
      %p279 = scmp.lt.s32.totalorder %s275, 255
      %s280 = scalar_select %p279, %s275, 255
      %p281 = scmp.lt.s32.totalorder %s276, 1
      %s282 = scalar_select %p281, %s276, 1
      %s283 = smul.addr %s280, 2
      %s284 = sadd.s32 %s282, %s283
      %s285 = smul.addr %s278, 512
      %s286 = sadd.s32 %s284, %s285
      %s287 = smul.addr %s286, 4
      %s288 = scalar_lea.vmem %s0, %s287
      %s289 = smul.u32 64, %s21
      %s290 = smul.u32 2, %s23
      %s291 = smul.u32 32, %s23
      %p292 = scmp.lt.s32.totalorder %s20, 0
      %s293 = scalar_select %p292, %s20, 0
      %p294 = scmp.lt.s32.totalorder %s291, 31
      %s295 = scalar_select %p294, %s291, 31
      %p296 = scmp.lt.s32.totalorder %s22, 0
      %s297 = scalar_select %p296, %s22, 0
      %s298 = sadd.s32 %s297, %s295
      %s299 = smul.addr %s293, 32
      %s300 = sadd.s32 %s298, %s299
      %s301 = smul.addr %s300, 4
      %s302 = scalar_lea.vmem %s1, %s301
      %s303 = smul.u32 32, %s23
      %p304 = scmp.lt.s32.totalorder %s20, 0
      %s305 = scalar_select %p304, %s20, 0
      %p306 = scmp.lt.s32.totalorder %s22, 0
      %s307 = scalar_select %p306, %s22, 0
      %s308 = sadd.s32 %s307, %s305
      %s309 = scalar_lea.vmem %s2, %s308
      %s310 = smul.u32 64, %s21
      %p311 = scmp.lt.s32.totalorder %s20, 0
      %s312 = scalar_select %p311, %s20, 0
      %p313 = scmp.lt.s32.totalorder %s310, 255
      %s314 = scalar_select %p313, %s310, 255
      %p315 = scmp.lt.s32.totalorder %s22, 0
      %s316 = scalar_select %p315, %s22, 0
      %s317 = sadd.s32 %s316, %s314
      %s318 = smul.addr %s312, 256
      %s319 = sadd.s32 %s317, %s318
      %s320 = smul.addr %s319, 8
      %s321 = scalar_lea.vmem %s3, %s320
      %s322 = smul.u32 64, %s21
      %p324 = scmp.eq.s32.totalorder %s23, 0
      // Predicated region
      $region33: #{mgan_forward.13} parent=31 // pred_check
        %p325 = pneg %p324
      $region34: #{mgan_forward.13} parent=31 // pred_check_branch
        %327 = sbr.rel (%p325) target = $region36
      $region35: #{mgan_forward.13} parent=31 // pred_region
        %328 = vst [vmem:[#allocation2] sm:$0xff] 0.0
        %329 = vst [vmem:[#allocation2 + $0x8] sm:$0xff] 0.0
        %330 = vst [vmem:[#allocation2 + $0x10] sm:$0xff] 0.0
        %331 = vst [vmem:[#allocation2 + $0x18] sm:$0xff] 0.0
        %332 = vst [vmem:[#allocation2 + $0x20] sm:$0xff] 0.0
        %333 = vst [vmem:[#allocation2 + $0x28] sm:$0xff] 0.0
        %334 = vst [vmem:[#allocation2 + $0x30] sm:$0xff] 0.0
        %335 = vst [vmem:[#allocation2 + $0x38] sm:$0xff] 0.0
        %336 = vst [vmem:[#allocation2 + $0x40] sm:$0xff] 0.0
        %337 = vst [vmem:[#allocation2 + $0x48] sm:$0xff] 0.0
        %338 = vst [vmem:[#allocation2 + $0x50] sm:$0xff] 0.0
        %339 = vst [vmem:[#allocation2 + $0x58] sm:$0xff] 0.0
        %340 = vst [vmem:[#allocation2 + $0x60] sm:$0xff] 0.0
        %341 = vst [vmem:[#allocation2 + $0x68] sm:$0xff] 0.0
        %342 = vst [vmem:[#allocation2 + $0x70] sm:$0xff] 0.0
        %343 = vst [vmem:[#allocation2 + $0x78] sm:$0xff] 0.0
        %344 = vst [vmem:[#allocation2 + $0x80] sm:$0xff] 0.0
        %345 = vst [vmem:[#allocation2 + $0x88] sm:$0xff] 0.0
        %346 = vst [vmem:[#allocation2 + $0x90] sm:$0xff] 0.0
        %347 = vst [vmem:[#allocation2 + $0x98] sm:$0xff] 0.0
        %348 = vst [vmem:[#allocation2 + $0xa0] sm:$0xff] 0.0
        %349 = vst [vmem:[#allocation2 + $0xa8] sm:$0xff] 0.0
        %350 = vst [vmem:[#allocation2 + $0xb0] sm:$0xff] 0.0
        %351 = vst [vmem:[#allocation2 + $0xb8] sm:$0xff] 0.0
        %352 = vst [vmem:[#allocation2 + $0xc0] sm:$0xff] 0.0
        %353 = vst [vmem:[#allocation2 + $0xc8] sm:$0xff] 0.0
        %354 = vst [vmem:[#allocation2 + $0xd0] sm:$0xff] 0.0
        %355 = vst [vmem:[#allocation2 + $0xd8] sm:$0xff] 0.0
        %356 = vst [vmem:[#allocation2 + $0xe0] sm:$0xff] 0.0
        %357 = vst [vmem:[#allocation2 + $0xe8] sm:$0xff] 0.0
        %358 = vst [vmem:[#allocation2 + $0xf0] sm:$0xff] 0.0
        %359 = vst [vmem:[#allocation2 + $0xf8] sm:$0xff] 0.0
        %360 = vst [vmem:[#allocation2 + $0x100] sm:$0xff] 0.0
        %361 = vst [vmem:[#allocation2 + $0x108] sm:$0xff] 0.0
        %362 = vst [vmem:[#allocation2 + $0x110] sm:$0xff] 0.0
        %363 = vst [vmem:[#allocation2 + $0x118] sm:$0xff] 0.0
        %364 = vst [vmem:[#allocation2 + $0x120] sm:$0xff] 0.0
        %365 = vst [vmem:[#allocation2 + $0x128] sm:$0xff] 0.0
        %366 = vst [vmem:[#allocation2 + $0x130] sm:$0xff] 0.0
        %367 = vst [vmem:[#allocation2 + $0x138] sm:$0xff] 0.0
        %368 = vst [vmem:[#allocation2 + $0x140] sm:$0xff] 0.0
        %369 = vst [vmem:[#allocation2 + $0x148] sm:$0xff] 0.0
        %370 = vst [vmem:[#allocation2 + $0x150] sm:$0xff] 0.0
        %371 = vst [vmem:[#allocation2 + $0x158] sm:$0xff] 0.0
        %372 = vst [vmem:[#allocation2 + $0x160] sm:$0xff] 0.0
        %373 = vst [vmem:[#allocation2 + $0x168] sm:$0xff] 0.0
        %374 = vst [vmem:[#allocation2 + $0x170] sm:$0xff] 0.0
        %375 = vst [vmem:[#allocation2 + $0x178] sm:$0xff] 0.0
        %376 = vst [vmem:[#allocation2 + $0x180] sm:$0xff] 0.0
        %377 = vst [vmem:[#allocation2 + $0x188] sm:$0xff] 0.0
        %378 = vst [vmem:[#allocation2 + $0x190] sm:$0xff] 0.0
        %379 = vst [vmem:[#allocation2 + $0x198] sm:$0xff] 0.0
        %380 = vst [vmem:[#allocation2 + $0x1a0] sm:$0xff] 0.0
        %381 = vst [vmem:[#allocation2 + $0x1a8] sm:$0xff] 0.0
        %382 = vst [vmem:[#allocation2 + $0x1b0] sm:$0xff] 0.0
        %383 = vst [vmem:[#allocation2 + $0x1b8] sm:$0xff] 0.0
        %384 = vst [vmem:[#allocation2 + $0x1c0] sm:$0xff] 0.0
        %385 = vst [vmem:[#allocation2 + $0x1c8] sm:$0xff] 0.0
        %386 = vst [vmem:[#allocation2 + $0x1d0] sm:$0xff] 0.0
        %387 = vst [vmem:[#allocation2 + $0x1d8] sm:$0xff] 0.0
        %388 = vst [vmem:[#allocation2 + $0x1e0] sm:$0xff] 0.0
        %389 = vst [vmem:[#allocation2 + $0x1e8] sm:$0xff] 0.0
        %390 = vst [vmem:[#allocation2 + $0x1f0] sm:$0xff] 0.0
        %391 = vst [vmem:[#allocation2 + $0x1f8] sm:$0xff] 0.0
      $region36: #{mgan_forward.13} parent=31 // pred_fallthru
        _
      %v392 = vld [vmem:[%s288] sm:$0xff]
      %v393 = vld [vmem:[%s288 + $0x8] sm:$0xff]
      %v394 = vld [vmem:[%s288 + $0x10] sm:$0xff]
      %v395 = vld [vmem:[%s288 + $0x18] sm:$0xff]
      %v396 = vld [vmem:[%s288 + $0x20] sm:$0xff]
      %v397 = vld [vmem:[%s288 + $0x28] sm:$0xff]
      %v398 = vld [vmem:[%s288 + $0x30] sm:$0xff]
      %v399 = vld [vmem:[%s288 + $0x38] sm:$0xff]
      %v400 = vld [vmem:[%s288 + $0x40] sm:$0xff]
      %v401 = vld [vmem:[%s288 + $0x48] sm:$0xff]
      %v402 = vld [vmem:[%s288 + $0x50] sm:$0xff]
      %v403 = vld [vmem:[%s288 + $0x58] sm:$0xff]
      %v404 = vld [vmem:[%s288 + $0x60] sm:$0xff]
      %v405 = vld [vmem:[%s288 + $0x68] sm:$0xff]
      %v406 = vld [vmem:[%s288 + $0x70] sm:$0xff]
      %v407 = vld [vmem:[%s288 + $0x78] sm:$0xff]
      %v408 = vld [vmem:[%s288 + $0x80] sm:$0xff]
      %v409 = vld [vmem:[%s288 + $0x88] sm:$0xff]
      %v410 = vld [vmem:[%s288 + $0x90] sm:$0xff]
      %v411 = vld [vmem:[%s288 + $0x98] sm:$0xff]
      %v412 = vld [vmem:[%s288 + $0xa0] sm:$0xff]
      %v413 = vld [vmem:[%s288 + $0xa8] sm:$0xff]
      %v414 = vld [vmem:[%s288 + $0xb0] sm:$0xff]
      %v415 = vld [vmem:[%s288 + $0xb8] sm:$0xff]
      %v416 = vld [vmem:[%s288 + $0xc0] sm:$0xff]
      %v417 = vld [vmem:[%s288 + $0xc8] sm:$0xff]
      %v418 = vld [vmem:[%s288 + $0xd0] sm:$0xff]
      %v419 = vld [vmem:[%s288 + $0xd8] sm:$0xff]
      %v420 = vld [vmem:[%s288 + $0xe0] sm:$0xff]
      %v421 = vld [vmem:[%s288 + $0xe8] sm:$0xff]
      %v422 = vld [vmem:[%s288 + $0xf0] sm:$0xff]
      %v423 = vld [vmem:[%s288 + $0xf8] sm:$0xff]
      %v424 = vld [vmem:[%s288 + $0x100] sm:$0xff]
      %v425 = vld [vmem:[%s288 + $0x108] sm:$0xff]
      %v426 = vld [vmem:[%s288 + $0x110] sm:$0xff]
      %v427 = vld [vmem:[%s288 + $0x118] sm:$0xff]
      %v428 = vld [vmem:[%s288 + $0x120] sm:$0xff]
      %v429 = vld [vmem:[%s288 + $0x128] sm:$0xff]
      %v430 = vld [vmem:[%s288 + $0x130] sm:$0xff]
      %v431 = vld [vmem:[%s288 + $0x138] sm:$0xff]
      %v432 = vld [vmem:[%s288 + $0x140] sm:$0xff]
      %v433 = vld [vmem:[%s288 + $0x148] sm:$0xff]
      %v434 = vld [vmem:[%s288 + $0x150] sm:$0xff]
      %v435 = vld [vmem:[%s288 + $0x158] sm:$0xff]
      %v436 = vld [vmem:[%s288 + $0x160] sm:$0xff]
      %v437 = vld [vmem:[%s288 + $0x168] sm:$0xff]
      %v438 = vld [vmem:[%s288 + $0x170] sm:$0xff]
      %v439 = vld [vmem:[%s288 + $0x178] sm:$0xff]
      %v440 = vld [vmem:[%s288 + $0x180] sm:$0xff]
      %v441 = vld [vmem:[%s288 + $0x188] sm:$0xff]
      %v442 = vld [vmem:[%s288 + $0x190] sm:$0xff]
      %v443 = vld [vmem:[%s288 + $0x198] sm:$0xff]
      %v444 = vld [vmem:[%s288 + $0x1a0] sm:$0xff]
      %v445 = vld [vmem:[%s288 + $0x1a8] sm:$0xff]
      %v446 = vld [vmem:[%s288 + $0x1b0] sm:$0xff]
      %v447 = vld [vmem:[%s288 + $0x1b8] sm:$0xff]
      %v448 = vld [vmem:[%s288 + $0x1c0] sm:$0xff]
      %v449 = vld [vmem:[%s288 + $0x1c8] sm:$0xff]
      %v450 = vld [vmem:[%s288 + $0x1d0] sm:$0xff]
      %v451 = vld [vmem:[%s288 + $0x1d8] sm:$0xff]
      %v452 = vld [vmem:[%s288 + $0x1e0] sm:$0xff]
      %v453 = vld [vmem:[%s288 + $0x1e8] sm:$0xff]
      %v454 = vld [vmem:[%s288 + $0x1f0] sm:$0xff]
      %v455 = vld [vmem:[%s288 + $0x1f8] sm:$0xff]
      %v456 = vmax.bf16 %v392, 0
      %v457 = vmax.bf16 %v393, 0
      %v458 = vmax.bf16 %v394, 0
      %v459 = vmax.bf16 %v395, 0
      %v460 = vmax.bf16 %v396, 0
      %v461 = vmax.bf16 %v397, 0
      %v462 = vmax.bf16 %v398, 0
      %v463 = vmax.bf16 %v399, 0
      %v464 = vmax.bf16 %v400, 0
      %v465 = vmax.bf16 %v401, 0
      %v466 = vmax.bf16 %v402, 0
      %v467 = vmax.bf16 %v403, 0
      %v468 = vmax.bf16 %v404, 0
      %v469 = vmax.bf16 %v405, 0
      %v470 = vmax.bf16 %v406, 0
      %v471 = vmax.bf16 %v407, 0
      %v472 = vmax.bf16 %v408, 0
      %v473 = vmax.bf16 %v409, 0
      %v474 = vmax.bf16 %v410, 0
      %v475 = vmax.bf16 %v411, 0
      %v476 = vmax.bf16 %v412, 0
      %v477 = vmax.bf16 %v413, 0
      %v478 = vmax.bf16 %v414, 0
      %v479 = vmax.bf16 %v415, 0
      %v480 = vmax.bf16 %v416, 0
      %v481 = vmax.bf16 %v417, 0
      %v482 = vmax.bf16 %v418, 0
      %v483 = vmax.bf16 %v419, 0
      %v484 = vmax.bf16 %v420, 0
      %v485 = vmax.bf16 %v421, 0
      %v486 = vmax.bf16 %v422, 0
      %v487 = vmax.bf16 %v423, 0
      %v488 = vmax.bf16 %v424, 0
      %v489 = vmax.bf16 %v425, 0
      %v490 = vmax.bf16 %v426, 0
      %v491 = vmax.bf16 %v427, 0
      %v492 = vmax.bf16 %v428, 0
      %v493 = vmax.bf16 %v429, 0
      %v494 = vmax.bf16 %v430, 0
      %v495 = vmax.bf16 %v431, 0
      %v496 = vmax.bf16 %v432, 0
      %v497 = vmax.bf16 %v433, 0
      %v498 = vmax.bf16 %v434, 0
      %v499 = vmax.bf16 %v435, 0
      %v500 = vmax.bf16 %v436, 0
      %v501 = vmax.bf16 %v437, 0
      %v502 = vmax.bf16 %v438, 0
      %v503 = vmax.bf16 %v439, 0
      %v504 = vmax.bf16 %v440, 0
      %v505 = vmax.bf16 %v441, 0
      %v506 = vmax.bf16 %v442, 0
      %v507 = vmax.bf16 %v443, 0
      %v508 = vmax.bf16 %v444, 0
      %v509 = vmax.bf16 %v445, 0
      %v510 = vmax.bf16 %v446, 0
      %v511 = vmax.bf16 %v447, 0
      %v512 = vmax.bf16 %v448, 0
      %v513 = vmax.bf16 %v449, 0
      %v514 = vmax.bf16 %v450, 0
      %v515 = vmax.bf16 %v451, 0
      %v516 = vmax.bf16 %v452, 0
      %v517 = vmax.bf16 %v453, 0
      %v518 = vmax.bf16 %v454, 0
      %v519 = vmax.bf16 %v455, 0
      %v520 = vld [vmem:[#allocation2] sm:$0xff]
      %v521 = vld [vmem:[#allocation2 + $0x8] sm:$0xff]
      %v522 = vld [vmem:[#allocation2 + $0x10] sm:$0xff]
      %v523 = vld [vmem:[#allocation2 + $0x18] sm:$0xff]
      %v524 = vld [vmem:[#allocation2 + $0x20] sm:$0xff]
      %v525 = vld [vmem:[#allocation2 + $0x28] sm:$0xff]
      %v526 = vld [vmem:[#allocation2 + $0x30] sm:$0xff]
      %v527 = vld [vmem:[#allocation2 + $0x38] sm:$0xff]
      %v528 = vld [vmem:[#allocation2 + $0x40] sm:$0xff]
      %v529 = vld [vmem:[#allocation2 + $0x48] sm:$0xff]
      %v530 = vld [vmem:[#allocation2 + $0x50] sm:$0xff]
      %v531 = vld [vmem:[#allocation2 + $0x58] sm:$0xff]
      %v532 = vld [vmem:[#allocation2 + $0x60] sm:$0xff]
      %v533 = vld [vmem:[#allocation2 + $0x68] sm:$0xff]
      %v534 = vld [vmem:[#allocation2 + $0x70] sm:$0xff]
      %v535 = vld [vmem:[#allocation2 + $0x78] sm:$0xff]
      %v536 = vld [vmem:[#allocation2 + $0x80] sm:$0xff]
      %v537 = vld [vmem:[#allocation2 + $0x88] sm:$0xff]
      %v538 = vld [vmem:[#allocation2 + $0x90] sm:$0xff]
      %v539 = vld [vmem:[#allocation2 + $0x98] sm:$0xff]
      %v540 = vld [vmem:[#allocation2 + $0xa0] sm:$0xff]
      %v541 = vld [vmem:[#allocation2 + $0xa8] sm:$0xff]
      %v542 = vld [vmem:[#allocation2 + $0xb0] sm:$0xff]
      %v543 = vld [vmem:[#allocation2 + $0xb8] sm:$0xff]
      %v544 = vld [vmem:[#allocation2 + $0xc0] sm:$0xff]
      %v545 = vld [vmem:[#allocation2 + $0xc8] sm:$0xff]
      %v546 = vld [vmem:[#allocation2 + $0xd0] sm:$0xff]
      %v547 = vld [vmem:[#allocation2 + $0xd8] sm:$0xff]
      %v548 = vld [vmem:[#allocation2 + $0xe0] sm:$0xff]
      %v549 = vld [vmem:[#allocation2 + $0xe8] sm:$0xff]
      %v550 = vld [vmem:[#allocation2 + $0xf0] sm:$0xff]
      %v551 = vld [vmem:[#allocation2 + $0xf8] sm:$0xff]
      %v552 = vld [vmem:[#allocation2 + $0x100] sm:$0xff]
      %v553 = vld [vmem:[#allocation2 + $0x108] sm:$0xff]
      %v554 = vld [vmem:[#allocation2 + $0x110] sm:$0xff]
      %v555 = vld [vmem:[#allocation2 + $0x118] sm:$0xff]
      %v556 = vld [vmem:[#allocation2 + $0x120] sm:$0xff]
      %v557 = vld [vmem:[#allocation2 + $0x128] sm:$0xff]
      %v558 = vld [vmem:[#allocation2 + $0x130] sm:$0xff]
      %v559 = vld [vmem:[#allocation2 + $0x138] sm:$0xff]
      %v560 = vld [vmem:[#allocation2 + $0x140] sm:$0xff]
      %v561 = vld [vmem:[#allocation2 + $0x148] sm:$0xff]
      %v562 = vld [vmem:[#allocation2 + $0x150] sm:$0xff]
      %v563 = vld [vmem:[#allocation2 + $0x158] sm:$0xff]
      %v564 = vld [vmem:[#allocation2 + $0x160] sm:$0xff]
      %v565 = vld [vmem:[#allocation2 + $0x168] sm:$0xff]
      %v566 = vld [vmem:[#allocation2 + $0x170] sm:$0xff]
      %v567 = vld [vmem:[#allocation2 + $0x178] sm:$0xff]
      %v568 = vld [vmem:[#allocation2 + $0x180] sm:$0xff]
      %v569 = vld [vmem:[#allocation2 + $0x188] sm:$0xff]
      %v570 = vld [vmem:[#allocation2 + $0x190] sm:$0xff]
      %v571 = vld [vmem:[#allocation2 + $0x198] sm:$0xff]
      %v572 = vld [vmem:[#allocation2 + $0x1a0] sm:$0xff]
      %v573 = vld [vmem:[#allocation2 + $0x1a8] sm:$0xff]
      %v574 = vld [vmem:[#allocation2 + $0x1b0] sm:$0xff]
      %v575 = vld [vmem:[#allocation2 + $0x1b8] sm:$0xff]
      %v576 = vld [vmem:[#allocation2 + $0x1c0] sm:$0xff]
      %v577 = vld [vmem:[#allocation2 + $0x1c8] sm:$0xff]
      %v578 = vld [vmem:[#allocation2 + $0x1d0] sm:$0xff]
      %v579 = vld [vmem:[#allocation2 + $0x1d8] sm:$0xff]
      %v580 = vld [vmem:[#allocation2 + $0x1e0] sm:$0xff]
      %v581 = vld [vmem:[#allocation2 + $0x1e8] sm:$0xff]
      %v582 = vld [vmem:[#allocation2 + $0x1f0] sm:$0xff]
      %v583 = vld [vmem:[#allocation2 + $0x1f8] sm:$0xff]
      %v584 = vld [vmem:[%s302] sm:$0xf]
      %v585 = vld [vmem:[%s302 + $0x4] sm:$0xf]
      %v586 = vld [vmem:[%s302 + $0x8] sm:$0xf]
      %v587 = vld [vmem:[%s302 + $0xc] sm:$0xf]
      %v588 = vld [vmem:[%s302 + $0x10] sm:$0xf]
      %v589 = vld [vmem:[%s302 + $0x14] sm:$0xf]
      %v590 = vld [vmem:[%s302 + $0x18] sm:$0xf]
      %v591 = vld [vmem:[%s302 + $0x1c] sm:$0xf]
      %v592 = vld [vmem:[%s302 + $0x20] sm:$0xf]
      %v593 = vld [vmem:[%s302 + $0x24] sm:$0xf]
      %v594 = vld [vmem:[%s302 + $0x28] sm:$0xf]
      %v595 = vld [vmem:[%s302 + $0x2c] sm:$0xf]
      %v596 = vld [vmem:[%s302 + $0x30] sm:$0xf]
      %v597 = vld [vmem:[%s302 + $0x34] sm:$0xf]
      %v598 = vld [vmem:[%s302 + $0x38] sm:$0xf]
      %v599 = vld [vmem:[%s302 + $0x3c] sm:$0xf]
      %v600 = vld [vmem:[%s302 + $0x40] sm:$0xf]
      %v601 = vld [vmem:[%s302 + $0x44] sm:$0xf]
      %v602 = vld [vmem:[%s302 + $0x48] sm:$0xf]
      %v603 = vld [vmem:[%s302 + $0x4c] sm:$0xf]
      %v604 = vld [vmem:[%s302 + $0x50] sm:$0xf]
      %v605 = vld [vmem:[%s302 + $0x54] sm:$0xf]
      %v606 = vld [vmem:[%s302 + $0x58] sm:$0xf]
      %v607 = vld [vmem:[%s302 + $0x5c] sm:$0xf]
      %v608 = vld [vmem:[%s302 + $0x60] sm:$0xf]
      %v609 = vld [vmem:[%s302 + $0x64] sm:$0xf]
      %v610 = vld [vmem:[%s302 + $0x68] sm:$0xf]
      %v611 = vld [vmem:[%s302 + $0x6c] sm:$0xf]
      %v612 = vld [vmem:[%s302 + $0x70] sm:$0xf]
      %v613 = vld [vmem:[%s302 + $0x74] sm:$0xf]
      %v614 = vld [vmem:[%s302 + $0x78] sm:$0xf]
      %v615 = vld [vmem:[%s302 + $0x7c] sm:$0xf]
      %v680 = vunpack.c.l.b16 %v456
      %v681 = vunpack.c.h.b16 %v456
      %v682 = vunpack.c.l.b16 %v457
      %v683 = vunpack.c.h.b16 %v457
      %v684 = vunpack.c.l.b16 %v458
      %v685 = vunpack.c.h.b16 %v458
      %v686 = vunpack.c.l.b16 %v459
      %v687 = vunpack.c.h.b16 %v459
      %v688 = vunpack.c.l.b16 %v460
      %v689 = vunpack.c.h.b16 %v460
      %v690 = vunpack.c.l.b16 %v461
      %v691 = vunpack.c.h.b16 %v461
      %v692 = vunpack.c.l.b16 %v462
      %v693 = vunpack.c.h.b16 %v462
      %v694 = vunpack.c.l.b16 %v463
      %v695 = vunpack.c.h.b16 %v463
      %v696 = vunpack.c.l.b16 %v464
      %v697 = vunpack.c.h.b16 %v464
      %v698 = vunpack.c.l.b16 %v465
      %v699 = vunpack.c.h.b16 %v465
      %v700 = vunpack.c.l.b16 %v466
      %v701 = vunpack.c.h.b16 %v466
      %v702 = vunpack.c.l.b16 %v467
      %v703 = vunpack.c.h.b16 %v467
      %v704 = vunpack.c.l.b16 %v468
      %v705 = vunpack.c.h.b16 %v468
      %v706 = vunpack.c.l.b16 %v469
      %v707 = vunpack.c.h.b16 %v469
      %v708 = vunpack.c.l.b16 %v470
      %v709 = vunpack.c.h.b16 %v470
      %v710 = vunpack.c.l.b16 %v471
      %v711 = vunpack.c.h.b16 %v471
      %v712 = vunpack.c.l.b16 %v472
      %v713 = vunpack.c.h.b16 %v472
      %v714 = vunpack.c.l.b16 %v473
      %v715 = vunpack.c.h.b16 %v473
      %v716 = vunpack.c.l.b16 %v474
      %v717 = vunpack.c.h.b16 %v474
      %v718 = vunpack.c.l.b16 %v475
      %v719 = vunpack.c.h.b16 %v475
      %v720 = vunpack.c.l.b16 %v476
      %v721 = vunpack.c.h.b16 %v476
      %v722 = vunpack.c.l.b16 %v477
      %v723 = vunpack.c.h.b16 %v477
      %v724 = vunpack.c.l.b16 %v478
      %v725 = vunpack.c.h.b16 %v478
      %v726 = vunpack.c.l.b16 %v479
      %v727 = vunpack.c.h.b16 %v479
      %v728 = vunpack.c.l.b16 %v480
      %v729 = vunpack.c.h.b16 %v480
      %v730 = vunpack.c.l.b16 %v481
      %v731 = vunpack.c.h.b16 %v481
      %v732 = vunpack.c.l.b16 %v482
      %v733 = vunpack.c.h.b16 %v482
      %v734 = vunpack.c.l.b16 %v483
      %v735 = vunpack.c.h.b16 %v483
      %v736 = vunpack.c.l.b16 %v484
      %v737 = vunpack.c.h.b16 %v484
      %v738 = vunpack.c.l.b16 %v485
      %v739 = vunpack.c.h.b16 %v485
      %v740 = vunpack.c.l.b16 %v486
      %v741 = vunpack.c.h.b16 %v486
      %v742 = vunpack.c.l.b16 %v487
      %v743 = vunpack.c.h.b16 %v487
      %v744 = vunpack.c.l.b16 %v488
      %v745 = vunpack.c.h.b16 %v488
      %v746 = vunpack.c.l.b16 %v489
      %v747 = vunpack.c.h.b16 %v489
      %v748 = vunpack.c.l.b16 %v490
      %v749 = vunpack.c.h.b16 %v490
      %v750 = vunpack.c.l.b16 %v491
      %v751 = vunpack.c.h.b16 %v491
      %v752 = vunpack.c.l.b16 %v492
      %v753 = vunpack.c.h.b16 %v492
      %v754 = vunpack.c.l.b16 %v493
      %v755 = vunpack.c.h.b16 %v493
      %v756 = vunpack.c.l.b16 %v494
      %v757 = vunpack.c.h.b16 %v494
      %v758 = vunpack.c.l.b16 %v495
      %v759 = vunpack.c.h.b16 %v495
      %v760 = vunpack.c.l.b16 %v496
      %v761 = vunpack.c.h.b16 %v496
      %v762 = vunpack.c.l.b16 %v497
      %v763 = vunpack.c.h.b16 %v497
      %v764 = vunpack.c.l.b16 %v498
      %v765 = vunpack.c.h.b16 %v498
      %v766 = vunpack.c.l.b16 %v499
      %v767 = vunpack.c.h.b16 %v499
      %v768 = vunpack.c.l.b16 %v500
      %v769 = vunpack.c.h.b16 %v500
      %v770 = vunpack.c.l.b16 %v501
      %v771 = vunpack.c.h.b16 %v501
      %v772 = vunpack.c.l.b16 %v502
      %v773 = vunpack.c.h.b16 %v502
      %v774 = vunpack.c.l.b16 %v503
      %v775 = vunpack.c.h.b16 %v503
      %v776 = vunpack.c.l.b16 %v504
      %v777 = vunpack.c.h.b16 %v504
      %v778 = vunpack.c.l.b16 %v505
      %v779 = vunpack.c.h.b16 %v505
      %v780 = vunpack.c.l.b16 %v506
      %v781 = vunpack.c.h.b16 %v506
      %v782 = vunpack.c.l.b16 %v507
      %v783 = vunpack.c.h.b16 %v507
      %v784 = vunpack.c.l.b16 %v508
      %v785 = vunpack.c.h.b16 %v508
      %v786 = vunpack.c.l.b16 %v509
      %v787 = vunpack.c.h.b16 %v509
      %v788 = vunpack.c.l.b16 %v510
      %v789 = vunpack.c.h.b16 %v510
      %v790 = vunpack.c.l.b16 %v511
      %v791 = vunpack.c.h.b16 %v511
      %v792 = vunpack.c.l.b16 %v512
      %v793 = vunpack.c.h.b16 %v512
      %v794 = vunpack.c.l.b16 %v513
      %v795 = vunpack.c.h.b16 %v513
      %v796 = vunpack.c.l.b16 %v514
      %v797 = vunpack.c.h.b16 %v514
      %v798 = vunpack.c.l.b16 %v515
      %v799 = vunpack.c.h.b16 %v515
      %v800 = vunpack.c.l.b16 %v516
      %v801 = vunpack.c.h.b16 %v516
      %v802 = vunpack.c.l.b16 %v517
      %v803 = vunpack.c.h.b16 %v517
      %v804 = vunpack.c.l.b16 %v518
      %v805 = vunpack.c.h.b16 %v518
      %v806 = vunpack.c.l.b16 %v519
      %v807 = vunpack.c.h.b16 %v519
      %v808 = vpack.c.b16 %v682, %v680
      %v809 = vpack.c.b16 %v683, %v681
      %v810 = vpack.c.b16 %v686, %v684
      %v811 = vpack.c.b16 %v687, %v685
      %v812 = vpack.c.b16 %v690, %v688
      %v813 = vpack.c.b16 %v691, %v689
      %v814 = vpack.c.b16 %v694, %v692
      %v815 = vpack.c.b16 %v695, %v693
      %v816 = vpack.c.b16 %v698, %v696
      %v817 = vpack.c.b16 %v699, %v697
      %v818 = vpack.c.b16 %v702, %v700
      %v819 = vpack.c.b16 %v703, %v701
      %v820 = vpack.c.b16 %v706, %v704
      %v821 = vpack.c.b16 %v707, %v705
      %v822 = vpack.c.b16 %v710, %v708
      %v823 = vpack.c.b16 %v711, %v709
      %v824 = vpack.c.b16 %v714, %v712
      %v825 = vpack.c.b16 %v715, %v713
      %v826 = vpack.c.b16 %v718, %v716
      %v827 = vpack.c.b16 %v719, %v717
      %v828 = vpack.c.b16 %v722, %v720
      %v829 = vpack.c.b16 %v723, %v721
      %v830 = vpack.c.b16 %v726, %v724
      %v831 = vpack.c.b16 %v727, %v725
      %v832 = vpack.c.b16 %v730, %v728
      %v833 = vpack.c.b16 %v731, %v729
      %v834 = vpack.c.b16 %v734, %v732
      %v835 = vpack.c.b16 %v735, %v733
      %v836 = vpack.c.b16 %v738, %v736
      %v837 = vpack.c.b16 %v739, %v737
      %v838 = vpack.c.b16 %v742, %v740
      %v839 = vpack.c.b16 %v743, %v741
      %v840 = vpack.c.b16 %v746, %v744
      %v841 = vpack.c.b16 %v747, %v745
      %v842 = vpack.c.b16 %v750, %v748
      %v843 = vpack.c.b16 %v751, %v749
      %v844 = vpack.c.b16 %v754, %v752
      %v845 = vpack.c.b16 %v755, %v753
      %v846 = vpack.c.b16 %v758, %v756
      %v847 = vpack.c.b16 %v759, %v757
      %v848 = vpack.c.b16 %v762, %v760
      %v849 = vpack.c.b16 %v763, %v761
      %v850 = vpack.c.b16 %v766, %v764
      %v851 = vpack.c.b16 %v767, %v765
      %v852 = vpack.c.b16 %v770, %v768
      %v853 = vpack.c.b16 %v771, %v769
      %v854 = vpack.c.b16 %v774, %v772
      %v855 = vpack.c.b16 %v775, %v773
      %v856 = vpack.c.b16 %v778, %v776
      %v857 = vpack.c.b16 %v779, %v777
      %v858 = vpack.c.b16 %v782, %v780
      %v859 = vpack.c.b16 %v783, %v781
      %v860 = vpack.c.b16 %v786, %v784
      %v861 = vpack.c.b16 %v787, %v785
      %v862 = vpack.c.b16 %v790, %v788
      %v863 = vpack.c.b16 %v791, %v789
      %v864 = vpack.c.b16 %v794, %v792
      %v865 = vpack.c.b16 %v795, %v793
      %v866 = vpack.c.b16 %v798, %v796
      %v867 = vpack.c.b16 %v799, %v797
      %v868 = vpack.c.b16 %v802, %v800
      %v869 = vpack.c.b16 %v803, %v801
      %v870 = vpack.c.b16 %v806, %v804
      %v871 = vpack.c.b16 %v807, %v805
      %v968 = vunpack.c.l.b16 %v584
      %v969 = vunpack.c.l.b16 %v585
      %v970 = vunpack.c.l.b16 %v586
      %v971 = vunpack.c.l.b16 %v587
      %v972 = vunpack.c.l.b16 %v588
      %v973 = vunpack.c.l.b16 %v589
      %v974 = vunpack.c.l.b16 %v590
      %v975 = vunpack.c.l.b16 %v591
      %v976 = vunpack.c.l.b16 %v592
      %v977 = vunpack.c.l.b16 %v593
      %v978 = vunpack.c.l.b16 %v594
      %v979 = vunpack.c.l.b16 %v595
      %v980 = vunpack.c.l.b16 %v596
      %v981 = vunpack.c.l.b16 %v597
      %v982 = vunpack.c.l.b16 %v598
      %v983 = vunpack.c.l.b16 %v599
      %v984 = vunpack.c.l.b16 %v600
      %v985 = vunpack.c.l.b16 %v601
      %v986 = vunpack.c.l.b16 %v602
      %v987 = vunpack.c.l.b16 %v603
      %v988 = vunpack.c.l.b16 %v604
      %v989 = vunpack.c.l.b16 %v605
      %v990 = vunpack.c.l.b16 %v606
      %v991 = vunpack.c.l.b16 %v607
      %v992 = vunpack.c.l.b16 %v608
      %v993 = vunpack.c.l.b16 %v609
      %v994 = vunpack.c.l.b16 %v610
      %v995 = vunpack.c.l.b16 %v611
      %v996 = vunpack.c.l.b16 %v612
      %v997 = vunpack.c.l.b16 %v613
      %v998 = vunpack.c.l.b16 %v614
      %v999 = vunpack.c.l.b16 %v615
      %v1000 = vpack.c.b16 %v969, %v968
      %v1001 = vpack.c.b16 %v971, %v970
      %v1002 = vpack.c.b16 %v973, %v972
      %v1003 = vpack.c.b16 %v975, %v974
      %v1004 = vpack.c.b16 %v977, %v976
      %v1005 = vpack.c.b16 %v979, %v978
      %v1006 = vpack.c.b16 %v981, %v980
      %v1007 = vpack.c.b16 %v983, %v982
      %v1008 = vpack.c.b16 %v985, %v984
      %v1009 = vpack.c.b16 %v987, %v986
      %v1010 = vpack.c.b16 %v989, %v988
      %v1011 = vpack.c.b16 %v991, %v990
      %v1012 = vpack.c.b16 %v993, %v992
      %v1013 = vpack.c.b16 %v995, %v994
      %v1014 = vpack.c.b16 %v997, %v996
      %v1015 = vpack.c.b16 %v999, %v998
      %1032 = vmatprep.subr.bf16.mxu0 0
      %1033 = vmatpush1.bf16.msra.mxu0 %v1007
      %1034 = vmatprep.subr.bf16.mxu0 0
      %1035 = vmatpush1.bf16.msra.mxu0 %v1006
      %1036 = vmatprep.subr.bf16.mxu0 0
      %1037 = vmatpush1.bf16.msra.mxu0 %v1005
      %1038 = vmatprep.subr.bf16.mxu0 0
      %1039 = vmatpush1.bf16.msra.mxu0 %v1004
      %1040 = vmatprep.subr.bf16.mxu0 0
      %1041 = vmatpush1.bf16.msra.mxu0 %v1003
      %1042 = vmatprep.subr.bf16.mxu0 0
      %1043 = vmatpush1.bf16.msra.mxu0 %v1002
      %1044 = vmatprep.subr.bf16.mxu0 0
      %1045 = vmatpush1.bf16.msra.mxu0 %v1001
      %1046 = vmatprep.subr.bf16.mxu0 0
      %1047 = vmatpush1.bf16.msra.mxu0 %v1000
      %1048 = vmatprep.subr.bf16.mxu0 0
      %1049 = vmatpush2.bf16.msra.mxu0 %v1015
      %1050 = vmatprep.subr.bf16.mxu0 0
      %1051 = vmatpush2.bf16.msra.mxu0 %v1014
      %1052 = vmatprep.subr.bf16.mxu0 0
      %1053 = vmatpush2.bf16.msra.mxu0 %v1013
      %1054 = vmatprep.subr.bf16.mxu0 0
      %1055 = vmatpush2.bf16.msra.mxu0 %v1012
      %1056 = vmatprep.subr.bf16.mxu0 0
      %1057 = vmatpush2.bf16.msra.mxu0 %v1011
      %1058 = vmatprep.subr.bf16.mxu0 0
      %1059 = vmatpush2.bf16.msra.mxu0 %v1010
      %1060 = vmatprep.subr.bf16.mxu0 0
      %1061 = vmatpush2.bf16.msra.mxu0 %v1009
      %1062 = vmatprep.subr.bf16.mxu0 0
      %1063 = vmatpush2.bf16.msra.mxu0 %v1008
      %1064 = vmatprep.mubr.bf16.mxu0 %v809
      %1065 = vmatmul.mubr.bf16.gmra.mxu0 %v808
      %v1066 = vpop.f32.mrf.mxu0
      %v1067 = vadd.f32 0.0, %v1066
      %v1068 = vpop.f32.mrf.mxu0
      %v1069 = vpop.f32.mrf.mxu0
      %v1070 = vadd.f32 0.0, %v1069
      %v1071 = vpop.f32.mrf.mxu0
      %1072 = vmatprep.mubr.bf16.mxu0 %v811
      %1073 = vmatmul.mubr.bf16.gmra.mxu0 %v810
      %v1074 = vpop.f32.mrf.mxu0
      %v1075 = vadd.f32 0.0, %v1074
      %v1076 = vpop.f32.mrf.mxu0
      %v1077 = vpop.f32.mrf.mxu0
      %v1078 = vadd.f32 0.0, %v1077
      %v1079 = vpop.f32.mrf.mxu0
      %1080 = vmatprep.mubr.bf16.mxu0 %v813
      %1081 = vmatmul.mubr.bf16.gmra.mxu0 %v812
      %v1082 = vpop.f32.mrf.mxu0
      %v1083 = vadd.f32 0.0, %v1082
      %v1084 = vpop.f32.mrf.mxu0
      %v1085 = vpop.f32.mrf.mxu0
      %v1086 = vadd.f32 0.0, %v1085
      %v1087 = vpop.f32.mrf.mxu0
      %1088 = vmatprep.mubr.bf16.mxu0 %v815
      %1089 = vmatmul.mubr.bf16.gmra.mxu0 %v814
      %v1090 = vpop.f32.mrf.mxu0
      %v1091 = vadd.f32 0.0, %v1090
      %v1092 = vpop.f32.mrf.mxu0
      %v1093 = vpop.f32.mrf.mxu0
      %v1094 = vadd.f32 0.0, %v1093
      %v1095 = vpop.f32.mrf.mxu0
      %1096 = vmatprep.mubr.bf16.mxu0 %v817
      %1097 = vmatmul.mubr.bf16.gmra.mxu0 %v816
      %v1098 = vpop.f32.mrf.mxu0
      %v1099 = vadd.f32 0.0, %v1098
      %v1100 = vpop.f32.mrf.mxu0
      %v1101 = vpop.f32.mrf.mxu0
      %v1102 = vadd.f32 0.0, %v1101
      %v1103 = vpop.f32.mrf.mxu0
      %1104 = vmatprep.mubr.bf16.mxu0 %v819
      %1105 = vmatmul.mubr.bf16.gmra.mxu0 %v818
      %v1106 = vpop.f32.mrf.mxu0
      %v1107 = vadd.f32 0.0, %v1106
      %v1108 = vpop.f32.mrf.mxu0
      %v1109 = vpop.f32.mrf.mxu0
      %v1110 = vadd.f32 0.0, %v1109
      %v1111 = vpop.f32.mrf.mxu0
      %1112 = vmatprep.mubr.bf16.mxu0 %v821
      %1113 = vmatmul.mubr.bf16.gmra.mxu0 %v820
      %v1114 = vpop.f32.mrf.mxu0
      %v1115 = vadd.f32 0.0, %v1114
      %v1116 = vpop.f32.mrf.mxu0
      %v1117 = vpop.f32.mrf.mxu0
      %v1118 = vadd.f32 0.0, %v1117
      %v1119 = vpop.f32.mrf.mxu0
      %1120 = vmatprep.mubr.bf16.mxu0 %v823
      %1121 = vmatmul.mubr.bf16.gmra.mxu0 %v822
      %v1122 = vpop.f32.mrf.mxu0
      %v1123 = vadd.f32 0.0, %v1122
      %v1124 = vpop.f32.mrf.mxu0
      %v1125 = vpop.f32.mrf.mxu0
      %v1126 = vadd.f32 0.0, %v1125
      %v1127 = vpop.f32.mrf.mxu0
      %1128 = vmatprep.mubr.bf16.mxu0 %v825
      %1129 = vmatmul.mubr.bf16.gmra.mxu0 %v824
      %v1130 = vpop.f32.mrf.mxu0
      %v1131 = vadd.f32 0.0, %v1130
      %v1132 = vpop.f32.mrf.mxu0
      %v1133 = vpop.f32.mrf.mxu0
      %v1134 = vadd.f32 0.0, %v1133
      %v1135 = vpop.f32.mrf.mxu0
      %1136 = vmatprep.mubr.bf16.mxu0 %v827
      %1137 = vmatmul.mubr.bf16.gmra.mxu0 %v826
      %v1138 = vpop.f32.mrf.mxu0
      %v1139 = vadd.f32 0.0, %v1138
      %v1140 = vpop.f32.mrf.mxu0
      %v1141 = vpop.f32.mrf.mxu0
      %v1142 = vadd.f32 0.0, %v1141
      %v1143 = vpop.f32.mrf.mxu0
      %1144 = vmatprep.mubr.bf16.mxu0 %v829
      %1145 = vmatmul.mubr.bf16.gmra.mxu0 %v828
      %v1146 = vpop.f32.mrf.mxu0
      %v1147 = vadd.f32 0.0, %v1146
      %v1148 = vpop.f32.mrf.mxu0
      %v1149 = vpop.f32.mrf.mxu0
      %v1150 = vadd.f32 0.0, %v1149
      %v1151 = vpop.f32.mrf.mxu0
      %1152 = vmatprep.mubr.bf16.mxu0 %v831
      %1153 = vmatmul.mubr.bf16.gmra.mxu0 %v830
      %v1154 = vpop.f32.mrf.mxu0
      %v1155 = vadd.f32 0.0, %v1154
      %v1156 = vpop.f32.mrf.mxu0
      %v1157 = vpop.f32.mrf.mxu0
      %v1158 = vadd.f32 0.0, %v1157
      %v1159 = vpop.f32.mrf.mxu0
      %1160 = vmatprep.mubr.bf16.mxu0 %v833
      %1161 = vmatmul.mubr.bf16.gmra.mxu0 %v832
      %v1162 = vpop.f32.mrf.mxu0
      %v1163 = vadd.f32 0.0, %v1162
      %v1164 = vpop.f32.mrf.mxu0
      %v1165 = vpop.f32.mrf.mxu0
      %v1166 = vadd.f32 0.0, %v1165
      %v1167 = vpop.f32.mrf.mxu0
      %1168 = vmatprep.mubr.bf16.mxu0 %v835
      %1169 = vmatmul.mubr.bf16.gmra.mxu0 %v834
      %v1170 = vpop.f32.mrf.mxu0
      %v1171 = vadd.f32 0.0, %v1170
      %v1172 = vpop.f32.mrf.mxu0
      %v1173 = vpop.f32.mrf.mxu0
      %v1174 = vadd.f32 0.0, %v1173
      %v1175 = vpop.f32.mrf.mxu0
      %1176 = vmatprep.mubr.bf16.mxu0 %v837
      %1177 = vmatmul.mubr.bf16.gmra.mxu0 %v836
      %v1178 = vpop.f32.mrf.mxu0
      %v1179 = vadd.f32 0.0, %v1178
      %v1180 = vpop.f32.mrf.mxu0
      %v1181 = vpop.f32.mrf.mxu0
      %v1182 = vadd.f32 0.0, %v1181
      %v1183 = vpop.f32.mrf.mxu0
      %1184 = vmatprep.mubr.bf16.mxu0 %v839
      %1185 = vmatmul.mubr.bf16.gmra.mxu0 %v838
      %v1186 = vpop.f32.mrf.mxu0
      %v1187 = vadd.f32 0.0, %v1186
      %v1188 = vpop.f32.mrf.mxu0
      %v1189 = vpop.f32.mrf.mxu0
      %v1190 = vadd.f32 0.0, %v1189
      %v1191 = vpop.f32.mrf.mxu0
      %1192 = vmatprep.mubr.bf16.mxu0 %v841
      %1193 = vmatmul.mubr.bf16.gmra.mxu0 %v840
      %v1194 = vpop.f32.mrf.mxu0
      %v1195 = vadd.f32 0.0, %v1194
      %v1196 = vpop.f32.mrf.mxu0
      %v1197 = vpop.f32.mrf.mxu0
      %v1198 = vadd.f32 0.0, %v1197
      %v1199 = vpop.f32.mrf.mxu0
      %1200 = vmatprep.mubr.bf16.mxu0 %v843
      %1201 = vmatmul.mubr.bf16.gmra.mxu0 %v842
      %v1202 = vpop.f32.mrf.mxu0
      %v1203 = vadd.f32 0.0, %v1202
      %v1204 = vpop.f32.mrf.mxu0
      %v1205 = vpop.f32.mrf.mxu0
      %v1206 = vadd.f32 0.0, %v1205
      %v1207 = vpop.f32.mrf.mxu0
      %1208 = vmatprep.mubr.bf16.mxu0 %v845
      %1209 = vmatmul.mubr.bf16.gmra.mxu0 %v844
      %v1210 = vpop.f32.mrf.mxu0
      %v1211 = vadd.f32 0.0, %v1210
      %v1212 = vpop.f32.mrf.mxu0
      %v1213 = vpop.f32.mrf.mxu0
      %v1214 = vadd.f32 0.0, %v1213
      %v1215 = vpop.f32.mrf.mxu0
      %1216 = vmatprep.mubr.bf16.mxu0 %v847
      %1217 = vmatmul.mubr.bf16.gmra.mxu0 %v846
      %v1218 = vpop.f32.mrf.mxu0
      %v1219 = vadd.f32 0.0, %v1218
      %v1220 = vpop.f32.mrf.mxu0
      %v1221 = vpop.f32.mrf.mxu0
      %v1222 = vadd.f32 0.0, %v1221
      %v1223 = vpop.f32.mrf.mxu0
      %1224 = vmatprep.mubr.bf16.mxu0 %v849
      %1225 = vmatmul.mubr.bf16.gmra.mxu0 %v848
      %v1226 = vpop.f32.mrf.mxu0
      %v1227 = vadd.f32 0.0, %v1226
      %v1228 = vpop.f32.mrf.mxu0
      %v1229 = vpop.f32.mrf.mxu0
      %v1230 = vadd.f32 0.0, %v1229
      %v1231 = vpop.f32.mrf.mxu0
      %1232 = vmatprep.mubr.bf16.mxu0 %v851
      %1233 = vmatmul.mubr.bf16.gmra.mxu0 %v850
      %v1234 = vpop.f32.mrf.mxu0
      %v1235 = vadd.f32 0.0, %v1234
      %v1236 = vpop.f32.mrf.mxu0
      %v1237 = vpop.f32.mrf.mxu0
      %v1238 = vadd.f32 0.0, %v1237
      %v1239 = vpop.f32.mrf.mxu0
      %1240 = vmatprep.mubr.bf16.mxu0 %v853
      %1241 = vmatmul.mubr.bf16.gmra.mxu0 %v852
      %v1242 = vpop.f32.mrf.mxu0
      %v1243 = vadd.f32 0.0, %v1242
      %v1244 = vpop.f32.mrf.mxu0
      %v1245 = vpop.f32.mrf.mxu0
      %v1246 = vadd.f32 0.0, %v1245
      %v1247 = vpop.f32.mrf.mxu0
      %1248 = vmatprep.mubr.bf16.mxu0 %v855
      %1249 = vmatmul.mubr.bf16.gmra.mxu0 %v854
      %v1250 = vpop.f32.mrf.mxu0
      %v1251 = vadd.f32 0.0, %v1250
      %v1252 = vpop.f32.mrf.mxu0
      %v1253 = vpop.f32.mrf.mxu0
      %v1254 = vadd.f32 0.0, %v1253
      %v1255 = vpop.f32.mrf.mxu0
      %1256 = vmatprep.mubr.bf16.mxu0 %v857
      %1257 = vmatmul.mubr.bf16.gmra.mxu0 %v856
      %v1258 = vpop.f32.mrf.mxu0
      %v1259 = vadd.f32 0.0, %v1258
      %v1260 = vpop.f32.mrf.mxu0
      %v1261 = vpop.f32.mrf.mxu0
      %v1262 = vadd.f32 0.0, %v1261
      %v1263 = vpop.f32.mrf.mxu0
      %1264 = vmatprep.mubr.bf16.mxu0 %v859
      %1265 = vmatmul.mubr.bf16.gmra.mxu0 %v858
      %v1266 = vpop.f32.mrf.mxu0
      %v1267 = vadd.f32 0.0, %v1266
      %v1268 = vpop.f32.mrf.mxu0
      %v1269 = vpop.f32.mrf.mxu0
      %v1270 = vadd.f32 0.0, %v1269
      %v1271 = vpop.f32.mrf.mxu0
      %1272 = vmatprep.mubr.bf16.mxu0 %v861
      %1273 = vmatmul.mubr.bf16.gmra.mxu0 %v860
      %v1274 = vpop.f32.mrf.mxu0
      %v1275 = vadd.f32 0.0, %v1274
      %v1276 = vpop.f32.mrf.mxu0
      %v1277 = vpop.f32.mrf.mxu0
      %v1278 = vadd.f32 0.0, %v1277
      %v1279 = vpop.f32.mrf.mxu0
      %1280 = vmatprep.mubr.bf16.mxu0 %v863
      %1281 = vmatmul.mubr.bf16.gmra.mxu0 %v862
      %v1282 = vpop.f32.mrf.mxu0
      %v1283 = vadd.f32 0.0, %v1282
      %v1284 = vpop.f32.mrf.mxu0
      %v1285 = vpop.f32.mrf.mxu0
      %v1286 = vadd.f32 0.0, %v1285
      %v1287 = vpop.f32.mrf.mxu0
      %1288 = vmatprep.mubr.bf16.mxu0 %v865
      %1289 = vmatmul.mubr.bf16.gmra.mxu0 %v864
      %v1290 = vpop.f32.mrf.mxu0
      %v1291 = vadd.f32 0.0, %v1290
      %v1292 = vpop.f32.mrf.mxu0
      %v1293 = vpop.f32.mrf.mxu0
      %v1294 = vadd.f32 0.0, %v1293
      %v1295 = vpop.f32.mrf.mxu0
      %1296 = vmatprep.mubr.bf16.mxu0 %v867
      %1297 = vmatmul.mubr.bf16.gmra.mxu0 %v866
      %v1298 = vpop.f32.mrf.mxu0
      %v1299 = vadd.f32 0.0, %v1298
      %v1300 = vpop.f32.mrf.mxu0
      %v1301 = vpop.f32.mrf.mxu0
      %v1302 = vadd.f32 0.0, %v1301
      %v1303 = vpop.f32.mrf.mxu0
      %1304 = vmatprep.mubr.bf16.mxu0 %v869
      %1305 = vmatmul.mubr.bf16.gmra.mxu0 %v868
      %v1306 = vpop.f32.mrf.mxu0
      %v1307 = vadd.f32 0.0, %v1306
      %v1308 = vpop.f32.mrf.mxu0
      %v1309 = vpop.f32.mrf.mxu0
      %v1310 = vadd.f32 0.0, %v1309
      %v1311 = vpop.f32.mrf.mxu0
      %1312 = vmatprep.mubr.bf16.mxu0 %v871
      %1313 = vmatmul.mubr.bf16.gmra.mxu0 %v870
      %v1314 = vpop.f32.mrf.mxu0
      %v1315 = vadd.f32 0.0, %v1314
      %v1316 = vpop.f32.mrf.mxu0
      %v1317 = vpop.f32.mrf.mxu0
      %v1318 = vadd.f32 0.0, %v1317
      %v1319 = vpop.f32.mrf.mxu0
      %1320 = vdwg.mxu0
      %v1321 = vadd.f32 %v520, %v1067
      %v1322 = vadd.f32 %v521, %v1070
      %v1323 = vadd.f32 %v522, %v1075
      %v1324 = vadd.f32 %v523, %v1078
      %v1325 = vadd.f32 %v524, %v1083
      %v1326 = vadd.f32 %v525, %v1086
      %v1327 = vadd.f32 %v526, %v1091
      %v1328 = vadd.f32 %v527, %v1094
      %v1329 = vadd.f32 %v528, %v1099
      %v1330 = vadd.f32 %v529, %v1102
      %v1331 = vadd.f32 %v530, %v1107
      %v1332 = vadd.f32 %v531, %v1110
      %v1333 = vadd.f32 %v532, %v1115
      %v1334 = vadd.f32 %v533, %v1118
      %v1335 = vadd.f32 %v534, %v1123
      %v1336 = vadd.f32 %v535, %v1126
      %v1337 = vadd.f32 %v536, %v1131
      %v1338 = vadd.f32 %v537, %v1134
      %v1339 = vadd.f32 %v538, %v1139
      %v1340 = vadd.f32 %v539, %v1142
      %v1341 = vadd.f32 %v540, %v1147
      %v1342 = vadd.f32 %v541, %v1150
      %v1343 = vadd.f32 %v542, %v1155
      %v1344 = vadd.f32 %v543, %v1158
      %v1345 = vadd.f32 %v544, %v1163
      %v1346 = vadd.f32 %v545, %v1166
      %v1347 = vadd.f32 %v546, %v1171
      %v1348 = vadd.f32 %v547, %v1174
      %v1349 = vadd.f32 %v548, %v1179
      %v1350 = vadd.f32 %v549, %v1182
      %v1351 = vadd.f32 %v550, %v1187
      %v1352 = vadd.f32 %v551, %v1190
      %v1353 = vadd.f32 %v552, %v1195
      %v1354 = vadd.f32 %v553, %v1198
      %v1355 = vadd.f32 %v554, %v1203
      %v1356 = vadd.f32 %v555, %v1206
      %v1357 = vadd.f32 %v556, %v1211
      %v1358 = vadd.f32 %v557, %v1214
      %v1359 = vadd.f32 %v558, %v1219
      %v1360 = vadd.f32 %v559, %v1222
      %v1361 = vadd.f32 %v560, %v1227
      %v1362 = vadd.f32 %v561, %v1230
      %v1363 = vadd.f32 %v562, %v1235
      %v1364 = vadd.f32 %v563, %v1238
      %v1365 = vadd.f32 %v564, %v1243
      %v1366 = vadd.f32 %v565, %v1246
      %v1367 = vadd.f32 %v566, %v1251
      %v1368 = vadd.f32 %v567, %v1254
      %v1369 = vadd.f32 %v568, %v1259
      %v1370 = vadd.f32 %v569, %v1262
      %v1371 = vadd.f32 %v570, %v1267
      %v1372 = vadd.f32 %v571, %v1270
      %v1373 = vadd.f32 %v572, %v1275
      %v1374 = vadd.f32 %v573, %v1278
      %v1375 = vadd.f32 %v574, %v1283
      %v1376 = vadd.f32 %v575, %v1286
      %v1377 = vadd.f32 %v576, %v1291
      %v1378 = vadd.f32 %v577, %v1294
      %v1379 = vadd.f32 %v578, %v1299
      %v1380 = vadd.f32 %v579, %v1302
      %v1381 = vadd.f32 %v580, %v1307
      %v1382 = vadd.f32 %v581, %v1310
      %v1383 = vadd.f32 %v582, %v1315
      %v1384 = vadd.f32 %v583, %v1318
      %1385 = vst [vmem:[#allocation2] sm:$0xff] %v1321
      %1386 = vst [vmem:[#allocation2 + $0x8] sm:$0xff] %v1322
      %1387 = vst [vmem:[#allocation2 + $0x10] sm:$0xff] %v1323
      %1388 = vst [vmem:[#allocation2 + $0x18] sm:$0xff] %v1324
      %1389 = vst [vmem:[#allocation2 + $0x20] sm:$0xff] %v1325
      %1390 = vst [vmem:[#allocation2 + $0x28] sm:$0xff] %v1326
      %1391 = vst [vmem:[#allocation2 + $0x30] sm:$0xff] %v1327
      %1392 = vst [vmem:[#allocation2 + $0x38] sm:$0xff] %v1328
      %1393 = vst [vmem:[#allocation2 + $0x40] sm:$0xff] %v1329
      %1394 = vst [vmem:[#allocation2 + $0x48] sm:$0xff] %v1330
      %1395 = vst [vmem:[#allocation2 + $0x50] sm:$0xff] %v1331
      %1396 = vst [vmem:[#allocation2 + $0x58] sm:$0xff] %v1332
      %1397 = vst [vmem:[#allocation2 + $0x60] sm:$0xff] %v1333
      %1398 = vst [vmem:[#allocation2 + $0x68] sm:$0xff] %v1334
      %1399 = vst [vmem:[#allocation2 + $0x70] sm:$0xff] %v1335
      %1400 = vst [vmem:[#allocation2 + $0x78] sm:$0xff] %v1336
      %1401 = vst [vmem:[#allocation2 + $0x80] sm:$0xff] %v1337
      %1402 = vst [vmem:[#allocation2 + $0x88] sm:$0xff] %v1338
      %1403 = vst [vmem:[#allocation2 + $0x90] sm:$0xff] %v1339
      %1404 = vst [vmem:[#allocation2 + $0x98] sm:$0xff] %v1340
      %1405 = vst [vmem:[#allocation2 + $0xa0] sm:$0xff] %v1341
      %1406 = vst [vmem:[#allocation2 + $0xa8] sm:$0xff] %v1342
      %1407 = vst [vmem:[#allocation2 + $0xb0] sm:$0xff] %v1343
      %1408 = vst [vmem:[#allocation2 + $0xb8] sm:$0xff] %v1344
      %1409 = vst [vmem:[#allocation2 + $0xc0] sm:$0xff] %v1345
      %1410 = vst [vmem:[#allocation2 + $0xc8] sm:$0xff] %v1346
      %1411 = vst [vmem:[#allocation2 + $0xd0] sm:$0xff] %v1347
      %1412 = vst [vmem:[#allocation2 + $0xd8] sm:$0xff] %v1348
      %1413 = vst [vmem:[#allocation2 + $0xe0] sm:$0xff] %v1349
      %1414 = vst [vmem:[#allocation2 + $0xe8] sm:$0xff] %v1350
      %1415 = vst [vmem:[#allocation2 + $0xf0] sm:$0xff] %v1351
      %1416 = vst [vmem:[#allocation2 + $0xf8] sm:$0xff] %v1352
      %1417 = vst [vmem:[#allocation2 + $0x100] sm:$0xff] %v1353
      %1418 = vst [vmem:[#allocation2 + $0x108] sm:$0xff] %v1354
      %1419 = vst [vmem:[#allocation2 + $0x110] sm:$0xff] %v1355
      %1420 = vst [vmem:[#allocation2 + $0x118] sm:$0xff] %v1356
      %1421 = vst [vmem:[#allocation2 + $0x120] sm:$0xff] %v1357
      %1422 = vst [vmem:[#allocation2 + $0x128] sm:$0xff] %v1358
      %1423 = vst [vmem:[#allocation2 + $0x130] sm:$0xff] %v1359
      %1424 = vst [vmem:[#allocation2 + $0x138] sm:$0xff] %v1360
      %1425 = vst [vmem:[#allocation2 + $0x140] sm:$0xff] %v1361
      %1426 = vst [vmem:[#allocation2 + $0x148] sm:$0xff] %v1362
      %1427 = vst [vmem:[#allocation2 + $0x150] sm:$0xff] %v1363
      %1428 = vst [vmem:[#allocation2 + $0x158] sm:$0xff] %v1364
      %1429 = vst [vmem:[#allocation2 + $0x160] sm:$0xff] %v1365
      %1430 = vst [vmem:[#allocation2 + $0x168] sm:$0xff] %v1366
      %1431 = vst [vmem:[#allocation2 + $0x170] sm:$0xff] %v1367
      %1432 = vst [vmem:[#allocation2 + $0x178] sm:$0xff] %v1368
      %1433 = vst [vmem:[#allocation2 + $0x180] sm:$0xff] %v1369
      %1434 = vst [vmem:[#allocation2 + $0x188] sm:$0xff] %v1370
      %1435 = vst [vmem:[#allocation2 + $0x190] sm:$0xff] %v1371
      %1436 = vst [vmem:[#allocation2 + $0x198] sm:$0xff] %v1372
      %1437 = vst [vmem:[#allocation2 + $0x1a0] sm:$0xff] %v1373
      %1438 = vst [vmem:[#allocation2 + $0x1a8] sm:$0xff] %v1374
      %1439 = vst [vmem:[#allocation2 + $0x1b0] sm:$0xff] %v1375
      %1440 = vst [vmem:[#allocation2 + $0x1b8] sm:$0xff] %v1376
      %1441 = vst [vmem:[#allocation2 + $0x1c0] sm:$0xff] %v1377
      %1442 = vst [vmem:[#allocation2 + $0x1c8] sm:$0xff] %v1378
      %1443 = vst [vmem:[#allocation2 + $0x1d0] sm:$0xff] %v1379
      %1444 = vst [vmem:[#allocation2 + $0x1d8] sm:$0xff] %v1380
      %1445 = vst [vmem:[#allocation2 + $0x1e0] sm:$0xff] %v1381
      %1446 = vst [vmem:[#allocation2 + $0x1e8] sm:$0xff] %v1382
      %1447 = vst [vmem:[#allocation2 + $0x1f0] sm:$0xff] %v1383
      %1448 = vst [vmem:[#allocation2 + $0x1f8] sm:$0xff] %v1384
      // Predicated region
      $region37: #{mgan_forward.13} parent=31 // pred_check
        %p1449 = pneg %p324
      $region38: #{mgan_forward.13} parent=31 // pred_check_branch
        %1451 = sbr.rel (%p1449) target = $region40
      $region39: #{mgan_forward.13} parent=31 // pred_region
        %v1452 = vld [vmem:[#allocation2] sm:$0xff]
        %v1453 = vld [vmem:[#allocation2 + $0x8] sm:$0xff]
        %v1454 = vld [vmem:[#allocation2 + $0x10] sm:$0xff]
        %v1455 = vld [vmem:[#allocation2 + $0x18] sm:$0xff]
        %v1456 = vld [vmem:[#allocation2 + $0x20] sm:$0xff]
        %v1457 = vld [vmem:[#allocation2 + $0x28] sm:$0xff]
        %v1458 = vld [vmem:[#allocation2 + $0x30] sm:$0xff]
        %v1459 = vld [vmem:[#allocation2 + $0x38] sm:$0xff]
        %v1460 = vld [vmem:[#allocation2 + $0x40] sm:$0xff]
        %v1461 = vld [vmem:[#allocation2 + $0x48] sm:$0xff]
        %v1462 = vld [vmem:[#allocation2 + $0x50] sm:$0xff]
        %v1463 = vld [vmem:[#allocation2 + $0x58] sm:$0xff]
        %v1464 = vld [vmem:[#allocation2 + $0x60] sm:$0xff]
        %v1465 = vld [vmem:[#allocation2 + $0x68] sm:$0xff]
        %v1466 = vld [vmem:[#allocation2 + $0x70] sm:$0xff]
        %v1467 = vld [vmem:[#allocation2 + $0x78] sm:$0xff]
        %v1468 = vld [vmem:[#allocation2 + $0x80] sm:$0xff]
        %v1469 = vld [vmem:[#allocation2 + $0x88] sm:$0xff]
        %v1470 = vld [vmem:[#allocation2 + $0x90] sm:$0xff]
        %v1471 = vld [vmem:[#allocation2 + $0x98] sm:$0xff]
        %v1472 = vld [vmem:[#allocation2 + $0xa0] sm:$0xff]
        %v1473 = vld [vmem:[#allocation2 + $0xa8] sm:$0xff]
        %v1474 = vld [vmem:[#allocation2 + $0xb0] sm:$0xff]
        %v1475 = vld [vmem:[#allocation2 + $0xb8] sm:$0xff]
        %v1476 = vld [vmem:[#allocation2 + $0xc0] sm:$0xff]
        %v1477 = vld [vmem:[#allocation2 + $0xc8] sm:$0xff]
        %v1478 = vld [vmem:[#allocation2 + $0xd0] sm:$0xff]
        %v1479 = vld [vmem:[#allocation2 + $0xd8] sm:$0xff]
        %v1480 = vld [vmem:[#allocation2 + $0xe0] sm:$0xff]
        %v1481 = vld [vmem:[#allocation2 + $0xe8] sm:$0xff]
        %v1482 = vld [vmem:[#allocation2 + $0xf0] sm:$0xff]
        %v1483 = vld [vmem:[#allocation2 + $0xf8] sm:$0xff]
        %v1484 = vld [vmem:[#allocation2 + $0x100] sm:$0xff]
        %v1485 = vld [vmem:[#allocation2 + $0x108] sm:$0xff]
        %v1486 = vld [vmem:[#allocation2 + $0x110] sm:$0xff]
        %v1487 = vld [vmem:[#allocation2 + $0x118] sm:$0xff]
        %v1488 = vld [vmem:[#allocation2 + $0x120] sm:$0xff]
        %v1489 = vld [vmem:[#allocation2 + $0x128] sm:$0xff]
        %v1490 = vld [vmem:[#allocation2 + $0x130] sm:$0xff]
        %v1491 = vld [vmem:[#allocation2 + $0x138] sm:$0xff]
        %v1492 = vld [vmem:[#allocation2 + $0x140] sm:$0xff]
        %v1493 = vld [vmem:[#allocation2 + $0x148] sm:$0xff]
        %v1494 = vld [vmem:[#allocation2 + $0x150] sm:$0xff]
        %v1495 = vld [vmem:[#allocation2 + $0x158] sm:$0xff]
        %v1496 = vld [vmem:[#allocation2 + $0x160] sm:$0xff]
        %v1497 = vld [vmem:[#allocation2 + $0x168] sm:$0xff]
        %v1498 = vld [vmem:[#allocation2 + $0x170] sm:$0xff]
        %v1499 = vld [vmem:[#allocation2 + $0x178] sm:$0xff]
        %v1500 = vld [vmem:[#allocation2 + $0x180] sm:$0xff]
        %v1501 = vld [vmem:[#allocation2 + $0x188] sm:$0xff]
        %v1502 = vld [vmem:[#allocation2 + $0x190] sm:$0xff]
        %v1503 = vld [vmem:[#allocation2 + $0x198] sm:$0xff]
        %v1504 = vld [vmem:[#allocation2 + $0x1a0] sm:$0xff]
        %v1505 = vld [vmem:[#allocation2 + $0x1a8] sm:$0xff]
        %v1506 = vld [vmem:[#allocation2 + $0x1b0] sm:$0xff]
        %v1507 = vld [vmem:[#allocation2 + $0x1b8] sm:$0xff]
        %v1508 = vld [vmem:[#allocation2 + $0x1c0] sm:$0xff]
        %v1509 = vld [vmem:[#allocation2 + $0x1c8] sm:$0xff]
        %v1510 = vld [vmem:[#allocation2 + $0x1d0] sm:$0xff]
        %v1511 = vld [vmem:[#allocation2 + $0x1d8] sm:$0xff]
        %v1512 = vld [vmem:[#allocation2 + $0x1e0] sm:$0xff]
        %v1513 = vld [vmem:[#allocation2 + $0x1e8] sm:$0xff]
        %v1514 = vld [vmem:[#allocation2 + $0x1f0] sm:$0xff]
        %v1515 = vld [vmem:[#allocation2 + $0x1f8] sm:$0xff]
        %v1516 = vld [vmem:[%s309] sm:$0x1]
        %v1518 = vlaneseq
        %v1519 = vshrl.u32 %v1518, 7
        %v1520 = vsub.s32 0, %v1519
        %v1521 = vrot.slane %v1516, %v1520
        %v1523 = vadd.f32 %v1452, %v1521
        %v1524 = vadd.f32 %v1453, %v1521
        %v1525 = vadd.f32 %v1454, %v1521
        %v1526 = vadd.f32 %v1455, %v1521
        %v1527 = vadd.f32 %v1456, %v1521
        %v1528 = vadd.f32 %v1457, %v1521
        %v1529 = vadd.f32 %v1458, %v1521
        %v1530 = vadd.f32 %v1459, %v1521
        %v1531 = vadd.f32 %v1460, %v1521
        %v1532 = vadd.f32 %v1461, %v1521
        %v1533 = vadd.f32 %v1462, %v1521
        %v1534 = vadd.f32 %v1463, %v1521
        %v1535 = vadd.f32 %v1464, %v1521
        %v1536 = vadd.f32 %v1465, %v1521
        %v1537 = vadd.f32 %v1466, %v1521
        %v1538 = vadd.f32 %v1467, %v1521
        %v1539 = vadd.f32 %v1468, %v1521
        %v1540 = vadd.f32 %v1469, %v1521
        %v1541 = vadd.f32 %v1470, %v1521
        %v1542 = vadd.f32 %v1471, %v1521
        %v1543 = vadd.f32 %v1472, %v1521
        %v1544 = vadd.f32 %v1473, %v1521
        %v1545 = vadd.f32 %v1474, %v1521
        %v1546 = vadd.f32 %v1475, %v1521
        %v1547 = vadd.f32 %v1476, %v1521
        %v1548 = vadd.f32 %v1477, %v1521
        %v1549 = vadd.f32 %v1478, %v1521
        %v1550 = vadd.f32 %v1479, %v1521
        %v1551 = vadd.f32 %v1480, %v1521
        %v1552 = vadd.f32 %v1481, %v1521
        %v1553 = vadd.f32 %v1482, %v1521
        %v1554 = vadd.f32 %v1483, %v1521
        %v1555 = vadd.f32 %v1484, %v1521
        %v1556 = vadd.f32 %v1485, %v1521
        %v1557 = vadd.f32 %v1486, %v1521
        %v1558 = vadd.f32 %v1487, %v1521
        %v1559 = vadd.f32 %v1488, %v1521
        %v1560 = vadd.f32 %v1489, %v1521
        %v1561 = vadd.f32 %v1490, %v1521
        %v1562 = vadd.f32 %v1491, %v1521
        %v1563 = vadd.f32 %v1492, %v1521
        %v1564 = vadd.f32 %v1493, %v1521
        %v1565 = vadd.f32 %v1494, %v1521
        %v1566 = vadd.f32 %v1495, %v1521
        %v1567 = vadd.f32 %v1496, %v1521
        %v1568 = vadd.f32 %v1497, %v1521
        %v1569 = vadd.f32 %v1498, %v1521
        %v1570 = vadd.f32 %v1499, %v1521
        %v1571 = vadd.f32 %v1500, %v1521
        %v1572 = vadd.f32 %v1501, %v1521
        %v1573 = vadd.f32 %v1502, %v1521
        %v1574 = vadd.f32 %v1503, %v1521
        %v1575 = vadd.f32 %v1504, %v1521
        %v1576 = vadd.f32 %v1505, %v1521
        %v1577 = vadd.f32 %v1506, %v1521
        %v1578 = vadd.f32 %v1507, %v1521
        %v1579 = vadd.f32 %v1508, %v1521
        %v1580 = vadd.f32 %v1509, %v1521
        %v1581 = vadd.f32 %v1510, %v1521
        %v1582 = vadd.f32 %v1511, %v1521
        %v1583 = vadd.f32 %v1512, %v1521
        %v1584 = vadd.f32 %v1513, %v1521
        %v1585 = vadd.f32 %v1514, %v1521
        %v1586 = vadd.f32 %v1515, %v1521
        %1587 = vst [vmem:[%s321] sm:$0xff] %v1523
        %1588 = vst [vmem:[%s321 + $0x8] sm:$0xff] %v1524
        %1589 = vst [vmem:[%s321 + $0x10] sm:$0xff] %v1525
        %1590 = vst [vmem:[%s321 + $0x18] sm:$0xff] %v1526
        %1591 = vst [vmem:[%s321 + $0x20] sm:$0xff] %v1527
        %1592 = vst [vmem:[%s321 + $0x28] sm:$0xff] %v1528
        %1593 = vst [vmem:[%s321 + $0x30] sm:$0xff] %v1529
        %1594 = vst [vmem:[%s321 + $0x38] sm:$0xff] %v1530
        %1595 = vst [vmem:[%s321 + $0x40] sm:$0xff] %v1531
        %1596 = vst [vmem:[%s321 + $0x48] sm:$0xff] %v1532
        %1597 = vst [vmem:[%s321 + $0x50] sm:$0xff] %v1533
        %1598 = vst [vmem:[%s321 + $0x58] sm:$0xff] %v1534
        %1599 = vst [vmem:[%s321 + $0x60] sm:$0xff] %v1535
        %1600 = vst [vmem:[%s321 + $0x68] sm:$0xff] %v1536
        %1601 = vst [vmem:[%s321 + $0x70] sm:$0xff] %v1537
        %1602 = vst [vmem:[%s321 + $0x78] sm:$0xff] %v1538
        %1603 = vst [vmem:[%s321 + $0x80] sm:$0xff] %v1539
        %1604 = vst [vmem:[%s321 + $0x88] sm:$0xff] %v1540
        %1605 = vst [vmem:[%s321 + $0x90] sm:$0xff] %v1541
        %1606 = vst [vmem:[%s321 + $0x98] sm:$0xff] %v1542
        %1607 = vst [vmem:[%s321 + $0xa0] sm:$0xff] %v1543
        %1608 = vst [vmem:[%s321 + $0xa8] sm:$0xff] %v1544
        %1609 = vst [vmem:[%s321 + $0xb0] sm:$0xff] %v1545
        %1610 = vst [vmem:[%s321 + $0xb8] sm:$0xff] %v1546
        %1611 = vst [vmem:[%s321 + $0xc0] sm:$0xff] %v1547
        %1612 = vst [vmem:[%s321 + $0xc8] sm:$0xff] %v1548
        %1613 = vst [vmem:[%s321 + $0xd0] sm:$0xff] %v1549
        %1614 = vst [vmem:[%s321 + $0xd8] sm:$0xff] %v1550
        %1615 = vst [vmem:[%s321 + $0xe0] sm:$0xff] %v1551
        %1616 = vst [vmem:[%s321 + $0xe8] sm:$0xff] %v1552
        %1617 = vst [vmem:[%s321 + $0xf0] sm:$0xff] %v1553
        %1618 = vst [vmem:[%s321 + $0xf8] sm:$0xff] %v1554
        %1619 = vst [vmem:[%s321 + $0x100] sm:$0xff] %v1555
        %1620 = vst [vmem:[%s321 + $0x108] sm:$0xff] %v1556
        %1621 = vst [vmem:[%s321 + $0x110] sm:$0xff] %v1557
        %1622 = vst [vmem:[%s321 + $0x118] sm:$0xff] %v1558
        %1623 = vst [vmem:[%s321 + $0x120] sm:$0xff] %v1559
        %1624 = vst [vmem:[%s321 + $0x128] sm:$0xff] %v1560
        %1625 = vst [vmem:[%s321 + $0x130] sm:$0xff] %v1561
        %1626 = vst [vmem:[%s321 + $0x138] sm:$0xff] %v1562
        %1627 = vst [vmem:[%s321 + $0x140] sm:$0xff] %v1563
        %1628 = vst [vmem:[%s321 + $0x148] sm:$0xff] %v1564
        %1629 = vst [vmem:[%s321 + $0x150] sm:$0xff] %v1565
        %1630 = vst [vmem:[%s321 + $0x158] sm:$0xff] %v1566
        %1631 = vst [vmem:[%s321 + $0x160] sm:$0xff] %v1567
        %1632 = vst [vmem:[%s321 + $0x168] sm:$0xff] %v1568
        %1633 = vst [vmem:[%s321 + $0x170] sm:$0xff] %v1569
        %1634 = vst [vmem:[%s321 + $0x178] sm:$0xff] %v1570
        %1635 = vst [vmem:[%s321 + $0x180] sm:$0xff] %v1571
        %1636 = vst [vmem:[%s321 + $0x188] sm:$0xff] %v1572
        %1637 = vst [vmem:[%s321 + $0x190] sm:$0xff] %v1573
        %1638 = vst [vmem:[%s321 + $0x198] sm:$0xff] %v1574
        %1639 = vst [vmem:[%s321 + $0x1a0] sm:$0xff] %v1575
        %1640 = vst [vmem:[%s321 + $0x1a8] sm:$0xff] %v1576
        %1641 = vst [vmem:[%s321 + $0x1b0] sm:$0xff] %v1577
        %1642 = vst [vmem:[%s321 + $0x1b8] sm:$0xff] %v1578
        %1643 = vst [vmem:[%s321 + $0x1c0] sm:$0xff] %v1579
        %1644 = vst [vmem:[%s321 + $0x1c8] sm:$0xff] %v1580
        %1645 = vst [vmem:[%s321 + $0x1d0] sm:$0xff] %v1581
        %1646 = vst [vmem:[%s321 + $0x1d8] sm:$0xff] %v1582
        %1647 = vst [vmem:[%s321 + $0x1e0] sm:$0xff] %v1583
        %1648 = vst [vmem:[%s321 + $0x1e8] sm:$0xff] %v1584
        %1649 = vst [vmem:[%s321 + $0x1f0] sm:$0xff] %v1585
        %1650 = vst [vmem:[%s321 + $0x1f8] sm:$0xff] %v1586
      $region40: #{mgan_forward.13} parent=31 // pred_fallthru
        _
      %s1651 = smul.u32 64, %s21
      %p1652 = scmp.lt.s32.totalorder %s20, 0
      %s1653 = scalar_select %p1652, %s20, 0
      %p1654 = scmp.lt.s32.totalorder %s1651, 255
      %s1655 = scalar_select %p1654, %s1651, 255
      %p1656 = scmp.lt.s32.totalorder %s22, 0
      %s1657 = scalar_select %p1656, %s22, 0
      %s1658 = sadd.s32 %s1657, %s1655
      %s1659 = smul.addr %s1653, 256
      %s1660 = sadd.s32 %s1658, %s1659
      %s1661 = smul.addr %s1660, 8
      %s1662 = scalar_lea.vmem %s3, %s1661
      // Predicated region
      $region41: #{mgan_forward.13} parent=31 // pred_check
        %p1663 = pneg %p150
      $region42: #{mgan_forward.13} parent=31 // pred_check_branch
        %1665 = sbr.rel (%p1663) target = $region44
      $region43: #{mgan_forward.13} parent=31 // pred_region
        %s1666 = smul.u32 64, %s21
      $region44: #{mgan_forward.13} parent=31 // pred_fallthru
        _
    $region32: #{mgan_forward.13} parent=5 // pred_fallthru
      _
    %p1667 = scmp.le.s32.totalorder 2, %s9
    // Predicated region
    $region45: #{mgan_forward.13} parent=5 // pred_check
      %p1668 = pneg %p1667
    $region46: #{mgan_forward.13} parent=5 // pred_check_branch
      %1670 = sbr.rel (%p1668) target = $region48
    $region47: #{mgan_forward.13} parent=5 // pred_region
      %s1671 = ssub.s32 %s9, 2
      // Predicated region
      $region49: #{mgan_forward.13} parent=47 // pred_check
        %p1672 = pneg %p156
      $region50: #{mgan_forward.13} parent=47 // pred_check_branch
        %1674 = sbr.rel (%p1672) target = $region52
      $region51: #{mgan_forward.13} parent=47 // pred_region
        %s1675 = smul.u32 64, %s25
        %p1676 = scmp.lt.s32.totalorder %s24, 0
        %s1677 = scalar_select %p1676, %s24, 0
        %p1678 = scmp.lt.s32.totalorder %s1675, 255
        %s1679 = scalar_select %p1678, %s1675, 255
        %p1680 = scmp.lt.s32.totalorder %s26, 0
        %s1681 = scalar_select %p1680, %s26, 0
        %s1682 = sadd.s32 %s1681, %s1679
        %s1683 = smul.addr %s1677, 256
        %s1684 = sadd.s32 %s1682, %s1683
        %s1685 = smul.addr %s1684, 8
        %s1686 = scalar_lea.vmem %s3, %s1685
      $region52: #{mgan_forward.13} parent=47 // pred_fallthru
        _
    $region48: #{mgan_forward.13} parent=5 // pred_fallthru
      _
  $region6: #{mgan_forward.13} parent=0 // loop_footer
    %s13 = sadd.s32 1, %s9
  $region7: #{mgan_forward.13} parent=0 // loop_footer_branch
    %8 = sbr.rel target = $region3
  $region8: #{mgan_forward.13} parent=0 // loop_exit
    _

// kernel: mgan_forward.14
$region0: #{mgan_forward.14}
  #allocation0 [shape = 'u32[]', space=smem, size = 0x4, offset = 0x4, fixed_abs, tag = 'smem constant byte address 0x4 - core index']
  #allocation1 [shape = 'u32[144,128]{1,0:T(1,128)}', space=vmem, size = 0x12000, scoped, tag = 'internal scratch']
  #allocation2 [shape = 'f32[256,128]{1,0:T(8,128)}', space=vmem, size = 0x20000, scoped, tag = 'scratch operand']
  %s0 = inlined_call_operand.vmem [shape: bf16[1,512,128], index: 0, kind: input, shape index: {}]
  %s1 = inlined_call_operand.vmem [shape: bf16[1,128,128], index: 1, kind: input, shape index: {}]
  %s2 = inlined_call_operand.vmem [shape: f32[1,1,128], index: 2, kind: input, shape index: {}]
  %s3 = inlined_call_operand.vmem [shape: f32[1,512,128], index: 3, kind: output, shape index: {}]
  %s4 = sld [smem:[#allocation0]]
  $region53: #{mgan_forward.14} parent=0
    _
  %s6 = ssub.s32 1, %s4
  %s7 = scalar_select 0, %s6, %s4
  loop: start=0, step=1, limit=4
  $region2: #{mgan_forward.14} parent=0 // loop_pre_header
    _
  $region3: #{mgan_forward.14} parent=0 // loop_header
    %s9 = sphi 0, %s13
    %p10 = scmp.ge.s32.totalorder %s9, 4
    %s16 = sphi 0, %s42
    %s17 = sphi 0, %s38
    %s18 = sphi 0, %s34
    %s19 = sphi 0, %s30
    %s20 = sphi 0, %s16
    %s21 = sphi 0, %s17
    %s22 = sphi 0, %s18
    %s23 = sphi 0, %s19
    %s24 = sphi 0, %s20
    %s25 = sphi 0, %s21
    %s26 = sphi 0, %s22
    %s27 = sphi 0, %s23
    %s49 = sphi 0, %s51
    %s52 = sphi 0, %s49
    %s53 = sphi 0, %s52
    %s69 = sphi 0, %s53
    %s79 = sphi 0, %s81
    %s82 = sphi 0, %s79
    %s83 = sphi 0, %s82
    %s99 = sphi 0, %s83
    %s107 = sphi 0, %s109
    %s110 = sphi 0, %s107
    %s111 = sphi 0, %s110
    %s127 = sphi 0, %s111
    %s137 = sphi 0, %s139
    %s140 = sphi 0, %s137
    %s141 = sphi 0, %s140
    %s157 = sphi 0, %s141
  $region4: #{mgan_forward.14} parent=0 // loop_header_branch
    %12 = sbr.rel (%p10) target = $region8
  $region5: #{mgan_forward.14} parent=0 // loop_body
    %s14 = ssub.s32 %s9, 1
    %s15 = ssub.s32 %s9, 2
    %s28 = sadd.s32 1, %s19
    %p29 = scmp.ge.s32.totalorder %s28, 1
    %s30 = scalar_select %p29, 0, %s28
    %s31 = sadd.s32 1, %s18
    %s32 = scalar_select %p29, %s31, %s18
    %p33 = scmp.ge.s32.totalorder %s32, 1
    %s34 = scalar_select %p33, 0, %s32
    %s35 = sadd.s32 1, %s17
    %s36 = scalar_select %p33, %s35, %s17
    %p37 = scmp.ge.s32.totalorder %s36, 2
    %s38 = scalar_select %p37, 0, %s36
    %s39 = sadd.s32 1, %s16
    %s40 = scalar_select %p37, %s39, %s16
    %p41 = scmp.ge.s32.totalorder %s40, 1
    %s42 = scalar_select %p41, 0, %s40
    %s43 = ssub.s32 %s16, %s42
    %s44 = ssub.s32 %s17, %s38
    %s45 = sor.u32 %s43, %s44
    %s46 = ssub.s32 %s19, %s30
    %s47 = sor.u32 %s45, %s46
    %p48 = scmp.eq.s32.totalorder %s47, 0
    %s50 = sadd.s32 %s49, 1
    %s51 = scalar_select %p48, %s49, %s50
    %p54 = pneg %p48
    %p55 = scmp.eq.s32.totalorder %s9, 1
    %p56 = por %p54, %p55
    %p57 = scmp.ne.s32.totalorder %s49, %s52
    %p58 = scmp.eq.s32.totalorder %s9, 0
    %p59 = por %p57, %p58
    %p60 = scmp.ne.s32.totalorder %s49, %s52
    %p61 = scmp.eq.s32.totalorder %s14, 1
    %p62 = por %p60, %p61
    %p63 = scmp.ne.s32.totalorder %s52, %s53
    %p64 = scmp.eq.s32.totalorder %s14, 0
    %p65 = por %p63, %p64
    %p66 = scmp.ne.s32.totalorder %s52, %s53
    %p67 = scmp.eq.s32.totalorder %s15, 1
    %p68 = por %p66, %p67
    %p70 = scmp.ne.s32.totalorder %s53, %s69
    %p71 = scmp.eq.s32.totalorder %s15, 0
    %p72 = por %p70, %p71
    %s73 = ssub.s32 %s16, %s42
    %s74 = ssub.s32 %s19, %s30
    %s75 = sor.u32 %s73, %s74
    %s76 = ssub.s32 %s18, %s34
    %s77 = sor.u32 %s75, %s76
    %p78 = scmp.eq.s32.totalorder %s77, 0
    %s80 = sadd.s32 %s79, 1
    %s81 = scalar_select %p78, %s79, %s80
    %p84 = pneg %p78
    %p85 = scmp.eq.s32.totalorder %s9, 1
    %p86 = por %p84, %p85
    %p87 = scmp.ne.s32.totalorder %s79, %s82
    %p88 = scmp.eq.s32.totalorder %s9, 0
    %p89 = por %p87, %p88
    %p90 = scmp.ne.s32.totalorder %s79, %s82
    %p91 = scmp.eq.s32.totalorder %s14, 1
    %p92 = por %p90, %p91
    %p93 = scmp.ne.s32.totalorder %s82, %s83
    %p94 = scmp.eq.s32.totalorder %s14, 0
    %p95 = por %p93, %p94
    %p96 = scmp.ne.s32.totalorder %s82, %s83
    %p97 = scmp.eq.s32.totalorder %s15, 1
    %p98 = por %p96, %p97
    %p100 = scmp.ne.s32.totalorder %s83, %s99
    %p101 = scmp.eq.s32.totalorder %s15, 0
    %p102 = por %p100, %p101
    %s103 = ssub.s32 %s16, %s42
    %s104 = ssub.s32 %s18, %s34
    %s105 = sor.u32 %s103, %s104
    %p106 = scmp.eq.s32.totalorder %s105, 0
    %s108 = sadd.s32 %s107, 1
    %s109 = scalar_select %p106, %s107, %s108
    %p112 = pneg %p106
    %p113 = scmp.eq.s32.totalorder %s9, 1
    %p114 = por %p112, %p113
    %p115 = scmp.ne.s32.totalorder %s107, %s110
    %p116 = scmp.eq.s32.totalorder %s9, 0
    %p117 = por %p115, %p116
    %p118 = scmp.ne.s32.totalorder %s107, %s110
    %p119 = scmp.eq.s32.totalorder %s14, 1
    %p120 = por %p118, %p119
    %p121 = scmp.ne.s32.totalorder %s110, %s111
    %p122 = scmp.eq.s32.totalorder %s14, 0
    %p123 = por %p121, %p122
    %p124 = scmp.ne.s32.totalorder %s110, %s111
    %p125 = scmp.eq.s32.totalorder %s15, 1
    %p126 = por %p124, %p125
    %p128 = scmp.ne.s32.totalorder %s111, %s127
    %p129 = scmp.eq.s32.totalorder %s15, 0
    %p130 = por %p128, %p129
    %s131 = ssub.s32 %s16, %s42
    %s132 = ssub.s32 %s17, %s38
    %s133 = sor.u32 %s131, %s132
    %s134 = ssub.s32 %s18, %s34
    %s135 = sor.u32 %s133, %s134
    %p136 = scmp.eq.s32.totalorder %s135, 0
    %s138 = sadd.s32 %s137, 1
    %s139 = scalar_select %p136, %s137, %s138
    %p142 = pneg %p136
    %p143 = scmp.eq.s32.totalorder %s9, 1
    %p144 = por %p142, %p143
    %p145 = scmp.ne.s32.totalorder %s137, %s140
    %p146 = scmp.eq.s32.totalorder %s9, 0
    %p147 = por %p145, %p146
    %p148 = scmp.ne.s32.totalorder %s137, %s140
    %p149 = scmp.eq.s32.totalorder %s14, 1
    %p150 = por %p148, %p149
    %p151 = scmp.ne.s32.totalorder %s140, %s141
    %p152 = scmp.eq.s32.totalorder %s14, 0
    %p153 = por %p151, %p152
    %p154 = scmp.ne.s32.totalorder %s140, %s141
    %p155 = scmp.eq.s32.totalorder %s15, 1
    %p156 = por %p154, %p155
    %p158 = scmp.ne.s32.totalorder %s141, %s157
    %p159 = scmp.eq.s32.totalorder %s15, 0
    %p160 = por %p158, %p159
    %p161 = scmp.le.s32.totalorder 1, %s9
    %p162 = scmp.lt.s32.totalorder %s9, 3
    %p163 = pnand %p161, %p162
    %p164 = pneg %p163
    // Predicated region
    $region9: #{mgan_forward.14} parent=5 // pred_check
      _
    $region10: #{mgan_forward.14} parent=5 // pred_check_branch
      %166 = sbr.rel (%p163) target = $region12
    $region11: #{mgan_forward.14} parent=5 // pred_region
      %s167 = ssub.s32 %s9, 1
      // Predicated region
      $region13: #{mgan_forward.14} parent=11 // pred_check
        %p168 = pneg %p95
      $region14: #{mgan_forward.14} parent=11 // pred_check_branch
        %170 = sbr.rel (%p168) target = $region16
      $region15: #{mgan_forward.14} parent=11 // pred_region
        %s171 = smul.u32 16, %s23
        %p172 = scmp.lt.s32.totalorder %s20, 0
        %s173 = scalar_select %p172, %s20, 0
        %p174 = scmp.lt.s32.totalorder %s171, 15
        %s175 = scalar_select %p174, %s171, 15
        %p176 = scmp.lt.s32.totalorder %s22, 0
        %s177 = scalar_select %p176, %s22, 0
        %s178 = sadd.s32 %s177, %s175
        %s179 = smul.addr %s173, 16
        %s180 = sadd.s32 %s178, %s179
        %s181 = smul.addr %s180, 4
        %s182 = scalar_lea.vmem %s1, %s181
        %s183 = smul.u32 16, %s23
      $region16: #{mgan_forward.14} parent=11 // pred_fallthru
        _
      // Predicated region
      $region17: #{mgan_forward.14} parent=11 // pred_check
        %p184 = pneg %p123
      $region18: #{mgan_forward.14} parent=11 // pred_check_branch
        %186 = sbr.rel (%p184) target = $region20
      $region19: #{mgan_forward.14} parent=11 // pred_region
        %p187 = scmp.lt.s32.totalorder %s20, 0
        %s188 = scalar_select %p187, %s20, 0
        %p189 = scmp.lt.s32.totalorder %s22, 0
        %s190 = scalar_select %p189, %s22, 0
        %s191 = sadd.s32 %s190, %s188
        %s192 = scalar_lea.vmem %s2, %s191
      $region20: #{mgan_forward.14} parent=11 // pred_fallthru
        _
    $region12: #{mgan_forward.14} parent=5 // pred_fallthru
      _
    %p193 = scmp.lt.s32.totalorder %s9, 2
    // Predicated region
    $region21: #{mgan_forward.14} parent=5 // pred_check
      %p194 = pneg %p193
    $region22: #{mgan_forward.14} parent=5 // pred_check_branch
      %196 = sbr.rel (%p194) target = $region24
    $region23: #{mgan_forward.14} parent=5 // pred_region
      // Predicated region
      $region25: #{mgan_forward.14} parent=23 // pred_check
        %p197 = pneg %p59
      $region26: #{mgan_forward.14} parent=23 // pred_check_branch
        %199 = sbr.rel (%p197) target = $region28
      $region27: #{mgan_forward.14} parent=23 // pred_region
        %s200 = smul.u32 32, %s17
        %p201 = scmp.lt.s32.totalorder %s16, 0
        %s202 = scalar_select %p201, %s16, 0
        %p203 = scmp.lt.s32.totalorder %s200, 63
        %s204 = scalar_select %p203, %s200, 63
        %p205 = scmp.lt.s32.totalorder %s19, 0
        %s206 = scalar_select %p205, %s19, 0
        %s207 = sadd.s32 %s206, %s204
        %s208 = smul.addr %s202, 64
        %s209 = sadd.s32 %s207, %s208
        %s210 = smul.addr %s209, 4
        %s211 = scalar_lea.vmem %s0, %s210
        %s212 = smul.u32 32, %s17
      $region28: #{mgan_forward.14} parent=23 // pred_fallthru
        _
    $region24: #{mgan_forward.14} parent=5 // pred_fallthru
      _
    %p213 = scmp.le.s32.totalorder 1, %s9
    %p214 = scmp.lt.s32.totalorder %s9, 3
    %p215 = pnand %p213, %p214
    %p216 = pneg %p215
    // Predicated region
    $region29: #{mgan_forward.14} parent=5 // pred_check
      _
    $region30: #{mgan_forward.14} parent=5 // pred_check_branch
      %218 = sbr.rel (%p215) target = $region32
    $region31: #{mgan_forward.14} parent=5 // pred_region
      %s219 = ssub.s32 %s9, 1
      %s220 = smul.u32 32, %s21
      %p221 = scmp.lt.s32.totalorder %s20, 0
      %s222 = scalar_select %p221, %s20, 0
      %p223 = scmp.lt.s32.totalorder %s220, 63
      %s224 = scalar_select %p223, %s220, 63
      %p225 = scmp.lt.s32.totalorder %s23, 0
      %s226 = scalar_select %p225, %s23, 0
      %s227 = sadd.s32 %s226, %s224
      %s228 = smul.addr %s222, 64
      %s229 = sadd.s32 %s227, %s228
      %s230 = smul.addr %s229, 4
      %s231 = scalar_lea.vmem %s0, %s230
      %p232 = pneg %p65
      %p233 = pneg %p62
      %s234 = smul.u32 16, %s23
      %p235 = scmp.lt.s32.totalorder %s20, 0
      %s236 = scalar_select %p235, %s20, 0
      %p237 = scmp.lt.s32.totalorder %s234, 15
      %s238 = scalar_select %p237, %s234, 15
      %p239 = scmp.lt.s32.totalorder %s22, 0
      %s240 = scalar_select %p239, %s22, 0
      %s241 = sadd.s32 %s240, %s238
      %s242 = smul.addr %s236, 16
      %s243 = sadd.s32 %s241, %s242
      %s244 = smul.addr %s243, 4
      %s245 = scalar_lea.vmem %s1, %s244
      %p246 = pneg %p95
      %p247 = pneg %p92
      %p248 = scmp.lt.s32.totalorder %s20, 0
      %s249 = scalar_select %p248, %s20, 0
      %p250 = scmp.lt.s32.totalorder %s22, 0
      %s251 = scalar_select %p250, %s22, 0
      %s252 = sadd.s32 %s251, %s249
      %s253 = scalar_lea.vmem %s2, %s252
      %p254 = pneg %p123
      %p255 = pneg %p120
      %p256 = pneg %p153
      %p257 = pneg %p150
      %s258 = smul.u32 32, %s21
      %p259 = scmp.lt.s32.totalorder %s20, 0
      %s260 = scalar_select %p259, %s20, 0
      %p261 = scmp.lt.s32.totalorder %s258, 63
      %s262 = scalar_select %p261, %s258, 63
      %p263 = scmp.lt.s32.totalorder %s22, 0
      %s264 = scalar_select %p263, %s22, 0
      %s265 = sadd.s32 %s264, %s262
      %s266 = smul.addr %s260, 64
      %s267 = sadd.s32 %s265, %s266
      %s268 = smul.addr %s267, 8
      %s269 = scalar_lea.vmem %s3, %s268
      %s270 = smul.u32 32, %s21
      %p271 = scmp.lt.s32.totalorder %s20, 0
      %s272 = scalar_select %p271, %s20, 0
      %p273 = scmp.lt.s32.totalorder %s270, 63
      %s274 = scalar_select %p273, %s270, 63
      %p275 = scmp.lt.s32.totalorder %s23, 0
      %s276 = scalar_select %p275, %s23, 0
      %s277 = sadd.s32 %s276, %s274
      %s278 = smul.addr %s272, 64
      %s279 = sadd.s32 %s277, %s278
      %s280 = smul.addr %s279, 4
      %s281 = scalar_lea.vmem %s0, %s280
      %s282 = smul.u32 32, %s21
      %s283 = smul.u32 16, %s23
      %p284 = scmp.lt.s32.totalorder %s20, 0
      %s285 = scalar_select %p284, %s20, 0
      %p286 = scmp.lt.s32.totalorder %s283, 15
      %s287 = scalar_select %p286, %s283, 15
      %p288 = scmp.lt.s32.totalorder %s22, 0
      %s289 = scalar_select %p288, %s22, 0
      %s290 = sadd.s32 %s289, %s287
      %s291 = smul.addr %s285, 16
      %s292 = sadd.s32 %s290, %s291
      %s293 = smul.addr %s292, 4
      %s294 = scalar_lea.vmem %s1, %s293
      %s295 = smul.u32 16, %s23
      %p296 = scmp.lt.s32.totalorder %s20, 0
      %s297 = scalar_select %p296, %s20, 0
      %p298 = scmp.lt.s32.totalorder %s22, 0
      %s299 = scalar_select %p298, %s22, 0
      %s300 = sadd.s32 %s299, %s297
      %s301 = scalar_lea.vmem %s2, %s300
      %s302 = smul.u32 32, %s21
      %p303 = scmp.lt.s32.totalorder %s20, 0
      %s304 = scalar_select %p303, %s20, 0
      %p305 = scmp.lt.s32.totalorder %s302, 63
      %s306 = scalar_select %p305, %s302, 63
      %p307 = scmp.lt.s32.totalorder %s22, 0
      %s308 = scalar_select %p307, %s22, 0
      %s309 = sadd.s32 %s308, %s306
      %s310 = smul.addr %s304, 64
      %s311 = sadd.s32 %s309, %s310
      %s312 = smul.addr %s311, 8
      %s313 = scalar_lea.vmem %s3, %s312
      %s314 = smul.u32 32, %s21
      %p316 = scmp.eq.s32.totalorder %s23, 0
      // Predicated region
      $region33: #{mgan_forward.14} parent=31 // pred_check
        %p317 = pneg %p316
      $region34: #{mgan_forward.14} parent=31 // pred_check_branch
        %319 = sbr.rel (%p317) target = $region36
      $region35: #{mgan_forward.14} parent=31 // pred_region
        %320 = vst [vmem:[#allocation2] sm:$0xff] 0.0
        %321 = vst [vmem:[#allocation2 + $0x8] sm:$0xff] 0.0
        %322 = vst [vmem:[#allocation2 + $0x10] sm:$0xff] 0.0
        %323 = vst [vmem:[#allocation2 + $0x18] sm:$0xff] 0.0
        %324 = vst [vmem:[#allocation2 + $0x20] sm:$0xff] 0.0
        %325 = vst [vmem:[#allocation2 + $0x28] sm:$0xff] 0.0
        %326 = vst [vmem:[#allocation2 + $0x30] sm:$0xff] 0.0
        %327 = vst [vmem:[#allocation2 + $0x38] sm:$0xff] 0.0
        %328 = vst [vmem:[#allocation2 + $0x40] sm:$0xff] 0.0
        %329 = vst [vmem:[#allocation2 + $0x48] sm:$0xff] 0.0
        %330 = vst [vmem:[#allocation2 + $0x50] sm:$0xff] 0.0
        %331 = vst [vmem:[#allocation2 + $0x58] sm:$0xff] 0.0
        %332 = vst [vmem:[#allocation2 + $0x60] sm:$0xff] 0.0
        %333 = vst [vmem:[#allocation2 + $0x68] sm:$0xff] 0.0
        %334 = vst [vmem:[#allocation2 + $0x70] sm:$0xff] 0.0
        %335 = vst [vmem:[#allocation2 + $0x78] sm:$0xff] 0.0
        %336 = vst [vmem:[#allocation2 + $0x80] sm:$0xff] 0.0
        %337 = vst [vmem:[#allocation2 + $0x88] sm:$0xff] 0.0
        %338 = vst [vmem:[#allocation2 + $0x90] sm:$0xff] 0.0
        %339 = vst [vmem:[#allocation2 + $0x98] sm:$0xff] 0.0
        %340 = vst [vmem:[#allocation2 + $0xa0] sm:$0xff] 0.0
        %341 = vst [vmem:[#allocation2 + $0xa8] sm:$0xff] 0.0
        %342 = vst [vmem:[#allocation2 + $0xb0] sm:$0xff] 0.0
        %343 = vst [vmem:[#allocation2 + $0xb8] sm:$0xff] 0.0
        %344 = vst [vmem:[#allocation2 + $0xc0] sm:$0xff] 0.0
        %345 = vst [vmem:[#allocation2 + $0xc8] sm:$0xff] 0.0
        %346 = vst [vmem:[#allocation2 + $0xd0] sm:$0xff] 0.0
        %347 = vst [vmem:[#allocation2 + $0xd8] sm:$0xff] 0.0
        %348 = vst [vmem:[#allocation2 + $0xe0] sm:$0xff] 0.0
        %349 = vst [vmem:[#allocation2 + $0xe8] sm:$0xff] 0.0
        %350 = vst [vmem:[#allocation2 + $0xf0] sm:$0xff] 0.0
        %351 = vst [vmem:[#allocation2 + $0xf8] sm:$0xff] 0.0
      $region36: #{mgan_forward.14} parent=31 // pred_fallthru
        _
      %v352 = vld [vmem:[%s281] sm:$0xf]
      %v353 = vld [vmem:[%s281 + $0x4] sm:$0xf]
      %v354 = vld [vmem:[%s281 + $0x8] sm:$0xf]
      %v355 = vld [vmem:[%s281 + $0xc] sm:$0xf]
      %v356 = vld [vmem:[%s281 + $0x10] sm:$0xf]
      %v357 = vld [vmem:[%s281 + $0x14] sm:$0xf]
      %v358 = vld [vmem:[%s281 + $0x18] sm:$0xf]
      %v359 = vld [vmem:[%s281 + $0x1c] sm:$0xf]
      %v360 = vld [vmem:[%s281 + $0x20] sm:$0xf]
      %v361 = vld [vmem:[%s281 + $0x24] sm:$0xf]
      %v362 = vld [vmem:[%s281 + $0x28] sm:$0xf]
      %v363 = vld [vmem:[%s281 + $0x2c] sm:$0xf]
      %v364 = vld [vmem:[%s281 + $0x30] sm:$0xf]
      %v365 = vld [vmem:[%s281 + $0x34] sm:$0xf]
      %v366 = vld [vmem:[%s281 + $0x38] sm:$0xf]
      %v367 = vld [vmem:[%s281 + $0x3c] sm:$0xf]
      %v368 = vld [vmem:[%s281 + $0x40] sm:$0xf]
      %v369 = vld [vmem:[%s281 + $0x44] sm:$0xf]
      %v370 = vld [vmem:[%s281 + $0x48] sm:$0xf]
      %v371 = vld [vmem:[%s281 + $0x4c] sm:$0xf]
      %v372 = vld [vmem:[%s281 + $0x50] sm:$0xf]
      %v373 = vld [vmem:[%s281 + $0x54] sm:$0xf]
      %v374 = vld [vmem:[%s281 + $0x58] sm:$0xf]
      %v375 = vld [vmem:[%s281 + $0x5c] sm:$0xf]
      %v376 = vld [vmem:[%s281 + $0x60] sm:$0xf]
      %v377 = vld [vmem:[%s281 + $0x64] sm:$0xf]
      %v378 = vld [vmem:[%s281 + $0x68] sm:$0xf]
      %v379 = vld [vmem:[%s281 + $0x6c] sm:$0xf]
      %v380 = vld [vmem:[%s281 + $0x70] sm:$0xf]
      %v381 = vld [vmem:[%s281 + $0x74] sm:$0xf]
      %v382 = vld [vmem:[%s281 + $0x78] sm:$0xf]
      %v383 = vld [vmem:[%s281 + $0x7c] sm:$0xf]
      %v384 = vld [vmem:[#allocation2] sm:$0xff]
      %v385 = vld [vmem:[#allocation2 + $0x8] sm:$0xff]
      %v386 = vld [vmem:[#allocation2 + $0x10] sm:$0xff]
      %v387 = vld [vmem:[#allocation2 + $0x18] sm:$0xff]
      %v388 = vld [vmem:[#allocation2 + $0x20] sm:$0xff]
      %v389 = vld [vmem:[#allocation2 + $0x28] sm:$0xff]
      %v390 = vld [vmem:[#allocation2 + $0x30] sm:$0xff]
      %v391 = vld [vmem:[#allocation2 + $0x38] sm:$0xff]
      %v392 = vld [vmem:[#allocation2 + $0x40] sm:$0xff]
      %v393 = vld [vmem:[#allocation2 + $0x48] sm:$0xff]
      %v394 = vld [vmem:[#allocation2 + $0x50] sm:$0xff]
      %v395 = vld [vmem:[#allocation2 + $0x58] sm:$0xff]
      %v396 = vld [vmem:[#allocation2 + $0x60] sm:$0xff]
      %v397 = vld [vmem:[#allocation2 + $0x68] sm:$0xff]
      %v398 = vld [vmem:[#allocation2 + $0x70] sm:$0xff]
      %v399 = vld [vmem:[#allocation2 + $0x78] sm:$0xff]
      %v400 = vld [vmem:[#allocation2 + $0x80] sm:$0xff]
      %v401 = vld [vmem:[#allocation2 + $0x88] sm:$0xff]
      %v402 = vld [vmem:[#allocation2 + $0x90] sm:$0xff]
      %v403 = vld [vmem:[#allocation2 + $0x98] sm:$0xff]
      %v404 = vld [vmem:[#allocation2 + $0xa0] sm:$0xff]
      %v405 = vld [vmem:[#allocation2 + $0xa8] sm:$0xff]
      %v406 = vld [vmem:[#allocation2 + $0xb0] sm:$0xff]
      %v407 = vld [vmem:[#allocation2 + $0xb8] sm:$0xff]
      %v408 = vld [vmem:[#allocation2 + $0xc0] sm:$0xff]
      %v409 = vld [vmem:[#allocation2 + $0xc8] sm:$0xff]
      %v410 = vld [vmem:[#allocation2 + $0xd0] sm:$0xff]
      %v411 = vld [vmem:[#allocation2 + $0xd8] sm:$0xff]
      %v412 = vld [vmem:[#allocation2 + $0xe0] sm:$0xff]
      %v413 = vld [vmem:[#allocation2 + $0xe8] sm:$0xff]
      %v414 = vld [vmem:[#allocation2 + $0xf0] sm:$0xff]
      %v415 = vld [vmem:[#allocation2 + $0xf8] sm:$0xff]
      %v416 = vld [vmem:[%s294] sm:$0xf]
      %v417 = vld [vmem:[%s294 + $0x4] sm:$0xf]
      %v418 = vld [vmem:[%s294 + $0x8] sm:$0xf]
      %v419 = vld [vmem:[%s294 + $0xc] sm:$0xf]
      %v420 = vld [vmem:[%s294 + $0x10] sm:$0xf]
      %v421 = vld [vmem:[%s294 + $0x14] sm:$0xf]
      %v422 = vld [vmem:[%s294 + $0x18] sm:$0xf]
      %v423 = vld [vmem:[%s294 + $0x1c] sm:$0xf]
      %v424 = vld [vmem:[%s294 + $0x20] sm:$0xf]
      %v425 = vld [vmem:[%s294 + $0x24] sm:$0xf]
      %v426 = vld [vmem:[%s294 + $0x28] sm:$0xf]
      %v427 = vld [vmem:[%s294 + $0x2c] sm:$0xf]
      %v428 = vld [vmem:[%s294 + $0x30] sm:$0xf]
      %v429 = vld [vmem:[%s294 + $0x34] sm:$0xf]
      %v430 = vld [vmem:[%s294 + $0x38] sm:$0xf]
      %v431 = vld [vmem:[%s294 + $0x3c] sm:$0xf]
      %v464 = vunpack.c.l.b16 %v352
      %v465 = vunpack.c.l.b16 %v353
      %v466 = vunpack.c.l.b16 %v354
      %v467 = vunpack.c.l.b16 %v355
      %v468 = vunpack.c.l.b16 %v356
      %v469 = vunpack.c.l.b16 %v357
      %v470 = vunpack.c.l.b16 %v358
      %v471 = vunpack.c.l.b16 %v359
      %v472 = vunpack.c.l.b16 %v360
      %v473 = vunpack.c.l.b16 %v361
      %v474 = vunpack.c.l.b16 %v362
      %v475 = vunpack.c.l.b16 %v363
      %v476 = vunpack.c.l.b16 %v364
      %v477 = vunpack.c.l.b16 %v365
      %v478 = vunpack.c.l.b16 %v366
      %v479 = vunpack.c.l.b16 %v367
      %v480 = vunpack.c.l.b16 %v368
      %v481 = vunpack.c.l.b16 %v369
      %v482 = vunpack.c.l.b16 %v370
      %v483 = vunpack.c.l.b16 %v371
      %v484 = vunpack.c.l.b16 %v372
      %v485 = vunpack.c.l.b16 %v373
      %v486 = vunpack.c.l.b16 %v374
      %v487 = vunpack.c.l.b16 %v375
      %v488 = vunpack.c.l.b16 %v376
      %v489 = vunpack.c.l.b16 %v377
      %v490 = vunpack.c.l.b16 %v378
      %v491 = vunpack.c.l.b16 %v379
      %v492 = vunpack.c.l.b16 %v380
      %v493 = vunpack.c.l.b16 %v381
      %v494 = vunpack.c.l.b16 %v382
      %v495 = vunpack.c.l.b16 %v383
      %v496 = vpack.c.b16 %v465, %v464
      %v497 = vpack.c.b16 %v467, %v466
      %v498 = vpack.c.b16 %v469, %v468
      %v499 = vpack.c.b16 %v471, %v470
      %v500 = vpack.c.b16 %v473, %v472
      %v501 = vpack.c.b16 %v475, %v474
      %v502 = vpack.c.b16 %v477, %v476
      %v503 = vpack.c.b16 %v479, %v478
      %v504 = vpack.c.b16 %v481, %v480
      %v505 = vpack.c.b16 %v483, %v482
      %v506 = vpack.c.b16 %v485, %v484
      %v507 = vpack.c.b16 %v487, %v486
      %v508 = vpack.c.b16 %v489, %v488
      %v509 = vpack.c.b16 %v491, %v490
      %v510 = vpack.c.b16 %v493, %v492
      %v511 = vpack.c.b16 %v495, %v494
      %v544 = vunpack.c.l.b16 %v416
      %v545 = vunpack.c.l.b16 %v417
      %v546 = vunpack.c.l.b16 %v418
      %v547 = vunpack.c.l.b16 %v419
      %v548 = vunpack.c.l.b16 %v420
      %v549 = vunpack.c.l.b16 %v421
      %v550 = vunpack.c.l.b16 %v422
      %v551 = vunpack.c.l.b16 %v423
      %v552 = vunpack.c.l.b16 %v424
      %v553 = vunpack.c.l.b16 %v425
      %v554 = vunpack.c.l.b16 %v426
      %v555 = vunpack.c.l.b16 %v427
      %v556 = vunpack.c.l.b16 %v428
      %v557 = vunpack.c.l.b16 %v429
      %v558 = vunpack.c.l.b16 %v430
      %v559 = vunpack.c.l.b16 %v431
      %v560 = vpack.c.b16 %v545, %v544
      %v561 = vpack.c.b16 %v547, %v546
      %v562 = vpack.c.b16 %v549, %v548
      %v563 = vpack.c.b16 %v551, %v550
      %v564 = vpack.c.b16 %v553, %v552
      %v565 = vpack.c.b16 %v555, %v554
      %v566 = vpack.c.b16 %v557, %v556
      %v567 = vpack.c.b16 %v559, %v558
      %576 = vmatprep.subr.bf16.mxu0 0
      %577 = vmatpush1.bf16.msra.mxu0 %v567
      %578 = vmatprep.subr.bf16.mxu0 0
      %579 = vmatpush1.bf16.msra.mxu0 %v566
      %580 = vmatprep.subr.bf16.mxu0 0
      %581 = vmatpush1.bf16.msra.mxu0 %v565
      %582 = vmatprep.subr.bf16.mxu0 0
      %583 = vmatpush1.bf16.msra.mxu0 %v564
      %584 = vmatprep.subr.bf16.mxu0 0
      %585 = vmatpush1.bf16.msra.mxu0 %v563
      %586 = vmatprep.subr.bf16.mxu0 0
      %587 = vmatpush1.bf16.msra.mxu0 %v562
      %588 = vmatprep.subr.bf16.mxu0 0
      %589 = vmatpush1.bf16.msra.mxu0 %v561
      %590 = vmatprep.subr.bf16.mxu0 0
      %591 = vmatpush1.bf16.msra.mxu0 %v560
      %592 = vmatprep.subr.bf16.mxu0 0
      %593 = vmatpush2.bf16.msra.mxu0 0
      %594 = vmatprep.subr.bf16.mxu0 0
      %595 = vmatpush2.bf16.msra.mxu0 0
      %596 = vmatprep.subr.bf16.mxu0 0
      %597 = vmatpush2.bf16.msra.mxu0 0
      %598 = vmatprep.subr.bf16.mxu0 0
      %599 = vmatpush2.bf16.msra.mxu0 0
      %600 = vmatprep.subr.bf16.mxu0 0
      %601 = vmatpush2.bf16.msra.mxu0 0
      %602 = vmatprep.subr.bf16.mxu0 0
      %603 = vmatpush2.bf16.msra.mxu0 0
      %604 = vmatprep.subr.bf16.mxu0 0
      %605 = vmatpush2.bf16.msra.mxu0 0
      %606 = vmatprep.subr.bf16.mxu0 0
      %607 = vmatpush2.bf16.msra.mxu0 0
      %608 = vmatprep.mubr.bf16.mxu0 0
      %609 = vmatmul.mubr.bf16.gmra.mxu0 %v496
      %v610 = vpop.f32.mrf.mxu0
      %v611 = vadd.f32 0.0, %v610
      %v612 = vpop.f32.mrf.mxu0
      %v613 = vpop.f32.mrf.mxu0
      %v614 = vadd.f32 0.0, %v613
      %v615 = vpop.f32.mrf.mxu0
      %616 = vmatprep.mubr.bf16.mxu0 0
      %617 = vmatmul.mubr.bf16.gmra.mxu0 %v497
      %v618 = vpop.f32.mrf.mxu0
      %v619 = vadd.f32 0.0, %v618
      %v620 = vpop.f32.mrf.mxu0
      %v621 = vpop.f32.mrf.mxu0
      %v622 = vadd.f32 0.0, %v621
      %v623 = vpop.f32.mrf.mxu0
      %624 = vmatprep.mubr.bf16.mxu0 0
      %625 = vmatmul.mubr.bf16.gmra.mxu0 %v498
      %v626 = vpop.f32.mrf.mxu0
      %v627 = vadd.f32 0.0, %v626
      %v628 = vpop.f32.mrf.mxu0
      %v629 = vpop.f32.mrf.mxu0
      %v630 = vadd.f32 0.0, %v629
      %v631 = vpop.f32.mrf.mxu0
      %632 = vmatprep.mubr.bf16.mxu0 0
      %633 = vmatmul.mubr.bf16.gmra.mxu0 %v499
      %v634 = vpop.f32.mrf.mxu0
      %v635 = vadd.f32 0.0, %v634
      %v636 = vpop.f32.mrf.mxu0
      %v637 = vpop.f32.mrf.mxu0
      %v638 = vadd.f32 0.0, %v637
      %v639 = vpop.f32.mrf.mxu0
      %640 = vmatprep.mubr.bf16.mxu0 0
      %641 = vmatmul.mubr.bf16.gmra.mxu0 %v500
      %v642 = vpop.f32.mrf.mxu0
      %v643 = vadd.f32 0.0, %v642
      %v644 = vpop.f32.mrf.mxu0
      %v645 = vpop.f32.mrf.mxu0
      %v646 = vadd.f32 0.0, %v645
      %v647 = vpop.f32.mrf.mxu0
      %648 = vmatprep.mubr.bf16.mxu0 0
      %649 = vmatmul.mubr.bf16.gmra.mxu0 %v501
      %v650 = vpop.f32.mrf.mxu0
      %v651 = vadd.f32 0.0, %v650
      %v652 = vpop.f32.mrf.mxu0
      %v653 = vpop.f32.mrf.mxu0
      %v654 = vadd.f32 0.0, %v653
      %v655 = vpop.f32.mrf.mxu0
      %656 = vmatprep.mubr.bf16.mxu0 0
      %657 = vmatmul.mubr.bf16.gmra.mxu0 %v502
      %v658 = vpop.f32.mrf.mxu0
      %v659 = vadd.f32 0.0, %v658
      %v660 = vpop.f32.mrf.mxu0
      %v661 = vpop.f32.mrf.mxu0
      %v662 = vadd.f32 0.0, %v661
      %v663 = vpop.f32.mrf.mxu0
      %664 = vmatprep.mubr.bf16.mxu0 0
      %665 = vmatmul.mubr.bf16.gmra.mxu0 %v503
      %v666 = vpop.f32.mrf.mxu0
      %v667 = vadd.f32 0.0, %v666
      %v668 = vpop.f32.mrf.mxu0
      %v669 = vpop.f32.mrf.mxu0
      %v670 = vadd.f32 0.0, %v669
      %v671 = vpop.f32.mrf.mxu0
      %672 = vmatprep.mubr.bf16.mxu0 0
      %673 = vmatmul.mubr.bf16.gmra.mxu0 %v504
      %v674 = vpop.f32.mrf.mxu0
      %v675 = vadd.f32 0.0, %v674
      %v676 = vpop.f32.mrf.mxu0
      %v677 = vpop.f32.mrf.mxu0
      %v678 = vadd.f32 0.0, %v677
      %v679 = vpop.f32.mrf.mxu0
      %680 = vmatprep.mubr.bf16.mxu0 0
      %681 = vmatmul.mubr.bf16.gmra.mxu0 %v505
      %v682 = vpop.f32.mrf.mxu0
      %v683 = vadd.f32 0.0, %v682
      %v684 = vpop.f32.mrf.mxu0
      %v685 = vpop.f32.mrf.mxu0
      %v686 = vadd.f32 0.0, %v685
      %v687 = vpop.f32.mrf.mxu0
      %688 = vmatprep.mubr.bf16.mxu0 0
      %689 = vmatmul.mubr.bf16.gmra.mxu0 %v506
      %v690 = vpop.f32.mrf.mxu0
      %v691 = vadd.f32 0.0, %v690
      %v692 = vpop.f32.mrf.mxu0
      %v693 = vpop.f32.mrf.mxu0
      %v694 = vadd.f32 0.0, %v693
      %v695 = vpop.f32.mrf.mxu0
      %696 = vmatprep.mubr.bf16.mxu0 0
      %697 = vmatmul.mubr.bf16.gmra.mxu0 %v507
      %v698 = vpop.f32.mrf.mxu0
      %v699 = vadd.f32 0.0, %v698
      %v700 = vpop.f32.mrf.mxu0
      %v701 = vpop.f32.mrf.mxu0
      %v702 = vadd.f32 0.0, %v701
      %v703 = vpop.f32.mrf.mxu0
      %704 = vmatprep.mubr.bf16.mxu0 0
      %705 = vmatmul.mubr.bf16.gmra.mxu0 %v508
      %v706 = vpop.f32.mrf.mxu0
      %v707 = vadd.f32 0.0, %v706
      %v708 = vpop.f32.mrf.mxu0
      %v709 = vpop.f32.mrf.mxu0
      %v710 = vadd.f32 0.0, %v709
      %v711 = vpop.f32.mrf.mxu0
      %712 = vmatprep.mubr.bf16.mxu0 0
      %713 = vmatmul.mubr.bf16.gmra.mxu0 %v509
      %v714 = vpop.f32.mrf.mxu0
      %v715 = vadd.f32 0.0, %v714
      %v716 = vpop.f32.mrf.mxu0
      %v717 = vpop.f32.mrf.mxu0
      %v718 = vadd.f32 0.0, %v717
      %v719 = vpop.f32.mrf.mxu0
      %720 = vmatprep.mubr.bf16.mxu0 0
      %721 = vmatmul.mubr.bf16.gmra.mxu0 %v510
      %v722 = vpop.f32.mrf.mxu0
      %v723 = vadd.f32 0.0, %v722
      %v724 = vpop.f32.mrf.mxu0
      %v725 = vpop.f32.mrf.mxu0
      %v726 = vadd.f32 0.0, %v725
      %v727 = vpop.f32.mrf.mxu0
      %728 = vmatprep.mubr.bf16.mxu0 0
      %729 = vmatmul.mubr.bf16.gmra.mxu0 %v511
      %v730 = vpop.f32.mrf.mxu0
      %v731 = vadd.f32 0.0, %v730
      %v732 = vpop.f32.mrf.mxu0
      %v733 = vpop.f32.mrf.mxu0
      %v734 = vadd.f32 0.0, %v733
      %v735 = vpop.f32.mrf.mxu0
      %736 = vdwg.mxu0
      %v737 = vadd.f32 %v384, %v611
      %v738 = vadd.f32 %v385, %v614
      %v739 = vadd.f32 %v386, %v619
      %v740 = vadd.f32 %v387, %v622
      %v741 = vadd.f32 %v388, %v627
      %v742 = vadd.f32 %v389, %v630
      %v743 = vadd.f32 %v390, %v635
      %v744 = vadd.f32 %v391, %v638
      %v745 = vadd.f32 %v392, %v643
      %v746 = vadd.f32 %v393, %v646
      %v747 = vadd.f32 %v394, %v651
      %v748 = vadd.f32 %v395, %v654
      %v749 = vadd.f32 %v396, %v659
      %v750 = vadd.f32 %v397, %v662
      %v751 = vadd.f32 %v398, %v667
      %v752 = vadd.f32 %v399, %v670
      %v753 = vadd.f32 %v400, %v675
      %v754 = vadd.f32 %v401, %v678
      %v755 = vadd.f32 %v402, %v683
      %v756 = vadd.f32 %v403, %v686
      %v757 = vadd.f32 %v404, %v691
      %v758 = vadd.f32 %v405, %v694
      %v759 = vadd.f32 %v406, %v699
      %v760 = vadd.f32 %v407, %v702
      %v761 = vadd.f32 %v408, %v707
      %v762 = vadd.f32 %v409, %v710
      %v763 = vadd.f32 %v410, %v715
      %v764 = vadd.f32 %v411, %v718
      %v765 = vadd.f32 %v412, %v723
      %v766 = vadd.f32 %v413, %v726
      %v767 = vadd.f32 %v414, %v731
      %v768 = vadd.f32 %v415, %v734
      %769 = vst [vmem:[#allocation2] sm:$0xff] %v737
      %770 = vst [vmem:[#allocation2 + $0x8] sm:$0xff] %v738
      %771 = vst [vmem:[#allocation2 + $0x10] sm:$0xff] %v739
      %772 = vst [vmem:[#allocation2 + $0x18] sm:$0xff] %v740
      %773 = vst [vmem:[#allocation2 + $0x20] sm:$0xff] %v741
      %774 = vst [vmem:[#allocation2 + $0x28] sm:$0xff] %v742
      %775 = vst [vmem:[#allocation2 + $0x30] sm:$0xff] %v743
      %776 = vst [vmem:[#allocation2 + $0x38] sm:$0xff] %v744
      %777 = vst [vmem:[#allocation2 + $0x40] sm:$0xff] %v745
      %778 = vst [vmem:[#allocation2 + $0x48] sm:$0xff] %v746
      %779 = vst [vmem:[#allocation2 + $0x50] sm:$0xff] %v747
      %780 = vst [vmem:[#allocation2 + $0x58] sm:$0xff] %v748
      %781 = vst [vmem:[#allocation2 + $0x60] sm:$0xff] %v749
      %782 = vst [vmem:[#allocation2 + $0x68] sm:$0xff] %v750
      %783 = vst [vmem:[#allocation2 + $0x70] sm:$0xff] %v751
      %784 = vst [vmem:[#allocation2 + $0x78] sm:$0xff] %v752
      %785 = vst [vmem:[#allocation2 + $0x80] sm:$0xff] %v753
      %786 = vst [vmem:[#allocation2 + $0x88] sm:$0xff] %v754
      %787 = vst [vmem:[#allocation2 + $0x90] sm:$0xff] %v755
      %788 = vst [vmem:[#allocation2 + $0x98] sm:$0xff] %v756
      %789 = vst [vmem:[#allocation2 + $0xa0] sm:$0xff] %v757
      %790 = vst [vmem:[#allocation2 + $0xa8] sm:$0xff] %v758
      %791 = vst [vmem:[#allocation2 + $0xb0] sm:$0xff] %v759
      %792 = vst [vmem:[#allocation2 + $0xb8] sm:$0xff] %v760
      %793 = vst [vmem:[#allocation2 + $0xc0] sm:$0xff] %v761
      %794 = vst [vmem:[#allocation2 + $0xc8] sm:$0xff] %v762
      %795 = vst [vmem:[#allocation2 + $0xd0] sm:$0xff] %v763
      %796 = vst [vmem:[#allocation2 + $0xd8] sm:$0xff] %v764
      %797 = vst [vmem:[#allocation2 + $0xe0] sm:$0xff] %v765
      %798 = vst [vmem:[#allocation2 + $0xe8] sm:$0xff] %v766
      %799 = vst [vmem:[#allocation2 + $0xf0] sm:$0xff] %v767
      %800 = vst [vmem:[#allocation2 + $0xf8] sm:$0xff] %v768
      // Predicated region
      $region37: #{mgan_forward.14} parent=31 // pred_check
        %p801 = pneg %p316
      $region38: #{mgan_forward.14} parent=31 // pred_check_branch
        %803 = sbr.rel (%p801) target = $region40
      $region39: #{mgan_forward.14} parent=31 // pred_region
        %v804 = vld [vmem:[#allocation2] sm:$0xff]
        %v805 = vld [vmem:[#allocation2 + $0x8] sm:$0xff]
        %v806 = vld [vmem:[#allocation2 + $0x10] sm:$0xff]
        %v807 = vld [vmem:[#allocation2 + $0x18] sm:$0xff]
        %v808 = vld [vmem:[#allocation2 + $0x20] sm:$0xff]
        %v809 = vld [vmem:[#allocation2 + $0x28] sm:$0xff]
        %v810 = vld [vmem:[#allocation2 + $0x30] sm:$0xff]
        %v811 = vld [vmem:[#allocation2 + $0x38] sm:$0xff]
        %v812 = vld [vmem:[#allocation2 + $0x40] sm:$0xff]
        %v813 = vld [vmem:[#allocation2 + $0x48] sm:$0xff]
        %v814 = vld [vmem:[#allocation2 + $0x50] sm:$0xff]
        %v815 = vld [vmem:[#allocation2 + $0x58] sm:$0xff]
        %v816 = vld [vmem:[#allocation2 + $0x60] sm:$0xff]
        %v817 = vld [vmem:[#allocation2 + $0x68] sm:$0xff]
        %v818 = vld [vmem:[#allocation2 + $0x70] sm:$0xff]
        %v819 = vld [vmem:[#allocation2 + $0x78] sm:$0xff]
        %v820 = vld [vmem:[#allocation2 + $0x80] sm:$0xff]
        %v821 = vld [vmem:[#allocation2 + $0x88] sm:$0xff]
        %v822 = vld [vmem:[#allocation2 + $0x90] sm:$0xff]
        %v823 = vld [vmem:[#allocation2 + $0x98] sm:$0xff]
        %v824 = vld [vmem:[#allocation2 + $0xa0] sm:$0xff]
        %v825 = vld [vmem:[#allocation2 + $0xa8] sm:$0xff]
        %v826 = vld [vmem:[#allocation2 + $0xb0] sm:$0xff]
        %v827 = vld [vmem:[#allocation2 + $0xb8] sm:$0xff]
        %v828 = vld [vmem:[#allocation2 + $0xc0] sm:$0xff]
        %v829 = vld [vmem:[#allocation2 + $0xc8] sm:$0xff]
        %v830 = vld [vmem:[#allocation2 + $0xd0] sm:$0xff]
        %v831 = vld [vmem:[#allocation2 + $0xd8] sm:$0xff]
        %v832 = vld [vmem:[#allocation2 + $0xe0] sm:$0xff]
        %v833 = vld [vmem:[#allocation2 + $0xe8] sm:$0xff]
        %v834 = vld [vmem:[#allocation2 + $0xf0] sm:$0xff]
        %v835 = vld [vmem:[#allocation2 + $0xf8] sm:$0xff]
        %v836 = vld [vmem:[%s301] sm:$0x1]
        %v838 = vlaneseq
        %v839 = vshrl.u32 %v838, 7
        %v840 = vsub.s32 0, %v839
        %v841 = vrot.slane %v836, %v840
        %v843 = vadd.f32 %v804, %v841
        %v844 = vadd.f32 %v805, %v841
        %v845 = vadd.f32 %v806, %v841
        %v846 = vadd.f32 %v807, %v841
        %v847 = vadd.f32 %v808, %v841
        %v848 = vadd.f32 %v809, %v841
        %v849 = vadd.f32 %v810, %v841
        %v850 = vadd.f32 %v811, %v841
        %v851 = vadd.f32 %v812, %v841
        %v852 = vadd.f32 %v813, %v841
        %v853 = vadd.f32 %v814, %v841
        %v854 = vadd.f32 %v815, %v841
        %v855 = vadd.f32 %v816, %v841
        %v856 = vadd.f32 %v817, %v841
        %v857 = vadd.f32 %v818, %v841
        %v858 = vadd.f32 %v819, %v841
        %v859 = vadd.f32 %v820, %v841
        %v860 = vadd.f32 %v821, %v841
        %v861 = vadd.f32 %v822, %v841
        %v862 = vadd.f32 %v823, %v841
        %v863 = vadd.f32 %v824, %v841
        %v864 = vadd.f32 %v825, %v841
        %v865 = vadd.f32 %v826, %v841
        %v866 = vadd.f32 %v827, %v841
        %v867 = vadd.f32 %v828, %v841
        %v868 = vadd.f32 %v829, %v841
        %v869 = vadd.f32 %v830, %v841
        %v870 = vadd.f32 %v831, %v841
        %v871 = vadd.f32 %v832, %v841
        %v872 = vadd.f32 %v833, %v841
        %v873 = vadd.f32 %v834, %v841
        %v874 = vadd.f32 %v835, %v841
        %875 = vst [vmem:[%s313] sm:$0xff] %v843
        %876 = vst [vmem:[%s313 + $0x8] sm:$0xff] %v844
        %877 = vst [vmem:[%s313 + $0x10] sm:$0xff] %v845
        %878 = vst [vmem:[%s313 + $0x18] sm:$0xff] %v846
        %879 = vst [vmem:[%s313 + $0x20] sm:$0xff] %v847
        %880 = vst [vmem:[%s313 + $0x28] sm:$0xff] %v848
        %881 = vst [vmem:[%s313 + $0x30] sm:$0xff] %v849
        %882 = vst [vmem:[%s313 + $0x38] sm:$0xff] %v850
        %883 = vst [vmem:[%s313 + $0x40] sm:$0xff] %v851
        %884 = vst [vmem:[%s313 + $0x48] sm:$0xff] %v852
        %885 = vst [vmem:[%s313 + $0x50] sm:$0xff] %v853
        %886 = vst [vmem:[%s313 + $0x58] sm:$0xff] %v854
        %887 = vst [vmem:[%s313 + $0x60] sm:$0xff] %v855
        %888 = vst [vmem:[%s313 + $0x68] sm:$0xff] %v856
        %889 = vst [vmem:[%s313 + $0x70] sm:$0xff] %v857
        %890 = vst [vmem:[%s313 + $0x78] sm:$0xff] %v858
        %891 = vst [vmem:[%s313 + $0x80] sm:$0xff] %v859
        %892 = vst [vmem:[%s313 + $0x88] sm:$0xff] %v860
        %893 = vst [vmem:[%s313 + $0x90] sm:$0xff] %v861
        %894 = vst [vmem:[%s313 + $0x98] sm:$0xff] %v862
        %895 = vst [vmem:[%s313 + $0xa0] sm:$0xff] %v863
        %896 = vst [vmem:[%s313 + $0xa8] sm:$0xff] %v864
        %897 = vst [vmem:[%s313 + $0xb0] sm:$0xff] %v865
        %898 = vst [vmem:[%s313 + $0xb8] sm:$0xff] %v866
        %899 = vst [vmem:[%s313 + $0xc0] sm:$0xff] %v867
        %900 = vst [vmem:[%s313 + $0xc8] sm:$0xff] %v868
        %901 = vst [vmem:[%s313 + $0xd0] sm:$0xff] %v869
        %902 = vst [vmem:[%s313 + $0xd8] sm:$0xff] %v870
        %903 = vst [vmem:[%s313 + $0xe0] sm:$0xff] %v871
        %904 = vst [vmem:[%s313 + $0xe8] sm:$0xff] %v872
        %905 = vst [vmem:[%s313 + $0xf0] sm:$0xff] %v873
        %906 = vst [vmem:[%s313 + $0xf8] sm:$0xff] %v874
      $region40: #{mgan_forward.14} parent=31 // pred_fallthru
        _
      %s907 = smul.u32 32, %s21
      %p908 = scmp.lt.s32.totalorder %s20, 0
      %s909 = scalar_select %p908, %s20, 0
      %p910 = scmp.lt.s32.totalorder %s907, 63
      %s911 = scalar_select %p910, %s907, 63
      %p912 = scmp.lt.s32.totalorder %s22, 0
      %s913 = scalar_select %p912, %s22, 0
      %s914 = sadd.s32 %s913, %s911
      %s915 = smul.addr %s909, 64
      %s916 = sadd.s32 %s914, %s915
      %s917 = smul.addr %s916, 8
      %s918 = scalar_lea.vmem %s3, %s917
      // Predicated region
      $region41: #{mgan_forward.14} parent=31 // pred_check
        %p919 = pneg %p150
      $region42: #{mgan_forward.14} parent=31 // pred_check_branch
        %921 = sbr.rel (%p919) target = $region44
      $region43: #{mgan_forward.14} parent=31 // pred_region
        %s922 = smul.u32 32, %s21
      $region44: #{mgan_forward.14} parent=31 // pred_fallthru
        _
    $region32: #{mgan_forward.14} parent=5 // pred_fallthru
      _
    %p923 = scmp.le.s32.totalorder 2, %s9
    // Predicated region
    $region45: #{mgan_forward.14} parent=5 // pred_check
      %p924 = pneg %p923
    $region46: #{mgan_forward.14} parent=5 // pred_check_branch
      %926 = sbr.rel (%p924) target = $region48
    $region47: #{mgan_forward.14} parent=5 // pred_region
      %s927 = ssub.s32 %s9, 2
      // Predicated region
      $region49: #{mgan_forward.14} parent=47 // pred_check
        %p928 = pneg %p156
      $region50: #{mgan_forward.14} parent=47 // pred_check_branch
        %930 = sbr.rel (%p928) target = $region52
      $region51: #{mgan_forward.14} parent=47 // pred_region
        %s931 = smul.u32 32, %s25
        %p932 = scmp.lt.s32.totalorder %s24, 0
        %s933 = scalar_select %p932, %s24, 0
        %p934 = scmp.lt.s32.totalorder %s931, 63
        %s935 = scalar_select %p934, %s931, 63
        %p936 = scmp.lt.s32.totalorder %s26, 0
        %s937 = scalar_select %p936, %s26, 0
        %s938 = sadd.s32 %s937, %s935
        %s939 = smul.addr %s933, 64
        %s940 = sadd.s32 %s938, %s939
        %s941 = smul.addr %s940, 8
        %s942 = scalar_lea.vmem %s3, %s941
      $region52: #{mgan_forward.14} parent=47 // pred_fallthru
        _
    $region48: #{mgan_forward.14} parent=5 // pred_fallthru
      _
  $region6: #{mgan_forward.14} parent=0 // loop_footer
    %s13 = sadd.s32 1, %s9
  $region7: #{mgan_forward.14} parent=0 // loop_footer_branch
    %8 = sbr.rel target = $region3
  $region8: #{mgan_forward.14} parent=0 // loop_exit
    _

// kernel: mgan_forward.15
$region0: #{mgan_forward.15}
  #allocation0 [shape = 'u32[]', space=smem, size = 0x4, offset = 0x4, fixed_abs, tag = 'smem constant byte address 0x4 - core index']
  #allocation1 [shape = 'u32[144,128]{1,0:T(1,128)}', space=vmem, size = 0x12000, scoped, tag = 'internal scratch']
  #allocation2 [shape = 'f32[64,128]{1,0:T(8,128)}', space=vmem, size = 0x8000, scoped, tag = 'scratch operand']
  %s0 = inlined_call_operand.vmem [shape: bf16[1,128,128], index: 0, kind: input, shape index: {}]
  %s1 = inlined_call_operand.vmem [shape: bf16[1,128,128], index: 1, kind: input, shape index: {}]
  %s2 = inlined_call_operand.vmem [shape: f32[1,1,128], index: 2, kind: input, shape index: {}]
  %s3 = inlined_call_operand.vmem [shape: f32[1,128,128], index: 3, kind: output, shape index: {}]
  %s4 = sld [smem:[#allocation0]]
  $region53: #{mgan_forward.15} parent=0
    _
  %s6 = ssub.s32 1, %s4
  %s7 = scalar_select 0, %s6, %s4
  loop: start=0, step=1, limit=4
  $region2: #{mgan_forward.15} parent=0 // loop_pre_header
    _
  $region3: #{mgan_forward.15} parent=0 // loop_header
    %s9 = sphi 0, %s13
    %p10 = scmp.ge.s32.totalorder %s9, 4
    %s16 = sphi 0, %s42
    %s17 = sphi 0, %s38
    %s18 = sphi 0, %s34
    %s19 = sphi 0, %s30
    %s20 = sphi 0, %s16
    %s21 = sphi 0, %s17
    %s22 = sphi 0, %s18
    %s23 = sphi 0, %s19
    %s24 = sphi 0, %s20
    %s25 = sphi 0, %s21
    %s26 = sphi 0, %s22
    %s27 = sphi 0, %s23
    %s49 = sphi 0, %s51
    %s52 = sphi 0, %s49
    %s53 = sphi 0, %s52
    %s69 = sphi 0, %s53
    %s79 = sphi 0, %s81
    %s82 = sphi 0, %s79
    %s83 = sphi 0, %s82
    %s99 = sphi 0, %s83
    %s107 = sphi 0, %s109
    %s110 = sphi 0, %s107
    %s111 = sphi 0, %s110
    %s127 = sphi 0, %s111
    %s137 = sphi 0, %s139
    %s140 = sphi 0, %s137
    %s141 = sphi 0, %s140
    %s157 = sphi 0, %s141
  $region4: #{mgan_forward.15} parent=0 // loop_header_branch
    %12 = sbr.rel (%p10) target = $region8
  $region5: #{mgan_forward.15} parent=0 // loop_body
    %s14 = ssub.s32 %s9, 1
    %s15 = ssub.s32 %s9, 2
    %s28 = sadd.s32 1, %s19
    %p29 = scmp.ge.s32.totalorder %s28, 1
    %s30 = scalar_select %p29, 0, %s28
    %s31 = sadd.s32 1, %s18
    %s32 = scalar_select %p29, %s31, %s18
    %p33 = scmp.ge.s32.totalorder %s32, 1
    %s34 = scalar_select %p33, 0, %s32
    %s35 = sadd.s32 1, %s17
    %s36 = scalar_select %p33, %s35, %s17
    %p37 = scmp.ge.s32.totalorder %s36, 2
    %s38 = scalar_select %p37, 0, %s36
    %s39 = sadd.s32 1, %s16
    %s40 = scalar_select %p37, %s39, %s16
    %p41 = scmp.ge.s32.totalorder %s40, 1
    %s42 = scalar_select %p41, 0, %s40
    %s43 = ssub.s32 %s16, %s42
    %s44 = ssub.s32 %s17, %s38
    %s45 = sor.u32 %s43, %s44
    %s46 = ssub.s32 %s19, %s30
    %s47 = sor.u32 %s45, %s46
    %p48 = scmp.eq.s32.totalorder %s47, 0
    %s50 = sadd.s32 %s49, 1
    %s51 = scalar_select %p48, %s49, %s50
    %p54 = pneg %p48
    %p55 = scmp.eq.s32.totalorder %s9, 1
    %p56 = por %p54, %p55
    %p57 = scmp.ne.s32.totalorder %s49, %s52
    %p58 = scmp.eq.s32.totalorder %s9, 0
    %p59 = por %p57, %p58
    %p60 = scmp.ne.s32.totalorder %s49, %s52
    %p61 = scmp.eq.s32.totalorder %s14, 1
    %p62 = por %p60, %p61
    %p63 = scmp.ne.s32.totalorder %s52, %s53
    %p64 = scmp.eq.s32.totalorder %s14, 0
    %p65 = por %p63, %p64
    %p66 = scmp.ne.s32.totalorder %s52, %s53
    %p67 = scmp.eq.s32.totalorder %s15, 1
    %p68 = por %p66, %p67
    %p70 = scmp.ne.s32.totalorder %s53, %s69
    %p71 = scmp.eq.s32.totalorder %s15, 0
    %p72 = por %p70, %p71
    %s73 = ssub.s32 %s16, %s42
    %s74 = ssub.s32 %s19, %s30
    %s75 = sor.u32 %s73, %s74
    %s76 = ssub.s32 %s18, %s34
    %s77 = sor.u32 %s75, %s76
    %p78 = scmp.eq.s32.totalorder %s77, 0
    %s80 = sadd.s32 %s79, 1
    %s81 = scalar_select %p78, %s79, %s80
    %p84 = pneg %p78
    %p85 = scmp.eq.s32.totalorder %s9, 1
    %p86 = por %p84, %p85
    %p87 = scmp.ne.s32.totalorder %s79, %s82
    %p88 = scmp.eq.s32.totalorder %s9, 0
    %p89 = por %p87, %p88
    %p90 = scmp.ne.s32.totalorder %s79, %s82
    %p91 = scmp.eq.s32.totalorder %s14, 1
    %p92 = por %p90, %p91
    %p93 = scmp.ne.s32.totalorder %s82, %s83
    %p94 = scmp.eq.s32.totalorder %s14, 0
    %p95 = por %p93, %p94
    %p96 = scmp.ne.s32.totalorder %s82, %s83
    %p97 = scmp.eq.s32.totalorder %s15, 1
    %p98 = por %p96, %p97
    %p100 = scmp.ne.s32.totalorder %s83, %s99
    %p101 = scmp.eq.s32.totalorder %s15, 0
    %p102 = por %p100, %p101
    %s103 = ssub.s32 %s16, %s42
    %s104 = ssub.s32 %s18, %s34
    %s105 = sor.u32 %s103, %s104
    %p106 = scmp.eq.s32.totalorder %s105, 0
    %s108 = sadd.s32 %s107, 1
    %s109 = scalar_select %p106, %s107, %s108
    %p112 = pneg %p106
    %p113 = scmp.eq.s32.totalorder %s9, 1
    %p114 = por %p112, %p113
    %p115 = scmp.ne.s32.totalorder %s107, %s110
    %p116 = scmp.eq.s32.totalorder %s9, 0
    %p117 = por %p115, %p116
    %p118 = scmp.ne.s32.totalorder %s107, %s110
    %p119 = scmp.eq.s32.totalorder %s14, 1
    %p120 = por %p118, %p119
    %p121 = scmp.ne.s32.totalorder %s110, %s111
    %p122 = scmp.eq.s32.totalorder %s14, 0
    %p123 = por %p121, %p122
    %p124 = scmp.ne.s32.totalorder %s110, %s111
    %p125 = scmp.eq.s32.totalorder %s15, 1
    %p126 = por %p124, %p125
    %p128 = scmp.ne.s32.totalorder %s111, %s127
    %p129 = scmp.eq.s32.totalorder %s15, 0
    %p130 = por %p128, %p129
    %s131 = ssub.s32 %s16, %s42
    %s132 = ssub.s32 %s17, %s38
    %s133 = sor.u32 %s131, %s132
    %s134 = ssub.s32 %s18, %s34
    %s135 = sor.u32 %s133, %s134
    %p136 = scmp.eq.s32.totalorder %s135, 0
    %s138 = sadd.s32 %s137, 1
    %s139 = scalar_select %p136, %s137, %s138
    %p142 = pneg %p136
    %p143 = scmp.eq.s32.totalorder %s9, 1
    %p144 = por %p142, %p143
    %p145 = scmp.ne.s32.totalorder %s137, %s140
    %p146 = scmp.eq.s32.totalorder %s9, 0
    %p147 = por %p145, %p146
    %p148 = scmp.ne.s32.totalorder %s137, %s140
    %p149 = scmp.eq.s32.totalorder %s14, 1
    %p150 = por %p148, %p149
    %p151 = scmp.ne.s32.totalorder %s140, %s141
    %p152 = scmp.eq.s32.totalorder %s14, 0
    %p153 = por %p151, %p152
    %p154 = scmp.ne.s32.totalorder %s140, %s141
    %p155 = scmp.eq.s32.totalorder %s15, 1
    %p156 = por %p154, %p155
    %p158 = scmp.ne.s32.totalorder %s141, %s157
    %p159 = scmp.eq.s32.totalorder %s15, 0
    %p160 = por %p158, %p159
    %p161 = scmp.le.s32.totalorder 1, %s9
    %p162 = scmp.lt.s32.totalorder %s9, 3
    %p163 = pnand %p161, %p162
    %p164 = pneg %p163
    // Predicated region
    $region9: #{mgan_forward.15} parent=5 // pred_check
      _
    $region10: #{mgan_forward.15} parent=5 // pred_check_branch
      %166 = sbr.rel (%p163) target = $region12
    $region11: #{mgan_forward.15} parent=5 // pred_region
      %s167 = ssub.s32 %s9, 1
      // Predicated region
      $region13: #{mgan_forward.15} parent=11 // pred_check
        %p168 = pneg %p95
      $region14: #{mgan_forward.15} parent=11 // pred_check_branch
        %170 = sbr.rel (%p168) target = $region16
      $region15: #{mgan_forward.15} parent=11 // pred_region
        %s171 = smul.u32 16, %s23
        %p172 = scmp.lt.s32.totalorder %s20, 0
        %s173 = scalar_select %p172, %s20, 0
        %p174 = scmp.lt.s32.totalorder %s171, 15
        %s175 = scalar_select %p174, %s171, 15
        %p176 = scmp.lt.s32.totalorder %s22, 0
        %s177 = scalar_select %p176, %s22, 0
        %s178 = sadd.s32 %s177, %s175
        %s179 = smul.addr %s173, 16
        %s180 = sadd.s32 %s178, %s179
        %s181 = smul.addr %s180, 4
        %s182 = scalar_lea.vmem %s1, %s181
        %s183 = smul.u32 16, %s23
      $region16: #{mgan_forward.15} parent=11 // pred_fallthru
        _
      // Predicated region
      $region17: #{mgan_forward.15} parent=11 // pred_check
        %p184 = pneg %p123
      $region18: #{mgan_forward.15} parent=11 // pred_check_branch
        %186 = sbr.rel (%p184) target = $region20
      $region19: #{mgan_forward.15} parent=11 // pred_region
        %p187 = scmp.lt.s32.totalorder %s20, 0
        %s188 = scalar_select %p187, %s20, 0
        %p189 = scmp.lt.s32.totalorder %s22, 0
        %s190 = scalar_select %p189, %s22, 0
        %s191 = sadd.s32 %s190, %s188
        %s192 = scalar_lea.vmem %s2, %s191
      $region20: #{mgan_forward.15} parent=11 // pred_fallthru
        _
    $region12: #{mgan_forward.15} parent=5 // pred_fallthru
      _
    %p193 = scmp.lt.s32.totalorder %s9, 2
    // Predicated region
    $region21: #{mgan_forward.15} parent=5 // pred_check
      %p194 = pneg %p193
    $region22: #{mgan_forward.15} parent=5 // pred_check_branch
      %196 = sbr.rel (%p194) target = $region24
    $region23: #{mgan_forward.15} parent=5 // pred_region
      // Predicated region
      $region25: #{mgan_forward.15} parent=23 // pred_check
        %p197 = pneg %p59
      $region26: #{mgan_forward.15} parent=23 // pred_check_branch
        %199 = sbr.rel (%p197) target = $region28
      $region27: #{mgan_forward.15} parent=23 // pred_region
        %s200 = smul.u32 8, %s17
        %p201 = scmp.lt.s32.totalorder %s16, 0
        %s202 = scalar_select %p201, %s16, 0
        %p203 = scmp.lt.s32.totalorder %s200, 15
        %s204 = scalar_select %p203, %s200, 15
        %p205 = scmp.lt.s32.totalorder %s19, 0
        %s206 = scalar_select %p205, %s19, 0
        %s207 = sadd.s32 %s206, %s204
        %s208 = smul.addr %s202, 16
        %s209 = sadd.s32 %s207, %s208
        %s210 = smul.addr %s209, 4
        %s211 = scalar_lea.vmem %s0, %s210
        %s212 = smul.u32 8, %s17
      $region28: #{mgan_forward.15} parent=23 // pred_fallthru
        _
    $region24: #{mgan_forward.15} parent=5 // pred_fallthru
      _
    %p213 = scmp.le.s32.totalorder 1, %s9
    %p214 = scmp.lt.s32.totalorder %s9, 3
    %p215 = pnand %p213, %p214
    %p216 = pneg %p215
    // Predicated region
    $region29: #{mgan_forward.15} parent=5 // pred_check
      _
    $region30: #{mgan_forward.15} parent=5 // pred_check_branch
      %218 = sbr.rel (%p215) target = $region32
    $region31: #{mgan_forward.15} parent=5 // pred_region
      %s219 = ssub.s32 %s9, 1
      %s220 = smul.u32 8, %s21
      %p221 = scmp.lt.s32.totalorder %s20, 0
      %s222 = scalar_select %p221, %s20, 0
      %p223 = scmp.lt.s32.totalorder %s220, 15
      %s224 = scalar_select %p223, %s220, 15
      %p225 = scmp.lt.s32.totalorder %s23, 0
      %s226 = scalar_select %p225, %s23, 0
      %s227 = sadd.s32 %s226, %s224
      %s228 = smul.addr %s222, 16
      %s229 = sadd.s32 %s227, %s228
      %s230 = smul.addr %s229, 4
      %s231 = scalar_lea.vmem %s0, %s230
      %p232 = pneg %p65
      %p233 = pneg %p62
      %s234 = smul.u32 16, %s23
      %p235 = scmp.lt.s32.totalorder %s20, 0
      %s236 = scalar_select %p235, %s20, 0
      %p237 = scmp.lt.s32.totalorder %s234, 15
      %s238 = scalar_select %p237, %s234, 15
      %p239 = scmp.lt.s32.totalorder %s22, 0
      %s240 = scalar_select %p239, %s22, 0
      %s241 = sadd.s32 %s240, %s238
      %s242 = smul.addr %s236, 16
      %s243 = sadd.s32 %s241, %s242
      %s244 = smul.addr %s243, 4
      %s245 = scalar_lea.vmem %s1, %s244
      %p246 = pneg %p95
      %p247 = pneg %p92
      %p248 = scmp.lt.s32.totalorder %s20, 0
      %s249 = scalar_select %p248, %s20, 0
      %p250 = scmp.lt.s32.totalorder %s22, 0
      %s251 = scalar_select %p250, %s22, 0
      %s252 = sadd.s32 %s251, %s249
      %s253 = scalar_lea.vmem %s2, %s252
      %p254 = pneg %p123
      %p255 = pneg %p120
      %p256 = pneg %p153
      %p257 = pneg %p150
      %s258 = smul.u32 8, %s21
      %p259 = scmp.lt.s32.totalorder %s20, 0
      %s260 = scalar_select %p259, %s20, 0
      %p261 = scmp.lt.s32.totalorder %s258, 15
      %s262 = scalar_select %p261, %s258, 15
      %p263 = scmp.lt.s32.totalorder %s22, 0
      %s264 = scalar_select %p263, %s22, 0
      %s265 = sadd.s32 %s264, %s262
      %s266 = smul.addr %s260, 16
      %s267 = sadd.s32 %s265, %s266
      %s268 = smul.addr %s267, 8
      %s269 = scalar_lea.vmem %s3, %s268
      %s270 = smul.u32 8, %s21
      %p271 = scmp.lt.s32.totalorder %s20, 0
      %s272 = scalar_select %p271, %s20, 0
      %p273 = scmp.lt.s32.totalorder %s270, 15
      %s274 = scalar_select %p273, %s270, 15
      %p275 = scmp.lt.s32.totalorder %s23, 0
      %s276 = scalar_select %p275, %s23, 0
      %s277 = sadd.s32 %s276, %s274
      %s278 = smul.addr %s272, 16
      %s279 = sadd.s32 %s277, %s278
      %s280 = smul.addr %s279, 4
      %s281 = scalar_lea.vmem %s0, %s280
      %s282 = smul.u32 8, %s21
      %s283 = smul.u32 16, %s23
      %p284 = scmp.lt.s32.totalorder %s20, 0
      %s285 = scalar_select %p284, %s20, 0
      %p286 = scmp.lt.s32.totalorder %s283, 15
      %s287 = scalar_select %p286, %s283, 15
      %p288 = scmp.lt.s32.totalorder %s22, 0
      %s289 = scalar_select %p288, %s22, 0
      %s290 = sadd.s32 %s289, %s287
      %s291 = smul.addr %s285, 16
      %s292 = sadd.s32 %s290, %s291
      %s293 = smul.addr %s292, 4
      %s294 = scalar_lea.vmem %s1, %s293
      %s295 = smul.u32 16, %s23
      %p296 = scmp.lt.s32.totalorder %s20, 0
      %s297 = scalar_select %p296, %s20, 0
      %p298 = scmp.lt.s32.totalorder %s22, 0
      %s299 = scalar_select %p298, %s22, 0
      %s300 = sadd.s32 %s299, %s297
      %s301 = scalar_lea.vmem %s2, %s300
      %s302 = smul.u32 8, %s21
      %p303 = scmp.lt.s32.totalorder %s20, 0
      %s304 = scalar_select %p303, %s20, 0
      %p305 = scmp.lt.s32.totalorder %s302, 15
      %s306 = scalar_select %p305, %s302, 15
      %p307 = scmp.lt.s32.totalorder %s22, 0
      %s308 = scalar_select %p307, %s22, 0
      %s309 = sadd.s32 %s308, %s306
      %s310 = smul.addr %s304, 16
      %s311 = sadd.s32 %s309, %s310
      %s312 = smul.addr %s311, 8
      %s313 = scalar_lea.vmem %s3, %s312
      %s314 = smul.u32 8, %s21
      %p317 = scmp.eq.s32.totalorder %s23, 0
      // Predicated region
      $region33: #{mgan_forward.15} parent=31 // pred_check
        %p318 = pneg %p317
      $region34: #{mgan_forward.15} parent=31 // pred_check_branch
        %320 = sbr.rel (%p318) target = $region36
      $region35: #{mgan_forward.15} parent=31 // pred_region
        %321 = vst [vmem:[#allocation2] sm:$0xff] 0.0
        %322 = vst [vmem:[#allocation2 + $0x8] sm:$0xff] 0.0
        %323 = vst [vmem:[#allocation2 + $0x10] sm:$0xff] 0.0
        %324 = vst [vmem:[#allocation2 + $0x18] sm:$0xff] 0.0
        %325 = vst [vmem:[#allocation2 + $0x20] sm:$0xff] 0.0
        %326 = vst [vmem:[#allocation2 + $0x28] sm:$0xff] 0.0
        %327 = vst [vmem:[#allocation2 + $0x30] sm:$0xff] 0.0
        %328 = vst [vmem:[#allocation2 + $0x38] sm:$0xff] 0.0
      $region36: #{mgan_forward.15} parent=31 // pred_fallthru
        _
      %v329 = vld [vmem:[%s281] sm:$0xf]
      %v330 = vld [vmem:[%s281 + $0x4] sm:$0xf]
      %v331 = vld [vmem:[%s281 + $0x8] sm:$0xf]
      %v332 = vld [vmem:[%s281 + $0xc] sm:$0xf]
      %v333 = vld [vmem:[%s281 + $0x10] sm:$0xf]
      %v334 = vld [vmem:[%s281 + $0x14] sm:$0xf]
      %v335 = vld [vmem:[%s281 + $0x18] sm:$0xf]
      %v336 = vld [vmem:[%s281 + $0x1c] sm:$0xf]
      %vm337 = vcmp.ge.bf16.partialorder %v329, 0
      %vm338 = vcmp.ge.bf16.partialorder %v330, 0
      %vm339 = vcmp.ge.bf16.partialorder %v331, 0
      %vm340 = vcmp.ge.bf16.partialorder %v332, 0
      %vm341 = vcmp.ge.bf16.partialorder %v333, 0
      %vm342 = vcmp.ge.bf16.partialorder %v334, 0
      %vm343 = vcmp.ge.bf16.partialorder %v335, 0
      %vm344 = vcmp.ge.bf16.partialorder %v336, 0
      %v345 = vmul.bf16 %v329, 1045249613
      %v346 = vmul.bf16 %v330, 1045249613
      %v347 = vmul.bf16 %v331, 1045249613
      %v348 = vmul.bf16 %v332, 1045249613
      %v349 = vmul.bf16 %v333, 1045249613
      %v350 = vmul.bf16 %v334, 1045249613
      %v351 = vmul.bf16 %v335, 1045249613
      %v352 = vmul.bf16 %v336, 1045249613
      %v353 = vsel %vm337, %v329, %v345
      %v354 = vsel %vm338, %v330, %v346
      %v355 = vsel %vm339, %v331, %v347
      %v356 = vsel %vm340, %v332, %v348
      %v357 = vsel %vm341, %v333, %v349
      %v358 = vsel %vm342, %v334, %v350
      %v359 = vsel %vm343, %v335, %v351
      %v360 = vsel %vm344, %v336, %v352
      %v361 = vld [vmem:[#allocation2] sm:$0xff]
      %v362 = vld [vmem:[#allocation2 + $0x8] sm:$0xff]
      %v363 = vld [vmem:[#allocation2 + $0x10] sm:$0xff]
      %v364 = vld [vmem:[#allocation2 + $0x18] sm:$0xff]
      %v365 = vld [vmem:[#allocation2 + $0x20] sm:$0xff]
      %v366 = vld [vmem:[#allocation2 + $0x28] sm:$0xff]
      %v367 = vld [vmem:[#allocation2 + $0x30] sm:$0xff]
      %v368 = vld [vmem:[#allocation2 + $0x38] sm:$0xff]
      %v369 = vld [vmem:[%s294] sm:$0xf]
      %v370 = vld [vmem:[%s294 + $0x4] sm:$0xf]
      %v371 = vld [vmem:[%s294 + $0x8] sm:$0xf]
      %v372 = vld [vmem:[%s294 + $0xc] sm:$0xf]
      %v373 = vld [vmem:[%s294 + $0x10] sm:$0xf]
      %v374 = vld [vmem:[%s294 + $0x14] sm:$0xf]
      %v375 = vld [vmem:[%s294 + $0x18] sm:$0xf]
      %v376 = vld [vmem:[%s294 + $0x1c] sm:$0xf]
      %v377 = vld [vmem:[%s294 + $0x20] sm:$0xf]
      %v378 = vld [vmem:[%s294 + $0x24] sm:$0xf]
      %v379 = vld [vmem:[%s294 + $0x28] sm:$0xf]
      %v380 = vld [vmem:[%s294 + $0x2c] sm:$0xf]
      %v381 = vld [vmem:[%s294 + $0x30] sm:$0xf]
      %v382 = vld [vmem:[%s294 + $0x34] sm:$0xf]
      %v383 = vld [vmem:[%s294 + $0x38] sm:$0xf]
      %v384 = vld [vmem:[%s294 + $0x3c] sm:$0xf]
      %v393 = vunpack.c.l.b16 %v353
      %v394 = vunpack.c.l.b16 %v354
      %v395 = vunpack.c.l.b16 %v355
      %v396 = vunpack.c.l.b16 %v356
      %v397 = vunpack.c.l.b16 %v357
      %v398 = vunpack.c.l.b16 %v358
      %v399 = vunpack.c.l.b16 %v359
      %v400 = vunpack.c.l.b16 %v360
      %v401 = vpack.c.b16 %v394, %v393
      %v402 = vpack.c.b16 %v396, %v395
      %v403 = vpack.c.b16 %v398, %v397
      %v404 = vpack.c.b16 %v400, %v399
      %v425 = vunpack.c.l.b16 %v369
      %v426 = vunpack.c.l.b16 %v370
      %v427 = vunpack.c.l.b16 %v371
      %v428 = vunpack.c.l.b16 %v372
      %v429 = vunpack.c.l.b16 %v373
      %v430 = vunpack.c.l.b16 %v374
      %v431 = vunpack.c.l.b16 %v375
      %v432 = vunpack.c.l.b16 %v376
      %v433 = vunpack.c.l.b16 %v377
      %v434 = vunpack.c.l.b16 %v378
      %v435 = vunpack.c.l.b16 %v379
      %v436 = vunpack.c.l.b16 %v380
      %v437 = vunpack.c.l.b16 %v381
      %v438 = vunpack.c.l.b16 %v382
      %v439 = vunpack.c.l.b16 %v383
      %v440 = vunpack.c.l.b16 %v384
      %v441 = vpack.c.b16 %v426, %v425
      %v442 = vpack.c.b16 %v428, %v427
      %v443 = vpack.c.b16 %v430, %v429
      %v444 = vpack.c.b16 %v432, %v431
      %v445 = vpack.c.b16 %v434, %v433
      %v446 = vpack.c.b16 %v436, %v435
      %v447 = vpack.c.b16 %v438, %v437
      %v448 = vpack.c.b16 %v440, %v439
      %457 = vmatprep.subr.bf16.mxu0 0
      %458 = vmatpush1.bf16.msra.mxu0 %v448
      %459 = vmatprep.subr.bf16.mxu0 0
      %460 = vmatpush1.bf16.msra.mxu0 %v447
      %461 = vmatprep.subr.bf16.mxu0 0
      %462 = vmatpush1.bf16.msra.mxu0 %v446
      %463 = vmatprep.subr.bf16.mxu0 0
      %464 = vmatpush1.bf16.msra.mxu0 %v445
      %465 = vmatprep.subr.bf16.mxu0 0
      %466 = vmatpush1.bf16.msra.mxu0 %v444
      %467 = vmatprep.subr.bf16.mxu0 0
      %468 = vmatpush1.bf16.msra.mxu0 %v443
      %469 = vmatprep.subr.bf16.mxu0 0
      %470 = vmatpush1.bf16.msra.mxu0 %v442
      %471 = vmatprep.subr.bf16.mxu0 0
      %472 = vmatpush1.bf16.msra.mxu0 %v441
      %473 = vmatprep.subr.bf16.mxu0 0
      %474 = vmatpush2.bf16.msra.mxu0 0
      %475 = vmatprep.subr.bf16.mxu0 0
      %476 = vmatpush2.bf16.msra.mxu0 0
      %477 = vmatprep.subr.bf16.mxu0 0
      %478 = vmatpush2.bf16.msra.mxu0 0
      %479 = vmatprep.subr.bf16.mxu0 0
      %480 = vmatpush2.bf16.msra.mxu0 0
      %481 = vmatprep.subr.bf16.mxu0 0
      %482 = vmatpush2.bf16.msra.mxu0 0
      %483 = vmatprep.subr.bf16.mxu0 0
      %484 = vmatpush2.bf16.msra.mxu0 0
      %485 = vmatprep.subr.bf16.mxu0 0
      %486 = vmatpush2.bf16.msra.mxu0 0
      %487 = vmatprep.subr.bf16.mxu0 0
      %488 = vmatpush2.bf16.msra.mxu0 0
      %489 = vmatprep.mubr.bf16.mxu0 0
      %490 = vmatmul.mubr.bf16.gmra.mxu0 %v401
      %v491 = vpop.f32.mrf.mxu0
      %v492 = vadd.f32 0.0, %v491
      %v493 = vpop.f32.mrf.mxu0
      %v494 = vpop.f32.mrf.mxu0
      %v495 = vadd.f32 0.0, %v494
      %v496 = vpop.f32.mrf.mxu0
      %497 = vmatprep.mubr.bf16.mxu0 0
      %498 = vmatmul.mubr.bf16.gmra.mxu0 %v402
      %v499 = vpop.f32.mrf.mxu0
      %v500 = vadd.f32 0.0, %v499
      %v501 = vpop.f32.mrf.mxu0
      %v502 = vpop.f32.mrf.mxu0
      %v503 = vadd.f32 0.0, %v502
      %v504 = vpop.f32.mrf.mxu0
      %505 = vmatprep.mubr.bf16.mxu0 0
      %506 = vmatmul.mubr.bf16.gmra.mxu0 %v403
      %v507 = vpop.f32.mrf.mxu0
      %v508 = vadd.f32 0.0, %v507
      %v509 = vpop.f32.mrf.mxu0
      %v510 = vpop.f32.mrf.mxu0
      %v511 = vadd.f32 0.0, %v510
      %v512 = vpop.f32.mrf.mxu0
      %513 = vmatprep.mubr.bf16.mxu0 0
      %514 = vmatmul.mubr.bf16.gmra.mxu0 %v404
      %v515 = vpop.f32.mrf.mxu0
      %v516 = vadd.f32 0.0, %v515
      %v517 = vpop.f32.mrf.mxu0
      %v518 = vpop.f32.mrf.mxu0
      %v519 = vadd.f32 0.0, %v518
      %v520 = vpop.f32.mrf.mxu0
      %521 = vdwg.mxu0
      %v522 = vadd.f32 %v361, %v492
      %v523 = vadd.f32 %v362, %v495
      %v524 = vadd.f32 %v363, %v500
      %v525 = vadd.f32 %v364, %v503
      %v526 = vadd.f32 %v365, %v508
      %v527 = vadd.f32 %v366, %v511
      %v528 = vadd.f32 %v367, %v516
      %v529 = vadd.f32 %v368, %v519
      %530 = vst [vmem:[#allocation2] sm:$0xff] %v522
      %531 = vst [vmem:[#allocation2 + $0x8] sm:$0xff] %v523
      %532 = vst [vmem:[#allocation2 + $0x10] sm:$0xff] %v524
      %533 = vst [vmem:[#allocation2 + $0x18] sm:$0xff] %v525
      %534 = vst [vmem:[#allocation2 + $0x20] sm:$0xff] %v526
      %535 = vst [vmem:[#allocation2 + $0x28] sm:$0xff] %v527
      %536 = vst [vmem:[#allocation2 + $0x30] sm:$0xff] %v528
      %537 = vst [vmem:[#allocation2 + $0x38] sm:$0xff] %v529
      // Predicated region
      $region37: #{mgan_forward.15} parent=31 // pred_check
        %p538 = pneg %p317
      $region38: #{mgan_forward.15} parent=31 // pred_check_branch
        %540 = sbr.rel (%p538) target = $region40
      $region39: #{mgan_forward.15} parent=31 // pred_region
        %v541 = vld [vmem:[#allocation2] sm:$0xff]
        %v542 = vld [vmem:[#allocation2 + $0x8] sm:$0xff]
        %v543 = vld [vmem:[#allocation2 + $0x10] sm:$0xff]
        %v544 = vld [vmem:[#allocation2 + $0x18] sm:$0xff]
        %v545 = vld [vmem:[#allocation2 + $0x20] sm:$0xff]
        %v546 = vld [vmem:[#allocation2 + $0x28] sm:$0xff]
        %v547 = vld [vmem:[#allocation2 + $0x30] sm:$0xff]
        %v548 = vld [vmem:[#allocation2 + $0x38] sm:$0xff]
        %v549 = vld [vmem:[%s301] sm:$0x1]
        %v551 = vlaneseq
        %v552 = vshrl.u32 %v551, 7
        %v553 = vsub.s32 0, %v552
        %v554 = vrot.slane %v549, %v553
        %v556 = vadd.f32 %v541, %v554
        %v557 = vadd.f32 %v542, %v554
        %v558 = vadd.f32 %v543, %v554
        %v559 = vadd.f32 %v544, %v554
        %v560 = vadd.f32 %v545, %v554
        %v561 = vadd.f32 %v546, %v554
        %v562 = vadd.f32 %v547, %v554
        %v563 = vadd.f32 %v548, %v554
        %564 = vst [vmem:[%s313] sm:$0xff] %v556
        %565 = vst [vmem:[%s313 + $0x8] sm:$0xff] %v557
        %566 = vst [vmem:[%s313 + $0x10] sm:$0xff] %v558
        %567 = vst [vmem:[%s313 + $0x18] sm:$0xff] %v559
        %568 = vst [vmem:[%s313 + $0x20] sm:$0xff] %v560
        %569 = vst [vmem:[%s313 + $0x28] sm:$0xff] %v561
        %570 = vst [vmem:[%s313 + $0x30] sm:$0xff] %v562
        %571 = vst [vmem:[%s313 + $0x38] sm:$0xff] %v563
      $region40: #{mgan_forward.15} parent=31 // pred_fallthru
        _
      %s572 = smul.u32 8, %s21
      %p573 = scmp.lt.s32.totalorder %s20, 0
      %s574 = scalar_select %p573, %s20, 0
      %p575 = scmp.lt.s32.totalorder %s572, 15
      %s576 = scalar_select %p575, %s572, 15
      %p577 = scmp.lt.s32.totalorder %s22, 0
      %s578 = scalar_select %p577, %s22, 0
      %s579 = sadd.s32 %s578, %s576
      %s580 = smul.addr %s574, 16
      %s581 = sadd.s32 %s579, %s580
      %s582 = smul.addr %s581, 8
      %s583 = scalar_lea.vmem %s3, %s582
      // Predicated region
      $region41: #{mgan_forward.15} parent=31 // pred_check
        %p584 = pneg %p150
      $region42: #{mgan_forward.15} parent=31 // pred_check_branch
        %586 = sbr.rel (%p584) target = $region44
      $region43: #{mgan_forward.15} parent=31 // pred_region
        %s587 = smul.u32 8, %s21
      $region44: #{mgan_forward.15} parent=31 // pred_fallthru
        _
    $region32: #{mgan_forward.15} parent=5 // pred_fallthru
      _
    %p588 = scmp.le.s32.totalorder 2, %s9
    // Predicated region
    $region45: #{mgan_forward.15} parent=5 // pred_check
      %p589 = pneg %p588
    $region46: #{mgan_forward.15} parent=5 // pred_check_branch
      %591 = sbr.rel (%p589) target = $region48
    $region47: #{mgan_forward.15} parent=5 // pred_region
      %s592 = ssub.s32 %s9, 2
      // Predicated region
      $region49: #{mgan_forward.15} parent=47 // pred_check
        %p593 = pneg %p156
      $region50: #{mgan_forward.15} parent=47 // pred_check_branch
        %595 = sbr.rel (%p593) target = $region52
      $region51: #{mgan_forward.15} parent=47 // pred_region
        %s596 = smul.u32 8, %s25
        %p597 = scmp.lt.s32.totalorder %s24, 0
        %s598 = scalar_select %p597, %s24, 0
        %p599 = scmp.lt.s32.totalorder %s596, 15
        %s600 = scalar_select %p599, %s596, 15
        %p601 = scmp.lt.s32.totalorder %s26, 0
        %s602 = scalar_select %p601, %s26, 0
        %s603 = sadd.s32 %s602, %s600
        %s604 = smul.addr %s598, 16
        %s605 = sadd.s32 %s603, %s604
        %s606 = smul.addr %s605, 8
        %s607 = scalar_lea.vmem %s3, %s606
      $region52: #{mgan_forward.15} parent=47 // pred_fallthru
        _
    $region48: #{mgan_forward.15} parent=5 // pred_fallthru
      _
  $region6: #{mgan_forward.15} parent=0 // loop_footer
    %s13 = sadd.s32 1, %s9
  $region7: #{mgan_forward.15} parent=0 // loop_footer_branch
    %8 = sbr.rel target = $region3
  $region8: #{mgan_forward.15} parent=0 // loop_exit
    _

// kernel: mgan_forward.16
$region0: #{mgan_forward.16}
  #allocation0 [shape = 'u32[]', space=smem, size = 0x4, offset = 0x4, fixed_abs, tag = 'smem constant byte address 0x4 - core index']
  #allocation1 [shape = 'u32[144,128]{1,0:T(1,128)}', space=vmem, size = 0x12000, scoped, tag = 'internal scratch']
  #allocation2 [shape = 'f32[32,128]{1,0:T(8,128)}', space=vmem, size = 0x4000, scoped, tag = 'scratch operand']
  %s0 = inlined_call_operand.vmem [shape: bf16[1,32,256], index: 0, kind: input, shape index: {}]
  %s1 = inlined_call_operand.vmem [shape: bf16[1,256,128], index: 1, kind: input, shape index: {}]
  %s2 = inlined_call_operand.vmem [shape: f32[1,1,128], index: 2, kind: input, shape index: {}]
  %s3 = inlined_call_operand.vmem [shape: f32[1,32,128], index: 3, kind: output, shape index: {}]
  %s4 = sld [smem:[#allocation0]]
  $region30: #{mgan_forward.16} parent=0
    _
  %s6 = ssub.s32 1, %s4
  %s7 = scalar_select 0, %s6, %s4
  // Predicated region
  $region2: #{mgan_forward.16} parent=0 // pred_check
    _
  $region3: #{mgan_forward.16} parent=0 // pred_check_branch
    %9 = sbr.rel (0) target = $region5
  $region4: #{mgan_forward.16} parent=0 // pred_region
    _
  $region5: #{mgan_forward.16} parent=0 // pred_fallthru
    _
  // Predicated region
  $region6: #{mgan_forward.16} parent=0 // pred_check
    _
  $region7: #{mgan_forward.16} parent=0 // pred_check_branch
    %11 = sbr.rel (0) target = $region9
  $region8: #{mgan_forward.16} parent=0 // pred_region
    _
  $region9: #{mgan_forward.16} parent=0 // pred_fallthru
    _
  // Predicated region
  $region10: #{mgan_forward.16} parent=0 // pred_check
    _
  $region11: #{mgan_forward.16} parent=0 // pred_check_branch
    %13 = sbr.rel (0) target = $region13
  $region12: #{mgan_forward.16} parent=0 // pred_region
    _
  $region13: #{mgan_forward.16} parent=0 // pred_fallthru
    _
  %p16 = scmp.eq.s32.totalorder 0, 0
  // Predicated region
  $region14: #{mgan_forward.16} parent=0 // pred_check
    %p17 = pneg %p16
  $region15: #{mgan_forward.16} parent=0 // pred_check_branch
    %19 = sbr.rel (%p17) target = $region17
  $region16: #{mgan_forward.16} parent=0 // pred_region
    %20 = vst [vmem:[#allocation2] sm:$0xff] 0.0
    %21 = vst [vmem:[#allocation2 + $0x8] sm:$0xff] 0.0
    %22 = vst [vmem:[#allocation2 + $0x10] sm:$0xff] 0.0
    %23 = vst [vmem:[#allocation2 + $0x18] sm:$0xff] 0.0
  $region17: #{mgan_forward.16} parent=0 // pred_fallthru
    _
  %v24 = vld [vmem:[%s0] sm:$0xff]
  %v25 = vld [vmem:[%s0 + $0x8] sm:$0xff]
  %v26 = vld [vmem:[%s0 + $0x10] sm:$0xff]
  %v27 = vld [vmem:[%s0 + $0x18] sm:$0xff]
  %vm28 = vcmp.ge.bf16.partialorder %v24, 0
  %vm29 = vcmp.ge.bf16.partialorder %v25, 0
  %vm30 = vcmp.ge.bf16.partialorder %v26, 0
  %vm31 = vcmp.ge.bf16.partialorder %v27, 0
  %v32 = vmul.bf16 %v24, 1045249613
  %v33 = vmul.bf16 %v25, 1045249613
  %v34 = vmul.bf16 %v26, 1045249613
  %v35 = vmul.bf16 %v27, 1045249613
  %v36 = vsel %vm28, %v24, %v32
  %v37 = vsel %vm29, %v25, %v33
  %v38 = vsel %vm30, %v26, %v34
  %v39 = vsel %vm31, %v27, %v35
  %v40 = vld [vmem:[#allocation2] sm:$0xff]
  %v41 = vld [vmem:[#allocation2 + $0x8] sm:$0xff]
  %v42 = vld [vmem:[#allocation2 + $0x10] sm:$0xff]
  %v43 = vld [vmem:[#allocation2 + $0x18] sm:$0xff]
  %v44 = vld [vmem:[%s1] sm:$0xf]
  %v45 = vld [vmem:[%s1 + $0x4] sm:$0xf]
  %v46 = vld [vmem:[%s1 + $0x8] sm:$0xf]
  %v47 = vld [vmem:[%s1 + $0xc] sm:$0xf]
  %v48 = vld [vmem:[%s1 + $0x10] sm:$0xf]
  %v49 = vld [vmem:[%s1 + $0x14] sm:$0xf]
  %v50 = vld [vmem:[%s1 + $0x18] sm:$0xf]
  %v51 = vld [vmem:[%s1 + $0x1c] sm:$0xf]
  %v52 = vld [vmem:[%s1 + $0x20] sm:$0xf]
  %v53 = vld [vmem:[%s1 + $0x24] sm:$0xf]
  %v54 = vld [vmem:[%s1 + $0x28] sm:$0xf]
  %v55 = vld [vmem:[%s1 + $0x2c] sm:$0xf]
  %v56 = vld [vmem:[%s1 + $0x30] sm:$0xf]
  %v57 = vld [vmem:[%s1 + $0x34] sm:$0xf]
  %v58 = vld [vmem:[%s1 + $0x38] sm:$0xf]
  %v59 = vld [vmem:[%s1 + $0x3c] sm:$0xf]
  %v60 = vld [vmem:[%s1 + $0x40] sm:$0xf]
  %v61 = vld [vmem:[%s1 + $0x44] sm:$0xf]
  %v62 = vld [vmem:[%s1 + $0x48] sm:$0xf]
  %v63 = vld [vmem:[%s1 + $0x4c] sm:$0xf]
  %v64 = vld [vmem:[%s1 + $0x50] sm:$0xf]
  %v65 = vld [vmem:[%s1 + $0x54] sm:$0xf]
  %v66 = vld [vmem:[%s1 + $0x58] sm:$0xf]
  %v67 = vld [vmem:[%s1 + $0x5c] sm:$0xf]
  %v68 = vld [vmem:[%s1 + $0x60] sm:$0xf]
  %v69 = vld [vmem:[%s1 + $0x64] sm:$0xf]
  %v70 = vld [vmem:[%s1 + $0x68] sm:$0xf]
  %v71 = vld [vmem:[%s1 + $0x6c] sm:$0xf]
  %v72 = vld [vmem:[%s1 + $0x70] sm:$0xf]
  %v73 = vld [vmem:[%s1 + $0x74] sm:$0xf]
  %v74 = vld [vmem:[%s1 + $0x78] sm:$0xf]
  %v75 = vld [vmem:[%s1 + $0x7c] sm:$0xf]
  %v80 = vunpack.c.l.b16 %v36
  %v81 = vunpack.c.h.b16 %v36
  %v82 = vunpack.c.l.b16 %v37
  %v83 = vunpack.c.h.b16 %v37
  %v84 = vunpack.c.l.b16 %v38
  %v85 = vunpack.c.h.b16 %v38
  %v86 = vunpack.c.l.b16 %v39
  %v87 = vunpack.c.h.b16 %v39
  %v88 = vpack.c.b16 %v82, %v80
  %v89 = vpack.c.b16 %v83, %v81
  %v90 = vpack.c.b16 %v86, %v84
  %v91 = vpack.c.b16 %v87, %v85
  %v128 = vunpack.c.l.b16 %v44
  %v129 = vunpack.c.l.b16 %v45
  %v130 = vunpack.c.l.b16 %v46
  %v131 = vunpack.c.l.b16 %v47
  %v132 = vunpack.c.l.b16 %v48
  %v133 = vunpack.c.l.b16 %v49
  %v134 = vunpack.c.l.b16 %v50
  %v135 = vunpack.c.l.b16 %v51
  %v136 = vunpack.c.l.b16 %v52
  %v137 = vunpack.c.l.b16 %v53
  %v138 = vunpack.c.l.b16 %v54
  %v139 = vunpack.c.l.b16 %v55
  %v140 = vunpack.c.l.b16 %v56
  %v141 = vunpack.c.l.b16 %v57
  %v142 = vunpack.c.l.b16 %v58
  %v143 = vunpack.c.l.b16 %v59
  %v144 = vunpack.c.l.b16 %v60
  %v145 = vunpack.c.l.b16 %v61
  %v146 = vunpack.c.l.b16 %v62
  %v147 = vunpack.c.l.b16 %v63
  %v148 = vunpack.c.l.b16 %v64
  %v149 = vunpack.c.l.b16 %v65
  %v150 = vunpack.c.l.b16 %v66
  %v151 = vunpack.c.l.b16 %v67
  %v152 = vunpack.c.l.b16 %v68
  %v153 = vunpack.c.l.b16 %v69
  %v154 = vunpack.c.l.b16 %v70
  %v155 = vunpack.c.l.b16 %v71
  %v156 = vunpack.c.l.b16 %v72
  %v157 = vunpack.c.l.b16 %v73
  %v158 = vunpack.c.l.b16 %v74
  %v159 = vunpack.c.l.b16 %v75
  %v160 = vpack.c.b16 %v129, %v128
  %v161 = vpack.c.b16 %v131, %v130
  %v162 = vpack.c.b16 %v133, %v132
  %v163 = vpack.c.b16 %v135, %v134
  %v164 = vpack.c.b16 %v137, %v136
  %v165 = vpack.c.b16 %v139, %v138
  %v166 = vpack.c.b16 %v141, %v140
  %v167 = vpack.c.b16 %v143, %v142
  %v168 = vpack.c.b16 %v145, %v144
  %v169 = vpack.c.b16 %v147, %v146
  %v170 = vpack.c.b16 %v149, %v148
  %v171 = vpack.c.b16 %v151, %v150
  %v172 = vpack.c.b16 %v153, %v152
  %v173 = vpack.c.b16 %v155, %v154
  %v174 = vpack.c.b16 %v157, %v156
  %v175 = vpack.c.b16 %v159, %v158
  %192 = vmatprep.subr.bf16.mxu0 0
  %193 = vmatpush1.bf16.msra.mxu0 %v167
  %194 = vmatprep.subr.bf16.mxu0 0
  %195 = vmatpush1.bf16.msra.mxu0 %v166
  %196 = vmatprep.subr.bf16.mxu0 0
  %197 = vmatpush1.bf16.msra.mxu0 %v165
  %198 = vmatprep.subr.bf16.mxu0 0
  %199 = vmatpush1.bf16.msra.mxu0 %v164
  %200 = vmatprep.subr.bf16.mxu0 0
  %201 = vmatpush1.bf16.msra.mxu0 %v163
  %202 = vmatprep.subr.bf16.mxu0 0
  %203 = vmatpush1.bf16.msra.mxu0 %v162
  %204 = vmatprep.subr.bf16.mxu0 0
  %205 = vmatpush1.bf16.msra.mxu0 %v161
  %206 = vmatprep.subr.bf16.mxu0 0
  %207 = vmatpush1.bf16.msra.mxu0 %v160
  %208 = vmatprep.subr.bf16.mxu0 0
  %209 = vmatpush2.bf16.msra.mxu0 %v175
  %210 = vmatprep.subr.bf16.mxu0 0
  %211 = vmatpush2.bf16.msra.mxu0 %v174
  %212 = vmatprep.subr.bf16.mxu0 0
  %213 = vmatpush2.bf16.msra.mxu0 %v173
  %214 = vmatprep.subr.bf16.mxu0 0
  %215 = vmatpush2.bf16.msra.mxu0 %v172
  %216 = vmatprep.subr.bf16.mxu0 0
  %217 = vmatpush2.bf16.msra.mxu0 %v171
  %218 = vmatprep.subr.bf16.mxu0 0
  %219 = vmatpush2.bf16.msra.mxu0 %v170
  %220 = vmatprep.subr.bf16.mxu0 0
  %221 = vmatpush2.bf16.msra.mxu0 %v169
  %222 = vmatprep.subr.bf16.mxu0 0
  %223 = vmatpush2.bf16.msra.mxu0 %v168
  %224 = vmatprep.mubr.bf16.mxu0 %v89
  %225 = vmatmul.mubr.bf16.gmra.mxu0 %v88
  %v226 = vpop.f32.mrf.mxu0
  %v227 = vadd.f32 0.0, %v226
  %v228 = vpop.f32.mrf.mxu0
  %v229 = vpop.f32.mrf.mxu0
  %v230 = vadd.f32 0.0, %v229
  %v231 = vpop.f32.mrf.mxu0
  %232 = vmatprep.mubr.bf16.mxu0 %v91
  %233 = vmatmul.mubr.bf16.gmra.mxu0 %v90
  %v234 = vpop.f32.mrf.mxu0
  %v235 = vadd.f32 0.0, %v234
  %v236 = vpop.f32.mrf.mxu0
  %v237 = vpop.f32.mrf.mxu0
  %v238 = vadd.f32 0.0, %v237
  %v239 = vpop.f32.mrf.mxu0
  %240 = vdwg.mxu0
  %v241 = vadd.f32 %v40, %v227
  %v242 = vadd.f32 %v41, %v230
  %v243 = vadd.f32 %v42, %v235
  %v244 = vadd.f32 %v43, %v238
  %245 = vst [vmem:[#allocation2] sm:$0xff] %v241
  %246 = vst [vmem:[#allocation2 + $0x8] sm:$0xff] %v242
  %247 = vst [vmem:[#allocation2 + $0x10] sm:$0xff] %v243
  %248 = vst [vmem:[#allocation2 + $0x18] sm:$0xff] %v244
  // Predicated region
  $region18: #{mgan_forward.16} parent=0 // pred_check
    %p249 = pneg %p16
  $region19: #{mgan_forward.16} parent=0 // pred_check_branch
    %251 = sbr.rel (%p249) target = $region21
  $region20: #{mgan_forward.16} parent=0 // pred_region
    %v252 = vld [vmem:[#allocation2] sm:$0xff]
    %v253 = vld [vmem:[#allocation2 + $0x8] sm:$0xff]
    %v254 = vld [vmem:[#allocation2 + $0x10] sm:$0xff]
    %v255 = vld [vmem:[#allocation2 + $0x18] sm:$0xff]
    %v256 = vld [vmem:[%s2] sm:$0x1]
    %v258 = vlaneseq
    %v259 = vshrl.u32 %v258, 7
    %v260 = vsub.s32 0, %v259
    %v261 = vrot.slane %v256, %v260
    %v263 = vadd.f32 %v252, %v261
    %v264 = vadd.f32 %v253, %v261
    %v265 = vadd.f32 %v254, %v261
    %v266 = vadd.f32 %v255, %v261
    %267 = vst [vmem:[%s3] sm:$0xff] %v263
    %268 = vst [vmem:[%s3 + $0x8] sm:$0xff] %v264
    %269 = vst [vmem:[%s3 + $0x10] sm:$0xff] %v265
    %270 = vst [vmem:[%s3 + $0x18] sm:$0xff] %v266
  $region21: #{mgan_forward.16} parent=0 // pred_fallthru
    _
  // Predicated region
  $region22: #{mgan_forward.16} parent=0 // pred_check
    _
  $region23: #{mgan_forward.16} parent=0 // pred_check_branch
    %272 = sbr.rel (0) target = $region25
  $region24: #{mgan_forward.16} parent=0 // pred_region
    _
  $region25: #{mgan_forward.16} parent=0 // pred_fallthru
    _
  // Predicated region
  $region26: #{mgan_forward.16} parent=0 // pred_check
    _
  $region27: #{mgan_forward.16} parent=0 // pred_check_branch
    %274 = sbr.rel (0) target = $region29
  $region28: #{mgan_forward.16} parent=0 // pred_region
    _
  $region29: #{mgan_forward.16} parent=0 // pred_fallthru
    _

// kernel: mgan_forward.17
$region0: #{mgan_forward.17}
  #allocation0 [shape = 'u32[]', space=smem, size = 0x4, offset = 0x4, fixed_abs, tag = 'smem constant byte address 0x4 - core index']
  #allocation1 [shape = 'u32[144,128]{1,0:T(1,128)}', space=vmem, size = 0x12000, scoped, tag = 'internal scratch']
  #allocation2 [shape = 'f32[16,128]{1,0:T(8,128)}', space=vmem, size = 0x2000, scoped, tag = 'scratch operand']
  %s0 = inlined_call_operand.vmem [shape: bf16[1,16,512], index: 0, kind: input, shape index: {}]
  %s1 = inlined_call_operand.vmem [shape: bf16[1,512,128], index: 1, kind: input, shape index: {}]
  %s2 = inlined_call_operand.vmem [shape: f32[1,1,128], index: 2, kind: input, shape index: {}]
  %s3 = inlined_call_operand.vmem [shape: f32[1,16,128], index: 3, kind: output, shape index: {}]
  %s4 = sld [smem:[#allocation0]]
  $region30: #{mgan_forward.17} parent=0
    _
  %s6 = ssub.s32 1, %s4
  %s7 = scalar_select 0, %s6, %s4
  // Predicated region
  $region2: #{mgan_forward.17} parent=0 // pred_check
    _
  $region3: #{mgan_forward.17} parent=0 // pred_check_branch
    %9 = sbr.rel (0) target = $region5
  $region4: #{mgan_forward.17} parent=0 // pred_region
    _
  $region5: #{mgan_forward.17} parent=0 // pred_fallthru
    _
  // Predicated region
  $region6: #{mgan_forward.17} parent=0 // pred_check
    _
  $region7: #{mgan_forward.17} parent=0 // pred_check_branch
    %11 = sbr.rel (0) target = $region9
  $region8: #{mgan_forward.17} parent=0 // pred_region
    _
  $region9: #{mgan_forward.17} parent=0 // pred_fallthru
    _
  // Predicated region
  $region10: #{mgan_forward.17} parent=0 // pred_check
    _
  $region11: #{mgan_forward.17} parent=0 // pred_check_branch
    %13 = sbr.rel (0) target = $region13
  $region12: #{mgan_forward.17} parent=0 // pred_region
    _
  $region13: #{mgan_forward.17} parent=0 // pred_fallthru
    _
  %p16 = scmp.eq.s32.totalorder 0, 0
  // Predicated region
  $region14: #{mgan_forward.17} parent=0 // pred_check
    %p17 = pneg %p16
  $region15: #{mgan_forward.17} parent=0 // pred_check_branch
    %19 = sbr.rel (%p17) target = $region17
  $region16: #{mgan_forward.17} parent=0 // pred_region
    %20 = vst [vmem:[#allocation2] sm:$0xff] 0.0
    %21 = vst [vmem:[#allocation2 + $0x8] sm:$0xff] 0.0
  $region17: #{mgan_forward.17} parent=0 // pred_fallthru
    _
  %v22 = vld [vmem:[%s0] sm:$0xff]
  %v23 = vld [vmem:[%s0 + $0x8] sm:$0xff]
  %v24 = vld [vmem:[%s0 + $0x10] sm:$0xff]
  %v25 = vld [vmem:[%s0 + $0x18] sm:$0xff]
  %vm26 = vcmp.ge.bf16.partialorder %v22, 0
  %vm27 = vcmp.ge.bf16.partialorder %v23, 0
  %vm28 = vcmp.ge.bf16.partialorder %v24, 0
  %vm29 = vcmp.ge.bf16.partialorder %v25, 0
  %v30 = vmul.bf16 %v22, 1045249613
  %v31 = vmul.bf16 %v23, 1045249613
  %v32 = vmul.bf16 %v24, 1045249613
  %v33 = vmul.bf16 %v25, 1045249613
  %v34 = vsel %vm26, %v22, %v30
  %v35 = vsel %vm27, %v23, %v31
  %v36 = vsel %vm28, %v24, %v32
  %v37 = vsel %vm29, %v25, %v33
  %v38 = vld [vmem:[#allocation2] sm:$0xff]
  %v39 = vld [vmem:[#allocation2 + $0x8] sm:$0xff]
  %v40 = vld [vmem:[%s1] sm:$0xf]
  %v41 = vld [vmem:[%s1 + $0x4] sm:$0xf]
  %v42 = vld [vmem:[%s1 + $0x8] sm:$0xf]
  %v43 = vld [vmem:[%s1 + $0xc] sm:$0xf]
  %v44 = vld [vmem:[%s1 + $0x10] sm:$0xf]
  %v45 = vld [vmem:[%s1 + $0x14] sm:$0xf]
  %v46 = vld [vmem:[%s1 + $0x18] sm:$0xf]
  %v47 = vld [vmem:[%s1 + $0x1c] sm:$0xf]
  %v48 = vld [vmem:[%s1 + $0x20] sm:$0xf]
  %v49 = vld [vmem:[%s1 + $0x24] sm:$0xf]
  %v50 = vld [vmem:[%s1 + $0x28] sm:$0xf]
  %v51 = vld [vmem:[%s1 + $0x2c] sm:$0xf]
  %v52 = vld [vmem:[%s1 + $0x30] sm:$0xf]
  %v53 = vld [vmem:[%s1 + $0x34] sm:$0xf]
  %v54 = vld [vmem:[%s1 + $0x38] sm:$0xf]
  %v55 = vld [vmem:[%s1 + $0x3c] sm:$0xf]
  %v56 = vld [vmem:[%s1 + $0x40] sm:$0xf]
  %v57 = vld [vmem:[%s1 + $0x44] sm:$0xf]
  %v58 = vld [vmem:[%s1 + $0x48] sm:$0xf]
  %v59 = vld [vmem:[%s1 + $0x4c] sm:$0xf]
  %v60 = vld [vmem:[%s1 + $0x50] sm:$0xf]
  %v61 = vld [vmem:[%s1 + $0x54] sm:$0xf]
  %v62 = vld [vmem:[%s1 + $0x58] sm:$0xf]
  %v63 = vld [vmem:[%s1 + $0x5c] sm:$0xf]
  %v64 = vld [vmem:[%s1 + $0x60] sm:$0xf]
  %v65 = vld [vmem:[%s1 + $0x64] sm:$0xf]
  %v66 = vld [vmem:[%s1 + $0x68] sm:$0xf]
  %v67 = vld [vmem:[%s1 + $0x6c] sm:$0xf]
  %v68 = vld [vmem:[%s1 + $0x70] sm:$0xf]
  %v69 = vld [vmem:[%s1 + $0x74] sm:$0xf]
  %v70 = vld [vmem:[%s1 + $0x78] sm:$0xf]
  %v71 = vld [vmem:[%s1 + $0x7c] sm:$0xf]
  %v72 = vld [vmem:[%s1 + $0x80] sm:$0xf]
  %v73 = vld [vmem:[%s1 + $0x84] sm:$0xf]
  %v74 = vld [vmem:[%s1 + $0x88] sm:$0xf]
  %v75 = vld [vmem:[%s1 + $0x8c] sm:$0xf]
  %v76 = vld [vmem:[%s1 + $0x90] sm:$0xf]
  %v77 = vld [vmem:[%s1 + $0x94] sm:$0xf]
  %v78 = vld [vmem:[%s1 + $0x98] sm:$0xf]
  %v79 = vld [vmem:[%s1 + $0x9c] sm:$0xf]
  %v80 = vld [vmem:[%s1 + $0xa0] sm:$0xf]
  %v81 = vld [vmem:[%s1 + $0xa4] sm:$0xf]
  %v82 = vld [vmem:[%s1 + $0xa8] sm:$0xf]
  %v83 = vld [vmem:[%s1 + $0xac] sm:$0xf]
  %v84 = vld [vmem:[%s1 + $0xb0] sm:$0xf]
  %v85 = vld [vmem:[%s1 + $0xb4] sm:$0xf]
  %v86 = vld [vmem:[%s1 + $0xb8] sm:$0xf]
  %v87 = vld [vmem:[%s1 + $0xbc] sm:$0xf]
  %v88 = vld [vmem:[%s1 + $0xc0] sm:$0xf]
  %v89 = vld [vmem:[%s1 + $0xc4] sm:$0xf]
  %v90 = vld [vmem:[%s1 + $0xc8] sm:$0xf]
  %v91 = vld [vmem:[%s1 + $0xcc] sm:$0xf]
  %v92 = vld [vmem:[%s1 + $0xd0] sm:$0xf]
  %v93 = vld [vmem:[%s1 + $0xd4] sm:$0xf]
  %v94 = vld [vmem:[%s1 + $0xd8] sm:$0xf]
  %v95 = vld [vmem:[%s1 + $0xdc] sm:$0xf]
  %v96 = vld [vmem:[%s1 + $0xe0] sm:$0xf]
  %v97 = vld [vmem:[%s1 + $0xe4] sm:$0xf]
  %v98 = vld [vmem:[%s1 + $0xe8] sm:$0xf]
  %v99 = vld [vmem:[%s1 + $0xec] sm:$0xf]
  %v100 = vld [vmem:[%s1 + $0xf0] sm:$0xf]
  %v101 = vld [vmem:[%s1 + $0xf4] sm:$0xf]
  %v102 = vld [vmem:[%s1 + $0xf8] sm:$0xf]
  %v103 = vld [vmem:[%s1 + $0xfc] sm:$0xf]
  %v108 = vunpack.c.l.b16 %v34
  %v109 = vunpack.c.h.b16 %v34
  %v110 = vunpack.c.l.b16 %v35
  %v111 = vunpack.c.h.b16 %v35
  %v112 = vunpack.c.l.b16 %v36
  %v113 = vunpack.c.h.b16 %v36
  %v114 = vunpack.c.l.b16 %v37
  %v115 = vunpack.c.h.b16 %v37
  %v116 = vpack.c.b16 %v112, %v108
  %v117 = vpack.c.b16 %v113, %v109
  %v118 = vpack.c.b16 %v114, %v110
  %v119 = vpack.c.b16 %v115, %v111
  %v188 = vunpack.c.l.b16 %v40
  %v189 = vunpack.c.l.b16 %v41
  %v190 = vunpack.c.l.b16 %v42
  %v191 = vunpack.c.l.b16 %v43
  %v192 = vunpack.c.l.b16 %v44
  %v193 = vunpack.c.l.b16 %v45
  %v194 = vunpack.c.l.b16 %v46
  %v195 = vunpack.c.l.b16 %v47
  %v196 = vunpack.c.l.b16 %v48
  %v197 = vunpack.c.l.b16 %v49
  %v198 = vunpack.c.l.b16 %v50
  %v199 = vunpack.c.l.b16 %v51
  %v200 = vunpack.c.l.b16 %v52
  %v201 = vunpack.c.l.b16 %v53
  %v202 = vunpack.c.l.b16 %v54
  %v203 = vunpack.c.l.b16 %v55
  %v204 = vunpack.c.l.b16 %v56
  %v205 = vunpack.c.l.b16 %v57
  %v206 = vunpack.c.l.b16 %v58
  %v207 = vunpack.c.l.b16 %v59
  %v208 = vunpack.c.l.b16 %v60
  %v209 = vunpack.c.l.b16 %v61
  %v210 = vunpack.c.l.b16 %v62
  %v211 = vunpack.c.l.b16 %v63
  %v212 = vunpack.c.l.b16 %v64
  %v213 = vunpack.c.l.b16 %v65
  %v214 = vunpack.c.l.b16 %v66
  %v215 = vunpack.c.l.b16 %v67
  %v216 = vunpack.c.l.b16 %v68
  %v217 = vunpack.c.l.b16 %v69
  %v218 = vunpack.c.l.b16 %v70
  %v219 = vunpack.c.l.b16 %v71
  %v220 = vunpack.c.l.b16 %v72
  %v221 = vunpack.c.l.b16 %v73
  %v222 = vunpack.c.l.b16 %v74
  %v223 = vunpack.c.l.b16 %v75
  %v224 = vunpack.c.l.b16 %v76
  %v225 = vunpack.c.l.b16 %v77
  %v226 = vunpack.c.l.b16 %v78
  %v227 = vunpack.c.l.b16 %v79
  %v228 = vunpack.c.l.b16 %v80
  %v229 = vunpack.c.l.b16 %v81
  %v230 = vunpack.c.l.b16 %v82
  %v231 = vunpack.c.l.b16 %v83
  %v232 = vunpack.c.l.b16 %v84
  %v233 = vunpack.c.l.b16 %v85
  %v234 = vunpack.c.l.b16 %v86
  %v235 = vunpack.c.l.b16 %v87
  %v236 = vunpack.c.l.b16 %v88
  %v237 = vunpack.c.l.b16 %v89
  %v238 = vunpack.c.l.b16 %v90
  %v239 = vunpack.c.l.b16 %v91
  %v240 = vunpack.c.l.b16 %v92
  %v241 = vunpack.c.l.b16 %v93
  %v242 = vunpack.c.l.b16 %v94
  %v243 = vunpack.c.l.b16 %v95
  %v244 = vunpack.c.l.b16 %v96
  %v245 = vunpack.c.l.b16 %v97
  %v246 = vunpack.c.l.b16 %v98
  %v247 = vunpack.c.l.b16 %v99
  %v248 = vunpack.c.l.b16 %v100
  %v249 = vunpack.c.l.b16 %v101
  %v250 = vunpack.c.l.b16 %v102
  %v251 = vunpack.c.l.b16 %v103
  %v252 = vpack.c.b16 %v189, %v188
  %v253 = vpack.c.b16 %v191, %v190
  %v254 = vpack.c.b16 %v193, %v192
  %v255 = vpack.c.b16 %v195, %v194
  %v256 = vpack.c.b16 %v197, %v196
  %v257 = vpack.c.b16 %v199, %v198
  %v258 = vpack.c.b16 %v201, %v200
  %v259 = vpack.c.b16 %v203, %v202
  %v260 = vpack.c.b16 %v205, %v204
  %v261 = vpack.c.b16 %v207, %v206
  %v262 = vpack.c.b16 %v209, %v208
  %v263 = vpack.c.b16 %v211, %v210
  %v264 = vpack.c.b16 %v213, %v212
  %v265 = vpack.c.b16 %v215, %v214
  %v266 = vpack.c.b16 %v217, %v216
  %v267 = vpack.c.b16 %v219, %v218
  %v268 = vpack.c.b16 %v221, %v220
  %v269 = vpack.c.b16 %v223, %v222
  %v270 = vpack.c.b16 %v225, %v224
  %v271 = vpack.c.b16 %v227, %v226
  %v272 = vpack.c.b16 %v229, %v228
  %v273 = vpack.c.b16 %v231, %v230
  %v274 = vpack.c.b16 %v233, %v232
  %v275 = vpack.c.b16 %v235, %v234
  %v276 = vpack.c.b16 %v237, %v236
  %v277 = vpack.c.b16 %v239, %v238
  %v278 = vpack.c.b16 %v241, %v240
  %v279 = vpack.c.b16 %v243, %v242
  %v280 = vpack.c.b16 %v245, %v244
  %v281 = vpack.c.b16 %v247, %v246
  %v282 = vpack.c.b16 %v249, %v248
  %v283 = vpack.c.b16 %v251, %v250
  %316 = vmatprep.subr.bf16.mxu0 0
  %317 = vmatpush1.bf16.msra.mxu0 %v259
  %318 = vmatprep.subr.bf16.mxu0 0
  %319 = vmatpush1.bf16.msra.mxu0 %v258
  %320 = vmatprep.subr.bf16.mxu0 0
  %321 = vmatpush1.bf16.msra.mxu0 %v257
  %322 = vmatprep.subr.bf16.mxu0 0
  %323 = vmatpush1.bf16.msra.mxu0 %v256
  %324 = vmatprep.subr.bf16.mxu0 0
  %325 = vmatpush1.bf16.msra.mxu0 %v255
  %326 = vmatprep.subr.bf16.mxu0 0
  %327 = vmatpush1.bf16.msra.mxu0 %v254
  %328 = vmatprep.subr.bf16.mxu0 0
  %329 = vmatpush1.bf16.msra.mxu0 %v253
  %330 = vmatprep.subr.bf16.mxu0 0
  %331 = vmatpush1.bf16.msra.mxu0 %v252
  %332 = vmatprep.subr.bf16.mxu0 0
  %333 = vmatpush2.bf16.msra.mxu0 %v267
  %334 = vmatprep.subr.bf16.mxu0 0
  %335 = vmatpush2.bf16.msra.mxu0 %v266
  %336 = vmatprep.subr.bf16.mxu0 0
  %337 = vmatpush2.bf16.msra.mxu0 %v265
  %338 = vmatprep.subr.bf16.mxu0 0
  %339 = vmatpush2.bf16.msra.mxu0 %v264
  %340 = vmatprep.subr.bf16.mxu0 0
  %341 = vmatpush2.bf16.msra.mxu0 %v263
  %342 = vmatprep.subr.bf16.mxu0 0
  %343 = vmatpush2.bf16.msra.mxu0 %v262
  %344 = vmatprep.subr.bf16.mxu0 0
  %345 = vmatpush2.bf16.msra.mxu0 %v261
  %346 = vmatprep.subr.bf16.mxu0 0
  %347 = vmatpush2.bf16.msra.mxu0 %v260
  %348 = vmatprep.mubr.bf16.mxu0 %v117
  %349 = vmatmul.mubr.bf16.gmra.mxu0 %v116
  %v350 = vpop.f32.mrf.mxu0
  %v351 = vadd.f32 0.0, %v350
  %v352 = vpop.f32.mrf.mxu0
  %v353 = vpop.f32.mrf.mxu0
  %v354 = vadd.f32 0.0, %v353
  %v355 = vpop.f32.mrf.mxu0
  %356 = vdwg.mxu0
  %357 = vmatprep.subr.bf16.mxu0 0
  %358 = vmatpush1.bf16.msra.mxu0 %v275
  %359 = vmatprep.subr.bf16.mxu0 0
  %360 = vmatpush1.bf16.msra.mxu0 %v274
  %361 = vmatprep.subr.bf16.mxu0 0
  %362 = vmatpush1.bf16.msra.mxu0 %v273
  %363 = vmatprep.subr.bf16.mxu0 0
  %364 = vmatpush1.bf16.msra.mxu0 %v272
  %365 = vmatprep.subr.bf16.mxu0 0
  %366 = vmatpush1.bf16.msra.mxu0 %v271
  %367 = vmatprep.subr.bf16.mxu0 0
  %368 = vmatpush1.bf16.msra.mxu0 %v270
  %369 = vmatprep.subr.bf16.mxu0 0
  %370 = vmatpush1.bf16.msra.mxu0 %v269
  %371 = vmatprep.subr.bf16.mxu0 0
  %372 = vmatpush1.bf16.msra.mxu0 %v268
  %373 = vmatprep.subr.bf16.mxu0 0
  %374 = vmatpush2.bf16.msra.mxu0 %v283
  %375 = vmatprep.subr.bf16.mxu0 0
  %376 = vmatpush2.bf16.msra.mxu0 %v282
  %377 = vmatprep.subr.bf16.mxu0 0
  %378 = vmatpush2.bf16.msra.mxu0 %v281
  %379 = vmatprep.subr.bf16.mxu0 0
  %380 = vmatpush2.bf16.msra.mxu0 %v280
  %381 = vmatprep.subr.bf16.mxu0 0
  %382 = vmatpush2.bf16.msra.mxu0 %v279
  %383 = vmatprep.subr.bf16.mxu0 0
  %384 = vmatpush2.bf16.msra.mxu0 %v278
  %385 = vmatprep.subr.bf16.mxu0 0
  %386 = vmatpush2.bf16.msra.mxu0 %v277
  %387 = vmatprep.subr.bf16.mxu0 0
  %388 = vmatpush2.bf16.msra.mxu0 %v276
  %389 = vmatprep.mubr.bf16.mxu0 %v119
  %390 = vmatmul.mubr.bf16.gmra.mxu0 %v118
  %v391 = vpop.f32.mrf.mxu0
  %v392 = vadd.f32 %v351, %v391
  %v393 = vpop.f32.mrf.mxu0
  %v394 = vpop.f32.mrf.mxu0
  %v395 = vadd.f32 %v354, %v394
  %v396 = vpop.f32.mrf.mxu0
  %397 = vdwg.mxu0
  %v398 = vadd.f32 %v38, %v392
  %v399 = vadd.f32 %v39, %v395
  %400 = vst [vmem:[#allocation2] sm:$0xff] %v398
  %401 = vst [vmem:[#allocation2 + $0x8] sm:$0xff] %v399
  // Predicated region
  $region18: #{mgan_forward.17} parent=0 // pred_check
    %p402 = pneg %p16
  $region19: #{mgan_forward.17} parent=0 // pred_check_branch
    %404 = sbr.rel (%p402) target = $region21
  $region20: #{mgan_forward.17} parent=0 // pred_region
    %v405 = vld [vmem:[#allocation2] sm:$0xff]
    %v406 = vld [vmem:[#allocation2 + $0x8] sm:$0xff]
    %v407 = vld [vmem:[%s2] sm:$0x1]
    %v409 = vlaneseq
    %v410 = vshrl.u32 %v409, 7
    %v411 = vsub.s32 0, %v410
    %v412 = vrot.slane %v407, %v411
    %v414 = vadd.f32 %v405, %v412
    %v415 = vadd.f32 %v406, %v412
    %416 = vst [vmem:[%s3] sm:$0xff] %v414
    %417 = vst [vmem:[%s3 + $0x8] sm:$0xff] %v415
  $region21: #{mgan_forward.17} parent=0 // pred_fallthru
    _
  // Predicated region
  $region22: #{mgan_forward.17} parent=0 // pred_check
    _
  $region23: #{mgan_forward.17} parent=0 // pred_check_branch
    %419 = sbr.rel (0) target = $region25
  $region24: #{mgan_forward.17} parent=0 // pred_region
    _
  $region25: #{mgan_forward.17} parent=0 // pred_fallthru
    _
  // Predicated region
  $region26: #{mgan_forward.17} parent=0 // pred_check
    _
  $region27: #{mgan_forward.17} parent=0 // pred_check_branch
    %421 = sbr.rel (0) target = $region29
  $region28: #{mgan_forward.17} parent=0 // pred_region
    _
  $region29: #{mgan_forward.17} parent=0 // pred_fallthru
    _

// kernel: mgan_forward.18
$region0: #{mgan_forward.18}
  #allocation0 [shape = 'u32[]', space=smem, size = 0x4, offset = 0x4, fixed_abs, tag = 'smem constant byte address 0x4 - core index']
  #allocation1 [shape = 'u32[144,128]{1,0:T(1,128)}', space=vmem, size = 0x12000, scoped, tag = 'internal scratch']
  #allocation2 [shape = 'f32[16,128]{1,0:T(8,128)}', space=vmem, size = 0x2000, scoped, tag = 'scratch operand']
  %s0 = inlined_call_operand.vmem [shape: bf16[1,16,1024], index: 0, kind: input, shape index: {}]
  %s1 = inlined_call_operand.vmem [shape: bf16[1,1024,128], index: 1, kind: input, shape index: {}]
  %s2 = inlined_call_operand.vmem [shape: f32[1,1,128], index: 2, kind: input, shape index: {}]
  %s3 = inlined_call_operand.vmem [shape: f32[1,16,128], index: 3, kind: output, shape index: {}]
  %s4 = sld [smem:[#allocation0]]
  $region76: #{mgan_forward.18} parent=0
    _
  %s6 = ssub.s32 1, %s4
  %s7 = scalar_select 0, %s6, %s4
  $region1: #{mgan_forward.18} parent=0
    #allocation3 [shape = 'u8[32768]{0}', space=vmem, size = 0x8000, scoped, tag = 'input window, operand 0']
    loop: start=0, step=1, limit=4
    $region2: #{mgan_forward.18} parent=1 // loop_pre_header
      _
    $region3: #{mgan_forward.18} parent=1 // loop_header
      %s9 = sphi 0, %s13
      %p10 = scmp.ge.s32.totalorder %s9, 4
      %s16 = sphi 0, %s42
      %s17 = sphi 0, %s38
      %s18 = sphi 0, %s34
      %s19 = sphi 0, %s30
      %s20 = sphi 0, %s16
      %s21 = sphi 0, %s17
      %s22 = sphi 0, %s18
      %s23 = sphi 0, %s19
      %s24 = sphi 0, %s20
      %s25 = sphi 0, %s21
      %s26 = sphi 0, %s22
      %s27 = sphi 0, %s23
      %s49 = sphi 0, %s51
      %s52 = sphi 0, %s49
      %s53 = sphi 0, %s52
      %s69 = sphi 0, %s53
      %s79 = sphi 0, %s81
      %s82 = sphi 0, %s79
      %s83 = sphi 0, %s82
      %s99 = sphi 0, %s83
      %s107 = sphi 0, %s109
      %s110 = sphi 0, %s107
      %s111 = sphi 0, %s110
      %s127 = sphi 0, %s111
      %s137 = sphi 0, %s139
      %s140 = sphi 0, %s137
      %s141 = sphi 0, %s140
      %s157 = sphi 0, %s141
    $region4: #{mgan_forward.18} parent=1 // loop_header_branch
      %12 = sbr.rel (%p10) target = $region8
    $region5: #{mgan_forward.18} parent=1 // loop_body
      %s14 = ssub.s32 %s9, 1
      %s15 = ssub.s32 %s9, 2
      %s28 = sadd.s32 1, %s19
      %p29 = scmp.ge.s32.totalorder %s28, 2
      %s30 = scalar_select %p29, 0, %s28
      %s31 = sadd.s32 1, %s18
      %s32 = scalar_select %p29, %s31, %s18
      %p33 = scmp.ge.s32.totalorder %s32, 1
      %s34 = scalar_select %p33, 0, %s32
      %s35 = sadd.s32 1, %s17
      %s36 = scalar_select %p33, %s35, %s17
      %p37 = scmp.ge.s32.totalorder %s36, 1
      %s38 = scalar_select %p37, 0, %s36
      %s39 = sadd.s32 1, %s16
      %s40 = scalar_select %p37, %s39, %s16
      %p41 = scmp.ge.s32.totalorder %s40, 1
      %s42 = scalar_select %p41, 0, %s40
      %s43 = ssub.s32 %s16, %s42
      %s44 = ssub.s32 %s17, %s38
      %s45 = sor.u32 %s43, %s44
      %s46 = ssub.s32 %s19, %s30
      %s47 = sor.u32 %s45, %s46
      %p48 = scmp.eq.s32.totalorder %s47, 0
      %s50 = sadd.s32 %s49, 1
      %s51 = scalar_select %p48, %s49, %s50
      %p54 = pneg %p48
      %p55 = scmp.eq.s32.totalorder %s9, 1
      %p56 = por %p54, %p55
      %p57 = scmp.ne.s32.totalorder %s49, %s52
      %p58 = scmp.eq.s32.totalorder %s9, 0
      %p59 = por %p57, %p58
      %p60 = scmp.ne.s32.totalorder %s49, %s52
      %p61 = scmp.eq.s32.totalorder %s14, 1
      %p62 = por %p60, %p61
      %p63 = scmp.ne.s32.totalorder %s52, %s53
      %p64 = scmp.eq.s32.totalorder %s14, 0
      %p65 = por %p63, %p64
      %p66 = scmp.ne.s32.totalorder %s52, %s53
      %p67 = scmp.eq.s32.totalorder %s15, 1
      %p68 = por %p66, %p67
      %p70 = scmp.ne.s32.totalorder %s53, %s69
      %p71 = scmp.eq.s32.totalorder %s15, 0
      %p72 = por %p70, %p71
      %s73 = ssub.s32 %s16, %s42
      %s74 = ssub.s32 %s19, %s30
      %s75 = sor.u32 %s73, %s74
      %s76 = ssub.s32 %s18, %s34
      %s77 = sor.u32 %s75, %s76
      %p78 = scmp.eq.s32.totalorder %s77, 0
      %s80 = sadd.s32 %s79, 1
      %s81 = scalar_select %p78, %s79, %s80
      %p84 = pneg %p78
      %p85 = scmp.eq.s32.totalorder %s9, 1
      %p86 = por %p84, %p85
      %p87 = scmp.ne.s32.totalorder %s79, %s82
      %p88 = scmp.eq.s32.totalorder %s9, 0
      %p89 = por %p87, %p88
      %p90 = scmp.ne.s32.totalorder %s79, %s82
      %p91 = scmp.eq.s32.totalorder %s14, 1
      %p92 = por %p90, %p91
      %p93 = scmp.ne.s32.totalorder %s82, %s83
      %p94 = scmp.eq.s32.totalorder %s14, 0
      %p95 = por %p93, %p94
      %p96 = scmp.ne.s32.totalorder %s82, %s83
      %p97 = scmp.eq.s32.totalorder %s15, 1
      %p98 = por %p96, %p97
      %p100 = scmp.ne.s32.totalorder %s83, %s99
      %p101 = scmp.eq.s32.totalorder %s15, 0
      %p102 = por %p100, %p101
      %s103 = ssub.s32 %s16, %s42
      %s104 = ssub.s32 %s18, %s34
      %s105 = sor.u32 %s103, %s104
      %p106 = scmp.eq.s32.totalorder %s105, 0
      %s108 = sadd.s32 %s107, 1
      %s109 = scalar_select %p106, %s107, %s108
      %p112 = pneg %p106
      %p113 = scmp.eq.s32.totalorder %s9, 1
      %p114 = por %p112, %p113
      %p115 = scmp.ne.s32.totalorder %s107, %s110
      %p116 = scmp.eq.s32.totalorder %s9, 0
      %p117 = por %p115, %p116
      %p118 = scmp.ne.s32.totalorder %s107, %s110
      %p119 = scmp.eq.s32.totalorder %s14, 1
      %p120 = por %p118, %p119
      %p121 = scmp.ne.s32.totalorder %s110, %s111
      %p122 = scmp.eq.s32.totalorder %s14, 0
      %p123 = por %p121, %p122
      %p124 = scmp.ne.s32.totalorder %s110, %s111
      %p125 = scmp.eq.s32.totalorder %s15, 1
      %p126 = por %p124, %p125
      %p128 = scmp.ne.s32.totalorder %s111, %s127
      %p129 = scmp.eq.s32.totalorder %s15, 0
      %p130 = por %p128, %p129
      %s131 = ssub.s32 %s16, %s42
      %s132 = ssub.s32 %s17, %s38
      %s133 = sor.u32 %s131, %s132
      %s134 = ssub.s32 %s18, %s34
      %s135 = sor.u32 %s133, %s134
      %p136 = scmp.eq.s32.totalorder %s135, 0
      %s138 = sadd.s32 %s137, 1
      %s139 = scalar_select %p136, %s137, %s138
      %p142 = pneg %p136
      %p143 = scmp.eq.s32.totalorder %s9, 1
      %p144 = por %p142, %p143
      %p145 = scmp.ne.s32.totalorder %s137, %s140
      %p146 = scmp.eq.s32.totalorder %s9, 0
      %p147 = por %p145, %p146
      %p148 = scmp.ne.s32.totalorder %s137, %s140
      %p149 = scmp.eq.s32.totalorder %s14, 1
      %p150 = por %p148, %p149
      %p151 = scmp.ne.s32.totalorder %s140, %s141
      %p152 = scmp.eq.s32.totalorder %s14, 0
      %p153 = por %p151, %p152
      %p154 = scmp.ne.s32.totalorder %s140, %s141
      %p155 = scmp.eq.s32.totalorder %s15, 1
      %p156 = por %p154, %p155
      %p158 = scmp.ne.s32.totalorder %s141, %s157
      %p159 = scmp.eq.s32.totalorder %s15, 0
      %p160 = por %p158, %p159
      %p161 = scmp.le.s32.totalorder 1, %s9
      %p162 = scmp.lt.s32.totalorder %s9, 3
      %p163 = pnand %p161, %p162
      %p164 = pneg %p163
      // Predicated region
      $region9: #{mgan_forward.18} parent=5 // pred_check
        _
      $region10: #{mgan_forward.18} parent=5 // pred_check_branch
        %166 = sbr.rel (%p163) target = $region12
      $region11: #{mgan_forward.18} parent=5 // pred_region
        %s167 = ssub.s32 %s9, 1
        // Predicated region
        $region13: #{mgan_forward.18} parent=11 // pred_check
          %p168 = pneg %p123
        $region14: #{mgan_forward.18} parent=11 // pred_check_branch
          %170 = sbr.rel (%p168) target = $region16
        $region15: #{mgan_forward.18} parent=11 // pred_region
          %p171 = scmp.lt.s32.totalorder %s20, 0
          %s172 = scalar_select %p171, %s20, 0
          %p173 = scmp.lt.s32.totalorder %s22, 0
          %s174 = scalar_select %p173, %s22, 0
          %s175 = sadd.s32 %s174, %s172
          %s176 = scalar_lea.vmem %s2, %s175
        $region16: #{mgan_forward.18} parent=11 // pred_fallthru
          _
      $region12: #{mgan_forward.18} parent=5 // pred_fallthru
        _
      %p177 = scmp.lt.s32.totalorder %s9, 2
      // Predicated region
      $region17: #{mgan_forward.18} parent=5 // pred_check
        %p178 = pneg %p177
      $region18: #{mgan_forward.18} parent=5 // pred_check_branch
        %180 = sbr.rel (%p178) target = $region20
      $region19: #{mgan_forward.18} parent=5 // pred_region
        // Predicated region
        $region21: #{mgan_forward.18} parent=19 // pred_check
          %p181 = pneg %p59
        $region22: #{mgan_forward.18} parent=19 // pred_check_branch
          %183 = sbr.rel (%p181) target = $region24
        $region23: #{mgan_forward.18} parent=19 // pred_region
          %s184 = sand.u32 %s49, 1
          %s185 = sand.u32 %s49, 1
          %s186 = smul.addr %s185, 32
          %s187 = scalar_lea.vmem [#allocation3], %s186
          %s188 = smul.u32 2, %s17
          %s189 = smul.u32 4, %s19
          %s190 = smul.addr %s188, 8
          %s191 = sadd.s32 %s189, %s190
          %s192 = smul.addr %s16, 16
          %s193 = sadd.s32 %s191, %s192
          %s194 = smul.addr %s193, 4
          %s195 = scalar_lea.vmem %s0, %s194
          // Predicated region
          $region25: #{mgan_forward.18} parent=23 // pred_check
            _
          $region26: #{mgan_forward.18} parent=23 // pred_check_branch
            %197 = sbr.rel (0) target = $region28
          $region27: #{mgan_forward.18} parent=23 // pred_region
            // Predicated region
            $region29: #{mgan_forward.18} parent=27 // pred_check
              _
            $region30: #{mgan_forward.18} parent=27 // pred_check_branch
              %199 = sbr.rel (0) target = $region32
            $region31: #{mgan_forward.18} parent=27 // pred_region
              loop: start=0, step=1, limit=1
              $region33: #{mgan_forward.18} parent=31 // loop_pre_header
                _
              $region34: #{mgan_forward.18} parent=31 // loop_header
                %s201 = sphi 0, %s205
                %p202 = scmp.ge.s32.totalorder %s201, 1
                %s206 = sphi %s195, %s195
                %s207 = sphi %s187, %s187
              $region35: #{mgan_forward.18} parent=31 // loop_header_branch
                %204 = sbr.rel (%p202) target = $region39
              $region36: #{mgan_forward.18} parent=31 // loop_body
                %v208 = vld [vmem:[%s206] sm:$0xff]
                %209 = vst [vmem:[%s207] sm:$0xff] %v208
                %v210 = vld [vmem:[%s206 + $0x8] sm:$0xff]
                %211 = vst [vmem:[%s207 + $0x8] sm:$0xff] %v210
                %v212 = vld [vmem:[%s206 + $0x20] sm:$0xff]
                %213 = vst [vmem:[%s207 + $0x10] sm:$0xff] %v212
                %v214 = vld [vmem:[%s206 + $0x28] sm:$0xff]
                %215 = vst [vmem:[%s207 + $0x18] sm:$0xff] %v214
              $region37: #{mgan_forward.18} parent=31 // loop_footer
                %s205 = sadd.s32 1, %s201
              $region38: #{mgan_forward.18} parent=31 // loop_footer_branch
                %200 = sbr.rel target = $region34
              $region39: #{mgan_forward.18} parent=31 // loop_exit
                _
            $region32: #{mgan_forward.18} parent=27 // pred_fallthru
              _
            // Predicated region
            $region40: #{mgan_forward.18} parent=27 // pred_check
              _
            $region41: #{mgan_forward.18} parent=27 // pred_check_branch
              %217 = sbr.rel target = $region43
            $region42: #{mgan_forward.18} parent=27 // pred_region
              _
            $region43: #{mgan_forward.18} parent=27 // pred_fallthru
              _
          $region28: #{mgan_forward.18} parent=23 // pred_fallthru
            _
          %218 = vnop
        $region24: #{mgan_forward.18} parent=19 // pred_fallthru
          _
        // Predicated region
        $region44: #{mgan_forward.18} parent=19 // pred_check
          %p219 = pneg %p89
        $region45: #{mgan_forward.18} parent=19 // pred_check_branch
          %221 = sbr.rel (%p219) target = $region47
        $region46: #{mgan_forward.18} parent=19 // pred_region
          %s222 = smul.u32 64, %s19
          %p223 = scmp.lt.s32.totalorder %s16, 0
          %s224 = scalar_select %p223, %s16, 0
          %p225 = scmp.lt.s32.totalorder %s222, 127
          %s226 = scalar_select %p225, %s222, 127
          %p227 = scmp.lt.s32.totalorder %s18, 0
          %s228 = scalar_select %p227, %s18, 0
          %s229 = sadd.s32 %s228, %s226
          %s230 = smul.addr %s224, 128
          %s231 = sadd.s32 %s229, %s230
          %s232 = smul.addr %s231, 4
          %s233 = scalar_lea.vmem %s1, %s232
          %s234 = smul.u32 64, %s19
        $region47: #{mgan_forward.18} parent=19 // pred_fallthru
          _
      $region20: #{mgan_forward.18} parent=5 // pred_fallthru
        _
      %p235 = scmp.le.s32.totalorder 1, %s9
      %p236 = scmp.lt.s32.totalorder %s9, 3
      %p237 = pnand %p235, %p236
      %p238 = pneg %p237
      // Predicated region
      $region48: #{mgan_forward.18} parent=5 // pred_check
        _
      $region49: #{mgan_forward.18} parent=5 // pred_check_branch
        %240 = sbr.rel (%p237) target = $region51
      $region50: #{mgan_forward.18} parent=5 // pred_region
        %s241 = ssub.s32 %s9, 1
        %s242 = sand.u32 %s52, 1
        %s243 = sand.u32 %s52, 1
        %s244 = smul.addr %s243, 32
        %s245 = scalar_lea.vmem [#allocation3], %s244
        // Predicated region
        $region52: #{mgan_forward.18} parent=50 // pred_check
          %p246 = pneg %p65
        $region53: #{mgan_forward.18} parent=50 // pred_check_branch
          %248 = sbr.rel (%p246) target = $region55
        $region54: #{mgan_forward.18} parent=50 // pred_region
          _
        $region55: #{mgan_forward.18} parent=50 // pred_fallthru
          _
        %s249 = sand.u32 %s52, 1
        %s250 = sand.u32 %s52, 1
        %s251 = smul.addr %s250, 32
        %s252 = scalar_lea.vmem [#allocation3], %s251
        %p253 = pneg %p65
        %p254 = pneg %p62
        %s255 = smul.u32 64, %s23
        %p256 = scmp.lt.s32.totalorder %s20, 0
        %s257 = scalar_select %p256, %s20, 0
        %p258 = scmp.lt.s32.totalorder %s255, 127
        %s259 = scalar_select %p258, %s255, 127
        %p260 = scmp.lt.s32.totalorder %s22, 0
        %s261 = scalar_select %p260, %s22, 0
        %s262 = sadd.s32 %s261, %s259
        %s263 = smul.addr %s257, 128
        %s264 = sadd.s32 %s262, %s263
        %s265 = smul.addr %s264, 4
        %s266 = scalar_lea.vmem %s1, %s265
        %p267 = pneg %p95
        %p268 = pneg %p92
        %p269 = scmp.lt.s32.totalorder %s20, 0
        %s270 = scalar_select %p269, %s20, 0
        %p271 = scmp.lt.s32.totalorder %s22, 0
        %s272 = scalar_select %p271, %s22, 0
        %s273 = sadd.s32 %s272, %s270
        %s274 = scalar_lea.vmem %s2, %s273
        %p275 = pneg %p123
        %p276 = pneg %p120
        %p277 = pneg %p153
        %p278 = pneg %p150
        %s279 = smul.u32 2, %s21
        %p280 = scmp.lt.s32.totalorder %s20, 0
        %s281 = scalar_select %p280, %s20, 0
        %p282 = scmp.lt.s32.totalorder %s279, 1
        %s283 = scalar_select %p282, %s279, 1
        %p284 = scmp.lt.s32.totalorder %s22, 0
        %s285 = scalar_select %p284, %s22, 0
        %s286 = sadd.s32 %s285, %s283
        %s287 = smul.addr %s281, 2
        %s288 = sadd.s32 %s286, %s287
        %s289 = smul.addr %s288, 8
        %s290 = scalar_lea.vmem %s3, %s289
        %s291 = smul.u32 2, %s21
        %s292 = smul.u32 4, %s23
        %s293 = smul.u32 64, %s23
        %p294 = scmp.lt.s32.totalorder %s20, 0
        %s295 = scalar_select %p294, %s20, 0
        %p296 = scmp.lt.s32.totalorder %s293, 127
        %s297 = scalar_select %p296, %s293, 127
        %p298 = scmp.lt.s32.totalorder %s22, 0
        %s299 = scalar_select %p298, %s22, 0
        %s300 = sadd.s32 %s299, %s297
        %s301 = smul.addr %s295, 128
        %s302 = sadd.s32 %s300, %s301
        %s303 = smul.addr %s302, 4
        %s304 = scalar_lea.vmem %s1, %s303
        %s305 = smul.u32 64, %s23
        %p306 = scmp.lt.s32.totalorder %s20, 0
        %s307 = scalar_select %p306, %s20, 0
        %p308 = scmp.lt.s32.totalorder %s22, 0
        %s309 = scalar_select %p308, %s22, 0
        %s310 = sadd.s32 %s309, %s307
        %s311 = scalar_lea.vmem %s2, %s310
        %s312 = smul.u32 2, %s21
        %p313 = scmp.lt.s32.totalorder %s20, 0
        %s314 = scalar_select %p313, %s20, 0
        %p315 = scmp.lt.s32.totalorder %s312, 1
        %s316 = scalar_select %p315, %s312, 1
        %p317 = scmp.lt.s32.totalorder %s22, 0
        %s318 = scalar_select %p317, %s22, 0
        %s319 = sadd.s32 %s318, %s316
        %s320 = smul.addr %s314, 2
        %s321 = sadd.s32 %s319, %s320
        %s322 = smul.addr %s321, 8
        %s323 = scalar_lea.vmem %s3, %s322
        %s324 = smul.u32 2, %s21
        %p327 = scmp.eq.s32.totalorder %s23, 0
        // Predicated region
        $region56: #{mgan_forward.18} parent=50 // pred_check
          %p328 = pneg %p327
        $region57: #{mgan_forward.18} parent=50 // pred_check_branch
          %330 = sbr.rel (%p328) target = $region59
        $region58: #{mgan_forward.18} parent=50 // pred_region
          %331 = vst [vmem:[#allocation2] sm:$0xff] 0.0
          %332 = vst [vmem:[#allocation2 + $0x8] sm:$0xff] 0.0
        $region59: #{mgan_forward.18} parent=50 // pred_fallthru
          _
        %v333 = vld [vmem:[%s245] sm:$0xff]
        %v334 = vld [vmem:[%s245 + $0x8] sm:$0xff]
        %v335 = vld [vmem:[%s245 + $0x10] sm:$0xff]
        %v336 = vld [vmem:[%s245 + $0x18] sm:$0xff]
        %vm337 = vcmp.ge.bf16.partialorder %v333, 0
        %vm338 = vcmp.ge.bf16.partialorder %v334, 0
        %vm339 = vcmp.ge.bf16.partialorder %v335, 0
        %vm340 = vcmp.ge.bf16.partialorder %v336, 0
        %v341 = vmul.bf16 %v333, 1045249613
        %v342 = vmul.bf16 %v334, 1045249613
        %v343 = vmul.bf16 %v335, 1045249613
        %v344 = vmul.bf16 %v336, 1045249613
        %v345 = vsel %vm337, %v333, %v341
        %v346 = vsel %vm338, %v334, %v342
        %v347 = vsel %vm339, %v335, %v343
        %v348 = vsel %vm340, %v336, %v344
        %v349 = vld [vmem:[#allocation2] sm:$0xff]
        %v350 = vld [vmem:[#allocation2 + $0x8] sm:$0xff]
        %v351 = vld [vmem:[%s304] sm:$0xf]
        %v352 = vld [vmem:[%s304 + $0x4] sm:$0xf]
        %v353 = vld [vmem:[%s304 + $0x8] sm:$0xf]
        %v354 = vld [vmem:[%s304 + $0xc] sm:$0xf]
        %v355 = vld [vmem:[%s304 + $0x10] sm:$0xf]
        %v356 = vld [vmem:[%s304 + $0x14] sm:$0xf]
        %v357 = vld [vmem:[%s304 + $0x18] sm:$0xf]
        %v358 = vld [vmem:[%s304 + $0x1c] sm:$0xf]
        %v359 = vld [vmem:[%s304 + $0x20] sm:$0xf]
        %v360 = vld [vmem:[%s304 + $0x24] sm:$0xf]
        %v361 = vld [vmem:[%s304 + $0x28] sm:$0xf]
        %v362 = vld [vmem:[%s304 + $0x2c] sm:$0xf]
        %v363 = vld [vmem:[%s304 + $0x30] sm:$0xf]
        %v364 = vld [vmem:[%s304 + $0x34] sm:$0xf]
        %v365 = vld [vmem:[%s304 + $0x38] sm:$0xf]
        %v366 = vld [vmem:[%s304 + $0x3c] sm:$0xf]
        %v367 = vld [vmem:[%s304 + $0x40] sm:$0xf]
        %v368 = vld [vmem:[%s304 + $0x44] sm:$0xf]
        %v369 = vld [vmem:[%s304 + $0x48] sm:$0xf]
        %v370 = vld [vmem:[%s304 + $0x4c] sm:$0xf]
        %v371 = vld [vmem:[%s304 + $0x50] sm:$0xf]
        %v372 = vld [vmem:[%s304 + $0x54] sm:$0xf]
        %v373 = vld [vmem:[%s304 + $0x58] sm:$0xf]
        %v374 = vld [vmem:[%s304 + $0x5c] sm:$0xf]
        %v375 = vld [vmem:[%s304 + $0x60] sm:$0xf]
        %v376 = vld [vmem:[%s304 + $0x64] sm:$0xf]
        %v377 = vld [vmem:[%s304 + $0x68] sm:$0xf]
        %v378 = vld [vmem:[%s304 + $0x6c] sm:$0xf]
        %v379 = vld [vmem:[%s304 + $0x70] sm:$0xf]
        %v380 = vld [vmem:[%s304 + $0x74] sm:$0xf]
        %v381 = vld [vmem:[%s304 + $0x78] sm:$0xf]
        %v382 = vld [vmem:[%s304 + $0x7c] sm:$0xf]
        %v383 = vld [vmem:[%s304 + $0x80] sm:$0xf]
        %v384 = vld [vmem:[%s304 + $0x84] sm:$0xf]
        %v385 = vld [vmem:[%s304 + $0x88] sm:$0xf]
        %v386 = vld [vmem:[%s304 + $0x8c] sm:$0xf]
        %v387 = vld [vmem:[%s304 + $0x90] sm:$0xf]
        %v388 = vld [vmem:[%s304 + $0x94] sm:$0xf]
        %v389 = vld [vmem:[%s304 + $0x98] sm:$0xf]
        %v390 = vld [vmem:[%s304 + $0x9c] sm:$0xf]
        %v391 = vld [vmem:[%s304 + $0xa0] sm:$0xf]
        %v392 = vld [vmem:[%s304 + $0xa4] sm:$0xf]
        %v393 = vld [vmem:[%s304 + $0xa8] sm:$0xf]
        %v394 = vld [vmem:[%s304 + $0xac] sm:$0xf]
        %v395 = vld [vmem:[%s304 + $0xb0] sm:$0xf]
        %v396 = vld [vmem:[%s304 + $0xb4] sm:$0xf]
        %v397 = vld [vmem:[%s304 + $0xb8] sm:$0xf]
        %v398 = vld [vmem:[%s304 + $0xbc] sm:$0xf]
        %v399 = vld [vmem:[%s304 + $0xc0] sm:$0xf]
        %v400 = vld [vmem:[%s304 + $0xc4] sm:$0xf]
        %v401 = vld [vmem:[%s304 + $0xc8] sm:$0xf]
        %v402 = vld [vmem:[%s304 + $0xcc] sm:$0xf]
        %v403 = vld [vmem:[%s304 + $0xd0] sm:$0xf]
        %v404 = vld [vmem:[%s304 + $0xd4] sm:$0xf]
        %v405 = vld [vmem:[%s304 + $0xd8] sm:$0xf]
        %v406 = vld [vmem:[%s304 + $0xdc] sm:$0xf]
        %v407 = vld [vmem:[%s304 + $0xe0] sm:$0xf]
        %v408 = vld [vmem:[%s304 + $0xe4] sm:$0xf]
        %v409 = vld [vmem:[%s304 + $0xe8] sm:$0xf]
        %v410 = vld [vmem:[%s304 + $0xec] sm:$0xf]
        %v411 = vld [vmem:[%s304 + $0xf0] sm:$0xf]
        %v412 = vld [vmem:[%s304 + $0xf4] sm:$0xf]
        %v413 = vld [vmem:[%s304 + $0xf8] sm:$0xf]
        %v414 = vld [vmem:[%s304 + $0xfc] sm:$0xf]
        %v419 = vunpack.c.l.b16 %v345
        %v420 = vunpack.c.h.b16 %v345
        %v421 = vunpack.c.l.b16 %v346
        %v422 = vunpack.c.h.b16 %v346
        %v423 = vunpack.c.l.b16 %v347
        %v424 = vunpack.c.h.b16 %v347
        %v425 = vunpack.c.l.b16 %v348
        %v426 = vunpack.c.h.b16 %v348
        %v427 = vpack.c.b16 %v423, %v419
        %v428 = vpack.c.b16 %v424, %v420
        %v429 = vpack.c.b16 %v425, %v421
        %v430 = vpack.c.b16 %v426, %v422
        %v499 = vunpack.c.l.b16 %v351
        %v500 = vunpack.c.l.b16 %v352
        %v501 = vunpack.c.l.b16 %v353
        %v502 = vunpack.c.l.b16 %v354
        %v503 = vunpack.c.l.b16 %v355
        %v504 = vunpack.c.l.b16 %v356
        %v505 = vunpack.c.l.b16 %v357
        %v506 = vunpack.c.l.b16 %v358
        %v507 = vunpack.c.l.b16 %v359
        %v508 = vunpack.c.l.b16 %v360
        %v509 = vunpack.c.l.b16 %v361
        %v510 = vunpack.c.l.b16 %v362
        %v511 = vunpack.c.l.b16 %v363
        %v512 = vunpack.c.l.b16 %v364
        %v513 = vunpack.c.l.b16 %v365
        %v514 = vunpack.c.l.b16 %v366
        %v515 = vunpack.c.l.b16 %v367
        %v516 = vunpack.c.l.b16 %v368
        %v517 = vunpack.c.l.b16 %v369
        %v518 = vunpack.c.l.b16 %v370
        %v519 = vunpack.c.l.b16 %v371
        %v520 = vunpack.c.l.b16 %v372
        %v521 = vunpack.c.l.b16 %v373
        %v522 = vunpack.c.l.b16 %v374
        %v523 = vunpack.c.l.b16 %v375
        %v524 = vunpack.c.l.b16 %v376
        %v525 = vunpack.c.l.b16 %v377
        %v526 = vunpack.c.l.b16 %v378
        %v527 = vunpack.c.l.b16 %v379
        %v528 = vunpack.c.l.b16 %v380
        %v529 = vunpack.c.l.b16 %v381
        %v530 = vunpack.c.l.b16 %v382
        %v531 = vunpack.c.l.b16 %v383
        %v532 = vunpack.c.l.b16 %v384
        %v533 = vunpack.c.l.b16 %v385
        %v534 = vunpack.c.l.b16 %v386
        %v535 = vunpack.c.l.b16 %v387
        %v536 = vunpack.c.l.b16 %v388
        %v537 = vunpack.c.l.b16 %v389
        %v538 = vunpack.c.l.b16 %v390
        %v539 = vunpack.c.l.b16 %v391
        %v540 = vunpack.c.l.b16 %v392
        %v541 = vunpack.c.l.b16 %v393
        %v542 = vunpack.c.l.b16 %v394
        %v543 = vunpack.c.l.b16 %v395
        %v544 = vunpack.c.l.b16 %v396
        %v545 = vunpack.c.l.b16 %v397
        %v546 = vunpack.c.l.b16 %v398
        %v547 = vunpack.c.l.b16 %v399
        %v548 = vunpack.c.l.b16 %v400
        %v549 = vunpack.c.l.b16 %v401
        %v550 = vunpack.c.l.b16 %v402
        %v551 = vunpack.c.l.b16 %v403
        %v552 = vunpack.c.l.b16 %v404
        %v553 = vunpack.c.l.b16 %v405
        %v554 = vunpack.c.l.b16 %v406
        %v555 = vunpack.c.l.b16 %v407
        %v556 = vunpack.c.l.b16 %v408
        %v557 = vunpack.c.l.b16 %v409
        %v558 = vunpack.c.l.b16 %v410
        %v559 = vunpack.c.l.b16 %v411
        %v560 = vunpack.c.l.b16 %v412
        %v561 = vunpack.c.l.b16 %v413
        %v562 = vunpack.c.l.b16 %v414
        %v563 = vpack.c.b16 %v500, %v499
        %v564 = vpack.c.b16 %v502, %v501
        %v565 = vpack.c.b16 %v504, %v503
        %v566 = vpack.c.b16 %v506, %v505
        %v567 = vpack.c.b16 %v508, %v507
        %v568 = vpack.c.b16 %v510, %v509
        %v569 = vpack.c.b16 %v512, %v511
        %v570 = vpack.c.b16 %v514, %v513
        %v571 = vpack.c.b16 %v516, %v515
        %v572 = vpack.c.b16 %v518, %v517
        %v573 = vpack.c.b16 %v520, %v519
        %v574 = vpack.c.b16 %v522, %v521
        %v575 = vpack.c.b16 %v524, %v523
        %v576 = vpack.c.b16 %v526, %v525
        %v577 = vpack.c.b16 %v528, %v527
        %v578 = vpack.c.b16 %v530, %v529
        %v579 = vpack.c.b16 %v532, %v531
        %v580 = vpack.c.b16 %v534, %v533
        %v581 = vpack.c.b16 %v536, %v535
        %v582 = vpack.c.b16 %v538, %v537
        %v583 = vpack.c.b16 %v540, %v539
        %v584 = vpack.c.b16 %v542, %v541
        %v585 = vpack.c.b16 %v544, %v543
        %v586 = vpack.c.b16 %v546, %v545
        %v587 = vpack.c.b16 %v548, %v547
        %v588 = vpack.c.b16 %v550, %v549
        %v589 = vpack.c.b16 %v552, %v551
        %v590 = vpack.c.b16 %v554, %v553
        %v591 = vpack.c.b16 %v556, %v555
        %v592 = vpack.c.b16 %v558, %v557
        %v593 = vpack.c.b16 %v560, %v559
        %v594 = vpack.c.b16 %v562, %v561
        %627 = vmatprep.subr.bf16.mxu0 0
        %628 = vmatpush1.bf16.msra.mxu0 %v570
        %629 = vmatprep.subr.bf16.mxu0 0
        %630 = vmatpush1.bf16.msra.mxu0 %v569
        %631 = vmatprep.subr.bf16.mxu0 0
        %632 = vmatpush1.bf16.msra.mxu0 %v568
        %633 = vmatprep.subr.bf16.mxu0 0
        %634 = vmatpush1.bf16.msra.mxu0 %v567
        %635 = vmatprep.subr.bf16.mxu0 0
        %636 = vmatpush1.bf16.msra.mxu0 %v566
        %637 = vmatprep.subr.bf16.mxu0 0
        %638 = vmatpush1.bf16.msra.mxu0 %v565
        %639 = vmatprep.subr.bf16.mxu0 0
        %640 = vmatpush1.bf16.msra.mxu0 %v564
        %641 = vmatprep.subr.bf16.mxu0 0
        %642 = vmatpush1.bf16.msra.mxu0 %v563
        %643 = vmatprep.subr.bf16.mxu0 0
        %644 = vmatpush2.bf16.msra.mxu0 %v578
        %645 = vmatprep.subr.bf16.mxu0 0
        %646 = vmatpush2.bf16.msra.mxu0 %v577
        %647 = vmatprep.subr.bf16.mxu0 0
        %648 = vmatpush2.bf16.msra.mxu0 %v576
        %649 = vmatprep.subr.bf16.mxu0 0
        %650 = vmatpush2.bf16.msra.mxu0 %v575
        %651 = vmatprep.subr.bf16.mxu0 0
        %652 = vmatpush2.bf16.msra.mxu0 %v574
        %653 = vmatprep.subr.bf16.mxu0 0
        %654 = vmatpush2.bf16.msra.mxu0 %v573
        %655 = vmatprep.subr.bf16.mxu0 0
        %656 = vmatpush2.bf16.msra.mxu0 %v572
        %657 = vmatprep.subr.bf16.mxu0 0
        %658 = vmatpush2.bf16.msra.mxu0 %v571
        %659 = vmatprep.mubr.bf16.mxu0 %v428
        %660 = vmatmul.mubr.bf16.gmra.mxu0 %v427
        %v661 = vpop.f32.mrf.mxu0
        %v662 = vadd.f32 0.0, %v661
        %v663 = vpop.f32.mrf.mxu0
        %v664 = vpop.f32.mrf.mxu0
        %v665 = vadd.f32 0.0, %v664
        %v666 = vpop.f32.mrf.mxu0
        %667 = vdwg.mxu0
        %668 = vmatprep.subr.bf16.mxu0 0
        %669 = vmatpush1.bf16.msra.mxu0 %v586
        %670 = vmatprep.subr.bf16.mxu0 0
        %671 = vmatpush1.bf16.msra.mxu0 %v585
        %672 = vmatprep.subr.bf16.mxu0 0
        %673 = vmatpush1.bf16.msra.mxu0 %v584
        %674 = vmatprep.subr.bf16.mxu0 0
        %675 = vmatpush1.bf16.msra.mxu0 %v583
        %676 = vmatprep.subr.bf16.mxu0 0
        %677 = vmatpush1.bf16.msra.mxu0 %v582
        %678 = vmatprep.subr.bf16.mxu0 0
        %679 = vmatpush1.bf16.msra.mxu0 %v581
        %680 = vmatprep.subr.bf16.mxu0 0
        %681 = vmatpush1.bf16.msra.mxu0 %v580
        %682 = vmatprep.subr.bf16.mxu0 0
        %683 = vmatpush1.bf16.msra.mxu0 %v579
        %684 = vmatprep.subr.bf16.mxu0 0
        %685 = vmatpush2.bf16.msra.mxu0 %v594
        %686 = vmatprep.subr.bf16.mxu0 0
        %687 = vmatpush2.bf16.msra.mxu0 %v593
        %688 = vmatprep.subr.bf16.mxu0 0
        %689 = vmatpush2.bf16.msra.mxu0 %v592
        %690 = vmatprep.subr.bf16.mxu0 0
        %691 = vmatpush2.bf16.msra.mxu0 %v591
        %692 = vmatprep.subr.bf16.mxu0 0
        %693 = vmatpush2.bf16.msra.mxu0 %v590
        %694 = vmatprep.subr.bf16.mxu0 0
        %695 = vmatpush2.bf16.msra.mxu0 %v589
        %696 = vmatprep.subr.bf16.mxu0 0
        %697 = vmatpush2.bf16.msra.mxu0 %v588
        %698 = vmatprep.subr.bf16.mxu0 0
        %699 = vmatpush2.bf16.msra.mxu0 %v587
        %700 = vmatprep.mubr.bf16.mxu0 %v430
        %701 = vmatmul.mubr.bf16.gmra.mxu0 %v429
        %v702 = vpop.f32.mrf.mxu0
        %v703 = vadd.f32 %v662, %v702
        %v704 = vpop.f32.mrf.mxu0
        %v705 = vpop.f32.mrf.mxu0
        %v706 = vadd.f32 %v665, %v705
        %v707 = vpop.f32.mrf.mxu0
        %708 = vdwg.mxu0
        %v709 = vadd.f32 %v349, %v703
        %v710 = vadd.f32 %v350, %v706
        %711 = vst [vmem:[#allocation2] sm:$0xff] %v709
        %712 = vst [vmem:[#allocation2 + $0x8] sm:$0xff] %v710
        %p713 = scmp.eq.s32.totalorder %s23, 1
        // Predicated region
        $region60: #{mgan_forward.18} parent=50 // pred_check
          %p714 = pneg %p713
        $region61: #{mgan_forward.18} parent=50 // pred_check_branch
          %716 = sbr.rel (%p714) target = $region63
        $region62: #{mgan_forward.18} parent=50 // pred_region
          %v717 = vld [vmem:[#allocation2] sm:$0xff]
          %v718 = vld [vmem:[#allocation2 + $0x8] sm:$0xff]
          %v719 = vld [vmem:[%s311] sm:$0x1]
          %v721 = vlaneseq
          %v722 = vshrl.u32 %v721, 7
          %v723 = vsub.s32 0, %v722
          %v724 = vrot.slane %v719, %v723
          %v726 = vadd.f32 %v717, %v724
          %v727 = vadd.f32 %v718, %v724
          %728 = vst [vmem:[%s323] sm:$0xff] %v726
          %729 = vst [vmem:[%s323 + $0x8] sm:$0xff] %v727
        $region63: #{mgan_forward.18} parent=50 // pred_fallthru
          _
        %s730 = smul.u32 2, %s21
        %p731 = scmp.lt.s32.totalorder %s20, 0
        %s732 = scalar_select %p731, %s20, 0
        %p733 = scmp.lt.s32.totalorder %s730, 1
        %s734 = scalar_select %p733, %s730, 1
        %p735 = scmp.lt.s32.totalorder %s22, 0
        %s736 = scalar_select %p735, %s22, 0
        %s737 = sadd.s32 %s736, %s734
        %s738 = smul.addr %s732, 2
        %s739 = sadd.s32 %s737, %s738
        %s740 = smul.addr %s739, 8
        %s741 = scalar_lea.vmem %s3, %s740
        // Predicated region
        $region64: #{mgan_forward.18} parent=50 // pred_check
          %p742 = pneg %p150
        $region65: #{mgan_forward.18} parent=50 // pred_check_branch
          %744 = sbr.rel (%p742) target = $region67
        $region66: #{mgan_forward.18} parent=50 // pred_region
          %s745 = smul.u32 2, %s21
        $region67: #{mgan_forward.18} parent=50 // pred_fallthru
          _
        // Predicated region
        $region68: #{mgan_forward.18} parent=50 // pred_check
          %p746 = pneg %p150
        $region69: #{mgan_forward.18} parent=50 // pred_check_branch
          %748 = sbr.rel (%p746) target = $region71
        $region70: #{mgan_forward.18} parent=50 // pred_region
          %s749 = smul.u32 2, %s21
          %p750 = scmp.lt.s32.totalorder %s20, 0
          %s751 = scalar_select %p750, %s20, 0
          %p752 = scmp.lt.s32.totalorder %s749, 1
          %s753 = scalar_select %p752, %s749, 1
          %p754 = scmp.lt.s32.totalorder %s22, 0
          %s755 = scalar_select %p754, %s22, 0
          %s756 = sadd.s32 %s755, %s753
          %s757 = smul.addr %s751, 2
          %s758 = sadd.s32 %s756, %s757
          %s759 = smul.addr %s758, 8
          %s760 = scalar_lea.vmem %s3, %s759
        $region71: #{mgan_forward.18} parent=50 // pred_fallthru
          _
      $region51: #{mgan_forward.18} parent=5 // pred_fallthru
        _
      %p761 = scmp.le.s32.totalorder 2, %s9
      // Predicated region
      $region72: #{mgan_forward.18} parent=5 // pred_check
        %p762 = pneg %p761
      $region73: #{mgan_forward.18} parent=5 // pred_check_branch
        %764 = sbr.rel (%p762) target = $region75
      $region74: #{mgan_forward.18} parent=5 // pred_region
        %s765 = ssub.s32 %s9, 2
      $region75: #{mgan_forward.18} parent=5 // pred_fallthru
        _
    $region6: #{mgan_forward.18} parent=1 // loop_footer
      %s13 = sadd.s32 1, %s9
    $region7: #{mgan_forward.18} parent=1 // loop_footer_branch
      %8 = sbr.rel target = $region3
    $region8: #{mgan_forward.18} parent=1 // loop_exit
      _

// kernel: mgan_forward.19
$region0: #{mgan_forward.19}
  #allocation0 [shape = 'u32[]', space=smem, size = 0x4, offset = 0x4, fixed_abs, tag = 'smem constant byte address 0x4 - core index']
  #allocation1 [shape = 'u32[144,128]{1,0:T(1,128)}', space=vmem, size = 0x12000, scoped, tag = 'internal scratch']
  #allocation2 [shape = 'f32[16,128]{1,0:T(8,128)}', space=vmem, size = 0x2000, scoped, tag = 'scratch operand']
  %s0 = inlined_call_operand.vmem [shape: bf16[4,16,256], index: 0, kind: input, shape index: {}]
  %s1 = inlined_call_operand.vmem [shape: bf16[4,256,128], index: 1, kind: input, shape index: {}]
  %s2 = inlined_call_operand.vmem [shape: f32[4,1,128], index: 2, kind: input, shape index: {}]
  %s3 = inlined_call_operand.vmem [shape: f32[4,16,128], index: 3, kind: output, shape index: {}]
  %s4 = sld [smem:[#allocation0]]
  $region53: #{mgan_forward.19} parent=0
    _
  %s6 = ssub.s32 1, %s4
  %s7 = scalar_select 0, %s6, %s4
  loop: start=0, step=1, limit=6
  $region2: #{mgan_forward.19} parent=0 // loop_pre_header
    _
  $region3: #{mgan_forward.19} parent=0 // loop_header
    %s9 = sphi 0, %s13
    %p10 = scmp.ge.s32.totalorder %s9, 6
    %s16 = sphi 0, %s42
    %s17 = sphi 0, %s38
    %s18 = sphi 0, %s34
    %s19 = sphi 0, %s30
    %s20 = sphi 0, %s16
    %s21 = sphi 0, %s17
    %s22 = sphi 0, %s18
    %s23 = sphi 0, %s19
    %s24 = sphi 0, %s20
    %s25 = sphi 0, %s21
    %s26 = sphi 0, %s22
    %s27 = sphi 0, %s23
    %s49 = sphi 0, %s51
    %s52 = sphi 0, %s49
    %s53 = sphi 0, %s52
    %s69 = sphi 0, %s53
    %s79 = sphi 0, %s81
    %s82 = sphi 0, %s79
    %s83 = sphi 0, %s82
    %s99 = sphi 0, %s83
    %s107 = sphi 0, %s109
    %s110 = sphi 0, %s107
    %s111 = sphi 0, %s110
    %s127 = sphi 0, %s111
    %s137 = sphi 0, %s139
    %s140 = sphi 0, %s137
    %s141 = sphi 0, %s140
    %s157 = sphi 0, %s141
  $region4: #{mgan_forward.19} parent=0 // loop_header_branch
    %12 = sbr.rel (%p10) target = $region8
  $region5: #{mgan_forward.19} parent=0 // loop_body
    %s14 = ssub.s32 %s9, 1
    %s15 = ssub.s32 %s9, 2
    %s28 = sadd.s32 1, %s19
    %p29 = scmp.ge.s32.totalorder %s28, 1
    %s30 = scalar_select %p29, 0, %s28
    %s31 = sadd.s32 1, %s18
    %s32 = scalar_select %p29, %s31, %s18
    %p33 = scmp.ge.s32.totalorder %s32, 1
    %s34 = scalar_select %p33, 0, %s32
    %s35 = sadd.s32 1, %s17
    %s36 = scalar_select %p33, %s35, %s17
    %p37 = scmp.ge.s32.totalorder %s36, 1
    %s38 = scalar_select %p37, 0, %s36
    %s39 = sadd.s32 1, %s16
    %s40 = scalar_select %p37, %s39, %s16
    %p41 = scmp.ge.s32.totalorder %s40, 4
    %s42 = scalar_select %p41, 0, %s40
    %s43 = ssub.s32 %s16, %s42
    %s44 = ssub.s32 %s17, %s38
    %s45 = sor.u32 %s43, %s44
    %s46 = ssub.s32 %s19, %s30
    %s47 = sor.u32 %s45, %s46
    %p48 = scmp.eq.s32.totalorder %s47, 0
    %s50 = sadd.s32 %s49, 1
    %s51 = scalar_select %p48, %s49, %s50
    %p54 = pneg %p48
    %p55 = scmp.eq.s32.totalorder %s9, 3
    %p56 = por %p54, %p55
    %p57 = scmp.ne.s32.totalorder %s49, %s52
    %p58 = scmp.eq.s32.totalorder %s9, 0
    %p59 = por %p57, %p58
    %p60 = scmp.ne.s32.totalorder %s49, %s52
    %p61 = scmp.eq.s32.totalorder %s14, 3
    %p62 = por %p60, %p61
    %p63 = scmp.ne.s32.totalorder %s52, %s53
    %p64 = scmp.eq.s32.totalorder %s14, 0
    %p65 = por %p63, %p64
    %p66 = scmp.ne.s32.totalorder %s52, %s53
    %p67 = scmp.eq.s32.totalorder %s15, 3
    %p68 = por %p66, %p67
    %p70 = scmp.ne.s32.totalorder %s53, %s69
    %p71 = scmp.eq.s32.totalorder %s15, 0
    %p72 = por %p70, %p71
    %s73 = ssub.s32 %s16, %s42
    %s74 = ssub.s32 %s19, %s30
    %s75 = sor.u32 %s73, %s74
    %s76 = ssub.s32 %s18, %s34
    %s77 = sor.u32 %s75, %s76
    %p78 = scmp.eq.s32.totalorder %s77, 0
    %s80 = sadd.s32 %s79, 1
    %s81 = scalar_select %p78, %s79, %s80
    %p84 = pneg %p78
    %p85 = scmp.eq.s32.totalorder %s9, 3
    %p86 = por %p84, %p85
    %p87 = scmp.ne.s32.totalorder %s79, %s82
    %p88 = scmp.eq.s32.totalorder %s9, 0
    %p89 = por %p87, %p88
    %p90 = scmp.ne.s32.totalorder %s79, %s82
    %p91 = scmp.eq.s32.totalorder %s14, 3
    %p92 = por %p90, %p91
    %p93 = scmp.ne.s32.totalorder %s82, %s83
    %p94 = scmp.eq.s32.totalorder %s14, 0
    %p95 = por %p93, %p94
    %p96 = scmp.ne.s32.totalorder %s82, %s83
    %p97 = scmp.eq.s32.totalorder %s15, 3
    %p98 = por %p96, %p97
    %p100 = scmp.ne.s32.totalorder %s83, %s99
    %p101 = scmp.eq.s32.totalorder %s15, 0
    %p102 = por %p100, %p101
    %s103 = ssub.s32 %s16, %s42
    %s104 = ssub.s32 %s18, %s34
    %s105 = sor.u32 %s103, %s104
    %p106 = scmp.eq.s32.totalorder %s105, 0
    %s108 = sadd.s32 %s107, 1
    %s109 = scalar_select %p106, %s107, %s108
    %p112 = pneg %p106
    %p113 = scmp.eq.s32.totalorder %s9, 3
    %p114 = por %p112, %p113
    %p115 = scmp.ne.s32.totalorder %s107, %s110
    %p116 = scmp.eq.s32.totalorder %s9, 0
    %p117 = por %p115, %p116
    %p118 = scmp.ne.s32.totalorder %s107, %s110
    %p119 = scmp.eq.s32.totalorder %s14, 3
    %p120 = por %p118, %p119
    %p121 = scmp.ne.s32.totalorder %s110, %s111
    %p122 = scmp.eq.s32.totalorder %s14, 0
    %p123 = por %p121, %p122
    %p124 = scmp.ne.s32.totalorder %s110, %s111
    %p125 = scmp.eq.s32.totalorder %s15, 3
    %p126 = por %p124, %p125
    %p128 = scmp.ne.s32.totalorder %s111, %s127
    %p129 = scmp.eq.s32.totalorder %s15, 0
    %p130 = por %p128, %p129
    %s131 = ssub.s32 %s16, %s42
    %s132 = ssub.s32 %s17, %s38
    %s133 = sor.u32 %s131, %s132
    %s134 = ssub.s32 %s18, %s34
    %s135 = sor.u32 %s133, %s134
    %p136 = scmp.eq.s32.totalorder %s135, 0
    %s138 = sadd.s32 %s137, 1
    %s139 = scalar_select %p136, %s137, %s138
    %p142 = pneg %p136
    %p143 = scmp.eq.s32.totalorder %s9, 3
    %p144 = por %p142, %p143
    %p145 = scmp.ne.s32.totalorder %s137, %s140
    %p146 = scmp.eq.s32.totalorder %s9, 0
    %p147 = por %p145, %p146
    %p148 = scmp.ne.s32.totalorder %s137, %s140
    %p149 = scmp.eq.s32.totalorder %s14, 3
    %p150 = por %p148, %p149
    %p151 = scmp.ne.s32.totalorder %s140, %s141
    %p152 = scmp.eq.s32.totalorder %s14, 0
    %p153 = por %p151, %p152
    %p154 = scmp.ne.s32.totalorder %s140, %s141
    %p155 = scmp.eq.s32.totalorder %s15, 3
    %p156 = por %p154, %p155
    %p158 = scmp.ne.s32.totalorder %s141, %s157
    %p159 = scmp.eq.s32.totalorder %s15, 0
    %p160 = por %p158, %p159
    %p161 = scmp.le.s32.totalorder 1, %s9
    %p162 = scmp.lt.s32.totalorder %s9, 5
    %p163 = pnand %p161, %p162
    %p164 = pneg %p163
    // Predicated region
    $region9: #{mgan_forward.19} parent=5 // pred_check
      _
    $region10: #{mgan_forward.19} parent=5 // pred_check_branch
      %166 = sbr.rel (%p163) target = $region12
    $region11: #{mgan_forward.19} parent=5 // pred_region
      %s167 = ssub.s32 %s9, 1
    $region12: #{mgan_forward.19} parent=5 // pred_fallthru
      _
    %p168 = scmp.lt.s32.totalorder %s9, 4
    // Predicated region
    $region13: #{mgan_forward.19} parent=5 // pred_check
      %p169 = pneg %p168
    $region14: #{mgan_forward.19} parent=5 // pred_check_branch
      %171 = sbr.rel (%p169) target = $region16
    $region15: #{mgan_forward.19} parent=5 // pred_region
      // Predicated region
      $region17: #{mgan_forward.19} parent=15 // pred_check
        %p172 = pneg %p59
      $region18: #{mgan_forward.19} parent=15 // pred_check_branch
        %174 = sbr.rel (%p172) target = $region20
      $region19: #{mgan_forward.19} parent=15 // pred_region
        %s175 = smul.u32 2, %s17
        %s176 = smul.u32 2, %s19
        %p177 = scmp.lt.s32.totalorder %s16, 3
        %s178 = scalar_select %p177, %s16, 3
        %p179 = scmp.lt.s32.totalorder %s175, 1
        %s180 = scalar_select %p179, %s175, 1
        %p181 = scmp.lt.s32.totalorder %s176, 1
        %s182 = scalar_select %p181, %s176, 1
        %s183 = smul.addr %s180, 2
        %s184 = sadd.s32 %s182, %s183
        %s185 = smul.addr %s178, 4
        %s186 = sadd.s32 %s184, %s185
        %s187 = smul.addr %s186, 4
        %s188 = scalar_lea.vmem %s0, %s187
        %s189 = smul.u32 2, %s17
        %s190 = smul.u32 2, %s19
      $region20: #{mgan_forward.19} parent=15 // pred_fallthru
        _
      // Predicated region
      $region21: #{mgan_forward.19} parent=15 // pred_check
        %p191 = pneg %p89
      $region22: #{mgan_forward.19} parent=15 // pred_check_branch
        %193 = sbr.rel (%p191) target = $region24
      $region23: #{mgan_forward.19} parent=15 // pred_region
        %s194 = smul.u32 32, %s19
        %p195 = scmp.lt.s32.totalorder %s16, 3
        %s196 = scalar_select %p195, %s16, 3
        %p197 = scmp.lt.s32.totalorder %s194, 31
        %s198 = scalar_select %p197, %s194, 31
        %p199 = scmp.lt.s32.totalorder %s18, 0
        %s200 = scalar_select %p199, %s18, 0
        %s201 = sadd.s32 %s200, %s198
        %s202 = smul.addr %s196, 32
        %s203 = sadd.s32 %s201, %s202
        %s204 = smul.addr %s203, 4
        %s205 = scalar_lea.vmem %s1, %s204
        %s206 = smul.u32 32, %s19
      $region24: #{mgan_forward.19} parent=15 // pred_fallthru
        _
      // Predicated region
      $region25: #{mgan_forward.19} parent=15 // pred_check
        %p207 = pneg %p117
      $region26: #{mgan_forward.19} parent=15 // pred_check_branch
        %209 = sbr.rel (%p207) target = $region28
      $region27: #{mgan_forward.19} parent=15 // pred_region
        %p210 = scmp.lt.s32.totalorder %s16, 3
        %s211 = scalar_select %p210, %s16, 3
        %p212 = scmp.lt.s32.totalorder %s18, 0
        %s213 = scalar_select %p212, %s18, 0
        %s214 = sadd.s32 %s213, %s211
        %s215 = scalar_lea.vmem %s2, %s214
      $region28: #{mgan_forward.19} parent=15 // pred_fallthru
        _
    $region16: #{mgan_forward.19} parent=5 // pred_fallthru
      _
    %p216 = scmp.le.s32.totalorder 1, %s9
    %p217 = scmp.lt.s32.totalorder %s9, 5
    %p218 = pnand %p216, %p217
    %p219 = pneg %p218
    // Predicated region
    $region29: #{mgan_forward.19} parent=5 // pred_check
      _
    $region30: #{mgan_forward.19} parent=5 // pred_check_branch
      %221 = sbr.rel (%p218) target = $region32
    $region31: #{mgan_forward.19} parent=5 // pred_region
      %s222 = ssub.s32 %s9, 1
      %s223 = smul.u32 2, %s21
      %s224 = smul.u32 2, %s23
      %p225 = scmp.lt.s32.totalorder %s20, 3
      %s226 = scalar_select %p225, %s20, 3
      %p227 = scmp.lt.s32.totalorder %s223, 1
      %s228 = scalar_select %p227, %s223, 1
      %p229 = scmp.lt.s32.totalorder %s224, 1
      %s230 = scalar_select %p229, %s224, 1
      %s231 = smul.addr %s228, 2
      %s232 = sadd.s32 %s230, %s231
      %s233 = smul.addr %s226, 4
      %s234 = sadd.s32 %s232, %s233
      %s235 = smul.addr %s234, 4
      %s236 = scalar_lea.vmem %s0, %s235
      %p237 = pneg %p65
      %p238 = pneg %p62
      %s239 = smul.u32 32, %s23
      %p240 = scmp.lt.s32.totalorder %s20, 3
      %s241 = scalar_select %p240, %s20, 3
      %p242 = scmp.lt.s32.totalorder %s239, 31
      %s243 = scalar_select %p242, %s239, 31
      %p244 = scmp.lt.s32.totalorder %s22, 0
      %s245 = scalar_select %p244, %s22, 0
      %s246 = sadd.s32 %s245, %s243
      %s247 = smul.addr %s241, 32
      %s248 = sadd.s32 %s246, %s247
      %s249 = smul.addr %s248, 4
      %s250 = scalar_lea.vmem %s1, %s249
      %p251 = pneg %p95
      %p252 = pneg %p92
      %p253 = scmp.lt.s32.totalorder %s20, 3
      %s254 = scalar_select %p253, %s20, 3
      %p255 = scmp.lt.s32.totalorder %s22, 0
      %s256 = scalar_select %p255, %s22, 0
      %s257 = sadd.s32 %s256, %s254
      %s258 = scalar_lea.vmem %s2, %s257
      %p259 = pneg %p123
      %p260 = pneg %p120
      %p261 = pneg %p153
      %p262 = pneg %p150
      %s263 = smul.u32 2, %s21
      %p264 = scmp.lt.s32.totalorder %s20, 3
      %s265 = scalar_select %p264, %s20, 3
      %p266 = scmp.lt.s32.totalorder %s263, 1
      %s267 = scalar_select %p266, %s263, 1
      %p268 = scmp.lt.s32.totalorder %s22, 0
      %s269 = scalar_select %p268, %s22, 0
      %s270 = sadd.s32 %s269, %s267
      %s271 = smul.addr %s265, 2
      %s272 = sadd.s32 %s270, %s271
      %s273 = smul.addr %s272, 8
      %s274 = scalar_lea.vmem %s3, %s273
      %s275 = smul.u32 2, %s21
      %s276 = smul.u32 2, %s23
      %p277 = scmp.lt.s32.totalorder %s20, 3
      %s278 = scalar_select %p277, %s20, 3
      %p279 = scmp.lt.s32.totalorder %s275, 1
      %s280 = scalar_select %p279, %s275, 1
      %p281 = scmp.lt.s32.totalorder %s276, 1
      %s282 = scalar_select %p281, %s276, 1
      %s283 = smul.addr %s280, 2
      %s284 = sadd.s32 %s282, %s283
      %s285 = smul.addr %s278, 4
      %s286 = sadd.s32 %s284, %s285
      %s287 = smul.addr %s286, 4
      %s288 = scalar_lea.vmem %s0, %s287
      %s289 = smul.u32 2, %s21
      %s290 = smul.u32 2, %s23
      %s291 = smul.u32 32, %s23
      %p292 = scmp.lt.s32.totalorder %s20, 3
      %s293 = scalar_select %p292, %s20, 3
      %p294 = scmp.lt.s32.totalorder %s291, 31
      %s295 = scalar_select %p294, %s291, 31
      %p296 = scmp.lt.s32.totalorder %s22, 0
      %s297 = scalar_select %p296, %s22, 0
      %s298 = sadd.s32 %s297, %s295
      %s299 = smul.addr %s293, 32
      %s300 = sadd.s32 %s298, %s299
      %s301 = smul.addr %s300, 4
      %s302 = scalar_lea.vmem %s1, %s301
      %s303 = smul.u32 32, %s23
      %p304 = scmp.lt.s32.totalorder %s20, 3
      %s305 = scalar_select %p304, %s20, 3
      %p306 = scmp.lt.s32.totalorder %s22, 0
      %s307 = scalar_select %p306, %s22, 0
      %s308 = sadd.s32 %s307, %s305
      %s309 = scalar_lea.vmem %s2, %s308
      %s310 = smul.u32 2, %s21
      %p311 = scmp.lt.s32.totalorder %s20, 3
      %s312 = scalar_select %p311, %s20, 3
      %p313 = scmp.lt.s32.totalorder %s310, 1
      %s314 = scalar_select %p313, %s310, 1
      %p315 = scmp.lt.s32.totalorder %s22, 0
      %s316 = scalar_select %p315, %s22, 0
      %s317 = sadd.s32 %s316, %s314
      %s318 = smul.addr %s312, 2
      %s319 = sadd.s32 %s317, %s318
      %s320 = smul.addr %s319, 8
      %s321 = scalar_lea.vmem %s3, %s320
      %s322 = smul.u32 2, %s21
      %p324 = scmp.eq.s32.totalorder %s23, 0
      // Predicated region
      $region33: #{mgan_forward.19} parent=31 // pred_check
        %p325 = pneg %p324
      $region34: #{mgan_forward.19} parent=31 // pred_check_branch
        %327 = sbr.rel (%p325) target = $region36
      $region35: #{mgan_forward.19} parent=31 // pred_region
        %328 = vst [vmem:[#allocation2] sm:$0xff] 0.0
        %329 = vst [vmem:[#allocation2 + $0x8] sm:$0xff] 0.0
      $region36: #{mgan_forward.19} parent=31 // pred_fallthru
        _
      %v330 = vld [vmem:[%s288] sm:$0xff]
      %v331 = vld [vmem:[%s288 + $0x8] sm:$0xff]
      %v332 = vmax.bf16 %v330, 0
      %v333 = vmax.bf16 %v331, 0
      %v334 = vld [vmem:[#allocation2] sm:$0xff]
      %v335 = vld [vmem:[#allocation2 + $0x8] sm:$0xff]
      %v336 = vld [vmem:[%s302] sm:$0xf]
      %v337 = vld [vmem:[%s302 + $0x4] sm:$0xf]
      %v338 = vld [vmem:[%s302 + $0x8] sm:$0xf]
      %v339 = vld [vmem:[%s302 + $0xc] sm:$0xf]
      %v340 = vld [vmem:[%s302 + $0x10] sm:$0xf]
      %v341 = vld [vmem:[%s302 + $0x14] sm:$0xf]
      %v342 = vld [vmem:[%s302 + $0x18] sm:$0xf]
      %v343 = vld [vmem:[%s302 + $0x1c] sm:$0xf]
      %v344 = vld [vmem:[%s302 + $0x20] sm:$0xf]
      %v345 = vld [vmem:[%s302 + $0x24] sm:$0xf]
      %v346 = vld [vmem:[%s302 + $0x28] sm:$0xf]
      %v347 = vld [vmem:[%s302 + $0x2c] sm:$0xf]
      %v348 = vld [vmem:[%s302 + $0x30] sm:$0xf]
      %v349 = vld [vmem:[%s302 + $0x34] sm:$0xf]
      %v350 = vld [vmem:[%s302 + $0x38] sm:$0xf]
      %v351 = vld [vmem:[%s302 + $0x3c] sm:$0xf]
      %v352 = vld [vmem:[%s302 + $0x40] sm:$0xf]
      %v353 = vld [vmem:[%s302 + $0x44] sm:$0xf]
      %v354 = vld [vmem:[%s302 + $0x48] sm:$0xf]
      %v355 = vld [vmem:[%s302 + $0x4c] sm:$0xf]
      %v356 = vld [vmem:[%s302 + $0x50] sm:$0xf]
      %v357 = vld [vmem:[%s302 + $0x54] sm:$0xf]
      %v358 = vld [vmem:[%s302 + $0x58] sm:$0xf]
      %v359 = vld [vmem:[%s302 + $0x5c] sm:$0xf]
      %v360 = vld [vmem:[%s302 + $0x60] sm:$0xf]
      %v361 = vld [vmem:[%s302 + $0x64] sm:$0xf]
      %v362 = vld [vmem:[%s302 + $0x68] sm:$0xf]
      %v363 = vld [vmem:[%s302 + $0x6c] sm:$0xf]
      %v364 = vld [vmem:[%s302 + $0x70] sm:$0xf]
      %v365 = vld [vmem:[%s302 + $0x74] sm:$0xf]
      %v366 = vld [vmem:[%s302 + $0x78] sm:$0xf]
      %v367 = vld [vmem:[%s302 + $0x7c] sm:$0xf]
      %v370 = vunpack.c.l.b16 %v332
      %v371 = vunpack.c.h.b16 %v332
      %v372 = vunpack.c.l.b16 %v333
      %v373 = vunpack.c.h.b16 %v333
      %v374 = vpack.c.b16 %v372, %v370
      %v375 = vpack.c.b16 %v373, %v371
      %v410 = vunpack.c.l.b16 %v336
      %v411 = vunpack.c.l.b16 %v337
      %v412 = vunpack.c.l.b16 %v338
      %v413 = vunpack.c.l.b16 %v339
      %v414 = vunpack.c.l.b16 %v340
      %v415 = vunpack.c.l.b16 %v341
      %v416 = vunpack.c.l.b16 %v342
      %v417 = vunpack.c.l.b16 %v343
      %v418 = vunpack.c.l.b16 %v344
      %v419 = vunpack.c.l.b16 %v345
      %v420 = vunpack.c.l.b16 %v346
      %v421 = vunpack.c.l.b16 %v347
      %v422 = vunpack.c.l.b16 %v348
      %v423 = vunpack.c.l.b16 %v349
      %v424 = vunpack.c.l.b16 %v350
      %v425 = vunpack.c.l.b16 %v351
      %v426 = vunpack.c.l.b16 %v352
      %v427 = vunpack.c.l.b16 %v353
      %v428 = vunpack.c.l.b16 %v354
      %v429 = vunpack.c.l.b16 %v355
      %v430 = vunpack.c.l.b16 %v356
      %v431 = vunpack.c.l.b16 %v357
      %v432 = vunpack.c.l.b16 %v358
      %v433 = vunpack.c.l.b16 %v359
      %v434 = vunpack.c.l.b16 %v360
      %v435 = vunpack.c.l.b16 %v361
      %v436 = vunpack.c.l.b16 %v362
      %v437 = vunpack.c.l.b16 %v363
      %v438 = vunpack.c.l.b16 %v364
      %v439 = vunpack.c.l.b16 %v365
      %v440 = vunpack.c.l.b16 %v366
      %v441 = vunpack.c.l.b16 %v367
      %v442 = vpack.c.b16 %v411, %v410
      %v443 = vpack.c.b16 %v413, %v412
      %v444 = vpack.c.b16 %v415, %v414
      %v445 = vpack.c.b16 %v417, %v416
      %v446 = vpack.c.b16 %v419, %v418
      %v447 = vpack.c.b16 %v421, %v420
      %v448 = vpack.c.b16 %v423, %v422
      %v449 = vpack.c.b16 %v425, %v424
      %v450 = vpack.c.b16 %v427, %v426
      %v451 = vpack.c.b16 %v429, %v428
      %v452 = vpack.c.b16 %v431, %v430
      %v453 = vpack.c.b16 %v433, %v432
      %v454 = vpack.c.b16 %v435, %v434
      %v455 = vpack.c.b16 %v437, %v436
      %v456 = vpack.c.b16 %v439, %v438
      %v457 = vpack.c.b16 %v441, %v440
      %474 = vmatprep.subr.bf16.mxu0 0
      %475 = vmatpush1.bf16.msra.mxu0 %v449
      %476 = vmatprep.subr.bf16.mxu0 0
      %477 = vmatpush1.bf16.msra.mxu0 %v448
      %478 = vmatprep.subr.bf16.mxu0 0
      %479 = vmatpush1.bf16.msra.mxu0 %v447
      %480 = vmatprep.subr.bf16.mxu0 0
      %481 = vmatpush1.bf16.msra.mxu0 %v446
      %482 = vmatprep.subr.bf16.mxu0 0
      %483 = vmatpush1.bf16.msra.mxu0 %v445
      %484 = vmatprep.subr.bf16.mxu0 0
      %485 = vmatpush1.bf16.msra.mxu0 %v444
      %486 = vmatprep.subr.bf16.mxu0 0
      %487 = vmatpush1.bf16.msra.mxu0 %v443
      %488 = vmatprep.subr.bf16.mxu0 0
      %489 = vmatpush1.bf16.msra.mxu0 %v442
      %490 = vmatprep.subr.bf16.mxu0 0
      %491 = vmatpush2.bf16.msra.mxu0 %v457
      %492 = vmatprep.subr.bf16.mxu0 0
      %493 = vmatpush2.bf16.msra.mxu0 %v456
      %494 = vmatprep.subr.bf16.mxu0 0
      %495 = vmatpush2.bf16.msra.mxu0 %v455
      %496 = vmatprep.subr.bf16.mxu0 0
      %497 = vmatpush2.bf16.msra.mxu0 %v454
      %498 = vmatprep.subr.bf16.mxu0 0
      %499 = vmatpush2.bf16.msra.mxu0 %v453
      %500 = vmatprep.subr.bf16.mxu0 0
      %501 = vmatpush2.bf16.msra.mxu0 %v452
      %502 = vmatprep.subr.bf16.mxu0 0
      %503 = vmatpush2.bf16.msra.mxu0 %v451
      %504 = vmatprep.subr.bf16.mxu0 0
      %505 = vmatpush2.bf16.msra.mxu0 %v450
      %506 = vmatprep.mubr.bf16.mxu0 %v375
      %507 = vmatmul.mubr.bf16.gmra.mxu0 %v374
      %v508 = vpop.f32.mrf.mxu0
      %v509 = vadd.f32 0.0, %v508
      %v510 = vpop.f32.mrf.mxu0
      %v511 = vpop.f32.mrf.mxu0
      %v512 = vadd.f32 0.0, %v511
      %v513 = vpop.f32.mrf.mxu0
      %514 = vdwg.mxu0
      %v515 = vadd.f32 %v334, %v509
      %v516 = vadd.f32 %v335, %v512
      %517 = vst [vmem:[#allocation2] sm:$0xff] %v515
      %518 = vst [vmem:[#allocation2 + $0x8] sm:$0xff] %v516
      // Predicated region
      $region37: #{mgan_forward.19} parent=31 // pred_check
        %p519 = pneg %p324
      $region38: #{mgan_forward.19} parent=31 // pred_check_branch
        %521 = sbr.rel (%p519) target = $region40
      $region39: #{mgan_forward.19} parent=31 // pred_region
        %v522 = vld [vmem:[#allocation2] sm:$0xff]
        %v523 = vld [vmem:[#allocation2 + $0x8] sm:$0xff]
        %v524 = vld [vmem:[%s309] sm:$0x1]
        %v526 = vlaneseq
        %v527 = vshrl.u32 %v526, 7
        %v528 = vsub.s32 0, %v527
        %v529 = vrot.slane %v524, %v528
        %v531 = vadd.f32 %v522, %v529
        %v532 = vadd.f32 %v523, %v529
        %533 = vst [vmem:[%s321] sm:$0xff] %v531
        %534 = vst [vmem:[%s321 + $0x8] sm:$0xff] %v532
      $region40: #{mgan_forward.19} parent=31 // pred_fallthru
        _
      %s535 = smul.u32 2, %s21
      %p536 = scmp.lt.s32.totalorder %s20, 3
      %s537 = scalar_select %p536, %s20, 3
      %p538 = scmp.lt.s32.totalorder %s535, 1
      %s539 = scalar_select %p538, %s535, 1
      %p540 = scmp.lt.s32.totalorder %s22, 0
      %s541 = scalar_select %p540, %s22, 0
      %s542 = sadd.s32 %s541, %s539
      %s543 = smul.addr %s537, 2
      %s544 = sadd.s32 %s542, %s543
      %s545 = smul.addr %s544, 8
      %s546 = scalar_lea.vmem %s3, %s545
      // Predicated region
      $region41: #{mgan_forward.19} parent=31 // pred_check
        %p547 = pneg %p150
      $region42: #{mgan_forward.19} parent=31 // pred_check_branch
        %549 = sbr.rel (%p547) target = $region44
      $region43: #{mgan_forward.19} parent=31 // pred_region
        %s550 = smul.u32 2, %s21
      $region44: #{mgan_forward.19} parent=31 // pred_fallthru
        _
    $region32: #{mgan_forward.19} parent=5 // pred_fallthru
      _
    %p551 = scmp.le.s32.totalorder 2, %s9
    // Predicated region
    $region45: #{mgan_forward.19} parent=5 // pred_check
      %p552 = pneg %p551
    $region46: #{mgan_forward.19} parent=5 // pred_check_branch
      %554 = sbr.rel (%p552) target = $region48
    $region47: #{mgan_forward.19} parent=5 // pred_region
      %s555 = ssub.s32 %s9, 2
      // Predicated region
      $region49: #{mgan_forward.19} parent=47 // pred_check
        %p556 = pneg %p156
      $region50: #{mgan_forward.19} parent=47 // pred_check_branch
        %558 = sbr.rel (%p556) target = $region52
      $region51: #{mgan_forward.19} parent=47 // pred_region
        %s559 = smul.u32 2, %s25
        %p560 = scmp.lt.s32.totalorder %s24, 3
        %s561 = scalar_select %p560, %s24, 3
        %p562 = scmp.lt.s32.totalorder %s559, 1
        %s563 = scalar_select %p562, %s559, 1
        %p564 = scmp.lt.s32.totalorder %s26, 0
        %s565 = scalar_select %p564, %s26, 0
        %s566 = sadd.s32 %s565, %s563
        %s567 = smul.addr %s561, 2
        %s568 = sadd.s32 %s566, %s567
        %s569 = smul.addr %s568, 8
        %s570 = scalar_lea.vmem %s3, %s569
      $region52: #{mgan_forward.19} parent=47 // pred_fallthru
        _
    $region48: #{mgan_forward.19} parent=5 // pred_fallthru
      _
  $region6: #{mgan_forward.19} parent=0 // loop_footer
    %s13 = sadd.s32 1, %s9
  $region7: #{mgan_forward.19} parent=0 // loop_footer_branch
    %8 = sbr.rel target = $region3
  $region8: #{mgan_forward.19} parent=0 // loop_exit
    _

// kernel: mgan_forward.20
$region0: #{mgan_forward.20}
  #allocation0 [shape = 'u32[]', space=smem, size = 0x4, offset = 0x4, fixed_abs, tag = 'smem constant byte address 0x4 - core index']
  #allocation1 [shape = 'u32[144,128]{1,0:T(1,128)}', space=vmem, size = 0x12000, scoped, tag = 'internal scratch']
  #allocation2 [shape = 'f32[16,128]{1,0:T(8,128)}', space=vmem, size = 0x2000, scoped, tag = 'scratch operand']
  %s0 = inlined_call_operand.vmem [shape: bf16[4,16,512], index: 0, kind: input, shape index: {}]
  %s1 = inlined_call_operand.vmem [shape: bf16[4,512,128], index: 1, kind: input, shape index: {}]
  %s2 = inlined_call_operand.vmem [shape: f32[4,1,128], index: 2, kind: input, shape index: {}]
  %s3 = inlined_call_operand.vmem [shape: f32[4,16,128], index: 3, kind: output, shape index: {}]
  %s4 = sld [smem:[#allocation0]]
  $region53: #{mgan_forward.20} parent=0
    _
  %s6 = ssub.s32 1, %s4
  %s7 = scalar_select 0, %s6, %s4
  loop: start=0, step=1, limit=6
  $region2: #{mgan_forward.20} parent=0 // loop_pre_header
    _
  $region3: #{mgan_forward.20} parent=0 // loop_header
    %s9 = sphi 0, %s13
    %p10 = scmp.ge.s32.totalorder %s9, 6
    %s16 = sphi 0, %s42
    %s17 = sphi 0, %s38
    %s18 = sphi 0, %s34
    %s19 = sphi 0, %s30
    %s20 = sphi 0, %s16
    %s21 = sphi 0, %s17
    %s22 = sphi 0, %s18
    %s23 = sphi 0, %s19
    %s24 = sphi 0, %s20
    %s25 = sphi 0, %s21
    %s26 = sphi 0, %s22
    %s27 = sphi 0, %s23
    %s49 = sphi 0, %s51
    %s52 = sphi 0, %s49
    %s53 = sphi 0, %s52
    %s69 = sphi 0, %s53
    %s79 = sphi 0, %s81
    %s82 = sphi 0, %s79
    %s83 = sphi 0, %s82
    %s99 = sphi 0, %s83
    %s107 = sphi 0, %s109
    %s110 = sphi 0, %s107
    %s111 = sphi 0, %s110
    %s127 = sphi 0, %s111
    %s137 = sphi 0, %s139
    %s140 = sphi 0, %s137
    %s141 = sphi 0, %s140
    %s157 = sphi 0, %s141
  $region4: #{mgan_forward.20} parent=0 // loop_header_branch
    %12 = sbr.rel (%p10) target = $region8
  $region5: #{mgan_forward.20} parent=0 // loop_body
    %s14 = ssub.s32 %s9, 1
    %s15 = ssub.s32 %s9, 2
    %s28 = sadd.s32 1, %s19
    %p29 = scmp.ge.s32.totalorder %s28, 1
    %s30 = scalar_select %p29, 0, %s28
    %s31 = sadd.s32 1, %s18
    %s32 = scalar_select %p29, %s31, %s18
    %p33 = scmp.ge.s32.totalorder %s32, 1
    %s34 = scalar_select %p33, 0, %s32
    %s35 = sadd.s32 1, %s17
    %s36 = scalar_select %p33, %s35, %s17
    %p37 = scmp.ge.s32.totalorder %s36, 1
    %s38 = scalar_select %p37, 0, %s36
    %s39 = sadd.s32 1, %s16
    %s40 = scalar_select %p37, %s39, %s16
    %p41 = scmp.ge.s32.totalorder %s40, 4
    %s42 = scalar_select %p41, 0, %s40
    %s43 = ssub.s32 %s16, %s42
    %s44 = ssub.s32 %s17, %s38
    %s45 = sor.u32 %s43, %s44
    %s46 = ssub.s32 %s19, %s30
    %s47 = sor.u32 %s45, %s46
    %p48 = scmp.eq.s32.totalorder %s47, 0
    %s50 = sadd.s32 %s49, 1
    %s51 = scalar_select %p48, %s49, %s50
    %p54 = pneg %p48
    %p55 = scmp.eq.s32.totalorder %s9, 3
    %p56 = por %p54, %p55
    %p57 = scmp.ne.s32.totalorder %s49, %s52
    %p58 = scmp.eq.s32.totalorder %s9, 0
    %p59 = por %p57, %p58
    %p60 = scmp.ne.s32.totalorder %s49, %s52
    %p61 = scmp.eq.s32.totalorder %s14, 3
    %p62 = por %p60, %p61
    %p63 = scmp.ne.s32.totalorder %s52, %s53
    %p64 = scmp.eq.s32.totalorder %s14, 0
    %p65 = por %p63, %p64
    %p66 = scmp.ne.s32.totalorder %s52, %s53
    %p67 = scmp.eq.s32.totalorder %s15, 3
    %p68 = por %p66, %p67
    %p70 = scmp.ne.s32.totalorder %s53, %s69
    %p71 = scmp.eq.s32.totalorder %s15, 0
    %p72 = por %p70, %p71
    %s73 = ssub.s32 %s16, %s42
    %s74 = ssub.s32 %s19, %s30
    %s75 = sor.u32 %s73, %s74
    %s76 = ssub.s32 %s18, %s34
    %s77 = sor.u32 %s75, %s76
    %p78 = scmp.eq.s32.totalorder %s77, 0
    %s80 = sadd.s32 %s79, 1
    %s81 = scalar_select %p78, %s79, %s80
    %p84 = pneg %p78
    %p85 = scmp.eq.s32.totalorder %s9, 3
    %p86 = por %p84, %p85
    %p87 = scmp.ne.s32.totalorder %s79, %s82
    %p88 = scmp.eq.s32.totalorder %s9, 0
    %p89 = por %p87, %p88
    %p90 = scmp.ne.s32.totalorder %s79, %s82
    %p91 = scmp.eq.s32.totalorder %s14, 3
    %p92 = por %p90, %p91
    %p93 = scmp.ne.s32.totalorder %s82, %s83
    %p94 = scmp.eq.s32.totalorder %s14, 0
    %p95 = por %p93, %p94
    %p96 = scmp.ne.s32.totalorder %s82, %s83
    %p97 = scmp.eq.s32.totalorder %s15, 3
    %p98 = por %p96, %p97
    %p100 = scmp.ne.s32.totalorder %s83, %s99
    %p101 = scmp.eq.s32.totalorder %s15, 0
    %p102 = por %p100, %p101
    %s103 = ssub.s32 %s16, %s42
    %s104 = ssub.s32 %s18, %s34
    %s105 = sor.u32 %s103, %s104
    %p106 = scmp.eq.s32.totalorder %s105, 0
    %s108 = sadd.s32 %s107, 1
    %s109 = scalar_select %p106, %s107, %s108
    %p112 = pneg %p106
    %p113 = scmp.eq.s32.totalorder %s9, 3
    %p114 = por %p112, %p113
    %p115 = scmp.ne.s32.totalorder %s107, %s110
    %p116 = scmp.eq.s32.totalorder %s9, 0
    %p117 = por %p115, %p116
    %p118 = scmp.ne.s32.totalorder %s107, %s110
    %p119 = scmp.eq.s32.totalorder %s14, 3
    %p120 = por %p118, %p119
    %p121 = scmp.ne.s32.totalorder %s110, %s111
    %p122 = scmp.eq.s32.totalorder %s14, 0
    %p123 = por %p121, %p122
    %p124 = scmp.ne.s32.totalorder %s110, %s111
    %p125 = scmp.eq.s32.totalorder %s15, 3
    %p126 = por %p124, %p125
    %p128 = scmp.ne.s32.totalorder %s111, %s127
    %p129 = scmp.eq.s32.totalorder %s15, 0
    %p130 = por %p128, %p129
    %s131 = ssub.s32 %s16, %s42
    %s132 = ssub.s32 %s17, %s38
    %s133 = sor.u32 %s131, %s132
    %s134 = ssub.s32 %s18, %s34
    %s135 = sor.u32 %s133, %s134
    %p136 = scmp.eq.s32.totalorder %s135, 0
    %s138 = sadd.s32 %s137, 1
    %s139 = scalar_select %p136, %s137, %s138
    %p142 = pneg %p136
    %p143 = scmp.eq.s32.totalorder %s9, 3
    %p144 = por %p142, %p143
    %p145 = scmp.ne.s32.totalorder %s137, %s140
    %p146 = scmp.eq.s32.totalorder %s9, 0
    %p147 = por %p145, %p146
    %p148 = scmp.ne.s32.totalorder %s137, %s140
    %p149 = scmp.eq.s32.totalorder %s14, 3
    %p150 = por %p148, %p149
    %p151 = scmp.ne.s32.totalorder %s140, %s141
    %p152 = scmp.eq.s32.totalorder %s14, 0
    %p153 = por %p151, %p152
    %p154 = scmp.ne.s32.totalorder %s140, %s141
    %p155 = scmp.eq.s32.totalorder %s15, 3
    %p156 = por %p154, %p155
    %p158 = scmp.ne.s32.totalorder %s141, %s157
    %p159 = scmp.eq.s32.totalorder %s15, 0
    %p160 = por %p158, %p159
    %p161 = scmp.le.s32.totalorder 1, %s9
    %p162 = scmp.lt.s32.totalorder %s9, 5
    %p163 = pnand %p161, %p162
    %p164 = pneg %p163
    // Predicated region
    $region9: #{mgan_forward.20} parent=5 // pred_check
      _
    $region10: #{mgan_forward.20} parent=5 // pred_check_branch
      %166 = sbr.rel (%p163) target = $region12
    $region11: #{mgan_forward.20} parent=5 // pred_region
      %s167 = ssub.s32 %s9, 1
    $region12: #{mgan_forward.20} parent=5 // pred_fallthru
      _
    %p168 = scmp.lt.s32.totalorder %s9, 4
    // Predicated region
    $region13: #{mgan_forward.20} parent=5 // pred_check
      %p169 = pneg %p168
    $region14: #{mgan_forward.20} parent=5 // pred_check_branch
      %171 = sbr.rel (%p169) target = $region16
    $region15: #{mgan_forward.20} parent=5 // pred_region
      // Predicated region
      $region17: #{mgan_forward.20} parent=15 // pred_check
        %p172 = pneg %p59
      $region18: #{mgan_forward.20} parent=15 // pred_check_branch
        %174 = sbr.rel (%p172) target = $region20
      $region19: #{mgan_forward.20} parent=15 // pred_region
        %s175 = smul.u32 2, %s17
        %s176 = smul.u32 4, %s19
        %p177 = scmp.lt.s32.totalorder %s16, 3
        %s178 = scalar_select %p177, %s16, 3
        %p179 = scmp.lt.s32.totalorder %s175, 1
        %s180 = scalar_select %p179, %s175, 1
        %p181 = scmp.lt.s32.totalorder %s176, 3
        %s182 = scalar_select %p181, %s176, 3
        %s183 = smul.addr %s180, 4
        %s184 = sadd.s32 %s182, %s183
        %s185 = smul.addr %s178, 8
        %s186 = sadd.s32 %s184, %s185
        %s187 = smul.addr %s186, 4
        %s188 = scalar_lea.vmem %s0, %s187
        %s189 = smul.u32 2, %s17
        %s190 = smul.u32 4, %s19
      $region20: #{mgan_forward.20} parent=15 // pred_fallthru
        _
      // Predicated region
      $region21: #{mgan_forward.20} parent=15 // pred_check
        %p191 = pneg %p89
      $region22: #{mgan_forward.20} parent=15 // pred_check_branch
        %193 = sbr.rel (%p191) target = $region24
      $region23: #{mgan_forward.20} parent=15 // pred_region
        %s194 = smul.u32 64, %s19
        %p195 = scmp.lt.s32.totalorder %s16, 3
        %s196 = scalar_select %p195, %s16, 3
        %p197 = scmp.lt.s32.totalorder %s194, 63
        %s198 = scalar_select %p197, %s194, 63
        %p199 = scmp.lt.s32.totalorder %s18, 0
        %s200 = scalar_select %p199, %s18, 0
        %s201 = sadd.s32 %s200, %s198
        %s202 = smul.addr %s196, 64
        %s203 = sadd.s32 %s201, %s202
        %s204 = smul.addr %s203, 4
        %s205 = scalar_lea.vmem %s1, %s204
        %s206 = smul.u32 64, %s19
      $region24: #{mgan_forward.20} parent=15 // pred_fallthru
        _
      // Predicated region
      $region25: #{mgan_forward.20} parent=15 // pred_check
        %p207 = pneg %p117
      $region26: #{mgan_forward.20} parent=15 // pred_check_branch
        %209 = sbr.rel (%p207) target = $region28
      $region27: #{mgan_forward.20} parent=15 // pred_region
        %p210 = scmp.lt.s32.totalorder %s16, 3
        %s211 = scalar_select %p210, %s16, 3
        %p212 = scmp.lt.s32.totalorder %s18, 0
        %s213 = scalar_select %p212, %s18, 0
        %s214 = sadd.s32 %s213, %s211
        %s215 = scalar_lea.vmem %s2, %s214
      $region28: #{mgan_forward.20} parent=15 // pred_fallthru
        _
    $region16: #{mgan_forward.20} parent=5 // pred_fallthru
      _
    %p216 = scmp.le.s32.totalorder 1, %s9
    %p217 = scmp.lt.s32.totalorder %s9, 5
    %p218 = pnand %p216, %p217
    %p219 = pneg %p218
    // Predicated region
    $region29: #{mgan_forward.20} parent=5 // pred_check
      _
    $region30: #{mgan_forward.20} parent=5 // pred_check_branch
      %221 = sbr.rel (%p218) target = $region32
    $region31: #{mgan_forward.20} parent=5 // pred_region
      %s222 = ssub.s32 %s9, 1
      %s223 = smul.u32 2, %s21
      %s224 = smul.u32 4, %s23
      %p225 = scmp.lt.s32.totalorder %s20, 3
      %s226 = scalar_select %p225, %s20, 3
      %p227 = scmp.lt.s32.totalorder %s223, 1
      %s228 = scalar_select %p227, %s223, 1
      %p229 = scmp.lt.s32.totalorder %s224, 3
      %s230 = scalar_select %p229, %s224, 3
      %s231 = smul.addr %s228, 4
      %s232 = sadd.s32 %s230, %s231
      %s233 = smul.addr %s226, 8
      %s234 = sadd.s32 %s232, %s233
      %s235 = smul.addr %s234, 4
      %s236 = scalar_lea.vmem %s0, %s235
      %p237 = pneg %p65
      %p238 = pneg %p62
      %s239 = smul.u32 64, %s23
      %p240 = scmp.lt.s32.totalorder %s20, 3
      %s241 = scalar_select %p240, %s20, 3
      %p242 = scmp.lt.s32.totalorder %s239, 63
      %s243 = scalar_select %p242, %s239, 63
      %p244 = scmp.lt.s32.totalorder %s22, 0
      %s245 = scalar_select %p244, %s22, 0
      %s246 = sadd.s32 %s245, %s243
      %s247 = smul.addr %s241, 64
      %s248 = sadd.s32 %s246, %s247
      %s249 = smul.addr %s248, 4
      %s250 = scalar_lea.vmem %s1, %s249
      %p251 = pneg %p95
      %p252 = pneg %p92
      %p253 = scmp.lt.s32.totalorder %s20, 3
      %s254 = scalar_select %p253, %s20, 3
      %p255 = scmp.lt.s32.totalorder %s22, 0
      %s256 = scalar_select %p255, %s22, 0
      %s257 = sadd.s32 %s256, %s254
      %s258 = scalar_lea.vmem %s2, %s257
      %p259 = pneg %p123
      %p260 = pneg %p120
      %p261 = pneg %p153
      %p262 = pneg %p150
      %s263 = smul.u32 2, %s21
      %p264 = scmp.lt.s32.totalorder %s20, 3
      %s265 = scalar_select %p264, %s20, 3
      %p266 = scmp.lt.s32.totalorder %s263, 1
      %s267 = scalar_select %p266, %s263, 1
      %p268 = scmp.lt.s32.totalorder %s22, 0
      %s269 = scalar_select %p268, %s22, 0
      %s270 = sadd.s32 %s269, %s267
      %s271 = smul.addr %s265, 2
      %s272 = sadd.s32 %s270, %s271
      %s273 = smul.addr %s272, 8
      %s274 = scalar_lea.vmem %s3, %s273
      %s275 = smul.u32 2, %s21
      %s276 = smul.u32 4, %s23
      %p277 = scmp.lt.s32.totalorder %s20, 3
      %s278 = scalar_select %p277, %s20, 3
      %p279 = scmp.lt.s32.totalorder %s275, 1
      %s280 = scalar_select %p279, %s275, 1
      %p281 = scmp.lt.s32.totalorder %s276, 3
      %s282 = scalar_select %p281, %s276, 3
      %s283 = smul.addr %s280, 4
      %s284 = sadd.s32 %s282, %s283
      %s285 = smul.addr %s278, 8
      %s286 = sadd.s32 %s284, %s285
      %s287 = smul.addr %s286, 4
      %s288 = scalar_lea.vmem %s0, %s287
      %s289 = smul.u32 2, %s21
      %s290 = smul.u32 4, %s23
      %s291 = smul.u32 64, %s23
      %p292 = scmp.lt.s32.totalorder %s20, 3
      %s293 = scalar_select %p292, %s20, 3
      %p294 = scmp.lt.s32.totalorder %s291, 63
      %s295 = scalar_select %p294, %s291, 63
      %p296 = scmp.lt.s32.totalorder %s22, 0
      %s297 = scalar_select %p296, %s22, 0
      %s298 = sadd.s32 %s297, %s295
      %s299 = smul.addr %s293, 64
      %s300 = sadd.s32 %s298, %s299
      %s301 = smul.addr %s300, 4
      %s302 = scalar_lea.vmem %s1, %s301
      %s303 = smul.u32 64, %s23
      %p304 = scmp.lt.s32.totalorder %s20, 3
      %s305 = scalar_select %p304, %s20, 3
      %p306 = scmp.lt.s32.totalorder %s22, 0
      %s307 = scalar_select %p306, %s22, 0
      %s308 = sadd.s32 %s307, %s305
      %s309 = scalar_lea.vmem %s2, %s308
      %s310 = smul.u32 2, %s21
      %p311 = scmp.lt.s32.totalorder %s20, 3
      %s312 = scalar_select %p311, %s20, 3
      %p313 = scmp.lt.s32.totalorder %s310, 1
      %s314 = scalar_select %p313, %s310, 1
      %p315 = scmp.lt.s32.totalorder %s22, 0
      %s316 = scalar_select %p315, %s22, 0
      %s317 = sadd.s32 %s316, %s314
      %s318 = smul.addr %s312, 2
      %s319 = sadd.s32 %s317, %s318
      %s320 = smul.addr %s319, 8
      %s321 = scalar_lea.vmem %s3, %s320
      %s322 = smul.u32 2, %s21
      %p324 = scmp.eq.s32.totalorder %s23, 0
      // Predicated region
      $region33: #{mgan_forward.20} parent=31 // pred_check
        %p325 = pneg %p324
      $region34: #{mgan_forward.20} parent=31 // pred_check_branch
        %327 = sbr.rel (%p325) target = $region36
      $region35: #{mgan_forward.20} parent=31 // pred_region
        %328 = vst [vmem:[#allocation2] sm:$0xff] 0.0
        %329 = vst [vmem:[#allocation2 + $0x8] sm:$0xff] 0.0
      $region36: #{mgan_forward.20} parent=31 // pred_fallthru
        _
      %v330 = vld [vmem:[%s288] sm:$0xff]
      %v331 = vld [vmem:[%s288 + $0x8] sm:$0xff]
      %v332 = vld [vmem:[%s288 + $0x10] sm:$0xff]
      %v333 = vld [vmem:[%s288 + $0x18] sm:$0xff]
      %v334 = vmax.bf16 %v330, 0
      %v335 = vmax.bf16 %v331, 0
      %v336 = vmax.bf16 %v332, 0
      %v337 = vmax.bf16 %v333, 0
      %v338 = vld [vmem:[#allocation2] sm:$0xff]
      %v339 = vld [vmem:[#allocation2 + $0x8] sm:$0xff]
      %v340 = vld [vmem:[%s302] sm:$0xf]
      %v341 = vld [vmem:[%s302 + $0x4] sm:$0xf]
      %v342 = vld [vmem:[%s302 + $0x8] sm:$0xf]
      %v343 = vld [vmem:[%s302 + $0xc] sm:$0xf]
      %v344 = vld [vmem:[%s302 + $0x10] sm:$0xf]
      %v345 = vld [vmem:[%s302 + $0x14] sm:$0xf]
      %v346 = vld [vmem:[%s302 + $0x18] sm:$0xf]
      %v347 = vld [vmem:[%s302 + $0x1c] sm:$0xf]
      %v348 = vld [vmem:[%s302 + $0x20] sm:$0xf]
      %v349 = vld [vmem:[%s302 + $0x24] sm:$0xf]
      %v350 = vld [vmem:[%s302 + $0x28] sm:$0xf]
      %v351 = vld [vmem:[%s302 + $0x2c] sm:$0xf]
      %v352 = vld [vmem:[%s302 + $0x30] sm:$0xf]
      %v353 = vld [vmem:[%s302 + $0x34] sm:$0xf]
      %v354 = vld [vmem:[%s302 + $0x38] sm:$0xf]
      %v355 = vld [vmem:[%s302 + $0x3c] sm:$0xf]
      %v356 = vld [vmem:[%s302 + $0x40] sm:$0xf]
      %v357 = vld [vmem:[%s302 + $0x44] sm:$0xf]
      %v358 = vld [vmem:[%s302 + $0x48] sm:$0xf]
      %v359 = vld [vmem:[%s302 + $0x4c] sm:$0xf]
      %v360 = vld [vmem:[%s302 + $0x50] sm:$0xf]
      %v361 = vld [vmem:[%s302 + $0x54] sm:$0xf]
      %v362 = vld [vmem:[%s302 + $0x58] sm:$0xf]
      %v363 = vld [vmem:[%s302 + $0x5c] sm:$0xf]
      %v364 = vld [vmem:[%s302 + $0x60] sm:$0xf]
      %v365 = vld [vmem:[%s302 + $0x64] sm:$0xf]
      %v366 = vld [vmem:[%s302 + $0x68] sm:$0xf]
      %v367 = vld [vmem:[%s302 + $0x6c] sm:$0xf]
      %v368 = vld [vmem:[%s302 + $0x70] sm:$0xf]
      %v369 = vld [vmem:[%s302 + $0x74] sm:$0xf]
      %v370 = vld [vmem:[%s302 + $0x78] sm:$0xf]
      %v371 = vld [vmem:[%s302 + $0x7c] sm:$0xf]
      %v372 = vld [vmem:[%s302 + $0x80] sm:$0xf]
      %v373 = vld [vmem:[%s302 + $0x84] sm:$0xf]
      %v374 = vld [vmem:[%s302 + $0x88] sm:$0xf]
      %v375 = vld [vmem:[%s302 + $0x8c] sm:$0xf]
      %v376 = vld [vmem:[%s302 + $0x90] sm:$0xf]
      %v377 = vld [vmem:[%s302 + $0x94] sm:$0xf]
      %v378 = vld [vmem:[%s302 + $0x98] sm:$0xf]
      %v379 = vld [vmem:[%s302 + $0x9c] sm:$0xf]
      %v380 = vld [vmem:[%s302 + $0xa0] sm:$0xf]
      %v381 = vld [vmem:[%s302 + $0xa4] sm:$0xf]
      %v382 = vld [vmem:[%s302 + $0xa8] sm:$0xf]
      %v383 = vld [vmem:[%s302 + $0xac] sm:$0xf]
      %v384 = vld [vmem:[%s302 + $0xb0] sm:$0xf]
      %v385 = vld [vmem:[%s302 + $0xb4] sm:$0xf]
      %v386 = vld [vmem:[%s302 + $0xb8] sm:$0xf]
      %v387 = vld [vmem:[%s302 + $0xbc] sm:$0xf]
      %v388 = vld [vmem:[%s302 + $0xc0] sm:$0xf]
      %v389 = vld [vmem:[%s302 + $0xc4] sm:$0xf]
      %v390 = vld [vmem:[%s302 + $0xc8] sm:$0xf]
      %v391 = vld [vmem:[%s302 + $0xcc] sm:$0xf]
      %v392 = vld [vmem:[%s302 + $0xd0] sm:$0xf]
      %v393 = vld [vmem:[%s302 + $0xd4] sm:$0xf]
      %v394 = vld [vmem:[%s302 + $0xd8] sm:$0xf]
      %v395 = vld [vmem:[%s302 + $0xdc] sm:$0xf]
      %v396 = vld [vmem:[%s302 + $0xe0] sm:$0xf]
      %v397 = vld [vmem:[%s302 + $0xe4] sm:$0xf]
      %v398 = vld [vmem:[%s302 + $0xe8] sm:$0xf]
      %v399 = vld [vmem:[%s302 + $0xec] sm:$0xf]
      %v400 = vld [vmem:[%s302 + $0xf0] sm:$0xf]
      %v401 = vld [vmem:[%s302 + $0xf4] sm:$0xf]
      %v402 = vld [vmem:[%s302 + $0xf8] sm:$0xf]
      %v403 = vld [vmem:[%s302 + $0xfc] sm:$0xf]
      %v408 = vunpack.c.l.b16 %v334
      %v409 = vunpack.c.h.b16 %v334
      %v410 = vunpack.c.l.b16 %v335
      %v411 = vunpack.c.h.b16 %v335
      %v412 = vunpack.c.l.b16 %v336
      %v413 = vunpack.c.h.b16 %v336
      %v414 = vunpack.c.l.b16 %v337
      %v415 = vunpack.c.h.b16 %v337
      %v416 = vpack.c.b16 %v412, %v408
      %v417 = vpack.c.b16 %v413, %v409
      %v418 = vpack.c.b16 %v414, %v410
      %v419 = vpack.c.b16 %v415, %v411
      %v488 = vunpack.c.l.b16 %v340
      %v489 = vunpack.c.l.b16 %v341
      %v490 = vunpack.c.l.b16 %v342
      %v491 = vunpack.c.l.b16 %v343
      %v492 = vunpack.c.l.b16 %v344
      %v493 = vunpack.c.l.b16 %v345
      %v494 = vunpack.c.l.b16 %v346
      %v495 = vunpack.c.l.b16 %v347
      %v496 = vunpack.c.l.b16 %v348
      %v497 = vunpack.c.l.b16 %v349
      %v498 = vunpack.c.l.b16 %v350
      %v499 = vunpack.c.l.b16 %v351
      %v500 = vunpack.c.l.b16 %v352
      %v501 = vunpack.c.l.b16 %v353
      %v502 = vunpack.c.l.b16 %v354
      %v503 = vunpack.c.l.b16 %v355
      %v504 = vunpack.c.l.b16 %v356
      %v505 = vunpack.c.l.b16 %v357
      %v506 = vunpack.c.l.b16 %v358
      %v507 = vunpack.c.l.b16 %v359
      %v508 = vunpack.c.l.b16 %v360
      %v509 = vunpack.c.l.b16 %v361
      %v510 = vunpack.c.l.b16 %v362
      %v511 = vunpack.c.l.b16 %v363
      %v512 = vunpack.c.l.b16 %v364
      %v513 = vunpack.c.l.b16 %v365
      %v514 = vunpack.c.l.b16 %v366
      %v515 = vunpack.c.l.b16 %v367
      %v516 = vunpack.c.l.b16 %v368
      %v517 = vunpack.c.l.b16 %v369
      %v518 = vunpack.c.l.b16 %v370
      %v519 = vunpack.c.l.b16 %v371
      %v520 = vunpack.c.l.b16 %v372
      %v521 = vunpack.c.l.b16 %v373
      %v522 = vunpack.c.l.b16 %v374
      %v523 = vunpack.c.l.b16 %v375
      %v524 = vunpack.c.l.b16 %v376
      %v525 = vunpack.c.l.b16 %v377
      %v526 = vunpack.c.l.b16 %v378
      %v527 = vunpack.c.l.b16 %v379
      %v528 = vunpack.c.l.b16 %v380
      %v529 = vunpack.c.l.b16 %v381
      %v530 = vunpack.c.l.b16 %v382
      %v531 = vunpack.c.l.b16 %v383
      %v532 = vunpack.c.l.b16 %v384
      %v533 = vunpack.c.l.b16 %v385
      %v534 = vunpack.c.l.b16 %v386
      %v535 = vunpack.c.l.b16 %v387
      %v536 = vunpack.c.l.b16 %v388
      %v537 = vunpack.c.l.b16 %v389
      %v538 = vunpack.c.l.b16 %v390
      %v539 = vunpack.c.l.b16 %v391
      %v540 = vunpack.c.l.b16 %v392
      %v541 = vunpack.c.l.b16 %v393
      %v542 = vunpack.c.l.b16 %v394
      %v543 = vunpack.c.l.b16 %v395
      %v544 = vunpack.c.l.b16 %v396
      %v545 = vunpack.c.l.b16 %v397
      %v546 = vunpack.c.l.b16 %v398
      %v547 = vunpack.c.l.b16 %v399
      %v548 = vunpack.c.l.b16 %v400
      %v549 = vunpack.c.l.b16 %v401
      %v550 = vunpack.c.l.b16 %v402
      %v551 = vunpack.c.l.b16 %v403
      %v552 = vpack.c.b16 %v489, %v488
      %v553 = vpack.c.b16 %v491, %v490
      %v554 = vpack.c.b16 %v493, %v492
      %v555 = vpack.c.b16 %v495, %v494
      %v556 = vpack.c.b16 %v497, %v496
      %v557 = vpack.c.b16 %v499, %v498
      %v558 = vpack.c.b16 %v501, %v500
      %v559 = vpack.c.b16 %v503, %v502
      %v560 = vpack.c.b16 %v505, %v504
      %v561 = vpack.c.b16 %v507, %v506
      %v562 = vpack.c.b16 %v509, %v508
      %v563 = vpack.c.b16 %v511, %v510
      %v564 = vpack.c.b16 %v513, %v512
      %v565 = vpack.c.b16 %v515, %v514
      %v566 = vpack.c.b16 %v517, %v516
      %v567 = vpack.c.b16 %v519, %v518
      %v568 = vpack.c.b16 %v521, %v520
      %v569 = vpack.c.b16 %v523, %v522
      %v570 = vpack.c.b16 %v525, %v524
      %v571 = vpack.c.b16 %v527, %v526
      %v572 = vpack.c.b16 %v529, %v528
      %v573 = vpack.c.b16 %v531, %v530
      %v574 = vpack.c.b16 %v533, %v532
      %v575 = vpack.c.b16 %v535, %v534
      %v576 = vpack.c.b16 %v537, %v536
      %v577 = vpack.c.b16 %v539, %v538
      %v578 = vpack.c.b16 %v541, %v540
      %v579 = vpack.c.b16 %v543, %v542
      %v580 = vpack.c.b16 %v545, %v544
      %v581 = vpack.c.b16 %v547, %v546
      %v582 = vpack.c.b16 %v549, %v548
      %v583 = vpack.c.b16 %v551, %v550
      %616 = vmatprep.subr.bf16.mxu0 0
      %617 = vmatpush1.bf16.msra.mxu0 %v559
      %618 = vmatprep.subr.bf16.mxu0 0
      %619 = vmatpush1.bf16.msra.mxu0 %v558
      %620 = vmatprep.subr.bf16.mxu0 0
      %621 = vmatpush1.bf16.msra.mxu0 %v557
      %622 = vmatprep.subr.bf16.mxu0 0
      %623 = vmatpush1.bf16.msra.mxu0 %v556
      %624 = vmatprep.subr.bf16.mxu0 0
      %625 = vmatpush1.bf16.msra.mxu0 %v555
      %626 = vmatprep.subr.bf16.mxu0 0
      %627 = vmatpush1.bf16.msra.mxu0 %v554
      %628 = vmatprep.subr.bf16.mxu0 0
      %629 = vmatpush1.bf16.msra.mxu0 %v553
      %630 = vmatprep.subr.bf16.mxu0 0
      %631 = vmatpush1.bf16.msra.mxu0 %v552
      %632 = vmatprep.subr.bf16.mxu0 0
      %633 = vmatpush2.bf16.msra.mxu0 %v567
      %634 = vmatprep.subr.bf16.mxu0 0
      %635 = vmatpush2.bf16.msra.mxu0 %v566
      %636 = vmatprep.subr.bf16.mxu0 0
      %637 = vmatpush2.bf16.msra.mxu0 %v565
      %638 = vmatprep.subr.bf16.mxu0 0
      %639 = vmatpush2.bf16.msra.mxu0 %v564
      %640 = vmatprep.subr.bf16.mxu0 0
      %641 = vmatpush2.bf16.msra.mxu0 %v563
      %642 = vmatprep.subr.bf16.mxu0 0
      %643 = vmatpush2.bf16.msra.mxu0 %v562
      %644 = vmatprep.subr.bf16.mxu0 0
      %645 = vmatpush2.bf16.msra.mxu0 %v561
      %646 = vmatprep.subr.bf16.mxu0 0
      %647 = vmatpush2.bf16.msra.mxu0 %v560
      %648 = vmatprep.mubr.bf16.mxu0 %v417
      %649 = vmatmul.mubr.bf16.gmra.mxu0 %v416
      %v650 = vpop.f32.mrf.mxu0
      %v651 = vadd.f32 0.0, %v650
      %v652 = vpop.f32.mrf.mxu0
      %v653 = vpop.f32.mrf.mxu0
      %v654 = vadd.f32 0.0, %v653
      %v655 = vpop.f32.mrf.mxu0
      %656 = vdwg.mxu0
      %657 = vmatprep.subr.bf16.mxu0 0
      %658 = vmatpush1.bf16.msra.mxu0 %v575
      %659 = vmatprep.subr.bf16.mxu0 0
      %660 = vmatpush1.bf16.msra.mxu0 %v574
      %661 = vmatprep.subr.bf16.mxu0 0
      %662 = vmatpush1.bf16.msra.mxu0 %v573
      %663 = vmatprep.subr.bf16.mxu0 0
      %664 = vmatpush1.bf16.msra.mxu0 %v572
      %665 = vmatprep.subr.bf16.mxu0 0
      %666 = vmatpush1.bf16.msra.mxu0 %v571
      %667 = vmatprep.subr.bf16.mxu0 0
      %668 = vmatpush1.bf16.msra.mxu0 %v570
      %669 = vmatprep.subr.bf16.mxu0 0
      %670 = vmatpush1.bf16.msra.mxu0 %v569
      %671 = vmatprep.subr.bf16.mxu0 0
      %672 = vmatpush1.bf16.msra.mxu0 %v568
      %673 = vmatprep.subr.bf16.mxu0 0
      %674 = vmatpush2.bf16.msra.mxu0 %v583
      %675 = vmatprep.subr.bf16.mxu0 0
      %676 = vmatpush2.bf16.msra.mxu0 %v582
      %677 = vmatprep.subr.bf16.mxu0 0
      %678 = vmatpush2.bf16.msra.mxu0 %v581
      %679 = vmatprep.subr.bf16.mxu0 0
      %680 = vmatpush2.bf16.msra.mxu0 %v580
      %681 = vmatprep.subr.bf16.mxu0 0
      %682 = vmatpush2.bf16.msra.mxu0 %v579
      %683 = vmatprep.subr.bf16.mxu0 0
      %684 = vmatpush2.bf16.msra.mxu0 %v578
      %685 = vmatprep.subr.bf16.mxu0 0
      %686 = vmatpush2.bf16.msra.mxu0 %v577
      %687 = vmatprep.subr.bf16.mxu0 0
      %688 = vmatpush2.bf16.msra.mxu0 %v576
      %689 = vmatprep.mubr.bf16.mxu0 %v419
      %690 = vmatmul.mubr.bf16.gmra.mxu0 %v418
      %v691 = vpop.f32.mrf.mxu0
      %v692 = vadd.f32 %v651, %v691
      %v693 = vpop.f32.mrf.mxu0
      %v694 = vpop.f32.mrf.mxu0
      %v695 = vadd.f32 %v654, %v694
      %v696 = vpop.f32.mrf.mxu0
      %697 = vdwg.mxu0
      %v698 = vadd.f32 %v338, %v692
      %v699 = vadd.f32 %v339, %v695
      %700 = vst [vmem:[#allocation2] sm:$0xff] %v698
      %701 = vst [vmem:[#allocation2 + $0x8] sm:$0xff] %v699
      // Predicated region
      $region37: #{mgan_forward.20} parent=31 // pred_check
        %p702 = pneg %p324
      $region38: #{mgan_forward.20} parent=31 // pred_check_branch
        %704 = sbr.rel (%p702) target = $region40
      $region39: #{mgan_forward.20} parent=31 // pred_region
        %v705 = vld [vmem:[#allocation2] sm:$0xff]
        %v706 = vld [vmem:[#allocation2 + $0x8] sm:$0xff]
        %v707 = vld [vmem:[%s309] sm:$0x1]
        %v709 = vlaneseq
        %v710 = vshrl.u32 %v709, 7
        %v711 = vsub.s32 0, %v710
        %v712 = vrot.slane %v707, %v711
        %v714 = vadd.f32 %v705, %v712
        %v715 = vadd.f32 %v706, %v712
        %716 = vst [vmem:[%s321] sm:$0xff] %v714
        %717 = vst [vmem:[%s321 + $0x8] sm:$0xff] %v715
      $region40: #{mgan_forward.20} parent=31 // pred_fallthru
        _
      %s718 = smul.u32 2, %s21
      %p719 = scmp.lt.s32.totalorder %s20, 3
      %s720 = scalar_select %p719, %s20, 3
      %p721 = scmp.lt.s32.totalorder %s718, 1
      %s722 = scalar_select %p721, %s718, 1
      %p723 = scmp.lt.s32.totalorder %s22, 0
      %s724 = scalar_select %p723, %s22, 0
      %s725 = sadd.s32 %s724, %s722
      %s726 = smul.addr %s720, 2
      %s727 = sadd.s32 %s725, %s726
      %s728 = smul.addr %s727, 8
      %s729 = scalar_lea.vmem %s3, %s728
      // Predicated region
      $region41: #{mgan_forward.20} parent=31 // pred_check
        %p730 = pneg %p150
      $region42: #{mgan_forward.20} parent=31 // pred_check_branch
        %732 = sbr.rel (%p730) target = $region44
      $region43: #{mgan_forward.20} parent=31 // pred_region
        %s733 = smul.u32 2, %s21
      $region44: #{mgan_forward.20} parent=31 // pred_fallthru
        _
    $region32: #{mgan_forward.20} parent=5 // pred_fallthru
      _
    %p734 = scmp.le.s32.totalorder 2, %s9
    // Predicated region
    $region45: #{mgan_forward.20} parent=5 // pred_check
      %p735 = pneg %p734
    $region46: #{mgan_forward.20} parent=5 // pred_check_branch
      %737 = sbr.rel (%p735) target = $region48
    $region47: #{mgan_forward.20} parent=5 // pred_region
      %s738 = ssub.s32 %s9, 2
      // Predicated region
      $region49: #{mgan_forward.20} parent=47 // pred_check
        %p739 = pneg %p156
      $region50: #{mgan_forward.20} parent=47 // pred_check_branch
        %741 = sbr.rel (%p739) target = $region52
      $region51: #{mgan_forward.20} parent=47 // pred_region
        %s742 = smul.u32 2, %s25
        %p743 = scmp.lt.s32.totalorder %s24, 3
        %s744 = scalar_select %p743, %s24, 3
        %p745 = scmp.lt.s32.totalorder %s742, 1
        %s746 = scalar_select %p745, %s742, 1
        %p747 = scmp.lt.s32.totalorder %s26, 0
        %s748 = scalar_select %p747, %s26, 0
        %s749 = sadd.s32 %s748, %s746
        %s750 = smul.addr %s744, 2
        %s751 = sadd.s32 %s749, %s750
        %s752 = smul.addr %s751, 8
        %s753 = scalar_lea.vmem %s3, %s752
      $region52: #{mgan_forward.20} parent=47 // pred_fallthru
        _
    $region48: #{mgan_forward.20} parent=5 // pred_fallthru
      _
  $region6: #{mgan_forward.20} parent=0 // loop_footer
    %s13 = sadd.s32 1, %s9
  $region7: #{mgan_forward.20} parent=0 // loop_footer_branch
    %8 = sbr.rel target = $region3
  $region8: #{mgan_forward.20} parent=0 // loop_exit
    _

// kernel: mgan_forward.21
$region0: #{mgan_forward.21}
  #allocation0 [shape = 'u32[]', space=smem, size = 0x4, offset = 0x4, fixed_abs, tag = 'smem constant byte address 0x4 - core index']
  #allocation1 [shape = 'u32[144,128]{1,0:T(1,128)}', space=vmem, size = 0x12000, scoped, tag = 'internal scratch']
  #allocation2 [shape = 'f32[32,128]{1,0:T(8,128)}', space=vmem, size = 0x4000, scoped, tag = 'scratch operand']
  %s0 = inlined_call_operand.vmem [shape: bf16[4,32,256], index: 0, kind: input, shape index: {}]
  %s1 = inlined_call_operand.vmem [shape: bf16[4,256,128], index: 1, kind: input, shape index: {}]
  %s2 = inlined_call_operand.vmem [shape: f32[4,1,128], index: 2, kind: input, shape index: {}]
  %s3 = inlined_call_operand.vmem [shape: f32[4,32,128], index: 3, kind: output, shape index: {}]
  %s4 = sld [smem:[#allocation0]]
  $region53: #{mgan_forward.21} parent=0
    _
  %s6 = ssub.s32 1, %s4
  %s7 = scalar_select 0, %s6, %s4
  loop: start=0, step=1, limit=6
  $region2: #{mgan_forward.21} parent=0 // loop_pre_header
    _
  $region3: #{mgan_forward.21} parent=0 // loop_header
    %s9 = sphi 0, %s13
    %p10 = scmp.ge.s32.totalorder %s9, 6
    %s16 = sphi 0, %s42
    %s17 = sphi 0, %s38
    %s18 = sphi 0, %s34
    %s19 = sphi 0, %s30
    %s20 = sphi 0, %s16
    %s21 = sphi 0, %s17
    %s22 = sphi 0, %s18
    %s23 = sphi 0, %s19
    %s24 = sphi 0, %s20
    %s25 = sphi 0, %s21
    %s26 = sphi 0, %s22
    %s27 = sphi 0, %s23
    %s49 = sphi 0, %s51
    %s52 = sphi 0, %s49
    %s53 = sphi 0, %s52
    %s69 = sphi 0, %s53
    %s79 = sphi 0, %s81
    %s82 = sphi 0, %s79
    %s83 = sphi 0, %s82
    %s99 = sphi 0, %s83
    %s107 = sphi 0, %s109
    %s110 = sphi 0, %s107
    %s111 = sphi 0, %s110
    %s127 = sphi 0, %s111
    %s137 = sphi 0, %s139
    %s140 = sphi 0, %s137
    %s141 = sphi 0, %s140
    %s157 = sphi 0, %s141
  $region4: #{mgan_forward.21} parent=0 // loop_header_branch
    %12 = sbr.rel (%p10) target = $region8
  $region5: #{mgan_forward.21} parent=0 // loop_body
    %s14 = ssub.s32 %s9, 1
    %s15 = ssub.s32 %s9, 2
    %s28 = sadd.s32 1, %s19
    %p29 = scmp.ge.s32.totalorder %s28, 1
    %s30 = scalar_select %p29, 0, %s28
    %s31 = sadd.s32 1, %s18
    %s32 = scalar_select %p29, %s31, %s18
    %p33 = scmp.ge.s32.totalorder %s32, 1
    %s34 = scalar_select %p33, 0, %s32
    %s35 = sadd.s32 1, %s17
    %s36 = scalar_select %p33, %s35, %s17
    %p37 = scmp.ge.s32.totalorder %s36, 1
    %s38 = scalar_select %p37, 0, %s36
    %s39 = sadd.s32 1, %s16
    %s40 = scalar_select %p37, %s39, %s16
    %p41 = scmp.ge.s32.totalorder %s40, 4
    %s42 = scalar_select %p41, 0, %s40
    %s43 = ssub.s32 %s16, %s42
    %s44 = ssub.s32 %s17, %s38
    %s45 = sor.u32 %s43, %s44
    %s46 = ssub.s32 %s19, %s30
    %s47 = sor.u32 %s45, %s46
    %p48 = scmp.eq.s32.totalorder %s47, 0
    %s50 = sadd.s32 %s49, 1
    %s51 = scalar_select %p48, %s49, %s50
    %p54 = pneg %p48
    %p55 = scmp.eq.s32.totalorder %s9, 3
    %p56 = por %p54, %p55
    %p57 = scmp.ne.s32.totalorder %s49, %s52
    %p58 = scmp.eq.s32.totalorder %s9, 0
    %p59 = por %p57, %p58
    %p60 = scmp.ne.s32.totalorder %s49, %s52
    %p61 = scmp.eq.s32.totalorder %s14, 3
    %p62 = por %p60, %p61
    %p63 = scmp.ne.s32.totalorder %s52, %s53
    %p64 = scmp.eq.s32.totalorder %s14, 0
    %p65 = por %p63, %p64
    %p66 = scmp.ne.s32.totalorder %s52, %s53
    %p67 = scmp.eq.s32.totalorder %s15, 3
    %p68 = por %p66, %p67
    %p70 = scmp.ne.s32.totalorder %s53, %s69
    %p71 = scmp.eq.s32.totalorder %s15, 0
    %p72 = por %p70, %p71
    %s73 = ssub.s32 %s16, %s42
    %s74 = ssub.s32 %s19, %s30
    %s75 = sor.u32 %s73, %s74
    %s76 = ssub.s32 %s18, %s34
    %s77 = sor.u32 %s75, %s76
    %p78 = scmp.eq.s32.totalorder %s77, 0
    %s80 = sadd.s32 %s79, 1
    %s81 = scalar_select %p78, %s79, %s80
    %p84 = pneg %p78
    %p85 = scmp.eq.s32.totalorder %s9, 3
    %p86 = por %p84, %p85
    %p87 = scmp.ne.s32.totalorder %s79, %s82
    %p88 = scmp.eq.s32.totalorder %s9, 0
    %p89 = por %p87, %p88
    %p90 = scmp.ne.s32.totalorder %s79, %s82
    %p91 = scmp.eq.s32.totalorder %s14, 3
    %p92 = por %p90, %p91
    %p93 = scmp.ne.s32.totalorder %s82, %s83
    %p94 = scmp.eq.s32.totalorder %s14, 0
    %p95 = por %p93, %p94
    %p96 = scmp.ne.s32.totalorder %s82, %s83
    %p97 = scmp.eq.s32.totalorder %s15, 3
    %p98 = por %p96, %p97
    %p100 = scmp.ne.s32.totalorder %s83, %s99
    %p101 = scmp.eq.s32.totalorder %s15, 0
    %p102 = por %p100, %p101
    %s103 = ssub.s32 %s16, %s42
    %s104 = ssub.s32 %s18, %s34
    %s105 = sor.u32 %s103, %s104
    %p106 = scmp.eq.s32.totalorder %s105, 0
    %s108 = sadd.s32 %s107, 1
    %s109 = scalar_select %p106, %s107, %s108
    %p112 = pneg %p106
    %p113 = scmp.eq.s32.totalorder %s9, 3
    %p114 = por %p112, %p113
    %p115 = scmp.ne.s32.totalorder %s107, %s110
    %p116 = scmp.eq.s32.totalorder %s9, 0
    %p117 = por %p115, %p116
    %p118 = scmp.ne.s32.totalorder %s107, %s110
    %p119 = scmp.eq.s32.totalorder %s14, 3
    %p120 = por %p118, %p119
    %p121 = scmp.ne.s32.totalorder %s110, %s111
    %p122 = scmp.eq.s32.totalorder %s14, 0
    %p123 = por %p121, %p122
    %p124 = scmp.ne.s32.totalorder %s110, %s111
    %p125 = scmp.eq.s32.totalorder %s15, 3
    %p126 = por %p124, %p125
    %p128 = scmp.ne.s32.totalorder %s111, %s127
    %p129 = scmp.eq.s32.totalorder %s15, 0
    %p130 = por %p128, %p129
    %s131 = ssub.s32 %s16, %s42
    %s132 = ssub.s32 %s17, %s38
    %s133 = sor.u32 %s131, %s132
    %s134 = ssub.s32 %s18, %s34
    %s135 = sor.u32 %s133, %s134
    %p136 = scmp.eq.s32.totalorder %s135, 0
    %s138 = sadd.s32 %s137, 1
    %s139 = scalar_select %p136, %s137, %s138
    %p142 = pneg %p136
    %p143 = scmp.eq.s32.totalorder %s9, 3
    %p144 = por %p142, %p143
    %p145 = scmp.ne.s32.totalorder %s137, %s140
    %p146 = scmp.eq.s32.totalorder %s9, 0
    %p147 = por %p145, %p146
    %p148 = scmp.ne.s32.totalorder %s137, %s140
    %p149 = scmp.eq.s32.totalorder %s14, 3
    %p150 = por %p148, %p149
    %p151 = scmp.ne.s32.totalorder %s140, %s141
    %p152 = scmp.eq.s32.totalorder %s14, 0
    %p153 = por %p151, %p152
    %p154 = scmp.ne.s32.totalorder %s140, %s141
    %p155 = scmp.eq.s32.totalorder %s15, 3
    %p156 = por %p154, %p155
    %p158 = scmp.ne.s32.totalorder %s141, %s157
    %p159 = scmp.eq.s32.totalorder %s15, 0
    %p160 = por %p158, %p159
    %p161 = scmp.le.s32.totalorder 1, %s9
    %p162 = scmp.lt.s32.totalorder %s9, 5
    %p163 = pnand %p161, %p162
    %p164 = pneg %p163
    // Predicated region
    $region9: #{mgan_forward.21} parent=5 // pred_check
      _
    $region10: #{mgan_forward.21} parent=5 // pred_check_branch
      %166 = sbr.rel (%p163) target = $region12
    $region11: #{mgan_forward.21} parent=5 // pred_region
      %s167 = ssub.s32 %s9, 1
    $region12: #{mgan_forward.21} parent=5 // pred_fallthru
      _
    %p168 = scmp.lt.s32.totalorder %s9, 4
    // Predicated region
    $region13: #{mgan_forward.21} parent=5 // pred_check
      %p169 = pneg %p168
    $region14: #{mgan_forward.21} parent=5 // pred_check_branch
      %171 = sbr.rel (%p169) target = $region16
    $region15: #{mgan_forward.21} parent=5 // pred_region
      // Predicated region
      $region17: #{mgan_forward.21} parent=15 // pred_check
        %p172 = pneg %p59
      $region18: #{mgan_forward.21} parent=15 // pred_check_branch
        %174 = sbr.rel (%p172) target = $region20
      $region19: #{mgan_forward.21} parent=15 // pred_region
        %s175 = smul.u32 4, %s17
        %s176 = smul.u32 2, %s19
        %p177 = scmp.lt.s32.totalorder %s16, 3
        %s178 = scalar_select %p177, %s16, 3
        %p179 = scmp.lt.s32.totalorder %s175, 3
        %s180 = scalar_select %p179, %s175, 3
        %p181 = scmp.lt.s32.totalorder %s176, 1
        %s182 = scalar_select %p181, %s176, 1
        %s183 = smul.addr %s180, 2
        %s184 = sadd.s32 %s182, %s183
        %s185 = smul.addr %s178, 8
        %s186 = sadd.s32 %s184, %s185
        %s187 = smul.addr %s186, 4
        %s188 = scalar_lea.vmem %s0, %s187
        %s189 = smul.u32 4, %s17
        %s190 = smul.u32 2, %s19
      $region20: #{mgan_forward.21} parent=15 // pred_fallthru
        _
      // Predicated region
      $region21: #{mgan_forward.21} parent=15 // pred_check
        %p191 = pneg %p89
      $region22: #{mgan_forward.21} parent=15 // pred_check_branch
        %193 = sbr.rel (%p191) target = $region24
      $region23: #{mgan_forward.21} parent=15 // pred_region
        %s194 = smul.u32 32, %s19
        %p195 = scmp.lt.s32.totalorder %s16, 3
        %s196 = scalar_select %p195, %s16, 3
        %p197 = scmp.lt.s32.totalorder %s194, 31
        %s198 = scalar_select %p197, %s194, 31
        %p199 = scmp.lt.s32.totalorder %s18, 0
        %s200 = scalar_select %p199, %s18, 0
        %s201 = sadd.s32 %s200, %s198
        %s202 = smul.addr %s196, 32
        %s203 = sadd.s32 %s201, %s202
        %s204 = smul.addr %s203, 4
        %s205 = scalar_lea.vmem %s1, %s204
        %s206 = smul.u32 32, %s19
      $region24: #{mgan_forward.21} parent=15 // pred_fallthru
        _
      // Predicated region
      $region25: #{mgan_forward.21} parent=15 // pred_check
        %p207 = pneg %p117
      $region26: #{mgan_forward.21} parent=15 // pred_check_branch
        %209 = sbr.rel (%p207) target = $region28
      $region27: #{mgan_forward.21} parent=15 // pred_region
        %p210 = scmp.lt.s32.totalorder %s16, 3
        %s211 = scalar_select %p210, %s16, 3
        %p212 = scmp.lt.s32.totalorder %s18, 0
        %s213 = scalar_select %p212, %s18, 0
        %s214 = sadd.s32 %s213, %s211
        %s215 = scalar_lea.vmem %s2, %s214
      $region28: #{mgan_forward.21} parent=15 // pred_fallthru
        _
    $region16: #{mgan_forward.21} parent=5 // pred_fallthru
      _
    %p216 = scmp.le.s32.totalorder 1, %s9
    %p217 = scmp.lt.s32.totalorder %s9, 5
    %p218 = pnand %p216, %p217
    %p219 = pneg %p218
    // Predicated region
    $region29: #{mgan_forward.21} parent=5 // pred_check
      _
    $region30: #{mgan_forward.21} parent=5 // pred_check_branch
      %221 = sbr.rel (%p218) target = $region32
    $region31: #{mgan_forward.21} parent=5 // pred_region
      %s222 = ssub.s32 %s9, 1
      %s223 = smul.u32 4, %s21
      %s224 = smul.u32 2, %s23
      %p225 = scmp.lt.s32.totalorder %s20, 3
      %s226 = scalar_select %p225, %s20, 3
      %p227 = scmp.lt.s32.totalorder %s223, 3
      %s228 = scalar_select %p227, %s223, 3
      %p229 = scmp.lt.s32.totalorder %s224, 1
      %s230 = scalar_select %p229, %s224, 1
      %s231 = smul.addr %s228, 2
      %s232 = sadd.s32 %s230, %s231
      %s233 = smul.addr %s226, 8
      %s234 = sadd.s32 %s232, %s233
      %s235 = smul.addr %s234, 4
      %s236 = scalar_lea.vmem %s0, %s235
      %p237 = pneg %p65
      %p238 = pneg %p62
      %s239 = smul.u32 32, %s23
      %p240 = scmp.lt.s32.totalorder %s20, 3
      %s241 = scalar_select %p240, %s20, 3
      %p242 = scmp.lt.s32.totalorder %s239, 31
      %s243 = scalar_select %p242, %s239, 31
      %p244 = scmp.lt.s32.totalorder %s22, 0
      %s245 = scalar_select %p244, %s22, 0
      %s246 = sadd.s32 %s245, %s243
      %s247 = smul.addr %s241, 32
      %s248 = sadd.s32 %s246, %s247
      %s249 = smul.addr %s248, 4
      %s250 = scalar_lea.vmem %s1, %s249
      %p251 = pneg %p95
      %p252 = pneg %p92
      %p253 = scmp.lt.s32.totalorder %s20, 3
      %s254 = scalar_select %p253, %s20, 3
      %p255 = scmp.lt.s32.totalorder %s22, 0
      %s256 = scalar_select %p255, %s22, 0
      %s257 = sadd.s32 %s256, %s254
      %s258 = scalar_lea.vmem %s2, %s257
      %p259 = pneg %p123
      %p260 = pneg %p120
      %p261 = pneg %p153
      %p262 = pneg %p150
      %s263 = smul.u32 4, %s21
      %p264 = scmp.lt.s32.totalorder %s20, 3
      %s265 = scalar_select %p264, %s20, 3
      %p266 = scmp.lt.s32.totalorder %s263, 3
      %s267 = scalar_select %p266, %s263, 3
      %p268 = scmp.lt.s32.totalorder %s22, 0
      %s269 = scalar_select %p268, %s22, 0
      %s270 = sadd.s32 %s269, %s267
      %s271 = smul.addr %s265, 4
      %s272 = sadd.s32 %s270, %s271
      %s273 = smul.addr %s272, 8
      %s274 = scalar_lea.vmem %s3, %s273
      %s275 = smul.u32 4, %s21
      %s276 = smul.u32 2, %s23
      %p277 = scmp.lt.s32.totalorder %s20, 3
      %s278 = scalar_select %p277, %s20, 3
      %p279 = scmp.lt.s32.totalorder %s275, 3
      %s280 = scalar_select %p279, %s275, 3
      %p281 = scmp.lt.s32.totalorder %s276, 1
      %s282 = scalar_select %p281, %s276, 1
      %s283 = smul.addr %s280, 2
      %s284 = sadd.s32 %s282, %s283
      %s285 = smul.addr %s278, 8
      %s286 = sadd.s32 %s284, %s285
      %s287 = smul.addr %s286, 4
      %s288 = scalar_lea.vmem %s0, %s287
      %s289 = smul.u32 4, %s21
      %s290 = smul.u32 2, %s23
      %s291 = smul.u32 32, %s23
      %p292 = scmp.lt.s32.totalorder %s20, 3
      %s293 = scalar_select %p292, %s20, 3
      %p294 = scmp.lt.s32.totalorder %s291, 31
      %s295 = scalar_select %p294, %s291, 31
      %p296 = scmp.lt.s32.totalorder %s22, 0
      %s297 = scalar_select %p296, %s22, 0
      %s298 = sadd.s32 %s297, %s295
      %s299 = smul.addr %s293, 32
      %s300 = sadd.s32 %s298, %s299
      %s301 = smul.addr %s300, 4
      %s302 = scalar_lea.vmem %s1, %s301
      %s303 = smul.u32 32, %s23
      %p304 = scmp.lt.s32.totalorder %s20, 3
      %s305 = scalar_select %p304, %s20, 3
      %p306 = scmp.lt.s32.totalorder %s22, 0
      %s307 = scalar_select %p306, %s22, 0
      %s308 = sadd.s32 %s307, %s305
      %s309 = scalar_lea.vmem %s2, %s308
      %s310 = smul.u32 4, %s21
      %p311 = scmp.lt.s32.totalorder %s20, 3
      %s312 = scalar_select %p311, %s20, 3
      %p313 = scmp.lt.s32.totalorder %s310, 3
      %s314 = scalar_select %p313, %s310, 3
      %p315 = scmp.lt.s32.totalorder %s22, 0
      %s316 = scalar_select %p315, %s22, 0
      %s317 = sadd.s32 %s316, %s314
      %s318 = smul.addr %s312, 4
      %s319 = sadd.s32 %s317, %s318
      %s320 = smul.addr %s319, 8
      %s321 = scalar_lea.vmem %s3, %s320
      %s322 = smul.u32 4, %s21
      %p324 = scmp.eq.s32.totalorder %s23, 0
      // Predicated region
      $region33: #{mgan_forward.21} parent=31 // pred_check
        %p325 = pneg %p324
      $region34: #{mgan_forward.21} parent=31 // pred_check_branch
        %327 = sbr.rel (%p325) target = $region36
      $region35: #{mgan_forward.21} parent=31 // pred_region
        %328 = vst [vmem:[#allocation2] sm:$0xff] 0.0
        %329 = vst [vmem:[#allocation2 + $0x8] sm:$0xff] 0.0
        %330 = vst [vmem:[#allocation2 + $0x10] sm:$0xff] 0.0
        %331 = vst [vmem:[#allocation2 + $0x18] sm:$0xff] 0.0
      $region36: #{mgan_forward.21} parent=31 // pred_fallthru
        _
      %v332 = vld [vmem:[%s288] sm:$0xff]
      %v333 = vld [vmem:[%s288 + $0x8] sm:$0xff]
      %v334 = vld [vmem:[%s288 + $0x10] sm:$0xff]
      %v335 = vld [vmem:[%s288 + $0x18] sm:$0xff]
      %v336 = vmax.bf16 %v332, 0
      %v337 = vmax.bf16 %v333, 0
      %v338 = vmax.bf16 %v334, 0
      %v339 = vmax.bf16 %v335, 0
      %v340 = vld [vmem:[#allocation2] sm:$0xff]
      %v341 = vld [vmem:[#allocation2 + $0x8] sm:$0xff]
      %v342 = vld [vmem:[#allocation2 + $0x10] sm:$0xff]
      %v343 = vld [vmem:[#allocation2 + $0x18] sm:$0xff]
      %v344 = vld [vmem:[%s302] sm:$0xf]
      %v345 = vld [vmem:[%s302 + $0x4] sm:$0xf]
      %v346 = vld [vmem:[%s302 + $0x8] sm:$0xf]
      %v347 = vld [vmem:[%s302 + $0xc] sm:$0xf]
      %v348 = vld [vmem:[%s302 + $0x10] sm:$0xf]
      %v349 = vld [vmem:[%s302 + $0x14] sm:$0xf]
      %v350 = vld [vmem:[%s302 + $0x18] sm:$0xf]
      %v351 = vld [vmem:[%s302 + $0x1c] sm:$0xf]
      %v352 = vld [vmem:[%s302 + $0x20] sm:$0xf]
      %v353 = vld [vmem:[%s302 + $0x24] sm:$0xf]
      %v354 = vld [vmem:[%s302 + $0x28] sm:$0xf]
      %v355 = vld [vmem:[%s302 + $0x2c] sm:$0xf]
      %v356 = vld [vmem:[%s302 + $0x30] sm:$0xf]
      %v357 = vld [vmem:[%s302 + $0x34] sm:$0xf]
      %v358 = vld [vmem:[%s302 + $0x38] sm:$0xf]
      %v359 = vld [vmem:[%s302 + $0x3c] sm:$0xf]
      %v360 = vld [vmem:[%s302 + $0x40] sm:$0xf]
      %v361 = vld [vmem:[%s302 + $0x44] sm:$0xf]
      %v362 = vld [vmem:[%s302 + $0x48] sm:$0xf]
      %v363 = vld [vmem:[%s302 + $0x4c] sm:$0xf]
      %v364 = vld [vmem:[%s302 + $0x50] sm:$0xf]
      %v365 = vld [vmem:[%s302 + $0x54] sm:$0xf]
      %v366 = vld [vmem:[%s302 + $0x58] sm:$0xf]
      %v367 = vld [vmem:[%s302 + $0x5c] sm:$0xf]
      %v368 = vld [vmem:[%s302 + $0x60] sm:$0xf]
      %v369 = vld [vmem:[%s302 + $0x64] sm:$0xf]
      %v370 = vld [vmem:[%s302 + $0x68] sm:$0xf]
      %v371 = vld [vmem:[%s302 + $0x6c] sm:$0xf]
      %v372 = vld [vmem:[%s302 + $0x70] sm:$0xf]
      %v373 = vld [vmem:[%s302 + $0x74] sm:$0xf]
      %v374 = vld [vmem:[%s302 + $0x78] sm:$0xf]
      %v375 = vld [vmem:[%s302 + $0x7c] sm:$0xf]
      %v380 = vunpack.c.l.b16 %v336
      %v381 = vunpack.c.h.b16 %v336
      %v382 = vunpack.c.l.b16 %v337
      %v383 = vunpack.c.h.b16 %v337
      %v384 = vunpack.c.l.b16 %v338
      %v385 = vunpack.c.h.b16 %v338
      %v386 = vunpack.c.l.b16 %v339
      %v387 = vunpack.c.h.b16 %v339
      %v388 = vpack.c.b16 %v382, %v380
      %v389 = vpack.c.b16 %v383, %v381
      %v390 = vpack.c.b16 %v386, %v384
      %v391 = vpack.c.b16 %v387, %v385
      %v428 = vunpack.c.l.b16 %v344
      %v429 = vunpack.c.l.b16 %v345
      %v430 = vunpack.c.l.b16 %v346
      %v431 = vunpack.c.l.b16 %v347
      %v432 = vunpack.c.l.b16 %v348
      %v433 = vunpack.c.l.b16 %v349
      %v434 = vunpack.c.l.b16 %v350
      %v435 = vunpack.c.l.b16 %v351
      %v436 = vunpack.c.l.b16 %v352
      %v437 = vunpack.c.l.b16 %v353
      %v438 = vunpack.c.l.b16 %v354
      %v439 = vunpack.c.l.b16 %v355
      %v440 = vunpack.c.l.b16 %v356
      %v441 = vunpack.c.l.b16 %v357
      %v442 = vunpack.c.l.b16 %v358
      %v443 = vunpack.c.l.b16 %v359
      %v444 = vunpack.c.l.b16 %v360
      %v445 = vunpack.c.l.b16 %v361
      %v446 = vunpack.c.l.b16 %v362
      %v447 = vunpack.c.l.b16 %v363
      %v448 = vunpack.c.l.b16 %v364
      %v449 = vunpack.c.l.b16 %v365
      %v450 = vunpack.c.l.b16 %v366
      %v451 = vunpack.c.l.b16 %v367
      %v452 = vunpack.c.l.b16 %v368
      %v453 = vunpack.c.l.b16 %v369
      %v454 = vunpack.c.l.b16 %v370
      %v455 = vunpack.c.l.b16 %v371
      %v456 = vunpack.c.l.b16 %v372
      %v457 = vunpack.c.l.b16 %v373
      %v458 = vunpack.c.l.b16 %v374
      %v459 = vunpack.c.l.b16 %v375
      %v460 = vpack.c.b16 %v429, %v428
      %v461 = vpack.c.b16 %v431, %v430
      %v462 = vpack.c.b16 %v433, %v432
      %v463 = vpack.c.b16 %v435, %v434
      %v464 = vpack.c.b16 %v437, %v436
      %v465 = vpack.c.b16 %v439, %v438
      %v466 = vpack.c.b16 %v441, %v440
      %v467 = vpack.c.b16 %v443, %v442
      %v468 = vpack.c.b16 %v445, %v444
      %v469 = vpack.c.b16 %v447, %v446
      %v470 = vpack.c.b16 %v449, %v448
      %v471 = vpack.c.b16 %v451, %v450
      %v472 = vpack.c.b16 %v453, %v452
      %v473 = vpack.c.b16 %v455, %v454
      %v474 = vpack.c.b16 %v457, %v456
      %v475 = vpack.c.b16 %v459, %v458
      %492 = vmatprep.subr.bf16.mxu0 0
      %493 = vmatpush1.bf16.msra.mxu0 %v467
      %494 = vmatprep.subr.bf16.mxu0 0
      %495 = vmatpush1.bf16.msra.mxu0 %v466
      %496 = vmatprep.subr.bf16.mxu0 0
      %497 = vmatpush1.bf16.msra.mxu0 %v465
      %498 = vmatprep.subr.bf16.mxu0 0
      %499 = vmatpush1.bf16.msra.mxu0 %v464
      %500 = vmatprep.subr.bf16.mxu0 0
      %501 = vmatpush1.bf16.msra.mxu0 %v463
      %502 = vmatprep.subr.bf16.mxu0 0
      %503 = vmatpush1.bf16.msra.mxu0 %v462
      %504 = vmatprep.subr.bf16.mxu0 0
      %505 = vmatpush1.bf16.msra.mxu0 %v461
      %506 = vmatprep.subr.bf16.mxu0 0
      %507 = vmatpush1.bf16.msra.mxu0 %v460
      %508 = vmatprep.subr.bf16.mxu0 0
      %509 = vmatpush2.bf16.msra.mxu0 %v475
      %510 = vmatprep.subr.bf16.mxu0 0
      %511 = vmatpush2.bf16.msra.mxu0 %v474
      %512 = vmatprep.subr.bf16.mxu0 0
      %513 = vmatpush2.bf16.msra.mxu0 %v473
      %514 = vmatprep.subr.bf16.mxu0 0
      %515 = vmatpush2.bf16.msra.mxu0 %v472
      %516 = vmatprep.subr.bf16.mxu0 0
      %517 = vmatpush2.bf16.msra.mxu0 %v471
      %518 = vmatprep.subr.bf16.mxu0 0
      %519 = vmatpush2.bf16.msra.mxu0 %v470
      %520 = vmatprep.subr.bf16.mxu0 0
      %521 = vmatpush2.bf16.msra.mxu0 %v469
      %522 = vmatprep.subr.bf16.mxu0 0
      %523 = vmatpush2.bf16.msra.mxu0 %v468
      %524 = vmatprep.mubr.bf16.mxu0 %v389
      %525 = vmatmul.mubr.bf16.gmra.mxu0 %v388
      %v526 = vpop.f32.mrf.mxu0
      %v527 = vadd.f32 0.0, %v526
      %v528 = vpop.f32.mrf.mxu0
      %v529 = vpop.f32.mrf.mxu0
      %v530 = vadd.f32 0.0, %v529
      %v531 = vpop.f32.mrf.mxu0
      %532 = vmatprep.mubr.bf16.mxu0 %v391
      %533 = vmatmul.mubr.bf16.gmra.mxu0 %v390
      %v534 = vpop.f32.mrf.mxu0
      %v535 = vadd.f32 0.0, %v534
      %v536 = vpop.f32.mrf.mxu0
      %v537 = vpop.f32.mrf.mxu0
      %v538 = vadd.f32 0.0, %v537
      %v539 = vpop.f32.mrf.mxu0
      %540 = vdwg.mxu0
      %v541 = vadd.f32 %v340, %v527
      %v542 = vadd.f32 %v341, %v530
      %v543 = vadd.f32 %v342, %v535
      %v544 = vadd.f32 %v343, %v538
      %545 = vst [vmem:[#allocation2] sm:$0xff] %v541
      %546 = vst [vmem:[#allocation2 + $0x8] sm:$0xff] %v542
      %547 = vst [vmem:[#allocation2 + $0x10] sm:$0xff] %v543
      %548 = vst [vmem:[#allocation2 + $0x18] sm:$0xff] %v544
      // Predicated region
      $region37: #{mgan_forward.21} parent=31 // pred_check
        %p549 = pneg %p324
      $region38: #{mgan_forward.21} parent=31 // pred_check_branch
        %551 = sbr.rel (%p549) target = $region40
      $region39: #{mgan_forward.21} parent=31 // pred_region
        %v552 = vld [vmem:[#allocation2] sm:$0xff]
        %v553 = vld [vmem:[#allocation2 + $0x8] sm:$0xff]
        %v554 = vld [vmem:[#allocation2 + $0x10] sm:$0xff]
        %v555 = vld [vmem:[#allocation2 + $0x18] sm:$0xff]
        %v556 = vld [vmem:[%s309] sm:$0x1]
        %v558 = vlaneseq
        %v559 = vshrl.u32 %v558, 7
        %v560 = vsub.s32 0, %v559
        %v561 = vrot.slane %v556, %v560
        %v563 = vadd.f32 %v552, %v561
        %v564 = vadd.f32 %v553, %v561
        %v565 = vadd.f32 %v554, %v561
        %v566 = vadd.f32 %v555, %v561
        %567 = vst [vmem:[%s321] sm:$0xff] %v563
        %568 = vst [vmem:[%s321 + $0x8] sm:$0xff] %v564
        %569 = vst [vmem:[%s321 + $0x10] sm:$0xff] %v565
        %570 = vst [vmem:[%s321 + $0x18] sm:$0xff] %v566
      $region40: #{mgan_forward.21} parent=31 // pred_fallthru
        _
      %s571 = smul.u32 4, %s21
      %p572 = scmp.lt.s32.totalorder %s20, 3
      %s573 = scalar_select %p572, %s20, 3
      %p574 = scmp.lt.s32.totalorder %s571, 3
      %s575 = scalar_select %p574, %s571, 3
      %p576 = scmp.lt.s32.totalorder %s22, 0
      %s577 = scalar_select %p576, %s22, 0
      %s578 = sadd.s32 %s577, %s575
      %s579 = smul.addr %s573, 4
      %s580 = sadd.s32 %s578, %s579
      %s581 = smul.addr %s580, 8
      %s582 = scalar_lea.vmem %s3, %s581
      // Predicated region
      $region41: #{mgan_forward.21} parent=31 // pred_check
        %p583 = pneg %p150
      $region42: #{mgan_forward.21} parent=31 // pred_check_branch
        %585 = sbr.rel (%p583) target = $region44
      $region43: #{mgan_forward.21} parent=31 // pred_region
        %s586 = smul.u32 4, %s21
      $region44: #{mgan_forward.21} parent=31 // pred_fallthru
        _
    $region32: #{mgan_forward.21} parent=5 // pred_fallthru
      _
    %p587 = scmp.le.s32.totalorder 2, %s9
    // Predicated region
    $region45: #{mgan_forward.21} parent=5 // pred_check
      %p588 = pneg %p587
    $region46: #{mgan_forward.21} parent=5 // pred_check_branch
      %590 = sbr.rel (%p588) target = $region48
    $region47: #{mgan_forward.21} parent=5 // pred_region
      %s591 = ssub.s32 %s9, 2
      // Predicated region
      $region49: #{mgan_forward.21} parent=47 // pred_check
        %p592 = pneg %p156
      $region50: #{mgan_forward.21} parent=47 // pred_check_branch
        %594 = sbr.rel (%p592) target = $region52
      $region51: #{mgan_forward.21} parent=47 // pred_region
        %s595 = smul.u32 4, %s25
        %p596 = scmp.lt.s32.totalorder %s24, 3
        %s597 = scalar_select %p596, %s24, 3
        %p598 = scmp.lt.s32.totalorder %s595, 3
        %s599 = scalar_select %p598, %s595, 3
        %p600 = scmp.lt.s32.totalorder %s26, 0
        %s601 = scalar_select %p600, %s26, 0
        %s602 = sadd.s32 %s601, %s599
        %s603 = smul.addr %s597, 4
        %s604 = sadd.s32 %s602, %s603
        %s605 = smul.addr %s604, 8
        %s606 = scalar_lea.vmem %s3, %s605
      $region52: #{mgan_forward.21} parent=47 // pred_fallthru
        _
    $region48: #{mgan_forward.21} parent=5 // pred_fallthru
      _
  $region6: #{mgan_forward.21} parent=0 // loop_footer
    %s13 = sadd.s32 1, %s9
  $region7: #{mgan_forward.21} parent=0 // loop_footer_branch
    %8 = sbr.rel target = $region3
  $region8: #{mgan_forward.21} parent=0 // loop_exit
    _

// kernel: mgan_forward.22
$region0: #{mgan_forward.22}
  #allocation0 [shape = 'u32[]', space=smem, size = 0x4, offset = 0x4, fixed_abs, tag = 'smem constant byte address 0x4 - core index']
  #allocation1 [shape = 'u32[144,128]{1,0:T(1,128)}', space=vmem, size = 0x12000, scoped, tag = 'internal scratch']
  #allocation2 [shape = 'f32[64,128]{1,0:T(8,128)}', space=vmem, size = 0x8000, scoped, tag = 'scratch operand']
  %s0 = inlined_call_operand.vmem [shape: bf16[4,128,128], index: 0, kind: input, shape index: {}]
  %s1 = inlined_call_operand.vmem [shape: bf16[4,128,128], index: 1, kind: input, shape index: {}]
  %s2 = inlined_call_operand.vmem [shape: f32[4,1,128], index: 2, kind: input, shape index: {}]
  %s3 = inlined_call_operand.vmem [shape: f32[4,128,128], index: 3, kind: output, shape index: {}]
  %s4 = sld [smem:[#allocation0]]
  $region53: #{mgan_forward.22} parent=0
    _
  %s6 = ssub.s32 1, %s4
  %s7 = scalar_select 0, %s6, %s4
  loop: start=0, step=1, limit=10
  $region2: #{mgan_forward.22} parent=0 // loop_pre_header
    _
  $region3: #{mgan_forward.22} parent=0 // loop_header
    %s9 = sphi 0, %s13
    %p10 = scmp.ge.s32.totalorder %s9, 10
    %s16 = sphi 0, %s42
    %s17 = sphi 0, %s38
    %s18 = sphi 0, %s34
    %s19 = sphi 0, %s30
    %s20 = sphi 0, %s16
    %s21 = sphi 0, %s17
    %s22 = sphi 0, %s18
    %s23 = sphi 0, %s19
    %s24 = sphi 0, %s20
    %s25 = sphi 0, %s21
    %s26 = sphi 0, %s22
    %s27 = sphi 0, %s23
    %s49 = sphi 0, %s51
    %s52 = sphi 0, %s49
    %s53 = sphi 0, %s52
    %s69 = sphi 0, %s53
    %s79 = sphi 0, %s81
    %s82 = sphi 0, %s79
    %s83 = sphi 0, %s82
    %s99 = sphi 0, %s83
    %s107 = sphi 0, %s109
    %s110 = sphi 0, %s107
    %s111 = sphi 0, %s110
    %s127 = sphi 0, %s111
    %s137 = sphi 0, %s139
    %s140 = sphi 0, %s137
    %s141 = sphi 0, %s140
    %s157 = sphi 0, %s141
  $region4: #{mgan_forward.22} parent=0 // loop_header_branch
    %12 = sbr.rel (%p10) target = $region8
  $region5: #{mgan_forward.22} parent=0 // loop_body
    %s14 = ssub.s32 %s9, 1
    %s15 = ssub.s32 %s9, 2
    %s28 = sadd.s32 1, %s19
    %p29 = scmp.ge.s32.totalorder %s28, 1
    %s30 = scalar_select %p29, 0, %s28
    %s31 = sadd.s32 1, %s18
    %s32 = scalar_select %p29, %s31, %s18
    %p33 = scmp.ge.s32.totalorder %s32, 1
    %s34 = scalar_select %p33, 0, %s32
    %s35 = sadd.s32 1, %s17
    %s36 = scalar_select %p33, %s35, %s17
    %p37 = scmp.ge.s32.totalorder %s36, 2
    %s38 = scalar_select %p37, 0, %s36
    %s39 = sadd.s32 1, %s16
    %s40 = scalar_select %p37, %s39, %s16
    %p41 = scmp.ge.s32.totalorder %s40, 4
    %s42 = scalar_select %p41, 0, %s40
    %s43 = ssub.s32 %s16, %s42
    %s44 = ssub.s32 %s17, %s38
    %s45 = sor.u32 %s43, %s44
    %s46 = ssub.s32 %s19, %s30
    %s47 = sor.u32 %s45, %s46
    %p48 = scmp.eq.s32.totalorder %s47, 0
    %s50 = sadd.s32 %s49, 1
    %s51 = scalar_select %p48, %s49, %s50
    %p54 = pneg %p48
    %p55 = scmp.eq.s32.totalorder %s9, 7
    %p56 = por %p54, %p55
    %p57 = scmp.ne.s32.totalorder %s49, %s52
    %p58 = scmp.eq.s32.totalorder %s9, 0
    %p59 = por %p57, %p58
    %p60 = scmp.ne.s32.totalorder %s49, %s52
    %p61 = scmp.eq.s32.totalorder %s14, 7
    %p62 = por %p60, %p61
    %p63 = scmp.ne.s32.totalorder %s52, %s53
    %p64 = scmp.eq.s32.totalorder %s14, 0
    %p65 = por %p63, %p64
    %p66 = scmp.ne.s32.totalorder %s52, %s53
    %p67 = scmp.eq.s32.totalorder %s15, 7
    %p68 = por %p66, %p67
    %p70 = scmp.ne.s32.totalorder %s53, %s69
    %p71 = scmp.eq.s32.totalorder %s15, 0
    %p72 = por %p70, %p71
    %s73 = ssub.s32 %s16, %s42
    %s74 = ssub.s32 %s19, %s30
    %s75 = sor.u32 %s73, %s74
    %s76 = ssub.s32 %s18, %s34
    %s77 = sor.u32 %s75, %s76
    %p78 = scmp.eq.s32.totalorder %s77, 0
    %s80 = sadd.s32 %s79, 1
    %s81 = scalar_select %p78, %s79, %s80
    %p84 = pneg %p78
    %p85 = scmp.eq.s32.totalorder %s9, 7
    %p86 = por %p84, %p85
    %p87 = scmp.ne.s32.totalorder %s79, %s82
    %p88 = scmp.eq.s32.totalorder %s9, 0
    %p89 = por %p87, %p88
    %p90 = scmp.ne.s32.totalorder %s79, %s82
    %p91 = scmp.eq.s32.totalorder %s14, 7
    %p92 = por %p90, %p91
    %p93 = scmp.ne.s32.totalorder %s82, %s83
    %p94 = scmp.eq.s32.totalorder %s14, 0
    %p95 = por %p93, %p94
    %p96 = scmp.ne.s32.totalorder %s82, %s83
    %p97 = scmp.eq.s32.totalorder %s15, 7
    %p98 = por %p96, %p97
    %p100 = scmp.ne.s32.totalorder %s83, %s99
    %p101 = scmp.eq.s32.totalorder %s15, 0
    %p102 = por %p100, %p101
    %s103 = ssub.s32 %s16, %s42
    %s104 = ssub.s32 %s18, %s34
    %s105 = sor.u32 %s103, %s104
    %p106 = scmp.eq.s32.totalorder %s105, 0
    %s108 = sadd.s32 %s107, 1
    %s109 = scalar_select %p106, %s107, %s108
    %p112 = pneg %p106
    %p113 = scmp.eq.s32.totalorder %s9, 7
    %p114 = por %p112, %p113
    %p115 = scmp.ne.s32.totalorder %s107, %s110
    %p116 = scmp.eq.s32.totalorder %s9, 0
    %p117 = por %p115, %p116
    %p118 = scmp.ne.s32.totalorder %s107, %s110
    %p119 = scmp.eq.s32.totalorder %s14, 7
    %p120 = por %p118, %p119
    %p121 = scmp.ne.s32.totalorder %s110, %s111
    %p122 = scmp.eq.s32.totalorder %s14, 0
    %p123 = por %p121, %p122
    %p124 = scmp.ne.s32.totalorder %s110, %s111
    %p125 = scmp.eq.s32.totalorder %s15, 7
    %p126 = por %p124, %p125
    %p128 = scmp.ne.s32.totalorder %s111, %s127
    %p129 = scmp.eq.s32.totalorder %s15, 0
    %p130 = por %p128, %p129
    %s131 = ssub.s32 %s16, %s42
    %s132 = ssub.s32 %s17, %s38
    %s133 = sor.u32 %s131, %s132
    %s134 = ssub.s32 %s18, %s34
    %s135 = sor.u32 %s133, %s134
    %p136 = scmp.eq.s32.totalorder %s135, 0
    %s138 = sadd.s32 %s137, 1
    %s139 = scalar_select %p136, %s137, %s138
    %p142 = pneg %p136
    %p143 = scmp.eq.s32.totalorder %s9, 7
    %p144 = por %p142, %p143
    %p145 = scmp.ne.s32.totalorder %s137, %s140
    %p146 = scmp.eq.s32.totalorder %s9, 0
    %p147 = por %p145, %p146
    %p148 = scmp.ne.s32.totalorder %s137, %s140
    %p149 = scmp.eq.s32.totalorder %s14, 7
    %p150 = por %p148, %p149
    %p151 = scmp.ne.s32.totalorder %s140, %s141
    %p152 = scmp.eq.s32.totalorder %s14, 0
    %p153 = por %p151, %p152
    %p154 = scmp.ne.s32.totalorder %s140, %s141
    %p155 = scmp.eq.s32.totalorder %s15, 7
    %p156 = por %p154, %p155
    %p158 = scmp.ne.s32.totalorder %s141, %s157
    %p159 = scmp.eq.s32.totalorder %s15, 0
    %p160 = por %p158, %p159
    %p161 = scmp.le.s32.totalorder 1, %s9
    %p162 = scmp.lt.s32.totalorder %s9, 9
    %p163 = pnand %p161, %p162
    %p164 = pneg %p163
    // Predicated region
    $region9: #{mgan_forward.22} parent=5 // pred_check
      _
    $region10: #{mgan_forward.22} parent=5 // pred_check_branch
      %166 = sbr.rel (%p163) target = $region12
    $region11: #{mgan_forward.22} parent=5 // pred_region
      %s167 = ssub.s32 %s9, 1
    $region12: #{mgan_forward.22} parent=5 // pred_fallthru
      _
    %p168 = scmp.lt.s32.totalorder %s9, 8
    // Predicated region
    $region13: #{mgan_forward.22} parent=5 // pred_check
      %p169 = pneg %p168
    $region14: #{mgan_forward.22} parent=5 // pred_check_branch
      %171 = sbr.rel (%p169) target = $region16
    $region15: #{mgan_forward.22} parent=5 // pred_region
      // Predicated region
      $region17: #{mgan_forward.22} parent=15 // pred_check
        %p172 = pneg %p59
      $region18: #{mgan_forward.22} parent=15 // pred_check_branch
        %174 = sbr.rel (%p172) target = $region20
      $region19: #{mgan_forward.22} parent=15 // pred_region
        %s175 = smul.u32 8, %s17
        %p176 = scmp.lt.s32.totalorder %s16, 3
        %s177 = scalar_select %p176, %s16, 3
        %p178 = scmp.lt.s32.totalorder %s175, 15
        %s179 = scalar_select %p178, %s175, 15
        %p180 = scmp.lt.s32.totalorder %s19, 0
        %s181 = scalar_select %p180, %s19, 0
        %s182 = sadd.s32 %s181, %s179
        %s183 = smul.addr %s177, 16
        %s184 = sadd.s32 %s182, %s183
        %s185 = smul.addr %s184, 4
        %s186 = scalar_lea.vmem %s0, %s185
        %s187 = smul.u32 8, %s17
      $region20: #{mgan_forward.22} parent=15 // pred_fallthru
        _
      // Predicated region
      $region21: #{mgan_forward.22} parent=15 // pred_check
        %p188 = pneg %p89
      $region22: #{mgan_forward.22} parent=15 // pred_check_branch
        %190 = sbr.rel (%p188) target = $region24
      $region23: #{mgan_forward.22} parent=15 // pred_region
        %s191 = smul.u32 16, %s19
        %p192 = scmp.lt.s32.totalorder %s16, 3
        %s193 = scalar_select %p192, %s16, 3
        %p194 = scmp.lt.s32.totalorder %s191, 15
        %s195 = scalar_select %p194, %s191, 15
        %p196 = scmp.lt.s32.totalorder %s18, 0
        %s197 = scalar_select %p196, %s18, 0
        %s198 = sadd.s32 %s197, %s195
        %s199 = smul.addr %s193, 16
        %s200 = sadd.s32 %s198, %s199
        %s201 = smul.addr %s200, 4
        %s202 = scalar_lea.vmem %s1, %s201
        %s203 = smul.u32 16, %s19
      $region24: #{mgan_forward.22} parent=15 // pred_fallthru
        _
      // Predicated region
      $region25: #{mgan_forward.22} parent=15 // pred_check
        %p204 = pneg %p117
      $region26: #{mgan_forward.22} parent=15 // pred_check_branch
        %206 = sbr.rel (%p204) target = $region28
      $region27: #{mgan_forward.22} parent=15 // pred_region
        %p207 = scmp.lt.s32.totalorder %s16, 3
        %s208 = scalar_select %p207, %s16, 3
        %p209 = scmp.lt.s32.totalorder %s18, 0
        %s210 = scalar_select %p209, %s18, 0
        %s211 = sadd.s32 %s210, %s208
        %s212 = scalar_lea.vmem %s2, %s211
      $region28: #{mgan_forward.22} parent=15 // pred_fallthru
        _
    $region16: #{mgan_forward.22} parent=5 // pred_fallthru
      _
    %p213 = scmp.le.s32.totalorder 1, %s9
    %p214 = scmp.lt.s32.totalorder %s9, 9
    %p215 = pnand %p213, %p214
    %p216 = pneg %p215
    // Predicated region
    $region29: #{mgan_forward.22} parent=5 // pred_check
      _
    $region30: #{mgan_forward.22} parent=5 // pred_check_branch
      %218 = sbr.rel (%p215) target = $region32
    $region31: #{mgan_forward.22} parent=5 // pred_region
      %s219 = ssub.s32 %s9, 1
      %s220 = smul.u32 8, %s21
      %p221 = scmp.lt.s32.totalorder %s20, 3
      %s222 = scalar_select %p221, %s20, 3
      %p223 = scmp.lt.s32.totalorder %s220, 15
      %s224 = scalar_select %p223, %s220, 15
      %p225 = scmp.lt.s32.totalorder %s23, 0
      %s226 = scalar_select %p225, %s23, 0
      %s227 = sadd.s32 %s226, %s224
      %s228 = smul.addr %s222, 16
      %s229 = sadd.s32 %s227, %s228
      %s230 = smul.addr %s229, 4
      %s231 = scalar_lea.vmem %s0, %s230
      %p232 = pneg %p65
      %p233 = pneg %p62
      %s234 = smul.u32 16, %s23
      %p235 = scmp.lt.s32.totalorder %s20, 3
      %s236 = scalar_select %p235, %s20, 3
      %p237 = scmp.lt.s32.totalorder %s234, 15
      %s238 = scalar_select %p237, %s234, 15
      %p239 = scmp.lt.s32.totalorder %s22, 0
      %s240 = scalar_select %p239, %s22, 0
      %s241 = sadd.s32 %s240, %s238
      %s242 = smul.addr %s236, 16
      %s243 = sadd.s32 %s241, %s242
      %s244 = smul.addr %s243, 4
      %s245 = scalar_lea.vmem %s1, %s244
      %p246 = pneg %p95
      %p247 = pneg %p92
      %p248 = scmp.lt.s32.totalorder %s20, 3
      %s249 = scalar_select %p248, %s20, 3
      %p250 = scmp.lt.s32.totalorder %s22, 0
      %s251 = scalar_select %p250, %s22, 0
      %s252 = sadd.s32 %s251, %s249
      %s253 = scalar_lea.vmem %s2, %s252
      %p254 = pneg %p123
      %p255 = pneg %p120
      %p256 = pneg %p153
      %p257 = pneg %p150
      %s258 = smul.u32 8, %s21
      %p259 = scmp.lt.s32.totalorder %s20, 3
      %s260 = scalar_select %p259, %s20, 3
      %p261 = scmp.lt.s32.totalorder %s258, 15
      %s262 = scalar_select %p261, %s258, 15
      %p263 = scmp.lt.s32.totalorder %s22, 0
      %s264 = scalar_select %p263, %s22, 0
      %s265 = sadd.s32 %s264, %s262
      %s266 = smul.addr %s260, 16
      %s267 = sadd.s32 %s265, %s266
      %s268 = smul.addr %s267, 8
      %s269 = scalar_lea.vmem %s3, %s268
      %s270 = smul.u32 8, %s21
      %p271 = scmp.lt.s32.totalorder %s20, 3
      %s272 = scalar_select %p271, %s20, 3
      %p273 = scmp.lt.s32.totalorder %s270, 15
      %s274 = scalar_select %p273, %s270, 15
      %p275 = scmp.lt.s32.totalorder %s23, 0
      %s276 = scalar_select %p275, %s23, 0
      %s277 = sadd.s32 %s276, %s274
      %s278 = smul.addr %s272, 16
      %s279 = sadd.s32 %s277, %s278
      %s280 = smul.addr %s279, 4
      %s281 = scalar_lea.vmem %s0, %s280
      %s282 = smul.u32 8, %s21
      %s283 = smul.u32 16, %s23
      %p284 = scmp.lt.s32.totalorder %s20, 3
      %s285 = scalar_select %p284, %s20, 3
      %p286 = scmp.lt.s32.totalorder %s283, 15
      %s287 = scalar_select %p286, %s283, 15
      %p288 = scmp.lt.s32.totalorder %s22, 0
      %s289 = scalar_select %p288, %s22, 0
      %s290 = sadd.s32 %s289, %s287
      %s291 = smul.addr %s285, 16
      %s292 = sadd.s32 %s290, %s291
      %s293 = smul.addr %s292, 4
      %s294 = scalar_lea.vmem %s1, %s293
      %s295 = smul.u32 16, %s23
      %p296 = scmp.lt.s32.totalorder %s20, 3
      %s297 = scalar_select %p296, %s20, 3
      %p298 = scmp.lt.s32.totalorder %s22, 0
      %s299 = scalar_select %p298, %s22, 0
      %s300 = sadd.s32 %s299, %s297
      %s301 = scalar_lea.vmem %s2, %s300
      %s302 = smul.u32 8, %s21
      %p303 = scmp.lt.s32.totalorder %s20, 3
      %s304 = scalar_select %p303, %s20, 3
      %p305 = scmp.lt.s32.totalorder %s302, 15
      %s306 = scalar_select %p305, %s302, 15
      %p307 = scmp.lt.s32.totalorder %s22, 0
      %s308 = scalar_select %p307, %s22, 0
      %s309 = sadd.s32 %s308, %s306
      %s310 = smul.addr %s304, 16
      %s311 = sadd.s32 %s309, %s310
      %s312 = smul.addr %s311, 8
      %s313 = scalar_lea.vmem %s3, %s312
      %s314 = smul.u32 8, %s21
      %p316 = scmp.eq.s32.totalorder %s23, 0
      // Predicated region
      $region33: #{mgan_forward.22} parent=31 // pred_check
        %p317 = pneg %p316
      $region34: #{mgan_forward.22} parent=31 // pred_check_branch
        %319 = sbr.rel (%p317) target = $region36
      $region35: #{mgan_forward.22} parent=31 // pred_region
        %320 = vst [vmem:[#allocation2] sm:$0xff] 0.0
        %321 = vst [vmem:[#allocation2 + $0x8] sm:$0xff] 0.0
        %322 = vst [vmem:[#allocation2 + $0x10] sm:$0xff] 0.0
        %323 = vst [vmem:[#allocation2 + $0x18] sm:$0xff] 0.0
        %324 = vst [vmem:[#allocation2 + $0x20] sm:$0xff] 0.0
        %325 = vst [vmem:[#allocation2 + $0x28] sm:$0xff] 0.0
        %326 = vst [vmem:[#allocation2 + $0x30] sm:$0xff] 0.0
        %327 = vst [vmem:[#allocation2 + $0x38] sm:$0xff] 0.0
      $region36: #{mgan_forward.22} parent=31 // pred_fallthru
        _
      %v328 = vld [vmem:[%s281] sm:$0xf]
      %v329 = vld [vmem:[%s281 + $0x4] sm:$0xf]
      %v330 = vld [vmem:[%s281 + $0x8] sm:$0xf]
      %v331 = vld [vmem:[%s281 + $0xc] sm:$0xf]
      %v332 = vld [vmem:[%s281 + $0x10] sm:$0xf]
      %v333 = vld [vmem:[%s281 + $0x14] sm:$0xf]
      %v334 = vld [vmem:[%s281 + $0x18] sm:$0xf]
      %v335 = vld [vmem:[%s281 + $0x1c] sm:$0xf]
      %v336 = vmax.bf16 %v328, 0
      %v337 = vmax.bf16 %v329, 0
      %v338 = vmax.bf16 %v330, 0
      %v339 = vmax.bf16 %v331, 0
      %v340 = vmax.bf16 %v332, 0
      %v341 = vmax.bf16 %v333, 0
      %v342 = vmax.bf16 %v334, 0
      %v343 = vmax.bf16 %v335, 0
      %v344 = vld [vmem:[#allocation2] sm:$0xff]
      %v345 = vld [vmem:[#allocation2 + $0x8] sm:$0xff]
      %v346 = vld [vmem:[#allocation2 + $0x10] sm:$0xff]
      %v347 = vld [vmem:[#allocation2 + $0x18] sm:$0xff]
      %v348 = vld [vmem:[#allocation2 + $0x20] sm:$0xff]
      %v349 = vld [vmem:[#allocation2 + $0x28] sm:$0xff]
      %v350 = vld [vmem:[#allocation2 + $0x30] sm:$0xff]
      %v351 = vld [vmem:[#allocation2 + $0x38] sm:$0xff]
      %v352 = vld [vmem:[%s294] sm:$0xf]
      %v353 = vld [vmem:[%s294 + $0x4] sm:$0xf]
      %v354 = vld [vmem:[%s294 + $0x8] sm:$0xf]
      %v355 = vld [vmem:[%s294 + $0xc] sm:$0xf]
      %v356 = vld [vmem:[%s294 + $0x10] sm:$0xf]
      %v357 = vld [vmem:[%s294 + $0x14] sm:$0xf]
      %v358 = vld [vmem:[%s294 + $0x18] sm:$0xf]
      %v359 = vld [vmem:[%s294 + $0x1c] sm:$0xf]
      %v360 = vld [vmem:[%s294 + $0x20] sm:$0xf]
      %v361 = vld [vmem:[%s294 + $0x24] sm:$0xf]
      %v362 = vld [vmem:[%s294 + $0x28] sm:$0xf]
      %v363 = vld [vmem:[%s294 + $0x2c] sm:$0xf]
      %v364 = vld [vmem:[%s294 + $0x30] sm:$0xf]
      %v365 = vld [vmem:[%s294 + $0x34] sm:$0xf]
      %v366 = vld [vmem:[%s294 + $0x38] sm:$0xf]
      %v367 = vld [vmem:[%s294 + $0x3c] sm:$0xf]
      %v376 = vunpack.c.l.b16 %v336
      %v377 = vunpack.c.l.b16 %v337
      %v378 = vunpack.c.l.b16 %v338
      %v379 = vunpack.c.l.b16 %v339
      %v380 = vunpack.c.l.b16 %v340
      %v381 = vunpack.c.l.b16 %v341
      %v382 = vunpack.c.l.b16 %v342
      %v383 = vunpack.c.l.b16 %v343
      %v384 = vpack.c.b16 %v377, %v376
      %v385 = vpack.c.b16 %v379, %v378
      %v386 = vpack.c.b16 %v381, %v380
      %v387 = vpack.c.b16 %v383, %v382
      %v408 = vunpack.c.l.b16 %v352
      %v409 = vunpack.c.l.b16 %v353
      %v410 = vunpack.c.l.b16 %v354
      %v411 = vunpack.c.l.b16 %v355
      %v412 = vunpack.c.l.b16 %v356
      %v413 = vunpack.c.l.b16 %v357
      %v414 = vunpack.c.l.b16 %v358
      %v415 = vunpack.c.l.b16 %v359
      %v416 = vunpack.c.l.b16 %v360
      %v417 = vunpack.c.l.b16 %v361
      %v418 = vunpack.c.l.b16 %v362
      %v419 = vunpack.c.l.b16 %v363
      %v420 = vunpack.c.l.b16 %v364
      %v421 = vunpack.c.l.b16 %v365
      %v422 = vunpack.c.l.b16 %v366
      %v423 = vunpack.c.l.b16 %v367
      %v424 = vpack.c.b16 %v409, %v408
      %v425 = vpack.c.b16 %v411, %v410
      %v426 = vpack.c.b16 %v413, %v412
      %v427 = vpack.c.b16 %v415, %v414
      %v428 = vpack.c.b16 %v417, %v416
      %v429 = vpack.c.b16 %v419, %v418
      %v430 = vpack.c.b16 %v421, %v420
      %v431 = vpack.c.b16 %v423, %v422
      %440 = vmatprep.subr.bf16.mxu0 0
      %441 = vmatpush1.bf16.msra.mxu0 %v431
      %442 = vmatprep.subr.bf16.mxu0 0
      %443 = vmatpush1.bf16.msra.mxu0 %v430
      %444 = vmatprep.subr.bf16.mxu0 0
      %445 = vmatpush1.bf16.msra.mxu0 %v429
      %446 = vmatprep.subr.bf16.mxu0 0
      %447 = vmatpush1.bf16.msra.mxu0 %v428
      %448 = vmatprep.subr.bf16.mxu0 0
      %449 = vmatpush1.bf16.msra.mxu0 %v427
      %450 = vmatprep.subr.bf16.mxu0 0
      %451 = vmatpush1.bf16.msra.mxu0 %v426
      %452 = vmatprep.subr.bf16.mxu0 0
      %453 = vmatpush1.bf16.msra.mxu0 %v425
      %454 = vmatprep.subr.bf16.mxu0 0
      %455 = vmatpush1.bf16.msra.mxu0 %v424
      %456 = vmatprep.subr.bf16.mxu0 0
      %457 = vmatpush2.bf16.msra.mxu0 0
      %458 = vmatprep.subr.bf16.mxu0 0
      %459 = vmatpush2.bf16.msra.mxu0 0
      %460 = vmatprep.subr.bf16.mxu0 0
      %461 = vmatpush2.bf16.msra.mxu0 0
      %462 = vmatprep.subr.bf16.mxu0 0
      %463 = vmatpush2.bf16.msra.mxu0 0
      %464 = vmatprep.subr.bf16.mxu0 0
      %465 = vmatpush2.bf16.msra.mxu0 0
      %466 = vmatprep.subr.bf16.mxu0 0
      %467 = vmatpush2.bf16.msra.mxu0 0
      %468 = vmatprep.subr.bf16.mxu0 0
      %469 = vmatpush2.bf16.msra.mxu0 0
      %470 = vmatprep.subr.bf16.mxu0 0
      %471 = vmatpush2.bf16.msra.mxu0 0
      %472 = vmatprep.mubr.bf16.mxu0 0
      %473 = vmatmul.mubr.bf16.gmra.mxu0 %v384
      %v474 = vpop.f32.mrf.mxu0
      %v475 = vadd.f32 0.0, %v474
      %v476 = vpop.f32.mrf.mxu0
      %v477 = vpop.f32.mrf.mxu0
      %v478 = vadd.f32 0.0, %v477
      %v479 = vpop.f32.mrf.mxu0
      %480 = vmatprep.mubr.bf16.mxu0 0
      %481 = vmatmul.mubr.bf16.gmra.mxu0 %v385
      %v482 = vpop.f32.mrf.mxu0
      %v483 = vadd.f32 0.0, %v482
      %v484 = vpop.f32.mrf.mxu0
      %v485 = vpop.f32.mrf.mxu0
      %v486 = vadd.f32 0.0, %v485
      %v487 = vpop.f32.mrf.mxu0
      %488 = vmatprep.mubr.bf16.mxu0 0
      %489 = vmatmul.mubr.bf16.gmra.mxu0 %v386
      %v490 = vpop.f32.mrf.mxu0
      %v491 = vadd.f32 0.0, %v490
      %v492 = vpop.f32.mrf.mxu0
      %v493 = vpop.f32.mrf.mxu0
      %v494 = vadd.f32 0.0, %v493
      %v495 = vpop.f32.mrf.mxu0
      %496 = vmatprep.mubr.bf16.mxu0 0
      %497 = vmatmul.mubr.bf16.gmra.mxu0 %v387
      %v498 = vpop.f32.mrf.mxu0
      %v499 = vadd.f32 0.0, %v498
      %v500 = vpop.f32.mrf.mxu0
      %v501 = vpop.f32.mrf.mxu0
      %v502 = vadd.f32 0.0, %v501
      %v503 = vpop.f32.mrf.mxu0
      %504 = vdwg.mxu0
      %v505 = vadd.f32 %v344, %v475
      %v506 = vadd.f32 %v345, %v478
      %v507 = vadd.f32 %v346, %v483
      %v508 = vadd.f32 %v347, %v486
      %v509 = vadd.f32 %v348, %v491
      %v510 = vadd.f32 %v349, %v494
      %v511 = vadd.f32 %v350, %v499
      %v512 = vadd.f32 %v351, %v502
      %513 = vst [vmem:[#allocation2] sm:$0xff] %v505
      %514 = vst [vmem:[#allocation2 + $0x8] sm:$0xff] %v506
      %515 = vst [vmem:[#allocation2 + $0x10] sm:$0xff] %v507
      %516 = vst [vmem:[#allocation2 + $0x18] sm:$0xff] %v508
      %517 = vst [vmem:[#allocation2 + $0x20] sm:$0xff] %v509
      %518 = vst [vmem:[#allocation2 + $0x28] sm:$0xff] %v510
      %519 = vst [vmem:[#allocation2 + $0x30] sm:$0xff] %v511
      %520 = vst [vmem:[#allocation2 + $0x38] sm:$0xff] %v512
      // Predicated region
      $region37: #{mgan_forward.22} parent=31 // pred_check
        %p521 = pneg %p316
      $region38: #{mgan_forward.22} parent=31 // pred_check_branch
        %523 = sbr.rel (%p521) target = $region40
      $region39: #{mgan_forward.22} parent=31 // pred_region
        %v524 = vld [vmem:[#allocation2] sm:$0xff]
        %v525 = vld [vmem:[#allocation2 + $0x8] sm:$0xff]
        %v526 = vld [vmem:[#allocation2 + $0x10] sm:$0xff]
        %v527 = vld [vmem:[#allocation2 + $0x18] sm:$0xff]
        %v528 = vld [vmem:[#allocation2 + $0x20] sm:$0xff]
        %v529 = vld [vmem:[#allocation2 + $0x28] sm:$0xff]
        %v530 = vld [vmem:[#allocation2 + $0x30] sm:$0xff]
        %v531 = vld [vmem:[#allocation2 + $0x38] sm:$0xff]
        %v532 = vld [vmem:[%s301] sm:$0x1]
        %v534 = vlaneseq
        %v535 = vshrl.u32 %v534, 7
        %v536 = vsub.s32 0, %v535
        %v537 = vrot.slane %v532, %v536
        %v539 = vadd.f32 %v524, %v537
        %v540 = vadd.f32 %v525, %v537
        %v541 = vadd.f32 %v526, %v537
        %v542 = vadd.f32 %v527, %v537
        %v543 = vadd.f32 %v528, %v537
        %v544 = vadd.f32 %v529, %v537
        %v545 = vadd.f32 %v530, %v537
        %v546 = vadd.f32 %v531, %v537
        %547 = vst [vmem:[%s313] sm:$0xff] %v539
        %548 = vst [vmem:[%s313 + $0x8] sm:$0xff] %v540
        %549 = vst [vmem:[%s313 + $0x10] sm:$0xff] %v541
        %550 = vst [vmem:[%s313 + $0x18] sm:$0xff] %v542
        %551 = vst [vmem:[%s313 + $0x20] sm:$0xff] %v543
        %552 = vst [vmem:[%s313 + $0x28] sm:$0xff] %v544
        %553 = vst [vmem:[%s313 + $0x30] sm:$0xff] %v545
        %554 = vst [vmem:[%s313 + $0x38] sm:$0xff] %v546
      $region40: #{mgan_forward.22} parent=31 // pred_fallthru
        _
      %s555 = smul.u32 8, %s21
      %p556 = scmp.lt.s32.totalorder %s20, 3
      %s557 = scalar_select %p556, %s20, 3
      %p558 = scmp.lt.s32.totalorder %s555, 15
      %s559 = scalar_select %p558, %s555, 15
      %p560 = scmp.lt.s32.totalorder %s22, 0
      %s561 = scalar_select %p560, %s22, 0
      %s562 = sadd.s32 %s561, %s559
      %s563 = smul.addr %s557, 16
      %s564 = sadd.s32 %s562, %s563
      %s565 = smul.addr %s564, 8
      %s566 = scalar_lea.vmem %s3, %s565
      // Predicated region
      $region41: #{mgan_forward.22} parent=31 // pred_check
        %p567 = pneg %p150
      $region42: #{mgan_forward.22} parent=31 // pred_check_branch
        %569 = sbr.rel (%p567) target = $region44
      $region43: #{mgan_forward.22} parent=31 // pred_region
        %s570 = smul.u32 8, %s21
      $region44: #{mgan_forward.22} parent=31 // pred_fallthru
        _
    $region32: #{mgan_forward.22} parent=5 // pred_fallthru
      _
    %p571 = scmp.le.s32.totalorder 2, %s9
    // Predicated region
    $region45: #{mgan_forward.22} parent=5 // pred_check
      %p572 = pneg %p571
    $region46: #{mgan_forward.22} parent=5 // pred_check_branch
      %574 = sbr.rel (%p572) target = $region48
    $region47: #{mgan_forward.22} parent=5 // pred_region
      %s575 = ssub.s32 %s9, 2
      // Predicated region
      $region49: #{mgan_forward.22} parent=47 // pred_check
        %p576 = pneg %p156
      $region50: #{mgan_forward.22} parent=47 // pred_check_branch
        %578 = sbr.rel (%p576) target = $region52
      $region51: #{mgan_forward.22} parent=47 // pred_region
        %s579 = smul.u32 8, %s25
        %p580 = scmp.lt.s32.totalorder %s24, 3
        %s581 = scalar_select %p580, %s24, 3
        %p582 = scmp.lt.s32.totalorder %s579, 15
        %s583 = scalar_select %p582, %s579, 15
        %p584 = scmp.lt.s32.totalorder %s26, 0
        %s585 = scalar_select %p584, %s26, 0
        %s586 = sadd.s32 %s585, %s583
        %s587 = smul.addr %s581, 16
        %s588 = sadd.s32 %s586, %s587
        %s589 = smul.addr %s588, 8
        %s590 = scalar_lea.vmem %s3, %s589
      $region52: #{mgan_forward.22} parent=47 // pred_fallthru
        _
    $region48: #{mgan_forward.22} parent=5 // pred_fallthru
      _
  $region6: #{mgan_forward.22} parent=0 // loop_footer
    %s13 = sadd.s32 1, %s9
  $region7: #{mgan_forward.22} parent=0 // loop_footer_branch
    %8 = sbr.rel target = $region3
  $region8: #{mgan_forward.22} parent=0 // loop_exit
    _

// kernel: mgan_forward.23
$region0: #{mgan_forward.23}
  #allocation0 [shape = 'u32[]', space=smem, size = 0x4, offset = 0x4, fixed_abs, tag = 'smem constant byte address 0x4 - core index']
  #allocation1 [shape = 'u32[144,128]{1,0:T(1,128)}', space=vmem, size = 0x12000, scoped, tag = 'internal scratch']
  #allocation2 [shape = 'f32[256,128]{1,0:T(8,128)}', space=vmem, size = 0x20000, scoped, tag = 'scratch operand']
  %s0 = inlined_call_operand.vmem [shape: bf16[4,512,128], index: 0, kind: input, shape index: {}]
  %s1 = inlined_call_operand.vmem [shape: bf16[4,128,128], index: 1, kind: input, shape index: {}]
  %s2 = inlined_call_operand.vmem [shape: f32[4,1,128], index: 2, kind: input, shape index: {}]
  %s3 = inlined_call_operand.vmem [shape: f32[4,512,128], index: 3, kind: output, shape index: {}]
  %s4 = sld [smem:[#allocation0]]
  $region53: #{mgan_forward.23} parent=0
    _
  %s6 = ssub.s32 1, %s4
  %s7 = scalar_select 0, %s6, %s4
  loop: start=0, step=1, limit=10
  $region2: #{mgan_forward.23} parent=0 // loop_pre_header
    _
  $region3: #{mgan_forward.23} parent=0 // loop_header
    %s9 = sphi 0, %s13
    %p10 = scmp.ge.s32.totalorder %s9, 10
    %s16 = sphi 0, %s42
    %s17 = sphi 0, %s38
    %s18 = sphi 0, %s34
    %s19 = sphi 0, %s30
    %s20 = sphi 0, %s16
    %s21 = sphi 0, %s17
    %s22 = sphi 0, %s18
    %s23 = sphi 0, %s19
    %s24 = sphi 0, %s20
    %s25 = sphi 0, %s21
    %s26 = sphi 0, %s22
    %s27 = sphi 0, %s23
    %s49 = sphi 0, %s51
    %s52 = sphi 0, %s49
    %s53 = sphi 0, %s52
    %s69 = sphi 0, %s53
    %s79 = sphi 0, %s81
    %s82 = sphi 0, %s79
    %s83 = sphi 0, %s82
    %s99 = sphi 0, %s83
    %s107 = sphi 0, %s109
    %s110 = sphi 0, %s107
    %s111 = sphi 0, %s110
    %s127 = sphi 0, %s111
    %s137 = sphi 0, %s139
    %s140 = sphi 0, %s137
    %s141 = sphi 0, %s140
    %s157 = sphi 0, %s141
  $region4: #{mgan_forward.23} parent=0 // loop_header_branch
    %12 = sbr.rel (%p10) target = $region8
  $region5: #{mgan_forward.23} parent=0 // loop_body
    %s14 = ssub.s32 %s9, 1
    %s15 = ssub.s32 %s9, 2
    %s28 = sadd.s32 1, %s19
    %p29 = scmp.ge.s32.totalorder %s28, 1
    %s30 = scalar_select %p29, 0, %s28
    %s31 = sadd.s32 1, %s18
    %s32 = scalar_select %p29, %s31, %s18
    %p33 = scmp.ge.s32.totalorder %s32, 1
    %s34 = scalar_select %p33, 0, %s32
    %s35 = sadd.s32 1, %s17
    %s36 = scalar_select %p33, %s35, %s17
    %p37 = scmp.ge.s32.totalorder %s36, 2
    %s38 = scalar_select %p37, 0, %s36
    %s39 = sadd.s32 1, %s16
    %s40 = scalar_select %p37, %s39, %s16
    %p41 = scmp.ge.s32.totalorder %s40, 4
    %s42 = scalar_select %p41, 0, %s40
    %s43 = ssub.s32 %s16, %s42
    %s44 = ssub.s32 %s17, %s38
    %s45 = sor.u32 %s43, %s44
    %s46 = ssub.s32 %s19, %s30
    %s47 = sor.u32 %s45, %s46
    %p48 = scmp.eq.s32.totalorder %s47, 0
    %s50 = sadd.s32 %s49, 1
    %s51 = scalar_select %p48, %s49, %s50
    %p54 = pneg %p48
    %p55 = scmp.eq.s32.totalorder %s9, 7
    %p56 = por %p54, %p55
    %p57 = scmp.ne.s32.totalorder %s49, %s52
    %p58 = scmp.eq.s32.totalorder %s9, 0
    %p59 = por %p57, %p58
    %p60 = scmp.ne.s32.totalorder %s49, %s52
    %p61 = scmp.eq.s32.totalorder %s14, 7
    %p62 = por %p60, %p61
    %p63 = scmp.ne.s32.totalorder %s52, %s53
    %p64 = scmp.eq.s32.totalorder %s14, 0
    %p65 = por %p63, %p64
    %p66 = scmp.ne.s32.totalorder %s52, %s53
    %p67 = scmp.eq.s32.totalorder %s15, 7
    %p68 = por %p66, %p67
    %p70 = scmp.ne.s32.totalorder %s53, %s69
    %p71 = scmp.eq.s32.totalorder %s15, 0
    %p72 = por %p70, %p71
    %s73 = ssub.s32 %s16, %s42
    %s74 = ssub.s32 %s19, %s30
    %s75 = sor.u32 %s73, %s74
    %s76 = ssub.s32 %s18, %s34
    %s77 = sor.u32 %s75, %s76
    %p78 = scmp.eq.s32.totalorder %s77, 0
    %s80 = sadd.s32 %s79, 1
    %s81 = scalar_select %p78, %s79, %s80
    %p84 = pneg %p78
    %p85 = scmp.eq.s32.totalorder %s9, 7
    %p86 = por %p84, %p85
    %p87 = scmp.ne.s32.totalorder %s79, %s82
    %p88 = scmp.eq.s32.totalorder %s9, 0
    %p89 = por %p87, %p88
    %p90 = scmp.ne.s32.totalorder %s79, %s82
    %p91 = scmp.eq.s32.totalorder %s14, 7
    %p92 = por %p90, %p91
    %p93 = scmp.ne.s32.totalorder %s82, %s83
    %p94 = scmp.eq.s32.totalorder %s14, 0
    %p95 = por %p93, %p94
    %p96 = scmp.ne.s32.totalorder %s82, %s83
    %p97 = scmp.eq.s32.totalorder %s15, 7
    %p98 = por %p96, %p97
    %p100 = scmp.ne.s32.totalorder %s83, %s99
    %p101 = scmp.eq.s32.totalorder %s15, 0
    %p102 = por %p100, %p101
    %s103 = ssub.s32 %s16, %s42
    %s104 = ssub.s32 %s18, %s34
    %s105 = sor.u32 %s103, %s104
    %p106 = scmp.eq.s32.totalorder %s105, 0
    %s108 = sadd.s32 %s107, 1
    %s109 = scalar_select %p106, %s107, %s108
    %p112 = pneg %p106
    %p113 = scmp.eq.s32.totalorder %s9, 7
    %p114 = por %p112, %p113
    %p115 = scmp.ne.s32.totalorder %s107, %s110
    %p116 = scmp.eq.s32.totalorder %s9, 0
    %p117 = por %p115, %p116
    %p118 = scmp.ne.s32.totalorder %s107, %s110
    %p119 = scmp.eq.s32.totalorder %s14, 7
    %p120 = por %p118, %p119
    %p121 = scmp.ne.s32.totalorder %s110, %s111
    %p122 = scmp.eq.s32.totalorder %s14, 0
    %p123 = por %p121, %p122
    %p124 = scmp.ne.s32.totalorder %s110, %s111
    %p125 = scmp.eq.s32.totalorder %s15, 7
    %p126 = por %p124, %p125
    %p128 = scmp.ne.s32.totalorder %s111, %s127
    %p129 = scmp.eq.s32.totalorder %s15, 0
    %p130 = por %p128, %p129
    %s131 = ssub.s32 %s16, %s42
    %s132 = ssub.s32 %s17, %s38
    %s133 = sor.u32 %s131, %s132
    %s134 = ssub.s32 %s18, %s34
    %s135 = sor.u32 %s133, %s134
    %p136 = scmp.eq.s32.totalorder %s135, 0
    %s138 = sadd.s32 %s137, 1
    %s139 = scalar_select %p136, %s137, %s138
    %p142 = pneg %p136
    %p143 = scmp.eq.s32.totalorder %s9, 7
    %p144 = por %p142, %p143
    %p145 = scmp.ne.s32.totalorder %s137, %s140
    %p146 = scmp.eq.s32.totalorder %s9, 0
    %p147 = por %p145, %p146
    %p148 = scmp.ne.s32.totalorder %s137, %s140
    %p149 = scmp.eq.s32.totalorder %s14, 7
    %p150 = por %p148, %p149
    %p151 = scmp.ne.s32.totalorder %s140, %s141
    %p152 = scmp.eq.s32.totalorder %s14, 0
    %p153 = por %p151, %p152
    %p154 = scmp.ne.s32.totalorder %s140, %s141
    %p155 = scmp.eq.s32.totalorder %s15, 7
    %p156 = por %p154, %p155
    %p158 = scmp.ne.s32.totalorder %s141, %s157
    %p159 = scmp.eq.s32.totalorder %s15, 0
    %p160 = por %p158, %p159
    %p161 = scmp.le.s32.totalorder 1, %s9
    %p162 = scmp.lt.s32.totalorder %s9, 9
    %p163 = pnand %p161, %p162
    %p164 = pneg %p163
    // Predicated region
    $region9: #{mgan_forward.23} parent=5 // pred_check
      _
    $region10: #{mgan_forward.23} parent=5 // pred_check_branch
      %166 = sbr.rel (%p163) target = $region12
    $region11: #{mgan_forward.23} parent=5 // pred_region
      %s167 = ssub.s32 %s9, 1
    $region12: #{mgan_forward.23} parent=5 // pred_fallthru
      _
    %p168 = scmp.lt.s32.totalorder %s9, 8
    // Predicated region
    $region13: #{mgan_forward.23} parent=5 // pred_check
      %p169 = pneg %p168
    $region14: #{mgan_forward.23} parent=5 // pred_check_branch
      %171 = sbr.rel (%p169) target = $region16
    $region15: #{mgan_forward.23} parent=5 // pred_region
      // Predicated region
      $region17: #{mgan_forward.23} parent=15 // pred_check
        %p172 = pneg %p59
      $region18: #{mgan_forward.23} parent=15 // pred_check_branch
        %174 = sbr.rel (%p172) target = $region20
      $region19: #{mgan_forward.23} parent=15 // pred_region
        %s175 = smul.u32 32, %s17
        %p176 = scmp.lt.s32.totalorder %s16, 3
        %s177 = scalar_select %p176, %s16, 3
        %p178 = scmp.lt.s32.totalorder %s175, 63
        %s179 = scalar_select %p178, %s175, 63
        %p180 = scmp.lt.s32.totalorder %s19, 0
        %s181 = scalar_select %p180, %s19, 0
        %s182 = sadd.s32 %s181, %s179
        %s183 = smul.addr %s177, 64
        %s184 = sadd.s32 %s182, %s183
        %s185 = smul.addr %s184, 4
        %s186 = scalar_lea.vmem %s0, %s185
        %s187 = smul.u32 32, %s17
      $region20: #{mgan_forward.23} parent=15 // pred_fallthru
        _
      // Predicated region
      $region21: #{mgan_forward.23} parent=15 // pred_check
        %p188 = pneg %p89
      $region22: #{mgan_forward.23} parent=15 // pred_check_branch
        %190 = sbr.rel (%p188) target = $region24
      $region23: #{mgan_forward.23} parent=15 // pred_region
        %s191 = smul.u32 16, %s19
        %p192 = scmp.lt.s32.totalorder %s16, 3
        %s193 = scalar_select %p192, %s16, 3
        %p194 = scmp.lt.s32.totalorder %s191, 15
        %s195 = scalar_select %p194, %s191, 15
        %p196 = scmp.lt.s32.totalorder %s18, 0
        %s197 = scalar_select %p196, %s18, 0
        %s198 = sadd.s32 %s197, %s195
        %s199 = smul.addr %s193, 16
        %s200 = sadd.s32 %s198, %s199
        %s201 = smul.addr %s200, 4
        %s202 = scalar_lea.vmem %s1, %s201
        %s203 = smul.u32 16, %s19
      $region24: #{mgan_forward.23} parent=15 // pred_fallthru
        _
      // Predicated region
      $region25: #{mgan_forward.23} parent=15 // pred_check
        %p204 = pneg %p117
      $region26: #{mgan_forward.23} parent=15 // pred_check_branch
        %206 = sbr.rel (%p204) target = $region28
      $region27: #{mgan_forward.23} parent=15 // pred_region
        %p207 = scmp.lt.s32.totalorder %s16, 3
        %s208 = scalar_select %p207, %s16, 3
        %p209 = scmp.lt.s32.totalorder %s18, 0
        %s210 = scalar_select %p209, %s18, 0
        %s211 = sadd.s32 %s210, %s208
        %s212 = scalar_lea.vmem %s2, %s211
      $region28: #{mgan_forward.23} parent=15 // pred_fallthru
        _
    $region16: #{mgan_forward.23} parent=5 // pred_fallthru
      _
    %p213 = scmp.le.s32.totalorder 1, %s9
    %p214 = scmp.lt.s32.totalorder %s9, 9
    %p215 = pnand %p213, %p214
    %p216 = pneg %p215
    // Predicated region
    $region29: #{mgan_forward.23} parent=5 // pred_check
      _
    $region30: #{mgan_forward.23} parent=5 // pred_check_branch
      %218 = sbr.rel (%p215) target = $region32
    $region31: #{mgan_forward.23} parent=5 // pred_region
      %s219 = ssub.s32 %s9, 1
      %s220 = smul.u32 32, %s21
      %p221 = scmp.lt.s32.totalorder %s20, 3
      %s222 = scalar_select %p221, %s20, 3
      %p223 = scmp.lt.s32.totalorder %s220, 63
      %s224 = scalar_select %p223, %s220, 63
      %p225 = scmp.lt.s32.totalorder %s23, 0
      %s226 = scalar_select %p225, %s23, 0
      %s227 = sadd.s32 %s226, %s224
      %s228 = smul.addr %s222, 64
      %s229 = sadd.s32 %s227, %s228
      %s230 = smul.addr %s229, 4
      %s231 = scalar_lea.vmem %s0, %s230
      %p232 = pneg %p65
      %p233 = pneg %p62
      %s234 = smul.u32 16, %s23
      %p235 = scmp.lt.s32.totalorder %s20, 3
      %s236 = scalar_select %p235, %s20, 3
      %p237 = scmp.lt.s32.totalorder %s234, 15
      %s238 = scalar_select %p237, %s234, 15
      %p239 = scmp.lt.s32.totalorder %s22, 0
      %s240 = scalar_select %p239, %s22, 0
      %s241 = sadd.s32 %s240, %s238
      %s242 = smul.addr %s236, 16
      %s243 = sadd.s32 %s241, %s242
      %s244 = smul.addr %s243, 4
      %s245 = scalar_lea.vmem %s1, %s244
      %p246 = pneg %p95
      %p247 = pneg %p92
      %p248 = scmp.lt.s32.totalorder %s20, 3
      %s249 = scalar_select %p248, %s20, 3
      %p250 = scmp.lt.s32.totalorder %s22, 0
      %s251 = scalar_select %p250, %s22, 0
      %s252 = sadd.s32 %s251, %s249
      %s253 = scalar_lea.vmem %s2, %s252
      %p254 = pneg %p123
      %p255 = pneg %p120
      %p256 = pneg %p153
      %p257 = pneg %p150
      %s258 = smul.u32 32, %s21
      %p259 = scmp.lt.s32.totalorder %s20, 3
      %s260 = scalar_select %p259, %s20, 3
      %p261 = scmp.lt.s32.totalorder %s258, 63
      %s262 = scalar_select %p261, %s258, 63
      %p263 = scmp.lt.s32.totalorder %s22, 0
      %s264 = scalar_select %p263, %s22, 0
      %s265 = sadd.s32 %s264, %s262
      %s266 = smul.addr %s260, 64
      %s267 = sadd.s32 %s265, %s266
      %s268 = smul.addr %s267, 8
      %s269 = scalar_lea.vmem %s3, %s268
      %s270 = smul.u32 32, %s21
      %p271 = scmp.lt.s32.totalorder %s20, 3
      %s272 = scalar_select %p271, %s20, 3
      %p273 = scmp.lt.s32.totalorder %s270, 63
      %s274 = scalar_select %p273, %s270, 63
      %p275 = scmp.lt.s32.totalorder %s23, 0
      %s276 = scalar_select %p275, %s23, 0
      %s277 = sadd.s32 %s276, %s274
      %s278 = smul.addr %s272, 64
      %s279 = sadd.s32 %s277, %s278
      %s280 = smul.addr %s279, 4
      %s281 = scalar_lea.vmem %s0, %s280
      %s282 = smul.u32 32, %s21
      %s283 = smul.u32 16, %s23
      %p284 = scmp.lt.s32.totalorder %s20, 3
      %s285 = scalar_select %p284, %s20, 3
      %p286 = scmp.lt.s32.totalorder %s283, 15
      %s287 = scalar_select %p286, %s283, 15
      %p288 = scmp.lt.s32.totalorder %s22, 0
      %s289 = scalar_select %p288, %s22, 0
      %s290 = sadd.s32 %s289, %s287
      %s291 = smul.addr %s285, 16
      %s292 = sadd.s32 %s290, %s291
      %s293 = smul.addr %s292, 4
      %s294 = scalar_lea.vmem %s1, %s293
      %s295 = smul.u32 16, %s23
      %p296 = scmp.lt.s32.totalorder %s20, 3
      %s297 = scalar_select %p296, %s20, 3
      %p298 = scmp.lt.s32.totalorder %s22, 0
      %s299 = scalar_select %p298, %s22, 0
      %s300 = sadd.s32 %s299, %s297
      %s301 = scalar_lea.vmem %s2, %s300
      %s302 = smul.u32 32, %s21
      %p303 = scmp.lt.s32.totalorder %s20, 3
      %s304 = scalar_select %p303, %s20, 3
      %p305 = scmp.lt.s32.totalorder %s302, 63
      %s306 = scalar_select %p305, %s302, 63
      %p307 = scmp.lt.s32.totalorder %s22, 0
      %s308 = scalar_select %p307, %s22, 0
      %s309 = sadd.s32 %s308, %s306
      %s310 = smul.addr %s304, 64
      %s311 = sadd.s32 %s309, %s310
      %s312 = smul.addr %s311, 8
      %s313 = scalar_lea.vmem %s3, %s312
      %s314 = smul.u32 32, %s21
      %p316 = scmp.eq.s32.totalorder %s23, 0
      // Predicated region
      $region33: #{mgan_forward.23} parent=31 // pred_check
        %p317 = pneg %p316
      $region34: #{mgan_forward.23} parent=31 // pred_check_branch
        %319 = sbr.rel (%p317) target = $region36
      $region35: #{mgan_forward.23} parent=31 // pred_region
        %320 = vst [vmem:[#allocation2] sm:$0xff] 0.0
        %321 = vst [vmem:[#allocation2 + $0x8] sm:$0xff] 0.0
        %322 = vst [vmem:[#allocation2 + $0x10] sm:$0xff] 0.0
        %323 = vst [vmem:[#allocation2 + $0x18] sm:$0xff] 0.0
        %324 = vst [vmem:[#allocation2 + $0x20] sm:$0xff] 0.0
        %325 = vst [vmem:[#allocation2 + $0x28] sm:$0xff] 0.0
        %326 = vst [vmem:[#allocation2 + $0x30] sm:$0xff] 0.0
        %327 = vst [vmem:[#allocation2 + $0x38] sm:$0xff] 0.0
        %328 = vst [vmem:[#allocation2 + $0x40] sm:$0xff] 0.0
        %329 = vst [vmem:[#allocation2 + $0x48] sm:$0xff] 0.0
        %330 = vst [vmem:[#allocation2 + $0x50] sm:$0xff] 0.0
        %331 = vst [vmem:[#allocation2 + $0x58] sm:$0xff] 0.0
        %332 = vst [vmem:[#allocation2 + $0x60] sm:$0xff] 0.0
        %333 = vst [vmem:[#allocation2 + $0x68] sm:$0xff] 0.0
        %334 = vst [vmem:[#allocation2 + $0x70] sm:$0xff] 0.0
        %335 = vst [vmem:[#allocation2 + $0x78] sm:$0xff] 0.0
        %336 = vst [vmem:[#allocation2 + $0x80] sm:$0xff] 0.0
        %337 = vst [vmem:[#allocation2 + $0x88] sm:$0xff] 0.0
        %338 = vst [vmem:[#allocation2 + $0x90] sm:$0xff] 0.0
        %339 = vst [vmem:[#allocation2 + $0x98] sm:$0xff] 0.0
        %340 = vst [vmem:[#allocation2 + $0xa0] sm:$0xff] 0.0
        %341 = vst [vmem:[#allocation2 + $0xa8] sm:$0xff] 0.0
        %342 = vst [vmem:[#allocation2 + $0xb0] sm:$0xff] 0.0
        %343 = vst [vmem:[#allocation2 + $0xb8] sm:$0xff] 0.0
        %344 = vst [vmem:[#allocation2 + $0xc0] sm:$0xff] 0.0
        %345 = vst [vmem:[#allocation2 + $0xc8] sm:$0xff] 0.0
        %346 = vst [vmem:[#allocation2 + $0xd0] sm:$0xff] 0.0
        %347 = vst [vmem:[#allocation2 + $0xd8] sm:$0xff] 0.0
        %348 = vst [vmem:[#allocation2 + $0xe0] sm:$0xff] 0.0
        %349 = vst [vmem:[#allocation2 + $0xe8] sm:$0xff] 0.0
        %350 = vst [vmem:[#allocation2 + $0xf0] sm:$0xff] 0.0
        %351 = vst [vmem:[#allocation2 + $0xf8] sm:$0xff] 0.0
      $region36: #{mgan_forward.23} parent=31 // pred_fallthru
        _
      %v352 = vld [vmem:[%s281] sm:$0xf]
      %v353 = vld [vmem:[%s281 + $0x4] sm:$0xf]
      %v354 = vld [vmem:[%s281 + $0x8] sm:$0xf]
      %v355 = vld [vmem:[%s281 + $0xc] sm:$0xf]
      %v356 = vld [vmem:[%s281 + $0x10] sm:$0xf]
      %v357 = vld [vmem:[%s281 + $0x14] sm:$0xf]
      %v358 = vld [vmem:[%s281 + $0x18] sm:$0xf]
      %v359 = vld [vmem:[%s281 + $0x1c] sm:$0xf]
      %v360 = vld [vmem:[%s281 + $0x20] sm:$0xf]
      %v361 = vld [vmem:[%s281 + $0x24] sm:$0xf]
      %v362 = vld [vmem:[%s281 + $0x28] sm:$0xf]
      %v363 = vld [vmem:[%s281 + $0x2c] sm:$0xf]
      %v364 = vld [vmem:[%s281 + $0x30] sm:$0xf]
      %v365 = vld [vmem:[%s281 + $0x34] sm:$0xf]
      %v366 = vld [vmem:[%s281 + $0x38] sm:$0xf]
      %v367 = vld [vmem:[%s281 + $0x3c] sm:$0xf]
      %v368 = vld [vmem:[%s281 + $0x40] sm:$0xf]
      %v369 = vld [vmem:[%s281 + $0x44] sm:$0xf]
      %v370 = vld [vmem:[%s281 + $0x48] sm:$0xf]
      %v371 = vld [vmem:[%s281 + $0x4c] sm:$0xf]
      %v372 = vld [vmem:[%s281 + $0x50] sm:$0xf]
      %v373 = vld [vmem:[%s281 + $0x54] sm:$0xf]
      %v374 = vld [vmem:[%s281 + $0x58] sm:$0xf]
      %v375 = vld [vmem:[%s281 + $0x5c] sm:$0xf]
      %v376 = vld [vmem:[%s281 + $0x60] sm:$0xf]
      %v377 = vld [vmem:[%s281 + $0x64] sm:$0xf]
      %v378 = vld [vmem:[%s281 + $0x68] sm:$0xf]
      %v379 = vld [vmem:[%s281 + $0x6c] sm:$0xf]
      %v380 = vld [vmem:[%s281 + $0x70] sm:$0xf]
      %v381 = vld [vmem:[%s281 + $0x74] sm:$0xf]
      %v382 = vld [vmem:[%s281 + $0x78] sm:$0xf]
      %v383 = vld [vmem:[%s281 + $0x7c] sm:$0xf]
      %v384 = vmax.bf16 %v352, 0
      %v385 = vmax.bf16 %v353, 0
      %v386 = vmax.bf16 %v354, 0
      %v387 = vmax.bf16 %v355, 0
      %v388 = vmax.bf16 %v356, 0
      %v389 = vmax.bf16 %v357, 0
      %v390 = vmax.bf16 %v358, 0
      %v391 = vmax.bf16 %v359, 0
      %v392 = vmax.bf16 %v360, 0
      %v393 = vmax.bf16 %v361, 0
      %v394 = vmax.bf16 %v362, 0
      %v395 = vmax.bf16 %v363, 0
      %v396 = vmax.bf16 %v364, 0
      %v397 = vmax.bf16 %v365, 0
      %v398 = vmax.bf16 %v366, 0
      %v399 = vmax.bf16 %v367, 0
      %v400 = vmax.bf16 %v368, 0
      %v401 = vmax.bf16 %v369, 0
      %v402 = vmax.bf16 %v370, 0
      %v403 = vmax.bf16 %v371, 0
      %v404 = vmax.bf16 %v372, 0
      %v405 = vmax.bf16 %v373, 0
      %v406 = vmax.bf16 %v374, 0
      %v407 = vmax.bf16 %v375, 0
      %v408 = vmax.bf16 %v376, 0
      %v409 = vmax.bf16 %v377, 0
      %v410 = vmax.bf16 %v378, 0
      %v411 = vmax.bf16 %v379, 0
      %v412 = vmax.bf16 %v380, 0
      %v413 = vmax.bf16 %v381, 0
      %v414 = vmax.bf16 %v382, 0
      %v415 = vmax.bf16 %v383, 0
      %v416 = vld [vmem:[#allocation2] sm:$0xff]
      %v417 = vld [vmem:[#allocation2 + $0x8] sm:$0xff]
      %v418 = vld [vmem:[#allocation2 + $0x10] sm:$0xff]
      %v419 = vld [vmem:[#allocation2 + $0x18] sm:$0xff]
      %v420 = vld [vmem:[#allocation2 + $0x20] sm:$0xff]
      %v421 = vld [vmem:[#allocation2 + $0x28] sm:$0xff]
      %v422 = vld [vmem:[#allocation2 + $0x30] sm:$0xff]
      %v423 = vld [vmem:[#allocation2 + $0x38] sm:$0xff]
      %v424 = vld [vmem:[#allocation2 + $0x40] sm:$0xff]
      %v425 = vld [vmem:[#allocation2 + $0x48] sm:$0xff]
      %v426 = vld [vmem:[#allocation2 + $0x50] sm:$0xff]
      %v427 = vld [vmem:[#allocation2 + $0x58] sm:$0xff]
      %v428 = vld [vmem:[#allocation2 + $0x60] sm:$0xff]
      %v429 = vld [vmem:[#allocation2 + $0x68] sm:$0xff]
      %v430 = vld [vmem:[#allocation2 + $0x70] sm:$0xff]
      %v431 = vld [vmem:[#allocation2 + $0x78] sm:$0xff]
      %v432 = vld [vmem:[#allocation2 + $0x80] sm:$0xff]
      %v433 = vld [vmem:[#allocation2 + $0x88] sm:$0xff]
      %v434 = vld [vmem:[#allocation2 + $0x90] sm:$0xff]
      %v435 = vld [vmem:[#allocation2 + $0x98] sm:$0xff]
      %v436 = vld [vmem:[#allocation2 + $0xa0] sm:$0xff]
      %v437 = vld [vmem:[#allocation2 + $0xa8] sm:$0xff]
      %v438 = vld [vmem:[#allocation2 + $0xb0] sm:$0xff]
      %v439 = vld [vmem:[#allocation2 + $0xb8] sm:$0xff]
      %v440 = vld [vmem:[#allocation2 + $0xc0] sm:$0xff]
      %v441 = vld [vmem:[#allocation2 + $0xc8] sm:$0xff]
      %v442 = vld [vmem:[#allocation2 + $0xd0] sm:$0xff]
      %v443 = vld [vmem:[#allocation2 + $0xd8] sm:$0xff]
      %v444 = vld [vmem:[#allocation2 + $0xe0] sm:$0xff]
      %v445 = vld [vmem:[#allocation2 + $0xe8] sm:$0xff]
      %v446 = vld [vmem:[#allocation2 + $0xf0] sm:$0xff]
      %v447 = vld [vmem:[#allocation2 + $0xf8] sm:$0xff]
      %v448 = vld [vmem:[%s294] sm:$0xf]
      %v449 = vld [vmem:[%s294 + $0x4] sm:$0xf]
      %v450 = vld [vmem:[%s294 + $0x8] sm:$0xf]
      %v451 = vld [vmem:[%s294 + $0xc] sm:$0xf]
      %v452 = vld [vmem:[%s294 + $0x10] sm:$0xf]
      %v453 = vld [vmem:[%s294 + $0x14] sm:$0xf]
      %v454 = vld [vmem:[%s294 + $0x18] sm:$0xf]
      %v455 = vld [vmem:[%s294 + $0x1c] sm:$0xf]
      %v456 = vld [vmem:[%s294 + $0x20] sm:$0xf]
      %v457 = vld [vmem:[%s294 + $0x24] sm:$0xf]
      %v458 = vld [vmem:[%s294 + $0x28] sm:$0xf]
      %v459 = vld [vmem:[%s294 + $0x2c] sm:$0xf]
      %v460 = vld [vmem:[%s294 + $0x30] sm:$0xf]
      %v461 = vld [vmem:[%s294 + $0x34] sm:$0xf]
      %v462 = vld [vmem:[%s294 + $0x38] sm:$0xf]
      %v463 = vld [vmem:[%s294 + $0x3c] sm:$0xf]
      %v496 = vunpack.c.l.b16 %v384
      %v497 = vunpack.c.l.b16 %v385
      %v498 = vunpack.c.l.b16 %v386
      %v499 = vunpack.c.l.b16 %v387
      %v500 = vunpack.c.l.b16 %v388
      %v501 = vunpack.c.l.b16 %v389
      %v502 = vunpack.c.l.b16 %v390
      %v503 = vunpack.c.l.b16 %v391
      %v504 = vunpack.c.l.b16 %v392
      %v505 = vunpack.c.l.b16 %v393
      %v506 = vunpack.c.l.b16 %v394
      %v507 = vunpack.c.l.b16 %v395
      %v508 = vunpack.c.l.b16 %v396
      %v509 = vunpack.c.l.b16 %v397
      %v510 = vunpack.c.l.b16 %v398
      %v511 = vunpack.c.l.b16 %v399
      %v512 = vunpack.c.l.b16 %v400
      %v513 = vunpack.c.l.b16 %v401
      %v514 = vunpack.c.l.b16 %v402
      %v515 = vunpack.c.l.b16 %v403
      %v516 = vunpack.c.l.b16 %v404
      %v517 = vunpack.c.l.b16 %v405
      %v518 = vunpack.c.l.b16 %v406
      %v519 = vunpack.c.l.b16 %v407
      %v520 = vunpack.c.l.b16 %v408
      %v521 = vunpack.c.l.b16 %v409
      %v522 = vunpack.c.l.b16 %v410
      %v523 = vunpack.c.l.b16 %v411
      %v524 = vunpack.c.l.b16 %v412
      %v525 = vunpack.c.l.b16 %v413
      %v526 = vunpack.c.l.b16 %v414
      %v527 = vunpack.c.l.b16 %v415
      %v528 = vpack.c.b16 %v497, %v496
      %v529 = vpack.c.b16 %v499, %v498
      %v530 = vpack.c.b16 %v501, %v500
      %v531 = vpack.c.b16 %v503, %v502
      %v532 = vpack.c.b16 %v505, %v504
      %v533 = vpack.c.b16 %v507, %v506
      %v534 = vpack.c.b16 %v509, %v508
      %v535 = vpack.c.b16 %v511, %v510
      %v536 = vpack.c.b16 %v513, %v512
      %v537 = vpack.c.b16 %v515, %v514
      %v538 = vpack.c.b16 %v517, %v516
      %v539 = vpack.c.b16 %v519, %v518
      %v540 = vpack.c.b16 %v521, %v520
      %v541 = vpack.c.b16 %v523, %v522
      %v542 = vpack.c.b16 %v525, %v524
      %v543 = vpack.c.b16 %v527, %v526
      %v576 = vunpack.c.l.b16 %v448
      %v577 = vunpack.c.l.b16 %v449
      %v578 = vunpack.c.l.b16 %v450
      %v579 = vunpack.c.l.b16 %v451
      %v580 = vunpack.c.l.b16 %v452
      %v581 = vunpack.c.l.b16 %v453
      %v582 = vunpack.c.l.b16 %v454
      %v583 = vunpack.c.l.b16 %v455
      %v584 = vunpack.c.l.b16 %v456
      %v585 = vunpack.c.l.b16 %v457
      %v586 = vunpack.c.l.b16 %v458
      %v587 = vunpack.c.l.b16 %v459
      %v588 = vunpack.c.l.b16 %v460
      %v589 = vunpack.c.l.b16 %v461
      %v590 = vunpack.c.l.b16 %v462
      %v591 = vunpack.c.l.b16 %v463
      %v592 = vpack.c.b16 %v577, %v576
      %v593 = vpack.c.b16 %v579, %v578
      %v594 = vpack.c.b16 %v581, %v580
      %v595 = vpack.c.b16 %v583, %v582
      %v596 = vpack.c.b16 %v585, %v584
      %v597 = vpack.c.b16 %v587, %v586
      %v598 = vpack.c.b16 %v589, %v588
      %v599 = vpack.c.b16 %v591, %v590
      %608 = vmatprep.subr.bf16.mxu0 0
      %609 = vmatpush1.bf16.msra.mxu0 %v599
      %610 = vmatprep.subr.bf16.mxu0 0
      %611 = vmatpush1.bf16.msra.mxu0 %v598
      %612 = vmatprep.subr.bf16.mxu0 0
      %613 = vmatpush1.bf16.msra.mxu0 %v597
      %614 = vmatprep.subr.bf16.mxu0 0
      %615 = vmatpush1.bf16.msra.mxu0 %v596
      %616 = vmatprep.subr.bf16.mxu0 0
      %617 = vmatpush1.bf16.msra.mxu0 %v595
      %618 = vmatprep.subr.bf16.mxu0 0
      %619 = vmatpush1.bf16.msra.mxu0 %v594
      %620 = vmatprep.subr.bf16.mxu0 0
      %621 = vmatpush1.bf16.msra.mxu0 %v593
      %622 = vmatprep.subr.bf16.mxu0 0
      %623 = vmatpush1.bf16.msra.mxu0 %v592
      %624 = vmatprep.subr.bf16.mxu0 0
      %625 = vmatpush2.bf16.msra.mxu0 0
      %626 = vmatprep.subr.bf16.mxu0 0
      %627 = vmatpush2.bf16.msra.mxu0 0
      %628 = vmatprep.subr.bf16.mxu0 0
      %629 = vmatpush2.bf16.msra.mxu0 0
      %630 = vmatprep.subr.bf16.mxu0 0
      %631 = vmatpush2.bf16.msra.mxu0 0
      %632 = vmatprep.subr.bf16.mxu0 0
      %633 = vmatpush2.bf16.msra.mxu0 0
      %634 = vmatprep.subr.bf16.mxu0 0
      %635 = vmatpush2.bf16.msra.mxu0 0
      %636 = vmatprep.subr.bf16.mxu0 0
      %637 = vmatpush2.bf16.msra.mxu0 0
      %638 = vmatprep.subr.bf16.mxu0 0
      %639 = vmatpush2.bf16.msra.mxu0 0
      %640 = vmatprep.mubr.bf16.mxu0 0
      %641 = vmatmul.mubr.bf16.gmra.mxu0 %v528
      %v642 = vpop.f32.mrf.mxu0
      %v643 = vadd.f32 0.0, %v642
      %v644 = vpop.f32.mrf.mxu0
      %v645 = vpop.f32.mrf.mxu0
      %v646 = vadd.f32 0.0, %v645
      %v647 = vpop.f32.mrf.mxu0
      %648 = vmatprep.mubr.bf16.mxu0 0
      %649 = vmatmul.mubr.bf16.gmra.mxu0 %v529
      %v650 = vpop.f32.mrf.mxu0
      %v651 = vadd.f32 0.0, %v650
      %v652 = vpop.f32.mrf.mxu0
      %v653 = vpop.f32.mrf.mxu0
      %v654 = vadd.f32 0.0, %v653
      %v655 = vpop.f32.mrf.mxu0
      %656 = vmatprep.mubr.bf16.mxu0 0
      %657 = vmatmul.mubr.bf16.gmra.mxu0 %v530
      %v658 = vpop.f32.mrf.mxu0
      %v659 = vadd.f32 0.0, %v658
      %v660 = vpop.f32.mrf.mxu0
      %v661 = vpop.f32.mrf.mxu0
      %v662 = vadd.f32 0.0, %v661
      %v663 = vpop.f32.mrf.mxu0
      %664 = vmatprep.mubr.bf16.mxu0 0
      %665 = vmatmul.mubr.bf16.gmra.mxu0 %v531
      %v666 = vpop.f32.mrf.mxu0
      %v667 = vadd.f32 0.0, %v666
      %v668 = vpop.f32.mrf.mxu0
      %v669 = vpop.f32.mrf.mxu0
      %v670 = vadd.f32 0.0, %v669
      %v671 = vpop.f32.mrf.mxu0
      %672 = vmatprep.mubr.bf16.mxu0 0
      %673 = vmatmul.mubr.bf16.gmra.mxu0 %v532
      %v674 = vpop.f32.mrf.mxu0
      %v675 = vadd.f32 0.0, %v674
      %v676 = vpop.f32.mrf.mxu0
      %v677 = vpop.f32.mrf.mxu0
      %v678 = vadd.f32 0.0, %v677
      %v679 = vpop.f32.mrf.mxu0
      %680 = vmatprep.mubr.bf16.mxu0 0
      %681 = vmatmul.mubr.bf16.gmra.mxu0 %v533
      %v682 = vpop.f32.mrf.mxu0
      %v683 = vadd.f32 0.0, %v682
      %v684 = vpop.f32.mrf.mxu0
      %v685 = vpop.f32.mrf.mxu0
      %v686 = vadd.f32 0.0, %v685
      %v687 = vpop.f32.mrf.mxu0
      %688 = vmatprep.mubr.bf16.mxu0 0
      %689 = vmatmul.mubr.bf16.gmra.mxu0 %v534
      %v690 = vpop.f32.mrf.mxu0
      %v691 = vadd.f32 0.0, %v690
      %v692 = vpop.f32.mrf.mxu0
      %v693 = vpop.f32.mrf.mxu0
      %v694 = vadd.f32 0.0, %v693
      %v695 = vpop.f32.mrf.mxu0
      %696 = vmatprep.mubr.bf16.mxu0 0
      %697 = vmatmul.mubr.bf16.gmra.mxu0 %v535
      %v698 = vpop.f32.mrf.mxu0
      %v699 = vadd.f32 0.0, %v698
      %v700 = vpop.f32.mrf.mxu0
      %v701 = vpop.f32.mrf.mxu0
      %v702 = vadd.f32 0.0, %v701
      %v703 = vpop.f32.mrf.mxu0
      %704 = vmatprep.mubr.bf16.mxu0 0
      %705 = vmatmul.mubr.bf16.gmra.mxu0 %v536
      %v706 = vpop.f32.mrf.mxu0
      %v707 = vadd.f32 0.0, %v706
      %v708 = vpop.f32.mrf.mxu0
      %v709 = vpop.f32.mrf.mxu0
      %v710 = vadd.f32 0.0, %v709
      %v711 = vpop.f32.mrf.mxu0
      %712 = vmatprep.mubr.bf16.mxu0 0
      %713 = vmatmul.mubr.bf16.gmra.mxu0 %v537
      %v714 = vpop.f32.mrf.mxu0
      %v715 = vadd.f32 0.0, %v714
      %v716 = vpop.f32.mrf.mxu0
      %v717 = vpop.f32.mrf.mxu0
      %v718 = vadd.f32 0.0, %v717
      %v719 = vpop.f32.mrf.mxu0
      %720 = vmatprep.mubr.bf16.mxu0 0
      %721 = vmatmul.mubr.bf16.gmra.mxu0 %v538
      %v722 = vpop.f32.mrf.mxu0
      %v723 = vadd.f32 0.0, %v722
      %v724 = vpop.f32.mrf.mxu0
      %v725 = vpop.f32.mrf.mxu0
      %v726 = vadd.f32 0.0, %v725
      %v727 = vpop.f32.mrf.mxu0
      %728 = vmatprep.mubr.bf16.mxu0 0
      %729 = vmatmul.mubr.bf16.gmra.mxu0 %v539
      %v730 = vpop.f32.mrf.mxu0
      %v731 = vadd.f32 0.0, %v730
      %v732 = vpop.f32.mrf.mxu0
      %v733 = vpop.f32.mrf.mxu0
      %v734 = vadd.f32 0.0, %v733
      %v735 = vpop.f32.mrf.mxu0
      %736 = vmatprep.mubr.bf16.mxu0 0
      %737 = vmatmul.mubr.bf16.gmra.mxu0 %v540
      %v738 = vpop.f32.mrf.mxu0
      %v739 = vadd.f32 0.0, %v738
      %v740 = vpop.f32.mrf.mxu0
      %v741 = vpop.f32.mrf.mxu0
      %v742 = vadd.f32 0.0, %v741
      %v743 = vpop.f32.mrf.mxu0
      %744 = vmatprep.mubr.bf16.mxu0 0
      %745 = vmatmul.mubr.bf16.gmra.mxu0 %v541
      %v746 = vpop.f32.mrf.mxu0
      %v747 = vadd.f32 0.0, %v746
      %v748 = vpop.f32.mrf.mxu0
      %v749 = vpop.f32.mrf.mxu0
      %v750 = vadd.f32 0.0, %v749
      %v751 = vpop.f32.mrf.mxu0
      %752 = vmatprep.mubr.bf16.mxu0 0
      %753 = vmatmul.mubr.bf16.gmra.mxu0 %v542
      %v754 = vpop.f32.mrf.mxu0
      %v755 = vadd.f32 0.0, %v754
      %v756 = vpop.f32.mrf.mxu0
      %v757 = vpop.f32.mrf.mxu0
      %v758 = vadd.f32 0.0, %v757
      %v759 = vpop.f32.mrf.mxu0
      %760 = vmatprep.mubr.bf16.mxu0 0
      %761 = vmatmul.mubr.bf16.gmra.mxu0 %v543
      %v762 = vpop.f32.mrf.mxu0
      %v763 = vadd.f32 0.0, %v762
      %v764 = vpop.f32.mrf.mxu0
      %v765 = vpop.f32.mrf.mxu0
      %v766 = vadd.f32 0.0, %v765
      %v767 = vpop.f32.mrf.mxu0
      %768 = vdwg.mxu0
      %v769 = vadd.f32 %v416, %v643
      %v770 = vadd.f32 %v417, %v646
      %v771 = vadd.f32 %v418, %v651
      %v772 = vadd.f32 %v419, %v654
      %v773 = vadd.f32 %v420, %v659
      %v774 = vadd.f32 %v421, %v662
      %v775 = vadd.f32 %v422, %v667
      %v776 = vadd.f32 %v423, %v670
      %v777 = vadd.f32 %v424, %v675
      %v778 = vadd.f32 %v425, %v678
      %v779 = vadd.f32 %v426, %v683
      %v780 = vadd.f32 %v427, %v686
      %v781 = vadd.f32 %v428, %v691
      %v782 = vadd.f32 %v429, %v694
      %v783 = vadd.f32 %v430, %v699
      %v784 = vadd.f32 %v431, %v702
      %v785 = vadd.f32 %v432, %v707
      %v786 = vadd.f32 %v433, %v710
      %v787 = vadd.f32 %v434, %v715
      %v788 = vadd.f32 %v435, %v718
      %v789 = vadd.f32 %v436, %v723
      %v790 = vadd.f32 %v437, %v726
      %v791 = vadd.f32 %v438, %v731
      %v792 = vadd.f32 %v439, %v734
      %v793 = vadd.f32 %v440, %v739
      %v794 = vadd.f32 %v441, %v742
      %v795 = vadd.f32 %v442, %v747
      %v796 = vadd.f32 %v443, %v750
      %v797 = vadd.f32 %v444, %v755
      %v798 = vadd.f32 %v445, %v758
      %v799 = vadd.f32 %v446, %v763
      %v800 = vadd.f32 %v447, %v766
      %801 = vst [vmem:[#allocation2] sm:$0xff] %v769
      %802 = vst [vmem:[#allocation2 + $0x8] sm:$0xff] %v770
      %803 = vst [vmem:[#allocation2 + $0x10] sm:$0xff] %v771
      %804 = vst [vmem:[#allocation2 + $0x18] sm:$0xff] %v772
      %805 = vst [vmem:[#allocation2 + $0x20] sm:$0xff] %v773
      %806 = vst [vmem:[#allocation2 + $0x28] sm:$0xff] %v774
      %807 = vst [vmem:[#allocation2 + $0x30] sm:$0xff] %v775
      %808 = vst [vmem:[#allocation2 + $0x38] sm:$0xff] %v776
      %809 = vst [vmem:[#allocation2 + $0x40] sm:$0xff] %v777
      %810 = vst [vmem:[#allocation2 + $0x48] sm:$0xff] %v778
      %811 = vst [vmem:[#allocation2 + $0x50] sm:$0xff] %v779
      %812 = vst [vmem:[#allocation2 + $0x58] sm:$0xff] %v780
      %813 = vst [vmem:[#allocation2 + $0x60] sm:$0xff] %v781
      %814 = vst [vmem:[#allocation2 + $0x68] sm:$0xff] %v782
      %815 = vst [vmem:[#allocation2 + $0x70] sm:$0xff] %v783
      %816 = vst [vmem:[#allocation2 + $0x78] sm:$0xff] %v784
      %817 = vst [vmem:[#allocation2 + $0x80] sm:$0xff] %v785
      %818 = vst [vmem:[#allocation2 + $0x88] sm:$0xff] %v786
      %819 = vst [vmem:[#allocation2 + $0x90] sm:$0xff] %v787
      %820 = vst [vmem:[#allocation2 + $0x98] sm:$0xff] %v788
      %821 = vst [vmem:[#allocation2 + $0xa0] sm:$0xff] %v789
      %822 = vst [vmem:[#allocation2 + $0xa8] sm:$0xff] %v790
      %823 = vst [vmem:[#allocation2 + $0xb0] sm:$0xff] %v791
      %824 = vst [vmem:[#allocation2 + $0xb8] sm:$0xff] %v792
      %825 = vst [vmem:[#allocation2 + $0xc0] sm:$0xff] %v793
      %826 = vst [vmem:[#allocation2 + $0xc8] sm:$0xff] %v794
      %827 = vst [vmem:[#allocation2 + $0xd0] sm:$0xff] %v795
      %828 = vst [vmem:[#allocation2 + $0xd8] sm:$0xff] %v796
      %829 = vst [vmem:[#allocation2 + $0xe0] sm:$0xff] %v797
      %830 = vst [vmem:[#allocation2 + $0xe8] sm:$0xff] %v798
      %831 = vst [vmem:[#allocation2 + $0xf0] sm:$0xff] %v799
      %832 = vst [vmem:[#allocation2 + $0xf8] sm:$0xff] %v800
      // Predicated region
      $region37: #{mgan_forward.23} parent=31 // pred_check
        %p833 = pneg %p316
      $region38: #{mgan_forward.23} parent=31 // pred_check_branch
        %835 = sbr.rel (%p833) target = $region40
      $region39: #{mgan_forward.23} parent=31 // pred_region
        %v836 = vld [vmem:[#allocation2] sm:$0xff]
        %v837 = vld [vmem:[#allocation2 + $0x8] sm:$0xff]
        %v838 = vld [vmem:[#allocation2 + $0x10] sm:$0xff]
        %v839 = vld [vmem:[#allocation2 + $0x18] sm:$0xff]
        %v840 = vld [vmem:[#allocation2 + $0x20] sm:$0xff]
        %v841 = vld [vmem:[#allocation2 + $0x28] sm:$0xff]
        %v842 = vld [vmem:[#allocation2 + $0x30] sm:$0xff]
        %v843 = vld [vmem:[#allocation2 + $0x38] sm:$0xff]
        %v844 = vld [vmem:[#allocation2 + $0x40] sm:$0xff]
        %v845 = vld [vmem:[#allocation2 + $0x48] sm:$0xff]
        %v846 = vld [vmem:[#allocation2 + $0x50] sm:$0xff]
        %v847 = vld [vmem:[#allocation2 + $0x58] sm:$0xff]
        %v848 = vld [vmem:[#allocation2 + $0x60] sm:$0xff]
        %v849 = vld [vmem:[#allocation2 + $0x68] sm:$0xff]
        %v850 = vld [vmem:[#allocation2 + $0x70] sm:$0xff]
        %v851 = vld [vmem:[#allocation2 + $0x78] sm:$0xff]
        %v852 = vld [vmem:[#allocation2 + $0x80] sm:$0xff]
        %v853 = vld [vmem:[#allocation2 + $0x88] sm:$0xff]
        %v854 = vld [vmem:[#allocation2 + $0x90] sm:$0xff]
        %v855 = vld [vmem:[#allocation2 + $0x98] sm:$0xff]
        %v856 = vld [vmem:[#allocation2 + $0xa0] sm:$0xff]
        %v857 = vld [vmem:[#allocation2 + $0xa8] sm:$0xff]
        %v858 = vld [vmem:[#allocation2 + $0xb0] sm:$0xff]
        %v859 = vld [vmem:[#allocation2 + $0xb8] sm:$0xff]
        %v860 = vld [vmem:[#allocation2 + $0xc0] sm:$0xff]
        %v861 = vld [vmem:[#allocation2 + $0xc8] sm:$0xff]
        %v862 = vld [vmem:[#allocation2 + $0xd0] sm:$0xff]
        %v863 = vld [vmem:[#allocation2 + $0xd8] sm:$0xff]
        %v864 = vld [vmem:[#allocation2 + $0xe0] sm:$0xff]
        %v865 = vld [vmem:[#allocation2 + $0xe8] sm:$0xff]
        %v866 = vld [vmem:[#allocation2 + $0xf0] sm:$0xff]
        %v867 = vld [vmem:[#allocation2 + $0xf8] sm:$0xff]
        %v868 = vld [vmem:[%s301] sm:$0x1]
        %v870 = vlaneseq
        %v871 = vshrl.u32 %v870, 7
        %v872 = vsub.s32 0, %v871
        %v873 = vrot.slane %v868, %v872
        %v875 = vadd.f32 %v836, %v873
        %v876 = vadd.f32 %v837, %v873
        %v877 = vadd.f32 %v838, %v873
        %v878 = vadd.f32 %v839, %v873
        %v879 = vadd.f32 %v840, %v873
        %v880 = vadd.f32 %v841, %v873
        %v881 = vadd.f32 %v842, %v873
        %v882 = vadd.f32 %v843, %v873
        %v883 = vadd.f32 %v844, %v873
        %v884 = vadd.f32 %v845, %v873
        %v885 = vadd.f32 %v846, %v873
        %v886 = vadd.f32 %v847, %v873
        %v887 = vadd.f32 %v848, %v873
        %v888 = vadd.f32 %v849, %v873
        %v889 = vadd.f32 %v850, %v873
        %v890 = vadd.f32 %v851, %v873
        %v891 = vadd.f32 %v852, %v873
        %v892 = vadd.f32 %v853, %v873
        %v893 = vadd.f32 %v854, %v873
        %v894 = vadd.f32 %v855, %v873
        %v895 = vadd.f32 %v856, %v873
        %v896 = vadd.f32 %v857, %v873
        %v897 = vadd.f32 %v858, %v873
        %v898 = vadd.f32 %v859, %v873
        %v899 = vadd.f32 %v860, %v873
        %v900 = vadd.f32 %v861, %v873
        %v901 = vadd.f32 %v862, %v873
        %v902 = vadd.f32 %v863, %v873
        %v903 = vadd.f32 %v864, %v873
        %v904 = vadd.f32 %v865, %v873
        %v905 = vadd.f32 %v866, %v873
        %v906 = vadd.f32 %v867, %v873
        %v907 = vtanh.pop %v875
        %v908 = vtanh.pop %v876
        %v909 = vtanh.pop %v877
        %v910 = vtanh.pop %v878
        %v911 = vtanh.pop %v879
        %v912 = vtanh.pop %v880
        %v913 = vtanh.pop %v881
        %v914 = vtanh.pop %v882
        %v915 = vtanh.pop %v883
        %v916 = vtanh.pop %v884
        %v917 = vtanh.pop %v885
        %v918 = vtanh.pop %v886
        %v919 = vtanh.pop %v887
        %v920 = vtanh.pop %v888
        %v921 = vtanh.pop %v889
        %v922 = vtanh.pop %v890
        %v923 = vtanh.pop %v891
        %v924 = vtanh.pop %v892
        %v925 = vtanh.pop %v893
        %v926 = vtanh.pop %v894
        %v927 = vtanh.pop %v895
        %v928 = vtanh.pop %v896
        %v929 = vtanh.pop %v897
        %v930 = vtanh.pop %v898
        %v931 = vtanh.pop %v899
        %v932 = vtanh.pop %v900
        %v933 = vtanh.pop %v901
        %v934 = vtanh.pop %v902
        %v935 = vtanh.pop %v903
        %v936 = vtanh.pop %v904
        %v937 = vtanh.pop %v905
        %v938 = vtanh.pop %v906
        %939 = vst [vmem:[%s313] sm:$0xff] %v907
        %940 = vst [vmem:[%s313 + $0x8] sm:$0xff] %v908
        %941 = vst [vmem:[%s313 + $0x10] sm:$0xff] %v909
        %942 = vst [vmem:[%s313 + $0x18] sm:$0xff] %v910
        %943 = vst [vmem:[%s313 + $0x20] sm:$0xff] %v911
        %944 = vst [vmem:[%s313 + $0x28] sm:$0xff] %v912
        %945 = vst [vmem:[%s313 + $0x30] sm:$0xff] %v913
        %946 = vst [vmem:[%s313 + $0x38] sm:$0xff] %v914
        %947 = vst [vmem:[%s313 + $0x40] sm:$0xff] %v915
        %948 = vst [vmem:[%s313 + $0x48] sm:$0xff] %v916
        %949 = vst [vmem:[%s313 + $0x50] sm:$0xff] %v917
        %950 = vst [vmem:[%s313 + $0x58] sm:$0xff] %v918
        %951 = vst [vmem:[%s313 + $0x60] sm:$0xff] %v919
        %952 = vst [vmem:[%s313 + $0x68] sm:$0xff] %v920
        %953 = vst [vmem:[%s313 + $0x70] sm:$0xff] %v921
        %954 = vst [vmem:[%s313 + $0x78] sm:$0xff] %v922
        %955 = vst [vmem:[%s313 + $0x80] sm:$0xff] %v923
        %956 = vst [vmem:[%s313 + $0x88] sm:$0xff] %v924
        %957 = vst [vmem:[%s313 + $0x90] sm:$0xff] %v925
        %958 = vst [vmem:[%s313 + $0x98] sm:$0xff] %v926
        %959 = vst [vmem:[%s313 + $0xa0] sm:$0xff] %v927
        %960 = vst [vmem:[%s313 + $0xa8] sm:$0xff] %v928
        %961 = vst [vmem:[%s313 + $0xb0] sm:$0xff] %v929
        %962 = vst [vmem:[%s313 + $0xb8] sm:$0xff] %v930
        %963 = vst [vmem:[%s313 + $0xc0] sm:$0xff] %v931
        %964 = vst [vmem:[%s313 + $0xc8] sm:$0xff] %v932
        %965 = vst [vmem:[%s313 + $0xd0] sm:$0xff] %v933
        %966 = vst [vmem:[%s313 + $0xd8] sm:$0xff] %v934
        %967 = vst [vmem:[%s313 + $0xe0] sm:$0xff] %v935
        %968 = vst [vmem:[%s313 + $0xe8] sm:$0xff] %v936
        %969 = vst [vmem:[%s313 + $0xf0] sm:$0xff] %v937
        %970 = vst [vmem:[%s313 + $0xf8] sm:$0xff] %v938
      $region40: #{mgan_forward.23} parent=31 // pred_fallthru
        _
      %s971 = smul.u32 32, %s21
      %p972 = scmp.lt.s32.totalorder %s20, 3
      %s973 = scalar_select %p972, %s20, 3
      %p974 = scmp.lt.s32.totalorder %s971, 63
      %s975 = scalar_select %p974, %s971, 63
      %p976 = scmp.lt.s32.totalorder %s22, 0
      %s977 = scalar_select %p976, %s22, 0
      %s978 = sadd.s32 %s977, %s975
      %s979 = smul.addr %s973, 64
      %s980 = sadd.s32 %s978, %s979
      %s981 = smul.addr %s980, 8
      %s982 = scalar_lea.vmem %s3, %s981
      // Predicated region
      $region41: #{mgan_forward.23} parent=31 // pred_check
        %p983 = pneg %p150
      $region42: #{mgan_forward.23} parent=31 // pred_check_branch
        %985 = sbr.rel (%p983) target = $region44
      $region43: #{mgan_forward.23} parent=31 // pred_region
        %s986 = smul.u32 32, %s21
      $region44: #{mgan_forward.23} parent=31 // pred_fallthru
        _
    $region32: #{mgan_forward.23} parent=5 // pred_fallthru
      _
    %p987 = scmp.le.s32.totalorder 2, %s9
    // Predicated region
    $region45: #{mgan_forward.23} parent=5 // pred_check
      %p988 = pneg %p987
    $region46: #{mgan_forward.23} parent=5 // pred_check_branch
      %990 = sbr.rel (%p988) target = $region48
    $region47: #{mgan_forward.23} parent=5 // pred_region
      %s991 = ssub.s32 %s9, 2
      // Predicated region
      $region49: #{mgan_forward.23} parent=47 // pred_check
        %p992 = pneg %p156
      $region50: #{mgan_forward.23} parent=47 // pred_check_branch
        %994 = sbr.rel (%p992) target = $region52
      $region51: #{mgan_forward.23} parent=47 // pred_region
        %s995 = smul.u32 32, %s25
        %p996 = scmp.lt.s32.totalorder %s24, 3
        %s997 = scalar_select %p996, %s24, 3
        %p998 = scmp.lt.s32.totalorder %s995, 63
        %s999 = scalar_select %p998, %s995, 63
        %p1000 = scmp.lt.s32.totalorder %s26, 0
        %s1001 = scalar_select %p1000, %s26, 0
        %s1002 = sadd.s32 %s1001, %s999
        %s1003 = smul.addr %s997, 64
        %s1004 = sadd.s32 %s1002, %s1003
        %s1005 = smul.addr %s1004, 8
        %s1006 = scalar_lea.vmem %s3, %s1005
      $region52: #{mgan_forward.23} parent=47 // pred_fallthru
        _
    $region48: #{mgan_forward.23} parent=5 // pred_fallthru
      _
  $region6: #{mgan_forward.23} parent=0 // loop_footer
    %s13 = sadd.s32 1, %s9
  $region7: #{mgan_forward.23} parent=0 // loop_footer_branch
    %8 = sbr.rel target = $region3
  $region8: #{mgan_forward.23} parent=0 // loop_exit
    _

</llo_original>
